<compile_context>
chip_gen: v7x
topology: tpu7x:2x2x1
jax: 0.10.0
libtpu: 0.0.40
codegen_flags: <defaults>
</compile_context>

<pallas_src>
import math

import jax
import jax.numpy as jnp
from jax.experimental import pallas as pl
from jax.experimental.pallas import tpu as pltpu


# --------------------------- Pallas LSTM kernel ------------------------------
def _bilstm_chunk_kernel(gx_ref, whh_ref, out_f_ref, out_b_ref,
                         hf_sc, hb_sc, cf_sc, cb_sc):
    """One (batch-block, time-chunk) grid step of a bidirectional LSTM layer.

    gx_ref : (Tc, Bc, 8H) bf16. Precomputed input projection + bias for BOTH
             directions; [..., :4H] forward (original time order),
             [..., 4H:] backward (time-reversed), so a single ascending local
             index walks both recurrences.
    whh_ref: (2H, 8H) bf16.  blockdiag(W_hh_fwd, W_hh_bwd).
    out_f_ref / out_b_ref: (Tc, Bc, H) f32 hidden states per direction.
             out_b's BlockSpec index_map runs the time chunks in reverse, and
             the kernel writes local index Tc-1-i, so out_b lands in ORIGINAL
             time order.
    hf/hb/cf/cb scratch: (Bc, H) f32 carries.  Valid because the grid iterates
             lexicographically (batch-block outer, time inner) and the time
             axis is "arbitrary": each batch block sees a complete t sweep and
             the carry is reset at t == 0.
    """
    t = pl.program_id(1)
    Tc = gx_ref.shape[0]
    H = out_f_ref.shape[-1]

    @pl.when(t == 0)
    def _():
        hf_sc[...] = jnp.zeros_like(hf_sc)
        hb_sc[...] = jnp.zeros_like(hb_sc)
        cf_sc[...] = jnp.zeros_like(cf_sc)
        cb_sc[...] = jnp.zeros_like(cb_sc)

    whh = whh_ref[...]                         # (2H, 8H) bf16, hoisted
    h_f, h_b = hf_sc[...], hb_sc[...]
    c_f, c_b = cf_sc[...], cb_sc[...]

    def _sig(v):  # sigmoid via tanh: one EUP push instead of exp + reciprocal
        return 0.5 * jnp.tanh(0.5 * v) + 0.5

    # Static, fully-unrolled time loop (Tc is small; for large Tc switch to
    # lax.fori_loop with a partial unroll to bound vreg pressure).
    for i in range(Tc):
        gx = gx_ref[i].astype(jnp.float32)                     # (Bc, 8H)
        hh = jnp.concatenate([h_f, h_b], axis=-1).astype(jnp.bfloat16)
        gates = gx + jnp.dot(hh, whh, preferred_element_type=jnp.float32)
        # PyTorch LSTM gate order per direction: i, f, g, o
        i_f = _sig(gates[:, 0 * H:1 * H])
        f_f = _sig(gates[:, 1 * H:2 * H])
        g_f = jnp.tanh(gates[:, 2 * H:3 * H])
        o_f = _sig(gates[:, 3 * H:4 * H])
        i_b = _sig(gates[:, 4 * H:5 * H])
        f_b = _sig(gates[:, 5 * H:6 * H])
        g_b = jnp.tanh(gates[:, 6 * H:7 * H])
        o_b = _sig(gates[:, 7 * H:8 * H])
        c_f = f_f * c_f + i_f * g_f
        c_b = f_b * c_b + i_b * g_b
        h_f = o_f * jnp.tanh(c_f)
        h_b = o_b * jnp.tanh(c_b)
        out_f_ref[i] = h_f.astype(out_f_ref.dtype)             # original time
        out_b_ref[Tc - 1 - i] = h_b.astype(out_b_ref.dtype)    # reversed local

    hf_sc[...] = h_f
    hb_sc[...] = h_b
    cf_sc[...] = c_f
    cb_sc[...] = c_b


def _project(parts, w, bias):
    """sum_i parts[i] @ w[rows_i] + bias, where concat(parts, -1) is the layer
    input.  Avoids materializing the concatenated (L, Bl, 2H) stream."""
    off, acc = 0, None
    for part in parts:
        f = part.shape[-1]
        term = jnp.einsum('lbf,fg->lbg', part, w[off:off + f])
        acc = term if acc is None else acc + term
        off += f
    return acc + bias


def bilstm_layer_pallas(parts, wih_t, whh_t, b, hidden, t_chunk, b_chunk):
    """One bidirectional LSTM layer.  parts: tuple of time-major (L, Bl, f_i)
    slabs whose concat is the layer input.  Returns (y_fwd, y_bwd), each
    (L, Bl, H) in original time order (torch concat order is [fwd, bwd])."""
    L, Bl = parts[0].shape[0], parts[0].shape[1]
    H = hidden
    # TODO(synk): pad H to a multiple of 128 (zero weights keep padded units at
    # exactly zero) instead of asserting.
    assert H % 128 == 0, "hidden size must be a multiple of 128 (lane alignment)"
    t_chunk = min(t_chunk, L)
    assert L % t_chunk == 0, "sequence length must be divisible by time chunk"
    nc = L // t_chunk
    b_chunk = min(b_chunk, Bl)
    assert Bl % b_chunk == 0 and (b_chunk % 8 == 0 or b_chunk == Bl)
    nb = Bl // b_chunk

    # Hoisted input projection for both directions (big MXU matmuls), bias
    # folded in.  Backward half is time-reversed so the kernel walks both
    # recurrences with one ascending local index.  Streamed to the kernel in
    # bf16 (dominant HBM stream; halves DMA bytes and VMEM buffers).
    gx_f = _project(parts, wih_t[0], b[0])                      # (L, Bl, 4H)
    gx_b = _project(parts, wih_t[1], b[1])
    gx = jnp.concatenate([gx_f, gx_b[::-1]], axis=-1).astype(jnp.bfloat16)

    # Block-diagonal recurrent weight: [h_f | h_b] @ blkdiag(W_f, W_b) computes
    # both directions' gates in ONE K=2H matmul (full MXU depth on v6e/v7x).
    whh_blk = jnp.zeros((2 * H, 8 * H), jnp.float32)
    whh_blk = whh_blk.at[:H, :4 * H].set(whh_t[0])
    whh_blk = whh_blk.at[H:, 4 * H:].set(whh_t[1])
    whh_blk = whh_blk.astype(jnp.bfloat16)

    out_f, out_b = pl.pallas_call(
        _bilstm_chunk_kernel,
        out_shape=(jax.ShapeDtypeStruct((L, Bl, H), jnp.float32),
                   jax.ShapeDtypeStruct((L, Bl, H), jnp.float32)),
        grid_spec=pltpu.PrefetchScalarGridSpec(
            num_scalar_prefetch=0,
            grid=(nb, nc),
            in_specs=[
                pl.BlockSpec((t_chunk, b_chunk, 8 * H),
                             lambda bi, t: (t, bi, 0)),
                # TODO(synk): grid-invariant weight; pipeline_mode=pl.Buffered(1)
                # would halve its (small) VMEM footprint.
                pl.BlockSpec((2 * H, 8 * H), lambda bi, t: (0, 0)),
            ],
            out_specs=[
                pl.BlockSpec((t_chunk, b_chunk, H),
                             lambda bi, t: (t, bi, 0)),
                pl.BlockSpec((t_chunk, b_chunk, H),
                             lambda bi, t: (nc - 1 - t, bi, 0)),
            ],
            scratch_shapes=[pltpu.VMEM((b_chunk, H), jnp.float32)] * 4,
        ),
        compiler_params=pltpu.CompilerParams(
            # batch blocks are independent (megacore on v7x); time is a
            # sequential recurrence carried through the VMEM scratch.
            dimension_semantics=("parallel", "arbitrary"),
            vmem_limit_bytes=48 * 1024 * 1024,
        ),
    )(gx, whh_blk)
    return out_f, out_b


def sbrnn_block_pallas(x_tm, layers, hidden, t_chunk, b_chunk):
    """SBRNNBlock forward (multi-layer bidirectional LSTM), time-major I/O.
    x_tm: (L, Bl, N) -> (y_fwd, y_bwd) each (L, Bl, hidden)."""
    parts = (x_tm,)
    for p in layers:
        parts = bilstm_layer_pallas(parts, p['wih_t'], p['whh_t'], p['b'],
                                    hidden, t_chunk, b_chunk)
        # TODO(synk): inter-layer dropout not applied (module default dropout=0).
    return parts


# ---------------------- Dual_Computation_Block (Pallas path) -----------------
def group_norm_ln(x, weight, bias, eps=1e-8):
    """nn.GroupNorm(1, N, eps=1e-8) on [B, N, K, S] (the 'ln' of select_norm)."""
    mean = jnp.mean(x, axis=(1, 2, 3), keepdims=True)
    var = jnp.mean(jnp.square(x - mean), axis=(1, 2, 3), keepdims=True)
    xn = (x - mean) * jax.lax.rsqrt(var + eps)
    return xn * weight[None, :, None, None] + bias[None, :, None, None]


def dual_computation_block_forward(x, params, hidden, t_chunk=16, b_chunk=16):
    """Dual_Computation_Block forward.  x: [B, N, K, S] -> [B, N, K, S]."""
    B, N, K, S = x.shape
    H = hidden

    # ----- intra: process within chunks (time axis = K) -----
    intra_tm = jnp.transpose(x, (2, 0, 3, 1)).reshape(K, B * S, N)      # (K,B*S,N)
    yf, yb = sbrnn_block_pallas(intra_tm, params['intra_lstm'], H, t_chunk, b_chunk)
    # split-weight linear: avoids concatenating / re-streaming (L, Bl, 2H)
    y = (jnp.einsum('lbh,hn->lbn', yf, params['intra_lin_w'][:H])
         + jnp.einsum('lbh,hn->lbn', yb, params['intra_lin_w'][H:])
         + params['intra_lin_b'])
    intra = jnp.transpose(y.reshape(K, B, S, N), (1, 3, 0, 2))          # (B,N,K,S)
    intra = group_norm_ln(intra, params['intra_norm_w'], params['intra_norm_b'])
    intra = intra + x                                                    # skip

    # ----- inter: process across chunks (time axis = S) -----
    inter_tm = jnp.transpose(intra, (3, 0, 2, 1)).reshape(S, B * K, N)  # (S,B*K,N)
    zf, zb = sbrnn_block_pallas(inter_tm, params['inter_lstm'], H, t_chunk, b_chunk)
    z = (jnp.einsum('lbh,hn->lbn', zf, params['inter_lin_w'][:H])
         + jnp.einsum('lbh,hn->lbn', zb, params['inter_lin_w'][H:])
         + params['inter_lin_b'])
    inter = jnp.transpose(z.reshape(S, B, K, N), (1, 3, 2, 0))          # (B,N,K,S)
    inter = group_norm_ln(inter, params['inter_norm_w'], params['inter_norm_b'])

    return inter + intra


# ------------------------------- parameters ----------------------------------
def init_params(key, out_channels, hidden, num_layers):
    N, H = out_channels, hidden

    def lstm_stack(key):
        layers, f_in = [], N
        for _ in range(num_layers):
            key, k1, k2, k3, k4 = jax.random.split(key, 5)
            s = 1.0 / math.sqrt(H)
            layers.append({
                'wih_t': jax.random.uniform(k1, (2, f_in, 4 * H), jnp.float32, -s, s),
                'whh_t': jax.random.uniform(k2, (2, H, 4 * H), jnp.float32, -s, s),
                'b': (jax.random.uniform(k3, (2, 4 * H), jnp.float32, -s, s)
                      + jax.random.uniform(k4, (2, 4 * H), jnp.float32, -s, s)),
            })
            f_in = 2 * H
        return key, layers

    key, intra_layers = lstm_stack(key)
    key, inter_layers = lstm_stack(key)
    key, k1, k2, k3, k4 = jax.random.split(key, 5)
    s_lin = 1.0 / math.sqrt(2 * H)
    return {
        'intra_lstm': intra_layers,
        'inter_lstm': inter_layers,
        'intra_lin_w': jax.random.uniform(k1, (2 * H, N), jnp.float32, -s_lin, s_lin),
        'intra_lin_b': jax.random.uniform(k2, (N,), jnp.float32, -s_lin, s_lin),
        'inter_lin_w': jax.random.uniform(k3, (2 * H, N), jnp.float32, -s_lin, s_lin),
        'inter_lin_b': jax.random.uniform(k4, (N,), jnp.float32, -s_lin, s_lin),
        'intra_norm_w': jnp.ones((N,), jnp.float32),
        'intra_norm_b': jnp.zeros((N,), jnp.float32),
        'inter_norm_w': jnp.ones((N,), jnp.float32),
        'inter_norm_b': jnp.zeros((N,), jnp.float32),
    }


# ----------------------------- pure-JAX reference ----------------------------
def _lstm_dir_ref(x_bf, wih_t, whh_t, b, H, reverse):
    Bl, L, _ = x_bf.shape
    xs = jnp.swapaxes(x_bf, 0, 1)
    if reverse:
        xs = xs[::-1]

    def step(carry, xt):
        h, c = carry
        gates = xt @ wih_t + h @ whh_t + b
        i = jax.nn.sigmoid(gates[:, 0 * H:1 * H])
        f = jax.nn.sigmoid(gates[:, 1 * H:2 * H])
        g = jnp.tanh(gates[:, 2 * H:3 * H])
        o = jax.nn.sigmoid(gates[:, 3 * H:4 * H])
        c = f * c + i * g
        h = o * jnp.tanh(c)
        return (h, c), h

    init = (jnp.zeros((Bl, H), jnp.float32), jnp.zeros((Bl, H), jnp.float32))
    _, ys = jax.lax.scan(step, init, xs)
    if reverse:
        ys = ys[::-1]
    return jnp.swapaxes(ys, 0, 1)


def _sbrnn_ref(x_bf, layers, H):
    h = x_bf
    for p in layers:
        fwd = _lstm_dir_ref(h, p['wih_t'][0], p['whh_t'][0], p['b'][0], H, False)
        bwd = _lstm_dir_ref(h, p['wih_t'][1], p['whh_t'][1], p['b'][1], H, True)
        h = jnp.concatenate([fwd, bwd], axis=-1)
    return h


def dual_computation_block_ref(x, params, hidden):
    B, N, K, S = x.shape
    H = hidden
    intra = jnp.transpose(x, (0, 3, 2, 1)).reshape(B * S, K, N)
    intra = _sbrnn_ref(intra, params['intra_lstm'], H)
    intra = intra @ params['intra_lin_w'] + params['intra_lin_b']
    intra = jnp.transpose(intra.reshape(B, S, K, N), (0, 3, 2, 1))
    intra = group_norm_ln(intra, params['intra_norm_w'], params['intra_norm_b'])
    intra = intra + x
    inter = jnp.transpose(intra, (0, 2, 3, 1)).reshape(B * K, S, N)
    inter = _sbrnn_ref(inter, params['inter_lstm'], H)
    inter = inter @ params['inter_lin_w'] + params['inter_lin_b']
    inter = jnp.transpose(inter.reshape(B, K, S, N), (0, 3, 1, 2))
    inter = group_norm_ln(inter, params['inter_norm_w'], params['inter_norm_b'])
    return inter + intra


# ----------------------------------- main -------------------------------------
if __name__ == "__main__":
    B, N, K, S = 2, 64, 16, 16          # x: [B, N, K, S] as in the module spec
    HIDDEN = 128                        # multiple of 128 -> lane-aligned gates
    NUM_LAYERS = 1
    T_CHUNK = 16                        # = L for this config -> single chunk
    B_CHUNK = 16                        # batch-parallel grid axis (megacore)

    key = jax.random.PRNGKey(0)
    kx, kp = jax.random.split(key)
    x = jax.random.normal(kx, (B, N, K, S), jnp.float32)
    params = init_params(kp, N, HIDDEN, NUM_LAYERS)

    fwd = jax.jit(dual_computation_block_forward, static_argnums=(2, 3, 4))
    out = jax.block_until_ready(fwd(x, params, HIDDEN, T_CHUNK, B_CHUNK))
    ref = jax.block_until_ready(dual_computation_block_ref(x, params, HIDDEN))

    assert out.shape == (B, N, K, S), out.shape
    max_err = float(jnp.max(jnp.abs(out - ref)))
    # Tolerance accounts for the bf16 gx stream + bf16 recurrent matmul in the
    # kernel path (reference stays f32); the two GroupNorms rescale absolute
    # error by ~1/std of their pre-norm activations.
    assert jnp.allclose(out, ref, atol=5e-2, rtol=5e-2), max_err
    print("KERNEL_OK")
</pallas_src>

<mosaic_0001>
module attributes {stable_mosaic.version = 11 : i64} {
  func.func @_bilstm_chunk_kernel(%arg0: i32, %arg1: i32, %arg2: memref<16x16x1024xbf16, #tpu.memory_space<vmem>>, %arg3: memref<256x1024xbf16, #tpu.memory_space<vmem>>, %arg4: memref<16x16x128xf32, #tpu.memory_space<vmem>>, %arg5: memref<16x16x128xf32, #tpu.memory_space<vmem>>, %arg6: memref<16x128xf32, #tpu.memory_space<vmem>>, %arg7: memref<16x128xf32, #tpu.memory_space<vmem>>, %arg8: memref<16x128xf32, #tpu.memory_space<vmem>>, %arg9: memref<16x128xf32, #tpu.memory_space<vmem>>) attributes {dimension_semantics = [#tpu.dimension_semantics<parallel>, #tpu.dimension_semantics<arbitrary>], iteration_bounds = array<i64: 2, 1>, scalar_prefetch = 0 : i64, scratch_operands = 4 : i64, tpu.core_type = #tpu.core_type<tc>, window_params = [{transform_indices = @transform_0, window_bounds = array<i64: 16, 16, 1024>}, {pipeline_mode = #tpu.pipeline_mode<synchronous>, transform_indices = @transform_1, window_bounds = array<i64: 256, 1024>}, {transform_indices = @transform_2, window_bounds = array<i64: 16, 16, 128>}, {transform_indices = @transform_3, window_bounds = array<i64: 16, 16, 128>}]} {
    %c0_i32 = arith.constant 0 : i32
    %0 = arith.cmpi eq, %arg1, %c0_i32 : i32
    %1 = arith.extui %0 : i1 to i32
    %c0_i32_0 = arith.constant 0 : i32
    %2 = arith.cmpi ne, %1, %c0_i32_0 : i32
    scf.if %2 {
      %cst_450 = arith.constant 0.000000e+00 : f32
      %1212 = vector.broadcast %cst_450 : f32 to vector<16x128xf32>
      %c0_451 = arith.constant 0 : index
      %c0_452 = arith.constant 0 : index
      %1213 = vector.load %arg6[%c0_451, %c0_452] : memref<16x128xf32, #tpu.memory_space<vmem>>, vector<16x128xf32>
      tpu.vector_store %arg6[%c0_451, %c0_452], %1212 {strides = array<i32>} : memref<16x128xf32, #tpu.memory_space<vmem>>, vector<16x128xf32>,
      %cst_453 = arith.constant 0.000000e+00 : f32
      %1214 = vector.broadcast %cst_453 : f32 to vector<16x128xf32>
      %c0_454 = arith.constant 0 : index
      %c0_455 = arith.constant 0 : index
      %1215 = vector.load %arg7[%c0_454, %c0_455] : memref<16x128xf32, #tpu.memory_space<vmem>>, vector<16x128xf32>
      tpu.vector_store %arg7[%c0_454, %c0_455], %1214 {strides = array<i32>} : memref<16x128xf32, #tpu.memory_space<vmem>>, vector<16x128xf32>,
      %cst_456 = arith.constant 0.000000e+00 : f32
      %1216 = vector.broadcast %cst_456 : f32 to vector<16x128xf32>
      %c0_457 = arith.constant 0 : index
      %c0_458 = arith.constant 0 : index
      %1217 = vector.load %arg8[%c0_457, %c0_458] : memref<16x128xf32, #tpu.memory_space<vmem>>, vector<16x128xf32>
      tpu.vector_store %arg8[%c0_457, %c0_458], %1216 {strides = array<i32>} : memref<16x128xf32, #tpu.memory_space<vmem>>, vector<16x128xf32>,
      %cst_459 = arith.constant 0.000000e+00 : f32
      %1218 = vector.broadcast %cst_459 : f32 to vector<16x128xf32>
      %c0_460 = arith.constant 0 : index
      %c0_461 = arith.constant 0 : index
      %1219 = vector.load %arg9[%c0_460, %c0_461] : memref<16x128xf32, #tpu.memory_space<vmem>>, vector<16x128xf32>
      tpu.vector_store %arg9[%c0_460, %c0_461], %1218 {strides = array<i32>} : memref<16x128xf32, #tpu.memory_space<vmem>>, vector<16x128xf32>,
    } else {
    }
    %c0 = arith.constant 0 : index
    %c0_1 = arith.constant 0 : index
    %3 = vector.load %arg3[%c0, %c0_1] : memref<256x1024xbf16, #tpu.memory_space<vmem>>, vector<256x1024xbf16>
    %c0_2 = arith.constant 0 : index
    %c0_3 = arith.constant 0 : index
    %4 = vector.load %arg6[%c0_2, %c0_3] : memref<16x128xf32, #tpu.memory_space<vmem>>, vector<16x128xf32>
    %c0_4 = arith.constant 0 : index
    %c0_5 = arith.constant 0 : index
    %5 = vector.load %arg7[%c0_4, %c0_5] : memref<16x128xf32, #tpu.memory_space<vmem>>, vector<16x128xf32>
    %c0_6 = arith.constant 0 : index
    %c0_7 = arith.constant 0 : index
    %6 = vector.load %arg8[%c0_6, %c0_7] : memref<16x128xf32, #tpu.memory_space<vmem>>, vector<16x128xf32>
    %c0_8 = arith.constant 0 : index
    %c0_9 = arith.constant 0 : index
    %7 = vector.load %arg9[%c0_8, %c0_9] : memref<16x128xf32, #tpu.memory_space<vmem>>, vector<16x128xf32>
    %c0_10 = arith.constant 0 : index
    %c0_11 = arith.constant 0 : index
    %c0_12 = arith.constant 0 : index
    %8 = vector.load %arg2[%c0_10, %c0_11, %c0_12] : memref<16x16x1024xbf16, #tpu.memory_space<vmem>>, vector<1x16x1024xbf16>
    %9 = vector.shape_cast %8 : vector<1x16x1024xbf16> to vector<16x1024xbf16>
    %10 = arith.extf %9 : vector<16x1024xbf16> to vector<16x1024xf32>
    %11 = tpu.concatenate %4, %5 in 1 : vector<16x128xf32>, vector<16x128xf32> -> vector<16x256xf32>
    %12 = arith.truncf %11 : vector<16x256xf32> to vector<16x256xbf16>
    %cst = arith.constant dense<0.000000e+00> : vector<16x1024xf32>
    %13 = tpu.matmul %12, %3, %cst {dimension_numbers = #tpu.dot_dimension_numbers<[1], [0], [0], [1], [0, 0, 1, 1], [], []>} : vector<16x256xbf16>, vector<256x1024xbf16>, vector<16x1024xf32> -> vector<16x1024xf32>
    %14 = arith.addf %10, %13 : vector<16x1024xf32>
    %15 = vector.extract_strided_slice %14 {offsets = [0, 0], sizes = [16, 128], strides = [1, 1]} : vector<16x1024xf32> to vector<16x128xf32>
    %cst_13 = arith.constant 5.000000e-01 : f32
    %16 = vector.broadcast %cst_13 : f32 to vector<16x128xf32>
    %17 = arith.mulf %16, %15 : vector<16x128xf32>
    %18 = math.tanh %17 : vector<16x128xf32>
    %cst_14 = arith.constant 5.000000e-01 : f32
    %19 = vector.broadcast %cst_14 : f32 to vector<16x128xf32>
    %20 = arith.mulf %19, %18 : vector<16x128xf32>
    %cst_15 = arith.constant 5.000000e-01 : f32
    %21 = vector.broadcast %cst_15 : f32 to vector<16x128xf32>
    %22 = arith.addf %20, %21 : vector<16x128xf32>
    %23 = vector.extract_strided_slice %14 {offsets = [0, 128], sizes = [16, 128], strides = [1, 1]} : vector<16x1024xf32> to vector<16x128xf32>
    %cst_16 = arith.constant 5.000000e-01 : f32
    %24 = vector.broadcast %cst_16 : f32 to vector<16x128xf32>
    %25 = arith.mulf %24, %23 : vector<16x128xf32>
    %26 = math.tanh %25 : vector<16x128xf32>
    %cst_17 = arith.constant 5.000000e-01 : f32
    %27 = vector.broadcast %cst_17 : f32 to vector<16x128xf32>
    %28 = arith.mulf %27, %26 : vector<16x128xf32>
    %cst_18 = arith.constant 5.000000e-01 : f32
    %29 = vector.broadcast %cst_18 : f32 to vector<16x128xf32>
    %30 = arith.addf %28, %29 : vector<16x128xf32>
    %31 = vector.extract_strided_slice %14 {offsets = [0, 256], sizes = [16, 128], strides = [1, 1]} : vector<16x1024xf32> to vector<16x128xf32>
    %32 = math.tanh %31 : vector<16x128xf32>
    %33 = vector.extract_strided_slice %14 {offsets = [0, 384], sizes = [16, 128], strides = [1, 1]} : vector<16x1024xf32> to vector<16x128xf32>
    %cst_19 = arith.constant 5.000000e-01 : f32
    %34 = vector.broadcast %cst_19 : f32 to vector<16x128xf32>
    %35 = arith.mulf %34, %33 : vector<16x128xf32>
    %36 = math.tanh %35 : vector<16x128xf32>
    %cst_20 = arith.constant 5.000000e-01 : f32
    %37 = vector.broadcast %cst_20 : f32 to vector<16x128xf32>
    %38 = arith.mulf %37, %36 : vector<16x128xf32>
    %cst_21 = arith.constant 5.000000e-01 : f32
    %39 = vector.broadcast %cst_21 : f32 to vector<16x128xf32>
    %40 = arith.addf %38, %39 : vector<16x128xf32>
    %41 = vector.extract_strided_slice %14 {offsets = [0, 512], sizes = [16, 128], strides = [1, 1]} : vector<16x1024xf32> to vector<16x128xf32>
    %cst_22 = arith.constant 5.000000e-01 : f32
    %42 = vector.broadcast %cst_22 : f32 to vector<16x128xf32>
    %43 = arith.mulf %42, %41 : vector<16x128xf32>
    %44 = math.tanh %43 : vector<16x128xf32>
    %cst_23 = arith.constant 5.000000e-01 : f32
    %45 = vector.broadcast %cst_23 : f32 to vector<16x128xf32>
    %46 = arith.mulf %45, %44 : vector<16x128xf32>
    %cst_24 = arith.constant 5.000000e-01 : f32
    %47 = vector.broadcast %cst_24 : f32 to vector<16x128xf32>
    %48 = arith.addf %46, %47 : vector<16x128xf32>
    %49 = vector.extract_strided_slice %14 {offsets = [0, 640], sizes = [16, 128], strides = [1, 1]} : vector<16x1024xf32> to vector<16x128xf32>
    %cst_25 = arith.constant 5.000000e-01 : f32
    %50 = vector.broadcast %cst_25 : f32 to vector<16x128xf32>
    %51 = arith.mulf %50, %49 : vector<16x128xf32>
    %52 = math.tanh %51 : vector<16x128xf32>
    %cst_26 = arith.constant 5.000000e-01 : f32
    %53 = vector.broadcast %cst_26 : f32 to vector<16x128xf32>
    %54 = arith.mulf %53, %52 : vector<16x128xf32>
    %cst_27 = arith.constant 5.000000e-01 : f32
    %55 = vector.broadcast %cst_27 : f32 to vector<16x128xf32>
    %56 = arith.addf %54, %55 : vector<16x128xf32>
    %57 = vector.extract_strided_slice %14 {offsets = [0, 768], sizes = [16, 128], strides = [1, 1]} : vector<16x1024xf32> to vector<16x128xf32>
    %58 = math.tanh %57 : vector<16x128xf32>
    %59 = vector.extract_strided_slice %14 {offsets = [0, 896], sizes = [16, 128], strides = [1, 1]} : vector<16x1024xf32> to vector<16x128xf32>
    %cst_28 = arith.constant 5.000000e-01 : f32
    %60 = vector.broadcast %cst_28 : f32 to vector<16x128xf32>
    %61 = arith.mulf %60, %59 : vector<16x128xf32>
    %62 = math.tanh %61 : vector<16x128xf32>
    %cst_29 = arith.constant 5.000000e-01 : f32
    %63 = vector.broadcast %cst_29 : f32 to vector<16x128xf32>
    %64 = arith.mulf %63, %62 : vector<16x128xf32>
    %cst_30 = arith.constant 5.000000e-01 : f32
    %65 = vector.broadcast %cst_30 : f32 to vector<16x128xf32>
    %66 = arith.addf %64, %65 : vector<16x128xf32>
    %67 = arith.mulf %30, %6 : vector<16x128xf32>
    %68 = arith.mulf %22, %32 : vector<16x128xf32>
    %69 = arith.addf %67, %68 : vector<16x128xf32>
    %70 = arith.mulf %56, %7 : vector<16x128xf32>
    %71 = arith.mulf %48, %58 : vector<16x128xf32>
    %72 = arith.addf %70, %71 : vector<16x128xf32>
    %73 = math.tanh %69 : vector<16x128xf32>
    %74 = arith.mulf %40, %73 : vector<16x128xf32>
    %75 = math.tanh %72 : vector<16x128xf32>
    %76 = arith.mulf %66, %75 : vector<16x128xf32>
    %c0_31 = arith.constant 0 : index
    %c0_32 = arith.constant 0 : index
    %c0_33 = arith.constant 0 : index
    %77 = vector.load %arg4[%c0_31, %c0_32, %c0_33] : memref<16x16x128xf32, #tpu.memory_space<vmem>>, vector<1x16x128xf32>
    %78 = vector.shape_cast %77 : vector<1x16x128xf32> to vector<16x128xf32>
    %79 = vector.shape_cast %74 : vector<16x128xf32> to vector<1x16x128xf32>
    tpu.vector_store %arg4[%c0_31, %c0_32, %c0_33], %79 {strides = array<i32>} : memref<16x16x128xf32, #tpu.memory_space<vmem>>, vector<1x16x128xf32>,
    %c15 = arith.constant 15 : index
    %c0_34 = arith.constant 0 : index
    %c0_35 = arith.constant 0 : index
    %80 = vector.load %arg5[%c15, %c0_34, %c0_35] : memref<16x16x128xf32, #tpu.memory_space<vmem>>, vector<1x16x128xf32>
    %81 = vector.shape_cast %80 : vector<1x16x128xf32> to vector<16x128xf32>
    %82 = vector.shape_cast %76 : vector<16x128xf32> to vector<1x16x128xf32>
    tpu.vector_store %arg5[%c15, %c0_34, %c0_35], %82 {strides = array<i32>} : memref<16x16x128xf32, #tpu.memory_space<vmem>>, vector<1x16x128xf32>,
    %c1 = arith.constant 1 : index
    %c0_36 = arith.constant 0 : index
    %c0_37 = arith.constant 0 : index
    %83 = vector.load %arg2[%c1, %c0_36, %c0_37] : memref<16x16x1024xbf16, #tpu.memory_space<vmem>>, vector<1x16x1024xbf16>
    %84 = vector.shape_cast %83 : vector<1x16x1024xbf16> to vector<16x1024xbf16>
    %85 = arith.extf %84 : vector<16x1024xbf16> to vector<16x1024xf32>
    %86 = tpu.concatenate %74, %76 in 1 : vector<16x128xf32>, vector<16x128xf32> -> vector<16x256xf32>
    %87 = arith.truncf %86 : vector<16x256xf32> to vector<16x256xbf16>
    %cst_38 = arith.constant dense<0.000000e+00> : vector<16x1024xf32>
    %88 = tpu.matmul %87, %3, %cst_38 {dimension_numbers = #tpu.dot_dimension_numbers<[1], [0], [0], [1], [0, 0, 1, 1], [], []>} : vector<16x256xbf16>, vector<256x1024xbf16>, vector<16x1024xf32> -> vector<16x1024xf32>
    %89 = arith.addf %85, %88 : vector<16x1024xf32>
    %90 = vector.extract_strided_slice %89 {offsets = [0, 0], sizes = [16, 128], strides = [1, 1]} : vector<16x1024xf32> to vector<16x128xf32>
    %cst_39 = arith.constant 5.000000e-01 : f32
    %91 = vector.broadcast %cst_39 : f32 to vector<16x128xf32>
    %92 = arith.mulf %91, %90 : vector<16x128xf32>
    %93 = math.tanh %92 : vector<16x128xf32>
    %cst_40 = arith.constant 5.000000e-01 : f32
    %94 = vector.broadcast %cst_40 : f32 to vector<16x128xf32>
    %95 = arith.mulf %94, %93 : vector<16x128xf32>
    %cst_41 = arith.constant 5.000000e-01 : f32
    %96 = vector.broadcast %cst_41 : f32 to vector<16x128xf32>
    %97 = arith.addf %95, %96 : vector<16x128xf32>
    %98 = vector.extract_strided_slice %89 {offsets = [0, 128], sizes = [16, 128], strides = [1, 1]} : vector<16x1024xf32> to vector<16x128xf32>
    %cst_42 = arith.constant 5.000000e-01 : f32
    %99 = vector.broadcast %cst_42 : f32 to vector<16x128xf32>
    %100 = arith.mulf %99, %98 : vector<16x128xf32>
    %101 = math.tanh %100 : vector<16x128xf32>
    %cst_43 = arith.constant 5.000000e-01 : f32
    %102 = vector.broadcast %cst_43 : f32 to vector<16x128xf32>
    %103 = arith.mulf %102, %101 : vector<16x128xf32>
    %cst_44 = arith.constant 5.000000e-01 : f32
    %104 = vector.broadcast %cst_44 : f32 to vector<16x128xf32>
    %105 = arith.addf %103, %104 : vector<16x128xf32>
    %106 = vector.extract_strided_slice %89 {offsets = [0, 256], sizes = [16, 128], strides = [1, 1]} : vector<16x1024xf32> to vector<16x128xf32>
    %107 = math.tanh %106 : vector<16x128xf32>
    %108 = vector.extract_strided_slice %89 {offsets = [0, 384], sizes = [16, 128], strides = [1, 1]} : vector<16x1024xf32> to vector<16x128xf32>
    %cst_45 = arith.constant 5.000000e-01 : f32
    %109 = vector.broadcast %cst_45 : f32 to vector<16x128xf32>
    %110 = arith.mulf %109, %108 : vector<16x128xf32>
    %111 = math.tanh %110 : vector<16x128xf32>
    %cst_46 = arith.constant 5.000000e-01 : f32
    %112 = vector.broadcast %cst_46 : f32 to vector<16x128xf32>
    %113 = arith.mulf %112, %111 : vector<16x128xf32>
    %cst_47 = arith.constant 5.000000e-01 : f32
    %114 = vector.broadcast %cst_47 : f32 to vector<16x128xf32>
    %115 = arith.addf %113, %114 : vector<16x128xf32>
    %116 = vector.extract_strided_slice %89 {offsets = [0, 512], sizes = [16, 128], strides = [1, 1]} : vector<16x1024xf32> to vector<16x128xf32>
    %cst_48 = arith.constant 5.000000e-01 : f32
    %117 = vector.broadcast %cst_48 : f32 to vector<16x128xf32>
    %118 = arith.mulf %117, %116 : vector<16x128xf32>
    %119 = math.tanh %118 : vector<16x128xf32>
    %cst_49 = arith.constant 5.000000e-01 : f32
    %120 = vector.broadcast %cst_49 : f32 to vector<16x128xf32>
    %121 = arith.mulf %120, %119 : vector<16x128xf32>
    %cst_50 = arith.constant 5.000000e-01 : f32
    %122 = vector.broadcast %cst_50 : f32 to vector<16x128xf32>
    %123 = arith.addf %121, %122 : vector<16x128xf32>
    %124 = vector.extract_strided_slice %89 {offsets = [0, 640], sizes = [16, 128], strides = [1, 1]} : vector<16x1024xf32> to vector<16x128xf32>
    %cst_51 = arith.constant 5.000000e-01 : f32
    %125 = vector.broadcast %cst_51 : f32 to vector<16x128xf32>
    %126 = arith.mulf %125, %124 : vector<16x128xf32>
    %127 = math.tanh %126 : vector<16x128xf32>
    %cst_52 = arith.constant 5.000000e-01 : f32
    %128 = vector.broadcast %cst_52 : f32 to vector<16x128xf32>
    %129 = arith.mulf %128, %127 : vector<16x128xf32>
    %cst_53 = arith.constant 5.000000e-01 : f32
    %130 = vector.broadcast %cst_53 : f32 to vector<16x128xf32>
    %131 = arith.addf %129, %130 : vector<16x128xf32>
    %132 = vector.extract_strided_slice %89 {offsets = [0, 768], sizes = [16, 128], strides = [1, 1]} : vector<16x1024xf32> to vector<16x128xf32>
    %133 = math.tanh %132 : vector<16x128xf32>
    %134 = vector.extract_strided_slice %89 {offsets = [0, 896], sizes = [16, 128], strides = [1, 1]} : vector<16x1024xf32> to vector<16x128xf32>
    %cst_54 = arith.constant 5.000000e-01 : f32
    %135 = vector.broadcast %cst_54 : f32 to vector<16x128xf32>
    %136 = arith.mulf %135, %134 : vector<16x128xf32>
    %137 = math.tanh %136 : vector<16x128xf32>
    %cst_55 = arith.constant 5.000000e-01 : f32
    %138 = vector.broadcast %cst_55 : f32 to vector<16x128xf32>
    %139 = arith.mulf %138, %137 : vector<16x128xf32>
    %cst_56 = arith.constant 5.000000e-01 : f32
    %140 = vector.broadcast %cst_56 : f32 to vector<16x128xf32>
    %141 = arith.addf %139, %140 : vector<16x128xf32>
    %142 = arith.mulf %105, %69 : vector<16x128xf32>
    %143 = arith.mulf %97, %107 : vector<16x128xf32>
    %144 = arith.addf %142, %143 : vector<16x128xf32>
    %145 = arith.mulf %131, %72 : vector<16x128xf32>
    %146 = arith.mulf %123, %133 : vector<16x128xf32>
    %147 = arith.addf %145, %146 : vector<16x128xf32>
    %148 = math.tanh %144 : vector<16x128xf32>
    %149 = arith.mulf %115, %148 : vector<16x128xf32>
    %150 = math.tanh %147 : vector<16x128xf32>
    %151 = arith.mulf %141, %150 : vector<16x128xf32>
    %c1_57 = arith.constant 1 : index
    %c0_58 = arith.constant 0 : index
    %c0_59 = arith.constant 0 : index
    %152 = vector.load %arg4[%c1_57, %c0_58, %c0_59] : memref<16x16x128xf32, #tpu.memory_space<vmem>>, vector<1x16x128xf32>
    %153 = vector.shape_cast %152 : vector<1x16x128xf32> to vector<16x128xf32>
    %154 = vector.shape_cast %149 : vector<16x128xf32> to vector<1x16x128xf32>
    tpu.vector_store %arg4[%c1_57, %c0_58, %c0_59], %154 {strides = array<i32>} : memref<16x16x128xf32, #tpu.memory_space<vmem>>, vector<1x16x128xf32>,
    %c14 = arith.constant 14 : index
    %c0_60 = arith.constant 0 : index
    %c0_61 = arith.constant 0 : index
    %155 = vector.load %arg5[%c14, %c0_60, %c0_61] : memref<16x16x128xf32, #tpu.memory_space<vmem>>, vector<1x16x128xf32>
    %156 = vector.shape_cast %155 : vector<1x16x128xf32> to vector<16x128xf32>
    %157 = vector.shape_cast %151 : vector<16x128xf32> to vector<1x16x128xf32>
    tpu.vector_store %arg5[%c14, %c0_60, %c0_61], %157 {strides = array<i32>} : memref<16x16x128xf32, #tpu.memory_space<vmem>>, vector<1x16x128xf32>,
    %c2 = arith.constant 2 : index
    %c0_62 = arith.constant 0 : index
    %c0_63 = arith.constant 0 : index
    %158 = vector.load %arg2[%c2, %c0_62, %c0_63] : memref<16x16x1024xbf16, #tpu.memory_space<vmem>>, vector<1x16x1024xbf16>
    %159 = vector.shape_cast %158 : vector<1x16x1024xbf16> to vector<16x1024xbf16>
    %160 = arith.extf %159 : vector<16x1024xbf16> to vector<16x1024xf32>
    %161 = tpu.concatenate %149, %151 in 1 : vector<16x128xf32>, vector<16x128xf32> -> vector<16x256xf32>
    %162 = arith.truncf %161 : vector<16x256xf32> to vector<16x256xbf16>
    %cst_64 = arith.constant dense<0.000000e+00> : vector<16x1024xf32>
    %163 = tpu.matmul %162, %3, %cst_64 {dimension_numbers = #tpu.dot_dimension_numbers<[1], [0], [0], [1], [0, 0, 1, 1], [], []>} : vector<16x256xbf16>, vector<256x1024xbf16>, vector<16x1024xf32> -> vector<16x1024xf32>
    %164 = arith.addf %160, %163 : vector<16x1024xf32>
    %165 = vector.extract_strided_slice %164 {offsets = [0, 0], sizes = [16, 128], strides = [1, 1]} : vector<16x1024xf32> to vector<16x128xf32>
    %cst_65 = arith.constant 5.000000e-01 : f32
    %166 = vector.broadcast %cst_65 : f32 to vector<16x128xf32>
    %167 = arith.mulf %166, %165 : vector<16x128xf32>
    %168 = math.tanh %167 : vector<16x128xf32>
    %cst_66 = arith.constant 5.000000e-01 : f32
    %169 = vector.broadcast %cst_66 : f32 to vector<16x128xf32>
    %170 = arith.mulf %169, %168 : vector<16x128xf32>
    %cst_67 = arith.constant 5.000000e-01 : f32
    %171 = vector.broadcast %cst_67 : f32 to vector<16x128xf32>
    %172 = arith.addf %170, %171 : vector<16x128xf32>
    %173 = vector.extract_strided_slice %164 {offsets = [0, 128], sizes = [16, 128], strides = [1, 1]} : vector<16x1024xf32> to vector<16x128xf32>
    %cst_68 = arith.constant 5.000000e-01 : f32
    %174 = vector.broadcast %cst_68 : f32 to vector<16x128xf32>
    %175 = arith.mulf %174, %173 : vector<16x128xf32>
    %176 = math.tanh %175 : vector<16x128xf32>
    %cst_69 = arith.constant 5.000000e-01 : f32
    %177 = vector.broadcast %cst_69 : f32 to vector<16x128xf32>
    %178 = arith.mulf %177, %176 : vector<16x128xf32>
    %cst_70 = arith.constant 5.000000e-01 : f32
    %179 = vector.broadcast %cst_70 : f32 to vector<16x128xf32>
    %180 = arith.addf %178, %179 : vector<16x128xf32>
    %181 = vector.extract_strided_slice %164 {offsets = [0, 256], sizes = [16, 128], strides = [1, 1]} : vector<16x1024xf32> to vector<16x128xf32>
    %182 = math.tanh %181 : vector<16x128xf32>
    %183 = vector.extract_strided_slice %164 {offsets = [0, 384], sizes = [16, 128], strides = [1, 1]} : vector<16x1024xf32> to vector<16x128xf32>
    %cst_71 = arith.constant 5.000000e-01 : f32
    %184 = vector.broadcast %cst_71 : f32 to vector<16x128xf32>
    %185 = arith.mulf %184, %183 : vector<16x128xf32>
    %186 = math.tanh %185 : vector<16x128xf32>
    %cst_72 = arith.constant 5.000000e-01 : f32
    %187 = vector.broadcast %cst_72 : f32 to vector<16x128xf32>
    %188 = arith.mulf %187, %186 : vector<16x128xf32>
    %cst_73 = arith.constant 5.000000e-01 : f32
    %189 = vector.broadcast %cst_73 : f32 to vector<16x128xf32>
    %190 = arith.addf %188, %189 : vector<16x128xf32>
    %191 = vector.extract_strided_slice %164 {offsets = [0, 512], sizes = [16, 128], strides = [1, 1]} : vector<16x1024xf32> to vector<16x128xf32>
    %cst_74 = arith.constant 5.000000e-01 : f32
    %192 = vector.broadcast %cst_74 : f32 to vector<16x128xf32>
    %193 = arith.mulf %192, %191 : vector<16x128xf32>
    %194 = math.tanh %193 : vector<16x128xf32>
    %cst_75 = arith.constant 5.000000e-01 : f32
    %195 = vector.broadcast %cst_75 : f32 to vector<16x128xf32>
    %196 = arith.mulf %195, %194 : vector<16x128xf32>
    %cst_76 = arith.constant 5.000000e-01 : f32
    %197 = vector.broadcast %cst_76 : f32 to vector<16x128xf32>
    %198 = arith.addf %196, %197 : vector<16x128xf32>
    %199 = vector.extract_strided_slice %164 {offsets = [0, 640], sizes = [16, 128], strides = [1, 1]} : vector<16x1024xf32> to vector<16x128xf32>
    %cst_77 = arith.constant 5.000000e-01 : f32
    %200 = vector.broadcast %cst_77 : f32 to vector<16x128xf32>
    %201 = arith.mulf %200, %199 : vector<16x128xf32>
    %202 = math.tanh %201 : vector<16x128xf32>
    %cst_78 = arith.constant 5.000000e-01 : f32
    %203 = vector.broadcast %cst_78 : f32 to vector<16x128xf32>
    %204 = arith.mulf %203, %202 : vector<16x128xf32>
    %cst_79 = arith.constant 5.000000e-01 : f32
    %205 = vector.broadcast %cst_79 : f32 to vector<16x128xf32>
    %206 = arith.addf %204, %205 : vector<16x128xf32>
    %207 = vector.extract_strided_slice %164 {offsets = [0, 768], sizes = [16, 128], strides = [1, 1]} : vector<16x1024xf32> to vector<16x128xf32>
    %208 = math.tanh %207 : vector<16x128xf32>
    %209 = vector.extract_strided_slice %164 {offsets = [0, 896], sizes = [16, 128], strides = [1, 1]} : vector<16x1024xf32> to vector<16x128xf32>
    %cst_80 = arith.constant 5.000000e-01 : f32
    %210 = vector.broadcast %cst_80 : f32 to vector<16x128xf32>
    %211 = arith.mulf %210, %209 : vector<16x128xf32>
    %212 = math.tanh %211 : vector<16x128xf32>
    %cst_81 = arith.constant 5.000000e-01 : f32
    %213 = vector.broadcast %cst_81 : f32 to vector<16x128xf32>
    %214 = arith.mulf %213, %212 : vector<16x128xf32>
    %cst_82 = arith.constant 5.000000e-01 : f32
    %215 = vector.broadcast %cst_82 : f32 to vector<16x128xf32>
    %216 = arith.addf %214, %215 : vector<16x128xf32>
    %217 = arith.mulf %180, %144 : vector<16x128xf32>
    %218 = arith.mulf %172, %182 : vector<16x128xf32>
    %219 = arith.addf %217, %218 : vector<16x128xf32>
    %220 = arith.mulf %206, %147 : vector<16x128xf32>
    %221 = arith.mulf %198, %208 : vector<16x128xf32>
    %222 = arith.addf %220, %221 : vector<16x128xf32>
    %223 = math.tanh %219 : vector<16x128xf32>
    %224 = arith.mulf %190, %223 : vector<16x128xf32>
    %225 = math.tanh %222 : vector<16x128xf32>
    %226 = arith.mulf %216, %225 : vector<16x128xf32>
    %c2_83 = arith.constant 2 : index
    %c0_84 = arith.constant 0 : index
    %c0_85 = arith.constant 0 : index
    %227 = vector.load %arg4[%c2_83, %c0_84, %c0_85] : memref<16x16x128xf32, #tpu.memory_space<vmem>>, vector<1x16x128xf32>
    %228 = vector.shape_cast %227 : vector<1x16x128xf32> to vector<16x128xf32>
    %229 = vector.shape_cast %224 : vector<16x128xf32> to vector<1x16x128xf32>
    tpu.vector_store %arg4[%c2_83, %c0_84, %c0_85], %229 {strides = array<i32>} : memref<16x16x128xf32, #tpu.memory_space<vmem>>, vector<1x16x128xf32>,
    %c13 = arith.constant 13 : index
    %c0_86 = arith.constant 0 : index
    %c0_87 = arith.constant 0 : index
    %230 = vector.load %arg5[%c13, %c0_86, %c0_87] : memref<16x16x128xf32, #tpu.memory_space<vmem>>, vector<1x16x128xf32>
    %231 = vector.shape_cast %230 : vector<1x16x128xf32> to vector<16x128xf32>
    %232 = vector.shape_cast %226 : vector<16x128xf32> to vector<1x16x128xf32>
    tpu.vector_store %arg5[%c13, %c0_86, %c0_87], %232 {strides = array<i32>} : memref<16x16x128xf32, #tpu.memory_space<vmem>>, vector<1x16x128xf32>,
    %c3 = arith.constant 3 : index
    %c0_88 = arith.constant 0 : index
    %c0_89 = arith.constant 0 : index
    %233 = vector.load %arg2[%c3, %c0_88, %c0_89] : memref<16x16x1024xbf16, #tpu.memory_space<vmem>>, vector<1x16x1024xbf16>
    %234 = vector.shape_cast %233 : vector<1x16x1024xbf16> to vector<16x1024xbf16>
    %235 = arith.extf %234 : vector<16x1024xbf16> to vector<16x1024xf32>
    %236 = tpu.concatenate %224, %226 in 1 : vector<16x128xf32>, vector<16x128xf32> -> vector<16x256xf32>
    %237 = arith.truncf %236 : vector<16x256xf32> to vector<16x256xbf16>
    %cst_90 = arith.constant dense<0.000000e+00> : vector<16x1024xf32>
    %238 = tpu.matmul %237, %3, %cst_90 {dimension_numbers = #tpu.dot_dimension_numbers<[1], [0], [0], [1], [0, 0, 1, 1], [], []>} : vector<16x256xbf16>, vector<256x1024xbf16>, vector<16x1024xf32> -> vector<16x1024xf32>
    %239 = arith.addf %235, %238 : vector<16x1024xf32>
    %240 = vector.extract_strided_slice %239 {offsets = [0, 0], sizes = [16, 128], strides = [1, 1]} : vector<16x1024xf32> to vector<16x128xf32>
    %cst_91 = arith.constant 5.000000e-01 : f32
    %241 = vector.broadcast %cst_91 : f32 to vector<16x128xf32>
    %242 = arith.mulf %241, %240 : vector<16x128xf32>
    %243 = math.tanh %242 : vector<16x128xf32>
    %cst_92 = arith.constant 5.000000e-01 : f32
    %244 = vector.broadcast %cst_92 : f32 to vector<16x128xf32>
    %245 = arith.mulf %244, %243 : vector<16x128xf32>
    %cst_93 = arith.constant 5.000000e-01 : f32
    %246 = vector.broadcast %cst_93 : f32 to vector<16x128xf32>
    %247 = arith.addf %245, %246 : vector<16x128xf32>
    %248 = vector.extract_strided_slice %239 {offsets = [0, 128], sizes = [16, 128], strides = [1, 1]} : vector<16x1024xf32> to vector<16x128xf32>
    %cst_94 = arith.constant 5.000000e-01 : f32
    %249 = vector.broadcast %cst_94 : f32 to vector<16x128xf32>
    %250 = arith.mulf %249, %248 : vector<16x128xf32>
    %251 = math.tanh %250 : vector<16x128xf32>
    %cst_95 = arith.constant 5.000000e-01 : f32
    %252 = vector.broadcast %cst_95 : f32 to vector<16x128xf32>
    %253 = arith.mulf %252, %251 : vector<16x128xf32>
    %cst_96 = arith.constant 5.000000e-01 : f32
    %254 = vector.broadcast %cst_96 : f32 to vector<16x128xf32>
    %255 = arith.addf %253, %254 : vector<16x128xf32>
    %256 = vector.extract_strided_slice %239 {offsets = [0, 256], sizes = [16, 128], strides = [1, 1]} : vector<16x1024xf32> to vector<16x128xf32>
    %257 = math.tanh %256 : vector<16x128xf32>
    %258 = vector.extract_strided_slice %239 {offsets = [0, 384], sizes = [16, 128], strides = [1, 1]} : vector<16x1024xf32> to vector<16x128xf32>
    %cst_97 = arith.constant 5.000000e-01 : f32
    %259 = vector.broadcast %cst_97 : f32 to vector<16x128xf32>
    %260 = arith.mulf %259, %258 : vector<16x128xf32>
    %261 = math.tanh %260 : vector<16x128xf32>
    %cst_98 = arith.constant 5.000000e-01 : f32
    %262 = vector.broadcast %cst_98 : f32 to vector<16x128xf32>
    %263 = arith.mulf %262, %261 : vector<16x128xf32>
    %cst_99 = arith.constant 5.000000e-01 : f32
    %264 = vector.broadcast %cst_99 : f32 to vector<16x128xf32>
    %265 = arith.addf %263, %264 : vector<16x128xf32>
    %266 = vector.extract_strided_slice %239 {offsets = [0, 512], sizes = [16, 128], strides = [1, 1]} : vector<16x1024xf32> to vector<16x128xf32>
    %cst_100 = arith.constant 5.000000e-01 : f32
    %267 = vector.broadcast %cst_100 : f32 to vector<16x128xf32>
    %268 = arith.mulf %267, %266 : vector<16x128xf32>
    %269 = math.tanh %268 : vector<16x128xf32>
    %cst_101 = arith.constant 5.000000e-01 : f32
    %270 = vector.broadcast %cst_101 : f32 to vector<16x128xf32>
    %271 = arith.mulf %270, %269 : vector<16x128xf32>
    %cst_102 = arith.constant 5.000000e-01 : f32
    %272 = vector.broadcast %cst_102 : f32 to vector<16x128xf32>
    %273 = arith.addf %271, %272 : vector<16x128xf32>
    %274 = vector.extract_strided_slice %239 {offsets = [0, 640], sizes = [16, 128], strides = [1, 1]} : vector<16x1024xf32> to vector<16x128xf32>
    %cst_103 = arith.constant 5.000000e-01 : f32
    %275 = vector.broadcast %cst_103 : f32 to vector<16x128xf32>
    %276 = arith.mulf %275, %274 : vector<16x128xf32>
    %277 = math.tanh %276 : vector<16x128xf32>
    %cst_104 = arith.constant 5.000000e-01 : f32
    %278 = vector.broadcast %cst_104 : f32 to vector<16x128xf32>
    %279 = arith.mulf %278, %277 : vector<16x128xf32>
    %cst_105 = arith.constant 5.000000e-01 : f32
    %280 = vector.broadcast %cst_105 : f32 to vector<16x128xf32>
    %281 = arith.addf %279, %280 : vector<16x128xf32>
    %282 = vector.extract_strided_slice %239 {offsets = [0, 768], sizes = [16, 128], strides = [1, 1]} : vector<16x1024xf32> to vector<16x128xf32>
    %283 = math.tanh %282 : vector<16x128xf32>
    %284 = vector.extract_strided_slice %239 {offsets = [0, 896], sizes = [16, 128], strides = [1, 1]} : vector<16x1024xf32> to vector<16x128xf32>
    %cst_106 = arith.constant 5.000000e-01 : f32
    %285 = vector.broadcast %cst_106 : f32 to vector<16x128xf32>
    %286 = arith.mulf %285, %284 : vector<16x128xf32>
    %287 = math.tanh %286 : vector<16x128xf32>
    %cst_107 = arith.constant 5.000000e-01 : f32
    %288 = vector.broadcast %cst_107 : f32 to vector<16x128xf32>
    %289 = arith.mulf %288, %287 : vector<16x128xf32>
    %cst_108 = arith.constant 5.000000e-01 : f32
    %290 = vector.broadcast %cst_108 : f32 to vector<16x128xf32>
    %291 = arith.addf %289, %290 : vector<16x128xf32>
    %292 = arith.mulf %255, %219 : vector<16x128xf32>
    %293 = arith.mulf %247, %257 : vector<16x128xf32>
    %294 = arith.addf %292, %293 : vector<16x128xf32>
    %295 = arith.mulf %281, %222 : vector<16x128xf32>
    %296 = arith.mulf %273, %283 : vector<16x128xf32>
    %297 = arith.addf %295, %296 : vector<16x128xf32>
    %298 = math.tanh %294 : vector<16x128xf32>
    %299 = arith.mulf %265, %298 : vector<16x128xf32>
    %300 = math.tanh %297 : vector<16x128xf32>
    %301 = arith.mulf %291, %300 : vector<16x128xf32>
    %c3_109 = arith.constant 3 : index
    %c0_110 = arith.constant 0 : index
    %c0_111 = arith.constant 0 : index
    %302 = vector.load %arg4[%c3_109, %c0_110, %c0_111] : memref<16x16x128xf32, #tpu.memory_space<vmem>>, vector<1x16x128xf32>
    %303 = vector.shape_cast %302 : vector<1x16x128xf32> to vector<16x128xf32>
    %304 = vector.shape_cast %299 : vector<16x128xf32> to vector<1x16x128xf32>
    tpu.vector_store %arg4[%c3_109, %c0_110, %c0_111], %304 {strides = array<i32>} : memref<16x16x128xf32, #tpu.memory_space<vmem>>, vector<1x16x128xf32>,
    %c12 = arith.constant 12 : index
    %c0_112 = arith.constant 0 : index
    %c0_113 = arith.constant 0 : index
    %305 = vector.load %arg5[%c12, %c0_112, %c0_113] : memref<16x16x128xf32, #tpu.memory_space<vmem>>, vector<1x16x128xf32>
    %306 = vector.shape_cast %305 : vector<1x16x128xf32> to vector<16x128xf32>
    %307 = vector.shape_cast %301 : vector<16x128xf32> to vector<1x16x128xf32>
    tpu.vector_store %arg5[%c12, %c0_112, %c0_113], %307 {strides = array<i32>} : memref<16x16x128xf32, #tpu.memory_space<vmem>>, vector<1x16x128xf32>,
    %c4 = arith.constant 4 : index
    %c0_114 = arith.constant 0 : index
    %c0_115 = arith.constant 0 : index
    %308 = vector.load %arg2[%c4, %c0_114, %c0_115] : memref<16x16x1024xbf16, #tpu.memory_space<vmem>>, vector<1x16x1024xbf16>
    %309 = vector.shape_cast %308 : vector<1x16x1024xbf16> to vector<16x1024xbf16>
    %310 = arith.extf %309 : vector<16x1024xbf16> to vector<16x1024xf32>
    %311 = tpu.concatenate %299, %301 in 1 : vector<16x128xf32>, vector<16x128xf32> -> vector<16x256xf32>
    %312 = arith.truncf %311 : vector<16x256xf32> to vector<16x256xbf16>
    %cst_116 = arith.constant dense<0.000000e+00> : vector<16x1024xf32>
    %313 = tpu.matmul %312, %3, %cst_116 {dimension_numbers = #tpu.dot_dimension_numbers<[1], [0], [0], [1], [0, 0, 1, 1], [], []>} : vector<16x256xbf16>, vector<256x1024xbf16>, vector<16x1024xf32> -> vector<16x1024xf32>
    %314 = arith.addf %310, %313 : vector<16x1024xf32>
    %315 = vector.extract_strided_slice %314 {offsets = [0, 0], sizes = [16, 128], strides = [1, 1]} : vector<16x1024xf32> to vector<16x128xf32>
    %cst_117 = arith.constant 5.000000e-01 : f32
    %316 = vector.broadcast %cst_117 : f32 to vector<16x128xf32>
    %317 = arith.mulf %316, %315 : vector<16x128xf32>
    %318 = math.tanh %317 : vector<16x128xf32>
    %cst_118 = arith.constant 5.000000e-01 : f32
    %319 = vector.broadcast %cst_118 : f32 to vector<16x128xf32>
    %320 = arith.mulf %319, %318 : vector<16x128xf32>
    %cst_119 = arith.constant 5.000000e-01 : f32
    %321 = vector.broadcast %cst_119 : f32 to vector<16x128xf32>
    %322 = arith.addf %320, %321 : vector<16x128xf32>
    %323 = vector.extract_strided_slice %314 {offsets = [0, 128], sizes = [16, 128], strides = [1, 1]} : vector<16x1024xf32> to vector<16x128xf32>
    %cst_120 = arith.constant 5.000000e-01 : f32
    %324 = vector.broadcast %cst_120 : f32 to vector<16x128xf32>
    %325 = arith.mulf %324, %323 : vector<16x128xf32>
    %326 = math.tanh %325 : vector<16x128xf32>
    %cst_121 = arith.constant 5.000000e-01 : f32
    %327 = vector.broadcast %cst_121 : f32 to vector<16x128xf32>
    %328 = arith.mulf %327, %326 : vector<16x128xf32>
    %cst_122 = arith.constant 5.000000e-01 : f32
    %329 = vector.broadcast %cst_122 : f32 to vector<16x128xf32>
    %330 = arith.addf %328, %329 : vector<16x128xf32>
    %331 = vector.extract_strided_slice %314 {offsets = [0, 256], sizes = [16, 128], strides = [1, 1]} : vector<16x1024xf32> to vector<16x128xf32>
    %332 = math.tanh %331 : vector<16x128xf32>
    %333 = vector.extract_strided_slice %314 {offsets = [0, 384], sizes = [16, 128], strides = [1, 1]} : vector<16x1024xf32> to vector<16x128xf32>
    %cst_123 = arith.constant 5.000000e-01 : f32
    %334 = vector.broadcast %cst_123 : f32 to vector<16x128xf32>
    %335 = arith.mulf %334, %333 : vector<16x128xf32>
    %336 = math.tanh %335 : vector<16x128xf32>
    %cst_124 = arith.constant 5.000000e-01 : f32
    %337 = vector.broadcast %cst_124 : f32 to vector<16x128xf32>
    %338 = arith.mulf %337, %336 : vector<16x128xf32>
    %cst_125 = arith.constant 5.000000e-01 : f32
    %339 = vector.broadcast %cst_125 : f32 to vector<16x128xf32>
    %340 = arith.addf %338, %339 : vector<16x128xf32>
    %341 = vector.extract_strided_slice %314 {offsets = [0, 512], sizes = [16, 128], strides = [1, 1]} : vector<16x1024xf32> to vector<16x128xf32>
    %cst_126 = arith.constant 5.000000e-01 : f32
    %342 = vector.broadcast %cst_126 : f32 to vector<16x128xf32>
    %343 = arith.mulf %342, %341 : vector<16x128xf32>
    %344 = math.tanh %343 : vector<16x128xf32>
    %cst_127 = arith.constant 5.000000e-01 : f32
    %345 = vector.broadcast %cst_127 : f32 to vector<16x128xf32>
    %346 = arith.mulf %345, %344 : vector<16x128xf32>
    %cst_128 = arith.constant 5.000000e-01 : f32
    %347 = vector.broadcast %cst_128 : f32 to vector<16x128xf32>
    %348 = arith.addf %346, %347 : vector<16x128xf32>
    %349 = vector.extract_strided_slice %314 {offsets = [0, 640], sizes = [16, 128], strides = [1, 1]} : vector<16x1024xf32> to vector<16x128xf32>
    %cst_129 = arith.constant 5.000000e-01 : f32
    %350 = vector.broadcast %cst_129 : f32 to vector<16x128xf32>
    %351 = arith.mulf %350, %349 : vector<16x128xf32>
    %352 = math.tanh %351 : vector<16x128xf32>
    %cst_130 = arith.constant 5.000000e-01 : f32
    %353 = vector.broadcast %cst_130 : f32 to vector<16x128xf32>
    %354 = arith.mulf %353, %352 : vector<16x128xf32>
    %cst_131 = arith.constant 5.000000e-01 : f32
    %355 = vector.broadcast %cst_131 : f32 to vector<16x128xf32>
    %356 = arith.addf %354, %355 : vector<16x128xf32>
    %357 = vector.extract_strided_slice %314 {offsets = [0, 768], sizes = [16, 128], strides = [1, 1]} : vector<16x1024xf32> to vector<16x128xf32>
    %358 = math.tanh %357 : vector<16x128xf32>
    %359 = vector.extract_strided_slice %314 {offsets = [0, 896], sizes = [16, 128], strides = [1, 1]} : vector<16x1024xf32> to vector<16x128xf32>
    %cst_132 = arith.constant 5.000000e-01 : f32
    %360 = vector.broadcast %cst_132 : f32 to vector<16x128xf32>
    %361 = arith.mulf %360, %359 : vector<16x128xf32>
    %362 = math.tanh %361 : vector<16x128xf32>
    %cst_133 = arith.constant 5.000000e-01 : f32
    %363 = vector.broadcast %cst_133 : f32 to vector<16x128xf32>
    %364 = arith.mulf %363, %362 : vector<16x128xf32>
    %cst_134 = arith.constant 5.000000e-01 : f32
    %365 = vector.broadcast %cst_134 : f32 to vector<16x128xf32>
    %366 = arith.addf %364, %365 : vector<16x128xf32>
    %367 = arith.mulf %330, %294 : vector<16x128xf32>
    %368 = arith.mulf %322, %332 : vector<16x128xf32>
    %369 = arith.addf %367, %368 : vector<16x128xf32>
    %370 = arith.mulf %356, %297 : vector<16x128xf32>
    %371 = arith.mulf %348, %358 : vector<16x128xf32>
    %372 = arith.addf %370, %371 : vector<16x128xf32>
    %373 = math.tanh %369 : vector<16x128xf32>
    %374 = arith.mulf %340, %373 : vector<16x128xf32>
    %375 = math.tanh %372 : vector<16x128xf32>
    %376 = arith.mulf %366, %375 : vector<16x128xf32>
    %c4_135 = arith.constant 4 : index
    %c0_136 = arith.constant 0 : index
    %c0_137 = arith.constant 0 : index
    %377 = vector.load %arg4[%c4_135, %c0_136, %c0_137] : memref<16x16x128xf32, #tpu.memory_space<vmem>>, vector<1x16x128xf32>
    %378 = vector.shape_cast %377 : vector<1x16x128xf32> to vector<16x128xf32>
    %379 = vector.shape_cast %374 : vector<16x128xf32> to vector<1x16x128xf32>
    tpu.vector_store %arg4[%c4_135, %c0_136, %c0_137], %379 {strides = array<i32>} : memref<16x16x128xf32, #tpu.memory_space<vmem>>, vector<1x16x128xf32>,
    %c11 = arith.constant 11 : index
    %c0_138 = arith.constant 0 : index
    %c0_139 = arith.constant 0 : index
    %380 = vector.load %arg5[%c11, %c0_138, %c0_139] : memref<16x16x128xf32, #tpu.memory_space<vmem>>, vector<1x16x128xf32>
    %381 = vector.shape_cast %380 : vector<1x16x128xf32> to vector<16x128xf32>
    %382 = vector.shape_cast %376 : vector<16x128xf32> to vector<1x16x128xf32>
    tpu.vector_store %arg5[%c11, %c0_138, %c0_139], %382 {strides = array<i32>} : memref<16x16x128xf32, #tpu.memory_space<vmem>>, vector<1x16x128xf32>,
    %c5 = arith.constant 5 : index
    %c0_140 = arith.constant 0 : index
    %c0_141 = arith.constant 0 : index
    %383 = vector.load %arg2[%c5, %c0_140, %c0_141] : memref<16x16x1024xbf16, #tpu.memory_space<vmem>>, vector<1x16x1024xbf16>
    %384 = vector.shape_cast %383 : vector<1x16x1024xbf16> to vector<16x1024xbf16>
    %385 = arith.extf %384 : vector<16x1024xbf16> to vector<16x1024xf32>
    %386 = tpu.concatenate %374, %376 in 1 : vector<16x128xf32>, vector<16x128xf32> -> vector<16x256xf32>
    %387 = arith.truncf %386 : vector<16x256xf32> to vector<16x256xbf16>
    %cst_142 = arith.constant dense<0.000000e+00> : vector<16x1024xf32>
    %388 = tpu.matmul %387, %3, %cst_142 {dimension_numbers = #tpu.dot_dimension_numbers<[1], [0], [0], [1], [0, 0, 1, 1], [], []>} : vector<16x256xbf16>, vector<256x1024xbf16>, vector<16x1024xf32> -> vector<16x1024xf32>
    %389 = arith.addf %385, %388 : vector<16x1024xf32>
    %390 = vector.extract_strided_slice %389 {offsets = [0, 0], sizes = [16, 128], strides = [1, 1]} : vector<16x1024xf32> to vector<16x128xf32>
    %cst_143 = arith.constant 5.000000e-01 : f32
    %391 = vector.broadcast %cst_143 : f32 to vector<16x128xf32>
    %392 = arith.mulf %391, %390 : vector<16x128xf32>
    %393 = math.tanh %392 : vector<16x128xf32>
    %cst_144 = arith.constant 5.000000e-01 : f32
    %394 = vector.broadcast %cst_144 : f32 to vector<16x128xf32>
    %395 = arith.mulf %394, %393 : vector<16x128xf32>
    %cst_145 = arith.constant 5.000000e-01 : f32
    %396 = vector.broadcast %cst_145 : f32 to vector<16x128xf32>
    %397 = arith.addf %395, %396 : vector<16x128xf32>
    %398 = vector.extract_strided_slice %389 {offsets = [0, 128], sizes = [16, 128], strides = [1, 1]} : vector<16x1024xf32> to vector<16x128xf32>
    %cst_146 = arith.constant 5.000000e-01 : f32
    %399 = vector.broadcast %cst_146 : f32 to vector<16x128xf32>
    %400 = arith.mulf %399, %398 : vector<16x128xf32>
    %401 = math.tanh %400 : vector<16x128xf32>
    %cst_147 = arith.constant 5.000000e-01 : f32
    %402 = vector.broadcast %cst_147 : f32 to vector<16x128xf32>
    %403 = arith.mulf %402, %401 : vector<16x128xf32>
    %cst_148 = arith.constant 5.000000e-01 : f32
    %404 = vector.broadcast %cst_148 : f32 to vector<16x128xf32>
    %405 = arith.addf %403, %404 : vector<16x128xf32>
    %406 = vector.extract_strided_slice %389 {offsets = [0, 256], sizes = [16, 128], strides = [1, 1]} : vector<16x1024xf32> to vector<16x128xf32>
    %407 = math.tanh %406 : vector<16x128xf32>
    %408 = vector.extract_strided_slice %389 {offsets = [0, 384], sizes = [16, 128], strides = [1, 1]} : vector<16x1024xf32> to vector<16x128xf32>
    %cst_149 = arith.constant 5.000000e-01 : f32
    %409 = vector.broadcast %cst_149 : f32 to vector<16x128xf32>
    %410 = arith.mulf %409, %408 : vector<16x128xf32>
    %411 = math.tanh %410 : vector<16x128xf32>
    %cst_150 = arith.constant 5.000000e-01 : f32
    %412 = vector.broadcast %cst_150 : f32 to vector<16x128xf32>
    %413 = arith.mulf %412, %411 : vector<16x128xf32>
    %cst_151 = arith.constant 5.000000e-01 : f32
    %414 = vector.broadcast %cst_151 : f32 to vector<16x128xf32>
    %415 = arith.addf %413, %414 : vector<16x128xf32>
    %416 = vector.extract_strided_slice %389 {offsets = [0, 512], sizes = [16, 128], strides = [1, 1]} : vector<16x1024xf32> to vector<16x128xf32>
    %cst_152 = arith.constant 5.000000e-01 : f32
    %417 = vector.broadcast %cst_152 : f32 to vector<16x128xf32>
    %418 = arith.mulf %417, %416 : vector<16x128xf32>
    %419 = math.tanh %418 : vector<16x128xf32>
    %cst_153 = arith.constant 5.000000e-01 : f32
    %420 = vector.broadcast %cst_153 : f32 to vector<16x128xf32>
    %421 = arith.mulf %420, %419 : vector<16x128xf32>
    %cst_154 = arith.constant 5.000000e-01 : f32
    %422 = vector.broadcast %cst_154 : f32 to vector<16x128xf32>
    %423 = arith.addf %421, %422 : vector<16x128xf32>
    %424 = vector.extract_strided_slice %389 {offsets = [0, 640], sizes = [16, 128], strides = [1, 1]} : vector<16x1024xf32> to vector<16x128xf32>
    %cst_155 = arith.constant 5.000000e-01 : f32
    %425 = vector.broadcast %cst_155 : f32 to vector<16x128xf32>
    %426 = arith.mulf %425, %424 : vector<16x128xf32>
    %427 = math.tanh %426 : vector<16x128xf32>
    %cst_156 = arith.constant 5.000000e-01 : f32
    %428 = vector.broadcast %cst_156 : f32 to vector<16x128xf32>
    %429 = arith.mulf %428, %427 : vector<16x128xf32>
    %cst_157 = arith.constant 5.000000e-01 : f32
    %430 = vector.broadcast %cst_157 : f32 to vector<16x128xf32>
    %431 = arith.addf %429, %430 : vector<16x128xf32>
    %432 = vector.extract_strided_slice %389 {offsets = [0, 768], sizes = [16, 128], strides = [1, 1]} : vector<16x1024xf32> to vector<16x128xf32>
    %433 = math.tanh %432 : vector<16x128xf32>
    %434 = vector.extract_strided_slice %389 {offsets = [0, 896], sizes = [16, 128], strides = [1, 1]} : vector<16x1024xf32> to vector<16x128xf32>
    %cst_158 = arith.constant 5.000000e-01 : f32
    %435 = vector.broadcast %cst_158 : f32 to vector<16x128xf32>
    %436 = arith.mulf %435, %434 : vector<16x128xf32>
    %437 = math.tanh %436 : vector<16x128xf32>
    %cst_159 = arith.constant 5.000000e-01 : f32
    %438 = vector.broadcast %cst_159 : f32 to vector<16x128xf32>
    %439 = arith.mulf %438, %437 : vector<16x128xf32>
    %cst_160 = arith.constant 5.000000e-01 : f32
    %440 = vector.broadcast %cst_160 : f32 to vector<16x128xf32>
    %441 = arith.addf %439, %440 : vector<16x128xf32>
    %442 = arith.mulf %405, %369 : vector<16x128xf32>
    %443 = arith.mulf %397, %407 : vector<16x128xf32>
    %444 = arith.addf %442, %443 : vector<16x128xf32>
    %445 = arith.mulf %431, %372 : vector<16x128xf32>
    %446 = arith.mulf %423, %433 : vector<16x128xf32>
    %447 = arith.addf %445, %446 : vector<16x128xf32>
    %448 = math.tanh %444 : vector<16x128xf32>
    %449 = arith.mulf %415, %448 : vector<16x128xf32>
    %450 = math.tanh %447 : vector<16x128xf32>
    %451 = arith.mulf %441, %450 : vector<16x128xf32>
    %c5_161 = arith.constant 5 : index
    %c0_162 = arith.constant 0 : index
    %c0_163 = arith.constant 0 : index
    %452 = vector.load %arg4[%c5_161, %c0_162, %c0_163] : memref<16x16x128xf32, #tpu.memory_space<vmem>>, vector<1x16x128xf32>
    %453 = vector.shape_cast %452 : vector<1x16x128xf32> to vector<16x128xf32>
    %454 = vector.shape_cast %449 : vector<16x128xf32> to vector<1x16x128xf32>
    tpu.vector_store %arg4[%c5_161, %c0_162, %c0_163], %454 {strides = array<i32>} : memref<16x16x128xf32, #tpu.memory_space<vmem>>, vector<1x16x128xf32>,
    %c10 = arith.constant 10 : index
    %c0_164 = arith.constant 0 : index
    %c0_165 = arith.constant 0 : index
    %455 = vector.load %arg5[%c10, %c0_164, %c0_165] : memref<16x16x128xf32, #tpu.memory_space<vmem>>, vector<1x16x128xf32>
    %456 = vector.shape_cast %455 : vector<1x16x128xf32> to vector<16x128xf32>
    %457 = vector.shape_cast %451 : vector<16x128xf32> to vector<1x16x128xf32>
    tpu.vector_store %arg5[%c10, %c0_164, %c0_165], %457 {strides = array<i32>} : memref<16x16x128xf32, #tpu.memory_space<vmem>>, vector<1x16x128xf32>,
    %c6 = arith.constant 6 : index
    %c0_166 = arith.constant 0 : index
    %c0_167 = arith.constant 0 : index
    %458 = vector.load %arg2[%c6, %c0_166, %c0_167] : memref<16x16x1024xbf16, #tpu.memory_space<vmem>>, vector<1x16x1024xbf16>
    %459 = vector.shape_cast %458 : vector<1x16x1024xbf16> to vector<16x1024xbf16>
    %460 = arith.extf %459 : vector<16x1024xbf16> to vector<16x1024xf32>
    %461 = tpu.concatenate %449, %451 in 1 : vector<16x128xf32>, vector<16x128xf32> -> vector<16x256xf32>
    %462 = arith.truncf %461 : vector<16x256xf32> to vector<16x256xbf16>
    %cst_168 = arith.constant dense<0.000000e+00> : vector<16x1024xf32>
    %463 = tpu.matmul %462, %3, %cst_168 {dimension_numbers = #tpu.dot_dimension_numbers<[1], [0], [0], [1], [0, 0, 1, 1], [], []>} : vector<16x256xbf16>, vector<256x1024xbf16>, vector<16x1024xf32> -> vector<16x1024xf32>
    %464 = arith.addf %460, %463 : vector<16x1024xf32>
    %465 = vector.extract_strided_slice %464 {offsets = [0, 0], sizes = [16, 128], strides = [1, 1]} : vector<16x1024xf32> to vector<16x128xf32>
    %cst_169 = arith.constant 5.000000e-01 : f32
    %466 = vector.broadcast %cst_169 : f32 to vector<16x128xf32>
    %467 = arith.mulf %466, %465 : vector<16x128xf32>
    %468 = math.tanh %467 : vector<16x128xf32>
    %cst_170 = arith.constant 5.000000e-01 : f32
    %469 = vector.broadcast %cst_170 : f32 to vector<16x128xf32>
    %470 = arith.mulf %469, %468 : vector<16x128xf32>
    %cst_171 = arith.constant 5.000000e-01 : f32
    %471 = vector.broadcast %cst_171 : f32 to vector<16x128xf32>
    %472 = arith.addf %470, %471 : vector<16x128xf32>
    %473 = vector.extract_strided_slice %464 {offsets = [0, 128], sizes = [16, 128], strides = [1, 1]} : vector<16x1024xf32> to vector<16x128xf32>
    %cst_172 = arith.constant 5.000000e-01 : f32
    %474 = vector.broadcast %cst_172 : f32 to vector<16x128xf32>
    %475 = arith.mulf %474, %473 : vector<16x128xf32>
    %476 = math.tanh %475 : vector<16x128xf32>
    %cst_173 = arith.constant 5.000000e-01 : f32
    %477 = vector.broadcast %cst_173 : f32 to vector<16x128xf32>
    %478 = arith.mulf %477, %476 : vector<16x128xf32>
    %cst_174 = arith.constant 5.000000e-01 : f32
    %479 = vector.broadcast %cst_174 : f32 to vector<16x128xf32>
    %480 = arith.addf %478, %479 : vector<16x128xf32>
    %481 = vector.extract_strided_slice %464 {offsets = [0, 256], sizes = [16, 128], strides = [1, 1]} : vector<16x1024xf32> to vector<16x128xf32>
    %482 = math.tanh %481 : vector<16x128xf32>
    %483 = vector.extract_strided_slice %464 {offsets = [0, 384], sizes = [16, 128], strides = [1, 1]} : vector<16x1024xf32> to vector<16x128xf32>
    %cst_175 = arith.constant 5.000000e-01 : f32
    %484 = vector.broadcast %cst_175 : f32 to vector<16x128xf32>
    %485 = arith.mulf %484, %483 : vector<16x128xf32>
    %486 = math.tanh %485 : vector<16x128xf32>
    %cst_176 = arith.constant 5.000000e-01 : f32
    %487 = vector.broadcast %cst_176 : f32 to vector<16x128xf32>
    %488 = arith.mulf %487, %486 : vector<16x128xf32>
    %cst_177 = arith.constant 5.000000e-01 : f32
    %489 = vector.broadcast %cst_177 : f32 to vector<16x128xf32>
    %490 = arith.addf %488, %489 : vector<16x128xf32>
    %491 = vector.extract_strided_slice %464 {offsets = [0, 512], sizes = [16, 128], strides = [1, 1]} : vector<16x1024xf32> to vector<16x128xf32>
    %cst_178 = arith.constant 5.000000e-01 : f32
    %492 = vector.broadcast %cst_178 : f32 to vector<16x128xf32>
    %493 = arith.mulf %492, %491 : vector<16x128xf32>
    %494 = math.tanh %493 : vector<16x128xf32>
    %cst_179 = arith.constant 5.000000e-01 : f32
    %495 = vector.broadcast %cst_179 : f32 to vector<16x128xf32>
    %496 = arith.mulf %495, %494 : vector<16x128xf32>
    %cst_180 = arith.constant 5.000000e-01 : f32
    %497 = vector.broadcast %cst_180 : f32 to vector<16x128xf32>
    %498 = arith.addf %496, %497 : vector<16x128xf32>
    %499 = vector.extract_strided_slice %464 {offsets = [0, 640], sizes = [16, 128], strides = [1, 1]} : vector<16x1024xf32> to vector<16x128xf32>
    %cst_181 = arith.constant 5.000000e-01 : f32
    %500 = vector.broadcast %cst_181 : f32 to vector<16x128xf32>
    %501 = arith.mulf %500, %499 : vector<16x128xf32>
    %502 = math.tanh %501 : vector<16x128xf32>
    %cst_182 = arith.constant 5.000000e-01 : f32
    %503 = vector.broadcast %cst_182 : f32 to vector<16x128xf32>
    %504 = arith.mulf %503, %502 : vector<16x128xf32>
    %cst_183 = arith.constant 5.000000e-01 : f32
    %505 = vector.broadcast %cst_183 : f32 to vector<16x128xf32>
    %506 = arith.addf %504, %505 : vector<16x128xf32>
    %507 = vector.extract_strided_slice %464 {offsets = [0, 768], sizes = [16, 128], strides = [1, 1]} : vector<16x1024xf32> to vector<16x128xf32>
    %508 = math.tanh %507 : vector<16x128xf32>
    %509 = vector.extract_strided_slice %464 {offsets = [0, 896], sizes = [16, 128], strides = [1, 1]} : vector<16x1024xf32> to vector<16x128xf32>
    %cst_184 = arith.constant 5.000000e-01 : f32
    %510 = vector.broadcast %cst_184 : f32 to vector<16x128xf32>
    %511 = arith.mulf %510, %509 : vector<16x128xf32>
    %512 = math.tanh %511 : vector<16x128xf32>
    %cst_185 = arith.constant 5.000000e-01 : f32
    %513 = vector.broadcast %cst_185 : f32 to vector<16x128xf32>
    %514 = arith.mulf %513, %512 : vector<16x128xf32>
    %cst_186 = arith.constant 5.000000e-01 : f32
    %515 = vector.broadcast %cst_186 : f32 to vector<16x128xf32>
    %516 = arith.addf %514, %515 : vector<16x128xf32>
    %517 = arith.mulf %480, %444 : vector<16x128xf32>
    %518 = arith.mulf %472, %482 : vector<16x128xf32>
    %519 = arith.addf %517, %518 : vector<16x128xf32>
    %520 = arith.mulf %506, %447 : vector<16x128xf32>
    %521 = arith.mulf %498, %508 : vector<16x128xf32>
    %522 = arith.addf %520, %521 : vector<16x128xf32>
    %523 = math.tanh %519 : vector<16x128xf32>
    %524 = arith.mulf %490, %523 : vector<16x128xf32>
    %525 = math.tanh %522 : vector<16x128xf32>
    %526 = arith.mulf %516, %525 : vector<16x128xf32>
    %c6_187 = arith.constant 6 : index
    %c0_188 = arith.constant 0 : index
    %c0_189 = arith.constant 0 : index
    %527 = vector.load %arg4[%c6_187, %c0_188, %c0_189] : memref<16x16x128xf32, #tpu.memory_space<vmem>>, vector<1x16x128xf32>
    %528 = vector.shape_cast %527 : vector<1x16x128xf32> to vector<16x128xf32>
    %529 = vector.shape_cast %524 : vector<16x128xf32> to vector<1x16x128xf32>
    tpu.vector_store %arg4[%c6_187, %c0_188, %c0_189], %529 {strides = array<i32>} : memref<16x16x128xf32, #tpu.memory_space<vmem>>, vector<1x16x128xf32>,
    %c9 = arith.constant 9 : index
    %c0_190 = arith.constant 0 : index
    %c0_191 = arith.constant 0 : index
    %530 = vector.load %arg5[%c9, %c0_190, %c0_191] : memref<16x16x128xf32, #tpu.memory_space<vmem>>, vector<1x16x128xf32>
    %531 = vector.shape_cast %530 : vector<1x16x128xf32> to vector<16x128xf32>
    %532 = vector.shape_cast %526 : vector<16x128xf32> to vector<1x16x128xf32>
    tpu.vector_store %arg5[%c9, %c0_190, %c0_191], %532 {strides = array<i32>} : memref<16x16x128xf32, #tpu.memory_space<vmem>>, vector<1x16x128xf32>,
    %c7 = arith.constant 7 : index
    %c0_192 = arith.constant 0 : index
    %c0_193 = arith.constant 0 : index
    %533 = vector.load %arg2[%c7, %c0_192, %c0_193] : memref<16x16x1024xbf16, #tpu.memory_space<vmem>>, vector<1x16x1024xbf16>
    %534 = vector.shape_cast %533 : vector<1x16x1024xbf16> to vector<16x1024xbf16>
    %535 = arith.extf %534 : vector<16x1024xbf16> to vector<16x1024xf32>
    %536 = tpu.concatenate %524, %526 in 1 : vector<16x128xf32>, vector<16x128xf32> -> vector<16x256xf32>
    %537 = arith.truncf %536 : vector<16x256xf32> to vector<16x256xbf16>
    %cst_194 = arith.constant dense<0.000000e+00> : vector<16x1024xf32>
    %538 = tpu.matmul %537, %3, %cst_194 {dimension_numbers = #tpu.dot_dimension_numbers<[1], [0], [0], [1], [0, 0, 1, 1], [], []>} : vector<16x256xbf16>, vector<256x1024xbf16>, vector<16x1024xf32> -> vector<16x1024xf32>
    %539 = arith.addf %535, %538 : vector<16x1024xf32>
    %540 = vector.extract_strided_slice %539 {offsets = [0, 0], sizes = [16, 128], strides = [1, 1]} : vector<16x1024xf32> to vector<16x128xf32>
    %cst_195 = arith.constant 5.000000e-01 : f32
    %541 = vector.broadcast %cst_195 : f32 to vector<16x128xf32>
    %542 = arith.mulf %541, %540 : vector<16x128xf32>
    %543 = math.tanh %542 : vector<16x128xf32>
    %cst_196 = arith.constant 5.000000e-01 : f32
    %544 = vector.broadcast %cst_196 : f32 to vector<16x128xf32>
    %545 = arith.mulf %544, %543 : vector<16x128xf32>
    %cst_197 = arith.constant 5.000000e-01 : f32
    %546 = vector.broadcast %cst_197 : f32 to vector<16x128xf32>
    %547 = arith.addf %545, %546 : vector<16x128xf32>
    %548 = vector.extract_strided_slice %539 {offsets = [0, 128], sizes = [16, 128], strides = [1, 1]} : vector<16x1024xf32> to vector<16x128xf32>
    %cst_198 = arith.constant 5.000000e-01 : f32
    %549 = vector.broadcast %cst_198 : f32 to vector<16x128xf32>
    %550 = arith.mulf %549, %548 : vector<16x128xf32>
    %551 = math.tanh %550 : vector<16x128xf32>
    %cst_199 = arith.constant 5.000000e-01 : f32
    %552 = vector.broadcast %cst_199 : f32 to vector<16x128xf32>
    %553 = arith.mulf %552, %551 : vector<16x128xf32>
    %cst_200 = arith.constant 5.000000e-01 : f32
    %554 = vector.broadcast %cst_200 : f32 to vector<16x128xf32>
    %555 = arith.addf %553, %554 : vector<16x128xf32>
    %556 = vector.extract_strided_slice %539 {offsets = [0, 256], sizes = [16, 128], strides = [1, 1]} : vector<16x1024xf32> to vector<16x128xf32>
    %557 = math.tanh %556 : vector<16x128xf32>
    %558 = vector.extract_strided_slice %539 {offsets = [0, 384], sizes = [16, 128], strides = [1, 1]} : vector<16x1024xf32> to vector<16x128xf32>
    %cst_201 = arith.constant 5.000000e-01 : f32
    %559 = vector.broadcast %cst_201 : f32 to vector<16x128xf32>
    %560 = arith.mulf %559, %558 : vector<16x128xf32>
    %561 = math.tanh %560 : vector<16x128xf32>
    %cst_202 = arith.constant 5.000000e-01 : f32
    %562 = vector.broadcast %cst_202 : f32 to vector<16x128xf32>
    %563 = arith.mulf %562, %561 : vector<16x128xf32>
    %cst_203 = arith.constant 5.000000e-01 : f32
    %564 = vector.broadcast %cst_203 : f32 to vector<16x128xf32>
    %565 = arith.addf %563, %564 : vector<16x128xf32>
    %566 = vector.extract_strided_slice %539 {offsets = [0, 512], sizes = [16, 128], strides = [1, 1]} : vector<16x1024xf32> to vector<16x128xf32>
    %cst_204 = arith.constant 5.000000e-01 : f32
    %567 = vector.broadcast %cst_204 : f32 to vector<16x128xf32>
    %568 = arith.mulf %567, %566 : vector<16x128xf32>
    %569 = math.tanh %568 : vector<16x128xf32>
    %cst_205 = arith.constant 5.000000e-01 : f32
    %570 = vector.broadcast %cst_205 : f32 to vector<16x128xf32>
    %571 = arith.mulf %570, %569 : vector<16x128xf32>
    %cst_206 = arith.constant 5.000000e-01 : f32
    %572 = vector.broadcast %cst_206 : f32 to vector<16x128xf32>
    %573 = arith.addf %571, %572 : vector<16x128xf32>
    %574 = vector.extract_strided_slice %539 {offsets = [0, 640], sizes = [16, 128], strides = [1, 1]} : vector<16x1024xf32> to vector<16x128xf32>
    %cst_207 = arith.constant 5.000000e-01 : f32
    %575 = vector.broadcast %cst_207 : f32 to vector<16x128xf32>
    %576 = arith.mulf %575, %574 : vector<16x128xf32>
    %577 = math.tanh %576 : vector<16x128xf32>
    %cst_208 = arith.constant 5.000000e-01 : f32
    %578 = vector.broadcast %cst_208 : f32 to vector<16x128xf32>
    %579 = arith.mulf %578, %577 : vector<16x128xf32>
    %cst_209 = arith.constant 5.000000e-01 : f32
    %580 = vector.broadcast %cst_209 : f32 to vector<16x128xf32>
    %581 = arith.addf %579, %580 : vector<16x128xf32>
    %582 = vector.extract_strided_slice %539 {offsets = [0, 768], sizes = [16, 128], strides = [1, 1]} : vector<16x1024xf32> to vector<16x128xf32>
    %583 = math.tanh %582 : vector<16x128xf32>
    %584 = vector.extract_strided_slice %539 {offsets = [0, 896], sizes = [16, 128], strides = [1, 1]} : vector<16x1024xf32> to vector<16x128xf32>
    %cst_210 = arith.constant 5.000000e-01 : f32
    %585 = vector.broadcast %cst_210 : f32 to vector<16x128xf32>
    %586 = arith.mulf %585, %584 : vector<16x128xf32>
    %587 = math.tanh %586 : vector<16x128xf32>
    %cst_211 = arith.constant 5.000000e-01 : f32
    %588 = vector.broadcast %cst_211 : f32 to vector<16x128xf32>
    %589 = arith.mulf %588, %587 : vector<16x128xf32>
    %cst_212 = arith.constant 5.000000e-01 : f32
    %590 = vector.broadcast %cst_212 : f32 to vector<16x128xf32>
    %591 = arith.addf %589, %590 : vector<16x128xf32>
    %592 = arith.mulf %555, %519 : vector<16x128xf32>
    %593 = arith.mulf %547, %557 : vector<16x128xf32>
    %594 = arith.addf %592, %593 : vector<16x128xf32>
    %595 = arith.mulf %581, %522 : vector<16x128xf32>
    %596 = arith.mulf %573, %583 : vector<16x128xf32>
    %597 = arith.addf %595, %596 : vector<16x128xf32>
    %598 = math.tanh %594 : vector<16x128xf32>
    %599 = arith.mulf %565, %598 : vector<16x128xf32>
    %600 = math.tanh %597 : vector<16x128xf32>
    %601 = arith.mulf %591, %600 : vector<16x128xf32>
    %c7_213 = arith.constant 7 : index
    %c0_214 = arith.constant 0 : index
    %c0_215 = arith.constant 0 : index
    %602 = vector.load %arg4[%c7_213, %c0_214, %c0_215] : memref<16x16x128xf32, #tpu.memory_space<vmem>>, vector<1x16x128xf32>
    %603 = vector.shape_cast %602 : vector<1x16x128xf32> to vector<16x128xf32>
    %604 = vector.shape_cast %599 : vector<16x128xf32> to vector<1x16x128xf32>
    tpu.vector_store %arg4[%c7_213, %c0_214, %c0_215], %604 {strides = array<i32>} : memref<16x16x128xf32, #tpu.memory_space<vmem>>, vector<1x16x128xf32>,
    %c8 = arith.constant 8 : index
    %c0_216 = arith.constant 0 : index
    %c0_217 = arith.constant 0 : index
    %605 = vector.load %arg5[%c8, %c0_216, %c0_217] : memref<16x16x128xf32, #tpu.memory_space<vmem>>, vector<1x16x128xf32>
    %606 = vector.shape_cast %605 : vector<1x16x128xf32> to vector<16x128xf32>
    %607 = vector.shape_cast %601 : vector<16x128xf32> to vector<1x16x128xf32>
    tpu.vector_store %arg5[%c8, %c0_216, %c0_217], %607 {strides = array<i32>} : memref<16x16x128xf32, #tpu.memory_space<vmem>>, vector<1x16x128xf32>,
    %c8_218 = arith.constant 8 : index
    %c0_219 = arith.constant 0 : index
    %c0_220 = arith.constant 0 : index
    %608 = vector.load %arg2[%c8_218, %c0_219, %c0_220] : memref<16x16x1024xbf16, #tpu.memory_space<vmem>>, vector<1x16x1024xbf16>
    %609 = vector.shape_cast %608 : vector<1x16x1024xbf16> to vector<16x1024xbf16>
    %610 = arith.extf %609 : vector<16x1024xbf16> to vector<16x1024xf32>
    %611 = tpu.concatenate %599, %601 in 1 : vector<16x128xf32>, vector<16x128xf32> -> vector<16x256xf32>
    %612 = arith.truncf %611 : vector<16x256xf32> to vector<16x256xbf16>
    %cst_221 = arith.constant dense<0.000000e+00> : vector<16x1024xf32>
    %613 = tpu.matmul %612, %3, %cst_221 {dimension_numbers = #tpu.dot_dimension_numbers<[1], [0], [0], [1], [0, 0, 1, 1], [], []>} : vector<16x256xbf16>, vector<256x1024xbf16>, vector<16x1024xf32> -> vector<16x1024xf32>
    %614 = arith.addf %610, %613 : vector<16x1024xf32>
    %615 = vector.extract_strided_slice %614 {offsets = [0, 0], sizes = [16, 128], strides = [1, 1]} : vector<16x1024xf32> to vector<16x128xf32>
    %cst_222 = arith.constant 5.000000e-01 : f32
    %616 = vector.broadcast %cst_222 : f32 to vector<16x128xf32>
    %617 = arith.mulf %616, %615 : vector<16x128xf32>
    %618 = math.tanh %617 : vector<16x128xf32>
    %cst_223 = arith.constant 5.000000e-01 : f32
    %619 = vector.broadcast %cst_223 : f32 to vector<16x128xf32>
    %620 = arith.mulf %619, %618 : vector<16x128xf32>
    %cst_224 = arith.constant 5.000000e-01 : f32
    %621 = vector.broadcast %cst_224 : f32 to vector<16x128xf32>
    %622 = arith.addf %620, %621 : vector<16x128xf32>
    %623 = vector.extract_strided_slice %614 {offsets = [0, 128], sizes = [16, 128], strides = [1, 1]} : vector<16x1024xf32> to vector<16x128xf32>
    %cst_225 = arith.constant 5.000000e-01 : f32
    %624 = vector.broadcast %cst_225 : f32 to vector<16x128xf32>
    %625 = arith.mulf %624, %623 : vector<16x128xf32>
    %626 = math.tanh %625 : vector<16x128xf32>
    %cst_226 = arith.constant 5.000000e-01 : f32
    %627 = vector.broadcast %cst_226 : f32 to vector<16x128xf32>
    %628 = arith.mulf %627, %626 : vector<16x128xf32>
    %cst_227 = arith.constant 5.000000e-01 : f32
    %629 = vector.broadcast %cst_227 : f32 to vector<16x128xf32>
    %630 = arith.addf %628, %629 : vector<16x128xf32>
    %631 = vector.extract_strided_slice %614 {offsets = [0, 256], sizes = [16, 128], strides = [1, 1]} : vector<16x1024xf32> to vector<16x128xf32>
    %632 = math.tanh %631 : vector<16x128xf32>
    %633 = vector.extract_strided_slice %614 {offsets = [0, 384], sizes = [16, 128], strides = [1, 1]} : vector<16x1024xf32> to vector<16x128xf32>
    %cst_228 = arith.constant 5.000000e-01 : f32
    %634 = vector.broadcast %cst_228 : f32 to vector<16x128xf32>
    %635 = arith.mulf %634, %633 : vector<16x128xf32>
    %636 = math.tanh %635 : vector<16x128xf32>
    %cst_229 = arith.constant 5.000000e-01 : f32
    %637 = vector.broadcast %cst_229 : f32 to vector<16x128xf32>
    %638 = arith.mulf %637, %636 : vector<16x128xf32>
    %cst_230 = arith.constant 5.000000e-01 : f32
    %639 = vector.broadcast %cst_230 : f32 to vector<16x128xf32>
    %640 = arith.addf %638, %639 : vector<16x128xf32>
    %641 = vector.extract_strided_slice %614 {offsets = [0, 512], sizes = [16, 128], strides = [1, 1]} : vector<16x1024xf32> to vector<16x128xf32>
    %cst_231 = arith.constant 5.000000e-01 : f32
    %642 = vector.broadcast %cst_231 : f32 to vector<16x128xf32>
    %643 = arith.mulf %642, %641 : vector<16x128xf32>
    %644 = math.tanh %643 : vector<16x128xf32>
    %cst_232 = arith.constant 5.000000e-01 : f32
    %645 = vector.broadcast %cst_232 : f32 to vector<16x128xf32>
    %646 = arith.mulf %645, %644 : vector<16x128xf32>
    %cst_233 = arith.constant 5.000000e-01 : f32
    %647 = vector.broadcast %cst_233 : f32 to vector<16x128xf32>
    %648 = arith.addf %646, %647 : vector<16x128xf32>
    %649 = vector.extract_strided_slice %614 {offsets = [0, 640], sizes = [16, 128], strides = [1, 1]} : vector<16x1024xf32> to vector<16x128xf32>
    %cst_234 = arith.constant 5.000000e-01 : f32
    %650 = vector.broadcast %cst_234 : f32 to vector<16x128xf32>
    %651 = arith.mulf %650, %649 : vector<16x128xf32>
    %652 = math.tanh %651 : vector<16x128xf32>
    %cst_235 = arith.constant 5.000000e-01 : f32
    %653 = vector.broadcast %cst_235 : f32 to vector<16x128xf32>
    %654 = arith.mulf %653, %652 : vector<16x128xf32>
    %cst_236 = arith.constant 5.000000e-01 : f32
    %655 = vector.broadcast %cst_236 : f32 to vector<16x128xf32>
    %656 = arith.addf %654, %655 : vector<16x128xf32>
    %657 = vector.extract_strided_slice %614 {offsets = [0, 768], sizes = [16, 128], strides = [1, 1]} : vector<16x1024xf32> to vector<16x128xf32>
    %658 = math.tanh %657 : vector<16x128xf32>
    %659 = vector.extract_strided_slice %614 {offsets = [0, 896], sizes = [16, 128], strides = [1, 1]} : vector<16x1024xf32> to vector<16x128xf32>
    %cst_237 = arith.constant 5.000000e-01 : f32
    %660 = vector.broadcast %cst_237 : f32 to vector<16x128xf32>
    %661 = arith.mulf %660, %659 : vector<16x128xf32>
    %662 = math.tanh %661 : vector<16x128xf32>
    %cst_238 = arith.constant 5.000000e-01 : f32
    %663 = vector.broadcast %cst_238 : f32 to vector<16x128xf32>
    %664 = arith.mulf %663, %662 : vector<16x128xf32>
    %cst_239 = arith.constant 5.000000e-01 : f32
    %665 = vector.broadcast %cst_239 : f32 to vector<16x128xf32>
    %666 = arith.addf %664, %665 : vector<16x128xf32>
    %667 = arith.mulf %630, %594 : vector<16x128xf32>
    %668 = arith.mulf %622, %632 : vector<16x128xf32>
    %669 = arith.addf %667, %668 : vector<16x128xf32>
    %670 = arith.mulf %656, %597 : vector<16x128xf32>
    %671 = arith.mulf %648, %658 : vector<16x128xf32>
    %672 = arith.addf %670, %671 : vector<16x128xf32>
    %673 = math.tanh %669 : vector<16x128xf32>
    %674 = arith.mulf %640, %673 : vector<16x128xf32>
    %675 = math.tanh %672 : vector<16x128xf32>
    %676 = arith.mulf %666, %675 : vector<16x128xf32>
    %c8_240 = arith.constant 8 : index
    %c0_241 = arith.constant 0 : index
    %c0_242 = arith.constant 0 : index
    %677 = vector.load %arg4[%c8_240, %c0_241, %c0_242] : memref<16x16x128xf32, #tpu.memory_space<vmem>>, vector<1x16x128xf32>
    %678 = vector.shape_cast %677 : vector<1x16x128xf32> to vector<16x128xf32>
    %679 = vector.shape_cast %674 : vector<16x128xf32> to vector<1x16x128xf32>
    tpu.vector_store %arg4[%c8_240, %c0_241, %c0_242], %679 {strides = array<i32>} : memref<16x16x128xf32, #tpu.memory_space<vmem>>, vector<1x16x128xf32>,
    %c7_243 = arith.constant 7 : index
    %c0_244 = arith.constant 0 : index
    %c0_245 = arith.constant 0 : index
    %680 = vector.load %arg5[%c7_243, %c0_244, %c0_245] : memref<16x16x128xf32, #tpu.memory_space<vmem>>, vector<1x16x128xf32>
    %681 = vector.shape_cast %680 : vector<1x16x128xf32> to vector<16x128xf32>
    %682 = vector.shape_cast %676 : vector<16x128xf32> to vector<1x16x128xf32>
    tpu.vector_store %arg5[%c7_243, %c0_244, %c0_245], %682 {strides = array<i32>} : memref<16x16x128xf32, #tpu.memory_space<vmem>>, vector<1x16x128xf32>,
    %c9_246 = arith.constant 9 : index
    %c0_247 = arith.constant 0 : index
    %c0_248 = arith.constant 0 : index
    %683 = vector.load %arg2[%c9_246, %c0_247, %c0_248] : memref<16x16x1024xbf16, #tpu.memory_space<vmem>>, vector<1x16x1024xbf16>
    %684 = vector.shape_cast %683 : vector<1x16x1024xbf16> to vector<16x1024xbf16>
    %685 = arith.extf %684 : vector<16x1024xbf16> to vector<16x1024xf32>
    %686 = tpu.concatenate %674, %676 in 1 : vector<16x128xf32>, vector<16x128xf32> -> vector<16x256xf32>
    %687 = arith.truncf %686 : vector<16x256xf32> to vector<16x256xbf16>
    %cst_249 = arith.constant dense<0.000000e+00> : vector<16x1024xf32>
    %688 = tpu.matmul %687, %3, %cst_249 {dimension_numbers = #tpu.dot_dimension_numbers<[1], [0], [0], [1], [0, 0, 1, 1], [], []>} : vector<16x256xbf16>, vector<256x1024xbf16>, vector<16x1024xf32> -> vector<16x1024xf32>
    %689 = arith.addf %685, %688 : vector<16x1024xf32>
    %690 = vector.extract_strided_slice %689 {offsets = [0, 0], sizes = [16, 128], strides = [1, 1]} : vector<16x1024xf32> to vector<16x128xf32>
    %cst_250 = arith.constant 5.000000e-01 : f32
    %691 = vector.broadcast %cst_250 : f32 to vector<16x128xf32>
    %692 = arith.mulf %691, %690 : vector<16x128xf32>
    %693 = math.tanh %692 : vector<16x128xf32>
    %cst_251 = arith.constant 5.000000e-01 : f32
    %694 = vector.broadcast %cst_251 : f32 to vector<16x128xf32>
    %695 = arith.mulf %694, %693 : vector<16x128xf32>
    %cst_252 = arith.constant 5.000000e-01 : f32
    %696 = vector.broadcast %cst_252 : f32 to vector<16x128xf32>
    %697 = arith.addf %695, %696 : vector<16x128xf32>
    %698 = vector.extract_strided_slice %689 {offsets = [0, 128], sizes = [16, 128], strides = [1, 1]} : vector<16x1024xf32> to vector<16x128xf32>
    %cst_253 = arith.constant 5.000000e-01 : f32
    %699 = vector.broadcast %cst_253 : f32 to vector<16x128xf32>
    %700 = arith.mulf %699, %698 : vector<16x128xf32>
    %701 = math.tanh %700 : vector<16x128xf32>
    %cst_254 = arith.constant 5.000000e-01 : f32
    %702 = vector.broadcast %cst_254 : f32 to vector<16x128xf32>
    %703 = arith.mulf %702, %701 : vector<16x128xf32>
    %cst_255 = arith.constant 5.000000e-01 : f32
    %704 = vector.broadcast %cst_255 : f32 to vector<16x128xf32>
    %705 = arith.addf %703, %704 : vector<16x128xf32>
    %706 = vector.extract_strided_slice %689 {offsets = [0, 256], sizes = [16, 128], strides = [1, 1]} : vector<16x1024xf32> to vector<16x128xf32>
    %707 = math.tanh %706 : vector<16x128xf32>
    %708 = vector.extract_strided_slice %689 {offsets = [0, 384], sizes = [16, 128], strides = [1, 1]} : vector<16x1024xf32> to vector<16x128xf32>
    %cst_256 = arith.constant 5.000000e-01 : f32
    %709 = vector.broadcast %cst_256 : f32 to vector<16x128xf32>
    %710 = arith.mulf %709, %708 : vector<16x128xf32>
    %711 = math.tanh %710 : vector<16x128xf32>
    %cst_257 = arith.constant 5.000000e-01 : f32
    %712 = vector.broadcast %cst_257 : f32 to vector<16x128xf32>
    %713 = arith.mulf %712, %711 : vector<16x128xf32>
    %cst_258 = arith.constant 5.000000e-01 : f32
    %714 = vector.broadcast %cst_258 : f32 to vector<16x128xf32>
    %715 = arith.addf %713, %714 : vector<16x128xf32>
    %716 = vector.extract_strided_slice %689 {offsets = [0, 512], sizes = [16, 128], strides = [1, 1]} : vector<16x1024xf32> to vector<16x128xf32>
    %cst_259 = arith.constant 5.000000e-01 : f32
    %717 = vector.broadcast %cst_259 : f32 to vector<16x128xf32>
    %718 = arith.mulf %717, %716 : vector<16x128xf32>
    %719 = math.tanh %718 : vector<16x128xf32>
    %cst_260 = arith.constant 5.000000e-01 : f32
    %720 = vector.broadcast %cst_260 : f32 to vector<16x128xf32>
    %721 = arith.mulf %720, %719 : vector<16x128xf32>
    %cst_261 = arith.constant 5.000000e-01 : f32
    %722 = vector.broadcast %cst_261 : f32 to vector<16x128xf32>
    %723 = arith.addf %721, %722 : vector<16x128xf32>
    %724 = vector.extract_strided_slice %689 {offsets = [0, 640], sizes = [16, 128], strides = [1, 1]} : vector<16x1024xf32> to vector<16x128xf32>
    %cst_262 = arith.constant 5.000000e-01 : f32
    %725 = vector.broadcast %cst_262 : f32 to vector<16x128xf32>
    %726 = arith.mulf %725, %724 : vector<16x128xf32>
    %727 = math.tanh %726 : vector<16x128xf32>
    %cst_263 = arith.constant 5.000000e-01 : f32
    %728 = vector.broadcast %cst_263 : f32 to vector<16x128xf32>
    %729 = arith.mulf %728, %727 : vector<16x128xf32>
    %cst_264 = arith.constant 5.000000e-01 : f32
    %730 = vector.broadcast %cst_264 : f32 to vector<16x128xf32>
    %731 = arith.addf %729, %730 : vector<16x128xf32>
    %732 = vector.extract_strided_slice %689 {offsets = [0, 768], sizes = [16, 128], strides = [1, 1]} : vector<16x1024xf32> to vector<16x128xf32>
    %733 = math.tanh %732 : vector<16x128xf32>
    %734 = vector.extract_strided_slice %689 {offsets = [0, 896], sizes = [16, 128], strides = [1, 1]} : vector<16x1024xf32> to vector<16x128xf32>
    %cst_265 = arith.constant 5.000000e-01 : f32
    %735 = vector.broadcast %cst_265 : f32 to vector<16x128xf32>
    %736 = arith.mulf %735, %734 : vector<16x128xf32>
    %737 = math.tanh %736 : vector<16x128xf32>
    %cst_266 = arith.constant 5.000000e-01 : f32
    %738 = vector.broadcast %cst_266 : f32 to vector<16x128xf32>
    %739 = arith.mulf %738, %737 : vector<16x128xf32>
    %cst_267 = arith.constant 5.000000e-01 : f32
    %740 = vector.broadcast %cst_267 : f32 to vector<16x128xf32>
    %741 = arith.addf %739, %740 : vector<16x128xf32>
    %742 = arith.mulf %705, %669 : vector<16x128xf32>
    %743 = arith.mulf %697, %707 : vector<16x128xf32>
    %744 = arith.addf %742, %743 : vector<16x128xf32>
    %745 = arith.mulf %731, %672 : vector<16x128xf32>
    %746 = arith.mulf %723, %733 : vector<16x128xf32>
    %747 = arith.addf %745, %746 : vector<16x128xf32>
    %748 = math.tanh %744 : vector<16x128xf32>
    %749 = arith.mulf %715, %748 : vector<16x128xf32>
    %750 = math.tanh %747 : vector<16x128xf32>
    %751 = arith.mulf %741, %750 : vector<16x128xf32>
    %c9_268 = arith.constant 9 : index
    %c0_269 = arith.constant 0 : index
    %c0_270 = arith.constant 0 : index
    %752 = vector.load %arg4[%c9_268, %c0_269, %c0_270] : memref<16x16x128xf32, #tpu.memory_space<vmem>>, vector<1x16x128xf32>
    %753 = vector.shape_cast %752 : vector<1x16x128xf32> to vector<16x128xf32>
    %754 = vector.shape_cast %749 : vector<16x128xf32> to vector<1x16x128xf32>
    tpu.vector_store %arg4[%c9_268, %c0_269, %c0_270], %754 {strides = array<i32>} : memref<16x16x128xf32, #tpu.memory_space<vmem>>, vector<1x16x128xf32>,
    %c6_271 = arith.constant 6 : index
    %c0_272 = arith.constant 0 : index
    %c0_273 = arith.constant 0 : index
    %755 = vector.load %arg5[%c6_271, %c0_272, %c0_273] : memref<16x16x128xf32, #tpu.memory_space<vmem>>, vector<1x16x128xf32>
    %756 = vector.shape_cast %755 : vector<1x16x128xf32> to vector<16x128xf32>
    %757 = vector.shape_cast %751 : vector<16x128xf32> to vector<1x16x128xf32>
    tpu.vector_store %arg5[%c6_271, %c0_272, %c0_273], %757 {strides = array<i32>} : memref<16x16x128xf32, #tpu.memory_space<vmem>>, vector<1x16x128xf32>,
    %c10_274 = arith.constant 10 : index
    %c0_275 = arith.constant 0 : index
    %c0_276 = arith.constant 0 : index
    %758 = vector.load %arg2[%c10_274, %c0_275, %c0_276] : memref<16x16x1024xbf16, #tpu.memory_space<vmem>>, vector<1x16x1024xbf16>
    %759 = vector.shape_cast %758 : vector<1x16x1024xbf16> to vector<16x1024xbf16>
    %760 = arith.extf %759 : vector<16x1024xbf16> to vector<16x1024xf32>
    %761 = tpu.concatenate %749, %751 in 1 : vector<16x128xf32>, vector<16x128xf32> -> vector<16x256xf32>
    %762 = arith.truncf %761 : vector<16x256xf32> to vector<16x256xbf16>
    %cst_277 = arith.constant dense<0.000000e+00> : vector<16x1024xf32>
    %763 = tpu.matmul %762, %3, %cst_277 {dimension_numbers = #tpu.dot_dimension_numbers<[1], [0], [0], [1], [0, 0, 1, 1], [], []>} : vector<16x256xbf16>, vector<256x1024xbf16>, vector<16x1024xf32> -> vector<16x1024xf32>
    %764 = arith.addf %760, %763 : vector<16x1024xf32>
    %765 = vector.extract_strided_slice %764 {offsets = [0, 0], sizes = [16, 128], strides = [1, 1]} : vector<16x1024xf32> to vector<16x128xf32>
    %cst_278 = arith.constant 5.000000e-01 : f32
    %766 = vector.broadcast %cst_278 : f32 to vector<16x128xf32>
    %767 = arith.mulf %766, %765 : vector<16x128xf32>
    %768 = math.tanh %767 : vector<16x128xf32>
    %cst_279 = arith.constant 5.000000e-01 : f32
    %769 = vector.broadcast %cst_279 : f32 to vector<16x128xf32>
    %770 = arith.mulf %769, %768 : vector<16x128xf32>
    %cst_280 = arith.constant 5.000000e-01 : f32
    %771 = vector.broadcast %cst_280 : f32 to vector<16x128xf32>
    %772 = arith.addf %770, %771 : vector<16x128xf32>
    %773 = vector.extract_strided_slice %764 {offsets = [0, 128], sizes = [16, 128], strides = [1, 1]} : vector<16x1024xf32> to vector<16x128xf32>
    %cst_281 = arith.constant 5.000000e-01 : f32
    %774 = vector.broadcast %cst_281 : f32 to vector<16x128xf32>
    %775 = arith.mulf %774, %773 : vector<16x128xf32>
    %776 = math.tanh %775 : vector<16x128xf32>
    %cst_282 = arith.constant 5.000000e-01 : f32
    %777 = vector.broadcast %cst_282 : f32 to vector<16x128xf32>
    %778 = arith.mulf %777, %776 : vector<16x128xf32>
    %cst_283 = arith.constant 5.000000e-01 : f32
    %779 = vector.broadcast %cst_283 : f32 to vector<16x128xf32>
    %780 = arith.addf %778, %779 : vector<16x128xf32>
    %781 = vector.extract_strided_slice %764 {offsets = [0, 256], sizes = [16, 128], strides = [1, 1]} : vector<16x1024xf32> to vector<16x128xf32>
    %782 = math.tanh %781 : vector<16x128xf32>
    %783 = vector.extract_strided_slice %764 {offsets = [0, 384], sizes = [16, 128], strides = [1, 1]} : vector<16x1024xf32> to vector<16x128xf32>
    %cst_284 = arith.constant 5.000000e-01 : f32
    %784 = vector.broadcast %cst_284 : f32 to vector<16x128xf32>
    %785 = arith.mulf %784, %783 : vector<16x128xf32>
    %786 = math.tanh %785 : vector<16x128xf32>
    %cst_285 = arith.constant 5.000000e-01 : f32
    %787 = vector.broadcast %cst_285 : f32 to vector<16x128xf32>
    %788 = arith.mulf %787, %786 : vector<16x128xf32>
    %cst_286 = arith.constant 5.000000e-01 : f32
    %789 = vector.broadcast %cst_286 : f32 to vector<16x128xf32>
    %790 = arith.addf %788, %789 : vector<16x128xf32>
    %791 = vector.extract_strided_slice %764 {offsets = [0, 512], sizes = [16, 128], strides = [1, 1]} : vector<16x1024xf32> to vector<16x128xf32>
    %cst_287 = arith.constant 5.000000e-01 : f32
    %792 = vector.broadcast %cst_287 : f32 to vector<16x128xf32>
    %793 = arith.mulf %792, %791 : vector<16x128xf32>
    %794 = math.tanh %793 : vector<16x128xf32>
    %cst_288 = arith.constant 5.000000e-01 : f32
    %795 = vector.broadcast %cst_288 : f32 to vector<16x128xf32>
    %796 = arith.mulf %795, %794 : vector<16x128xf32>
    %cst_289 = arith.constant 5.000000e-01 : f32
    %797 = vector.broadcast %cst_289 : f32 to vector<16x128xf32>
    %798 = arith.addf %796, %797 : vector<16x128xf32>
    %799 = vector.extract_strided_slice %764 {offsets = [0, 640], sizes = [16, 128], strides = [1, 1]} : vector<16x1024xf32> to vector<16x128xf32>
    %cst_290 = arith.constant 5.000000e-01 : f32
    %800 = vector.broadcast %cst_290 : f32 to vector<16x128xf32>
    %801 = arith.mulf %800, %799 : vector<16x128xf32>
    %802 = math.tanh %801 : vector<16x128xf32>
    %cst_291 = arith.constant 5.000000e-01 : f32
    %803 = vector.broadcast %cst_291 : f32 to vector<16x128xf32>
    %804 = arith.mulf %803, %802 : vector<16x128xf32>
    %cst_292 = arith.constant 5.000000e-01 : f32
    %805 = vector.broadcast %cst_292 : f32 to vector<16x128xf32>
    %806 = arith.addf %804, %805 : vector<16x128xf32>
    %807 = vector.extract_strided_slice %764 {offsets = [0, 768], sizes = [16, 128], strides = [1, 1]} : vector<16x1024xf32> to vector<16x128xf32>
    %808 = math.tanh %807 : vector<16x128xf32>
    %809 = vector.extract_strided_slice %764 {offsets = [0, 896], sizes = [16, 128], strides = [1, 1]} : vector<16x1024xf32> to vector<16x128xf32>
    %cst_293 = arith.constant 5.000000e-01 : f32
    %810 = vector.broadcast %cst_293 : f32 to vector<16x128xf32>
    %811 = arith.mulf %810, %809 : vector<16x128xf32>
    %812 = math.tanh %811 : vector<16x128xf32>
    %cst_294 = arith.constant 5.000000e-01 : f32
    %813 = vector.broadcast %cst_294 : f32 to vector<16x128xf32>
    %814 = arith.mulf %813, %812 : vector<16x128xf32>
    %cst_295 = arith.constant 5.000000e-01 : f32
    %815 = vector.broadcast %cst_295 : f32 to vector<16x128xf32>
    %816 = arith.addf %814, %815 : vector<16x128xf32>
    %817 = arith.mulf %780, %744 : vector<16x128xf32>
    %818 = arith.mulf %772, %782 : vector<16x128xf32>
    %819 = arith.addf %817, %818 : vector<16x128xf32>
    %820 = arith.mulf %806, %747 : vector<16x128xf32>
    %821 = arith.mulf %798, %808 : vector<16x128xf32>
    %822 = arith.addf %820, %821 : vector<16x128xf32>
    %823 = math.tanh %819 : vector<16x128xf32>
    %824 = arith.mulf %790, %823 : vector<16x128xf32>
    %825 = math.tanh %822 : vector<16x128xf32>
    %826 = arith.mulf %816, %825 : vector<16x128xf32>
    %c10_296 = arith.constant 10 : index
    %c0_297 = arith.constant 0 : index
    %c0_298 = arith.constant 0 : index
    %827 = vector.load %arg4[%c10_296, %c0_297, %c0_298] : memref<16x16x128xf32, #tpu.memory_space<vmem>>, vector<1x16x128xf32>
    %828 = vector.shape_cast %827 : vector<1x16x128xf32> to vector<16x128xf32>
    %829 = vector.shape_cast %824 : vector<16x128xf32> to vector<1x16x128xf32>
    tpu.vector_store %arg4[%c10_296, %c0_297, %c0_298], %829 {strides = array<i32>} : memref<16x16x128xf32, #tpu.memory_space<vmem>>, vector<1x16x128xf32>,
    %c5_299 = arith.constant 5 : index
    %c0_300 = arith.constant 0 : index
    %c0_301 = arith.constant 0 : index
    %830 = vector.load %arg5[%c5_299, %c0_300, %c0_301] : memref<16x16x128xf32, #tpu.memory_space<vmem>>, vector<1x16x128xf32>
    %831 = vector.shape_cast %830 : vector<1x16x128xf32> to vector<16x128xf32>
    %832 = vector.shape_cast %826 : vector<16x128xf32> to vector<1x16x128xf32>
    tpu.vector_store %arg5[%c5_299, %c0_300, %c0_301], %832 {strides = array<i32>} : memref<16x16x128xf32, #tpu.memory_space<vmem>>, vector<1x16x128xf32>,
    %c11_302 = arith.constant 11 : index
    %c0_303 = arith.constant 0 : index
    %c0_304 = arith.constant 0 : index
    %833 = vector.load %arg2[%c11_302, %c0_303, %c0_304] : memref<16x16x1024xbf16, #tpu.memory_space<vmem>>, vector<1x16x1024xbf16>
    %834 = vector.shape_cast %833 : vector<1x16x1024xbf16> to vector<16x1024xbf16>
    %835 = arith.extf %834 : vector<16x1024xbf16> to vector<16x1024xf32>
    %836 = tpu.concatenate %824, %826 in 1 : vector<16x128xf32>, vector<16x128xf32> -> vector<16x256xf32>
    %837 = arith.truncf %836 : vector<16x256xf32> to vector<16x256xbf16>
    %cst_305 = arith.constant dense<0.000000e+00> : vector<16x1024xf32>
    %838 = tpu.matmul %837, %3, %cst_305 {dimension_numbers = #tpu.dot_dimension_numbers<[1], [0], [0], [1], [0, 0, 1, 1], [], []>} : vector<16x256xbf16>, vector<256x1024xbf16>, vector<16x1024xf32> -> vector<16x1024xf32>
    %839 = arith.addf %835, %838 : vector<16x1024xf32>
    %840 = vector.extract_strided_slice %839 {offsets = [0, 0], sizes = [16, 128], strides = [1, 1]} : vector<16x1024xf32> to vector<16x128xf32>
    %cst_306 = arith.constant 5.000000e-01 : f32
    %841 = vector.broadcast %cst_306 : f32 to vector<16x128xf32>
    %842 = arith.mulf %841, %840 : vector<16x128xf32>
    %843 = math.tanh %842 : vector<16x128xf32>
    %cst_307 = arith.constant 5.000000e-01 : f32
    %844 = vector.broadcast %cst_307 : f32 to vector<16x128xf32>
    %845 = arith.mulf %844, %843 : vector<16x128xf32>
    %cst_308 = arith.constant 5.000000e-01 : f32
    %846 = vector.broadcast %cst_308 : f32 to vector<16x128xf32>
    %847 = arith.addf %845, %846 : vector<16x128xf32>
    %848 = vector.extract_strided_slice %839 {offsets = [0, 128], sizes = [16, 128], strides = [1, 1]} : vector<16x1024xf32> to vector<16x128xf32>
    %cst_309 = arith.constant 5.000000e-01 : f32
    %849 = vector.broadcast %cst_309 : f32 to vector<16x128xf32>
    %850 = arith.mulf %849, %848 : vector<16x128xf32>
    %851 = math.tanh %850 : vector<16x128xf32>
    %cst_310 = arith.constant 5.000000e-01 : f32
    %852 = vector.broadcast %cst_310 : f32 to vector<16x128xf32>
    %853 = arith.mulf %852, %851 : vector<16x128xf32>
    %cst_311 = arith.constant 5.000000e-01 : f32
    %854 = vector.broadcast %cst_311 : f32 to vector<16x128xf32>
    %855 = arith.addf %853, %854 : vector<16x128xf32>
    %856 = vector.extract_strided_slice %839 {offsets = [0, 256], sizes = [16, 128], strides = [1, 1]} : vector<16x1024xf32> to vector<16x128xf32>
    %857 = math.tanh %856 : vector<16x128xf32>
    %858 = vector.extract_strided_slice %839 {offsets = [0, 384], sizes = [16, 128], strides = [1, 1]} : vector<16x1024xf32> to vector<16x128xf32>
    %cst_312 = arith.constant 5.000000e-01 : f32
    %859 = vector.broadcast %cst_312 : f32 to vector<16x128xf32>
    %860 = arith.mulf %859, %858 : vector<16x128xf32>
    %861 = math.tanh %860 : vector<16x128xf32>
    %cst_313 = arith.constant 5.000000e-01 : f32
    %862 = vector.broadcast %cst_313 : f32 to vector<16x128xf32>
    %863 = arith.mulf %862, %861 : vector<16x128xf32>
    %cst_314 = arith.constant 5.000000e-01 : f32
    %864 = vector.broadcast %cst_314 : f32 to vector<16x128xf32>
    %865 = arith.addf %863, %864 : vector<16x128xf32>
    %866 = vector.extract_strided_slice %839 {offsets = [0, 512], sizes = [16, 128], strides = [1, 1]} : vector<16x1024xf32> to vector<16x128xf32>
    %cst_315 = arith.constant 5.000000e-01 : f32
    %867 = vector.broadcast %cst_315 : f32 to vector<16x128xf32>
    %868 = arith.mulf %867, %866 : vector<16x128xf32>
    %869 = math.tanh %868 : vector<16x128xf32>
    %cst_316 = arith.constant 5.000000e-01 : f32
    %870 = vector.broadcast %cst_316 : f32 to vector<16x128xf32>
    %871 = arith.mulf %870, %869 : vector<16x128xf32>
    %cst_317 = arith.constant 5.000000e-01 : f32
    %872 = vector.broadcast %cst_317 : f32 to vector<16x128xf32>
    %873 = arith.addf %871, %872 : vector<16x128xf32>
    %874 = vector.extract_strided_slice %839 {offsets = [0, 640], sizes = [16, 128], strides = [1, 1]} : vector<16x1024xf32> to vector<16x128xf32>
    %cst_318 = arith.constant 5.000000e-01 : f32
    %875 = vector.broadcast %cst_318 : f32 to vector<16x128xf32>
    %876 = arith.mulf %875, %874 : vector<16x128xf32>
    %877 = math.tanh %876 : vector<16x128xf32>
    %cst_319 = arith.constant 5.000000e-01 : f32
    %878 = vector.broadcast %cst_319 : f32 to vector<16x128xf32>
    %879 = arith.mulf %878, %877 : vector<16x128xf32>
    %cst_320 = arith.constant 5.000000e-01 : f32
    %880 = vector.broadcast %cst_320 : f32 to vector<16x128xf32>
    %881 = arith.addf %879, %880 : vector<16x128xf32>
    %882 = vector.extract_strided_slice %839 {offsets = [0, 768], sizes = [16, 128], strides = [1, 1]} : vector<16x1024xf32> to vector<16x128xf32>
    %883 = math.tanh %882 : vector<16x128xf32>
    %884 = vector.extract_strided_slice %839 {offsets = [0, 896], sizes = [16, 128], strides = [1, 1]} : vector<16x1024xf32> to vector<16x128xf32>
    %cst_321 = arith.constant 5.000000e-01 : f32
    %885 = vector.broadcast %cst_321 : f32 to vector<16x128xf32>
    %886 = arith.mulf %885, %884 : vector<16x128xf32>
    %887 = math.tanh %886 : vector<16x128xf32>
    %cst_322 = arith.constant 5.000000e-01 : f32
    %888 = vector.broadcast %cst_322 : f32 to vector<16x128xf32>
    %889 = arith.mulf %888, %887 : vector<16x128xf32>
    %cst_323 = arith.constant 5.000000e-01 : f32
    %890 = vector.broadcast %cst_323 : f32 to vector<16x128xf32>
    %891 = arith.addf %889, %890 : vector<16x128xf32>
    %892 = arith.mulf %855, %819 : vector<16x128xf32>
    %893 = arith.mulf %847, %857 : vector<16x128xf32>
    %894 = arith.addf %892, %893 : vector<16x128xf32>
    %895 = arith.mulf %881, %822 : vector<16x128xf32>
    %896 = arith.mulf %873, %883 : vector<16x128xf32>
    %897 = arith.addf %895, %896 : vector<16x128xf32>
    %898 = math.tanh %894 : vector<16x128xf32>
    %899 = arith.mulf %865, %898 : vector<16x128xf32>
    %900 = math.tanh %897 : vector<16x128xf32>
    %901 = arith.mulf %891, %900 : vector<16x128xf32>
    %c11_324 = arith.constant 11 : index
    %c0_325 = arith.constant 0 : index
    %c0_326 = arith.constant 0 : index
    %902 = vector.load %arg4[%c11_324, %c0_325, %c0_326] : memref<16x16x128xf32, #tpu.memory_space<vmem>>, vector<1x16x128xf32>
    %903 = vector.shape_cast %902 : vector<1x16x128xf32> to vector<16x128xf32>
    %904 = vector.shape_cast %899 : vector<16x128xf32> to vector<1x16x128xf32>
    tpu.vector_store %arg4[%c11_324, %c0_325, %c0_326], %904 {strides = array<i32>} : memref<16x16x128xf32, #tpu.memory_space<vmem>>, vector<1x16x128xf32>,
    %c4_327 = arith.constant 4 : index
    %c0_328 = arith.constant 0 : index
    %c0_329 = arith.constant 0 : index
    %905 = vector.load %arg5[%c4_327, %c0_328, %c0_329] : memref<16x16x128xf32, #tpu.memory_space<vmem>>, vector<1x16x128xf32>
    %906 = vector.shape_cast %905 : vector<1x16x128xf32> to vector<16x128xf32>
    %907 = vector.shape_cast %901 : vector<16x128xf32> to vector<1x16x128xf32>
    tpu.vector_store %arg5[%c4_327, %c0_328, %c0_329], %907 {strides = array<i32>} : memref<16x16x128xf32, #tpu.memory_space<vmem>>, vector<1x16x128xf32>,
    %c12_330 = arith.constant 12 : index
    %c0_331 = arith.constant 0 : index
    %c0_332 = arith.constant 0 : index
    %908 = vector.load %arg2[%c12_330, %c0_331, %c0_332] : memref<16x16x1024xbf16, #tpu.memory_space<vmem>>, vector<1x16x1024xbf16>
    %909 = vector.shape_cast %908 : vector<1x16x1024xbf16> to vector<16x1024xbf16>
    %910 = arith.extf %909 : vector<16x1024xbf16> to vector<16x1024xf32>
    %911 = tpu.concatenate %899, %901 in 1 : vector<16x128xf32>, vector<16x128xf32> -> vector<16x256xf32>
    %912 = arith.truncf %911 : vector<16x256xf32> to vector<16x256xbf16>
    %cst_333 = arith.constant dense<0.000000e+00> : vector<16x1024xf32>
    %913 = tpu.matmul %912, %3, %cst_333 {dimension_numbers = #tpu.dot_dimension_numbers<[1], [0], [0], [1], [0, 0, 1, 1], [], []>} : vector<16x256xbf16>, vector<256x1024xbf16>, vector<16x1024xf32> -> vector<16x1024xf32>
    %914 = arith.addf %910, %913 : vector<16x1024xf32>
    %915 = vector.extract_strided_slice %914 {offsets = [0, 0], sizes = [16, 128], strides = [1, 1]} : vector<16x1024xf32> to vector<16x128xf32>
    %cst_334 = arith.constant 5.000000e-01 : f32
    %916 = vector.broadcast %cst_334 : f32 to vector<16x128xf32>
    %917 = arith.mulf %916, %915 : vector<16x128xf32>
    %918 = math.tanh %917 : vector<16x128xf32>
    %cst_335 = arith.constant 5.000000e-01 : f32
    %919 = vector.broadcast %cst_335 : f32 to vector<16x128xf32>
    %920 = arith.mulf %919, %918 : vector<16x128xf32>
    %cst_336 = arith.constant 5.000000e-01 : f32
    %921 = vector.broadcast %cst_336 : f32 to vector<16x128xf32>
    %922 = arith.addf %920, %921 : vector<16x128xf32>
    %923 = vector.extract_strided_slice %914 {offsets = [0, 128], sizes = [16, 128], strides = [1, 1]} : vector<16x1024xf32> to vector<16x128xf32>
    %cst_337 = arith.constant 5.000000e-01 : f32
    %924 = vector.broadcast %cst_337 : f32 to vector<16x128xf32>
    %925 = arith.mulf %924, %923 : vector<16x128xf32>
    %926 = math.tanh %925 : vector<16x128xf32>
    %cst_338 = arith.constant 5.000000e-01 : f32
    %927 = vector.broadcast %cst_338 : f32 to vector<16x128xf32>
    %928 = arith.mulf %927, %926 : vector<16x128xf32>
    %cst_339 = arith.constant 5.000000e-01 : f32
    %929 = vector.broadcast %cst_339 : f32 to vector<16x128xf32>
    %930 = arith.addf %928, %929 : vector<16x128xf32>
    %931 = vector.extract_strided_slice %914 {offsets = [0, 256], sizes = [16, 128], strides = [1, 1]} : vector<16x1024xf32> to vector<16x128xf32>
    %932 = math.tanh %931 : vector<16x128xf32>
    %933 = vector.extract_strided_slice %914 {offsets = [0, 384], sizes = [16, 128], strides = [1, 1]} : vector<16x1024xf32> to vector<16x128xf32>
    %cst_340 = arith.constant 5.000000e-01 : f32
    %934 = vector.broadcast %cst_340 : f32 to vector<16x128xf32>
    %935 = arith.mulf %934, %933 : vector<16x128xf32>
    %936 = math.tanh %935 : vector<16x128xf32>
    %cst_341 = arith.constant 5.000000e-01 : f32
    %937 = vector.broadcast %cst_341 : f32 to vector<16x128xf32>
    %938 = arith.mulf %937, %936 : vector<16x128xf32>
    %cst_342 = arith.constant 5.000000e-01 : f32
    %939 = vector.broadcast %cst_342 : f32 to vector<16x128xf32>
    %940 = arith.addf %938, %939 : vector<16x128xf32>
    %941 = vector.extract_strided_slice %914 {offsets = [0, 512], sizes = [16, 128], strides = [1, 1]} : vector<16x1024xf32> to vector<16x128xf32>
    %cst_343 = arith.constant 5.000000e-01 : f32
    %942 = vector.broadcast %cst_343 : f32 to vector<16x128xf32>
    %943 = arith.mulf %942, %941 : vector<16x128xf32>
    %944 = math.tanh %943 : vector<16x128xf32>
    %cst_344 = arith.constant 5.000000e-01 : f32
    %945 = vector.broadcast %cst_344 : f32 to vector<16x128xf32>
    %946 = arith.mulf %945, %944 : vector<16x128xf32>
    %cst_345 = arith.constant 5.000000e-01 : f32
    %947 = vector.broadcast %cst_345 : f32 to vector<16x128xf32>
    %948 = arith.addf %946, %947 : vector<16x128xf32>
    %949 = vector.extract_strided_slice %914 {offsets = [0, 640], sizes = [16, 128], strides = [1, 1]} : vector<16x1024xf32> to vector<16x128xf32>
    %cst_346 = arith.constant 5.000000e-01 : f32
    %950 = vector.broadcast %cst_346 : f32 to vector<16x128xf32>
    %951 = arith.mulf %950, %949 : vector<16x128xf32>
    %952 = math.tanh %951 : vector<16x128xf32>
    %cst_347 = arith.constant 5.000000e-01 : f32
    %953 = vector.broadcast %cst_347 : f32 to vector<16x128xf32>
    %954 = arith.mulf %953, %952 : vector<16x128xf32>
    %cst_348 = arith.constant 5.000000e-01 : f32
    %955 = vector.broadcast %cst_348 : f32 to vector<16x128xf32>
    %956 = arith.addf %954, %955 : vector<16x128xf32>
    %957 = vector.extract_strided_slice %914 {offsets = [0, 768], sizes = [16, 128], strides = [1, 1]} : vector<16x1024xf32> to vector<16x128xf32>
    %958 = math.tanh %957 : vector<16x128xf32>
    %959 = vector.extract_strided_slice %914 {offsets = [0, 896], sizes = [16, 128], strides = [1, 1]} : vector<16x1024xf32> to vector<16x128xf32>
    %cst_349 = arith.constant 5.000000e-01 : f32
    %960 = vector.broadcast %cst_349 : f32 to vector<16x128xf32>
    %961 = arith.mulf %960, %959 : vector<16x128xf32>
    %962 = math.tanh %961 : vector<16x128xf32>
    %cst_350 = arith.constant 5.000000e-01 : f32
    %963 = vector.broadcast %cst_350 : f32 to vector<16x128xf32>
    %964 = arith.mulf %963, %962 : vector<16x128xf32>
    %cst_351 = arith.constant 5.000000e-01 : f32
    %965 = vector.broadcast %cst_351 : f32 to vector<16x128xf32>
    %966 = arith.addf %964, %965 : vector<16x128xf32>
    %967 = arith.mulf %930, %894 : vector<16x128xf32>
    %968 = arith.mulf %922, %932 : vector<16x128xf32>
    %969 = arith.addf %967, %968 : vector<16x128xf32>
    %970 = arith.mulf %956, %897 : vector<16x128xf32>
    %971 = arith.mulf %948, %958 : vector<16x128xf32>
    %972 = arith.addf %970, %971 : vector<16x128xf32>
    %973 = math.tanh %969 : vector<16x128xf32>
    %974 = arith.mulf %940, %973 : vector<16x128xf32>
    %975 = math.tanh %972 : vector<16x128xf32>
    %976 = arith.mulf %966, %975 : vector<16x128xf32>
    %c12_352 = arith.constant 12 : index
    %c0_353 = arith.constant 0 : index
    %c0_354 = arith.constant 0 : index
    %977 = vector.load %arg4[%c12_352, %c0_353, %c0_354] : memref<16x16x128xf32, #tpu.memory_space<vmem>>, vector<1x16x128xf32>
    %978 = vector.shape_cast %977 : vector<1x16x128xf32> to vector<16x128xf32>
    %979 = vector.shape_cast %974 : vector<16x128xf32> to vector<1x16x128xf32>
    tpu.vector_store %arg4[%c12_352, %c0_353, %c0_354], %979 {strides = array<i32>} : memref<16x16x128xf32, #tpu.memory_space<vmem>>, vector<1x16x128xf32>,
    %c3_355 = arith.constant 3 : index
    %c0_356 = arith.constant 0 : index
    %c0_357 = arith.constant 0 : index
    %980 = vector.load %arg5[%c3_355, %c0_356, %c0_357] : memref<16x16x128xf32, #tpu.memory_space<vmem>>, vector<1x16x128xf32>
    %981 = vector.shape_cast %980 : vector<1x16x128xf32> to vector<16x128xf32>
    %982 = vector.shape_cast %976 : vector<16x128xf32> to vector<1x16x128xf32>
    tpu.vector_store %arg5[%c3_355, %c0_356, %c0_357], %982 {strides = array<i32>} : memref<16x16x128xf32, #tpu.memory_space<vmem>>, vector<1x16x128xf32>,
    %c13_358 = arith.constant 13 : index
    %c0_359 = arith.constant 0 : index
    %c0_360 = arith.constant 0 : index
    %983 = vector.load %arg2[%c13_358, %c0_359, %c0_360] : memref<16x16x1024xbf16, #tpu.memory_space<vmem>>, vector<1x16x1024xbf16>
    %984 = vector.shape_cast %983 : vector<1x16x1024xbf16> to vector<16x1024xbf16>
    %985 = arith.extf %984 : vector<16x1024xbf16> to vector<16x1024xf32>
    %986 = tpu.concatenate %974, %976 in 1 : vector<16x128xf32>, vector<16x128xf32> -> vector<16x256xf32>
    %987 = arith.truncf %986 : vector<16x256xf32> to vector<16x256xbf16>
    %cst_361 = arith.constant dense<0.000000e+00> : vector<16x1024xf32>
    %988 = tpu.matmul %987, %3, %cst_361 {dimension_numbers = #tpu.dot_dimension_numbers<[1], [0], [0], [1], [0, 0, 1, 1], [], []>} : vector<16x256xbf16>, vector<256x1024xbf16>, vector<16x1024xf32> -> vector<16x1024xf32>
    %989 = arith.addf %985, %988 : vector<16x1024xf32>
    %990 = vector.extract_strided_slice %989 {offsets = [0, 0], sizes = [16, 128], strides = [1, 1]} : vector<16x1024xf32> to vector<16x128xf32>
    %cst_362 = arith.constant 5.000000e-01 : f32
    %991 = vector.broadcast %cst_362 : f32 to vector<16x128xf32>
    %992 = arith.mulf %991, %990 : vector<16x128xf32>
    %993 = math.tanh %992 : vector<16x128xf32>
    %cst_363 = arith.constant 5.000000e-01 : f32
    %994 = vector.broadcast %cst_363 : f32 to vector<16x128xf32>
    %995 = arith.mulf %994, %993 : vector<16x128xf32>
    %cst_364 = arith.constant 5.000000e-01 : f32
    %996 = vector.broadcast %cst_364 : f32 to vector<16x128xf32>
    %997 = arith.addf %995, %996 : vector<16x128xf32>
    %998 = vector.extract_strided_slice %989 {offsets = [0, 128], sizes = [16, 128], strides = [1, 1]} : vector<16x1024xf32> to vector<16x128xf32>
    %cst_365 = arith.constant 5.000000e-01 : f32
    %999 = vector.broadcast %cst_365 : f32 to vector<16x128xf32>
    %1000 = arith.mulf %999, %998 : vector<16x128xf32>
    %1001 = math.tanh %1000 : vector<16x128xf32>
    %cst_366 = arith.constant 5.000000e-01 : f32
    %1002 = vector.broadcast %cst_366 : f32 to vector<16x128xf32>
    %1003 = arith.mulf %1002, %1001 : vector<16x128xf32>
    %cst_367 = arith.constant 5.000000e-01 : f32
    %1004 = vector.broadcast %cst_367 : f32 to vector<16x128xf32>
    %1005 = arith.addf %1003, %1004 : vector<16x128xf32>
    %1006 = vector.extract_strided_slice %989 {offsets = [0, 256], sizes = [16, 128], strides = [1, 1]} : vector<16x1024xf32> to vector<16x128xf32>
    %1007 = math.tanh %1006 : vector<16x128xf32>
    %1008 = vector.extract_strided_slice %989 {offsets = [0, 384], sizes = [16, 128], strides = [1, 1]} : vector<16x1024xf32> to vector<16x128xf32>
    %cst_368 = arith.constant 5.000000e-01 : f32
    %1009 = vector.broadcast %cst_368 : f32 to vector<16x128xf32>
    %1010 = arith.mulf %1009, %1008 : vector<16x128xf32>
    %1011 = math.tanh %1010 : vector<16x128xf32>
    %cst_369 = arith.constant 5.000000e-01 : f32
    %1012 = vector.broadcast %cst_369 : f32 to vector<16x128xf32>
    %1013 = arith.mulf %1012, %1011 : vector<16x128xf32>
    %cst_370 = arith.constant 5.000000e-01 : f32
    %1014 = vector.broadcast %cst_370 : f32 to vector<16x128xf32>
    %1015 = arith.addf %1013, %1014 : vector<16x128xf32>
    %1016 = vector.extract_strided_slice %989 {offsets = [0, 512], sizes = [16, 128], strides = [1, 1]} : vector<16x1024xf32> to vector<16x128xf32>
    %cst_371 = arith.constant 5.000000e-01 : f32
    %1017 = vector.broadcast %cst_371 : f32 to vector<16x128xf32>
    %1018 = arith.mulf %1017, %1016 : vector<16x128xf32>
    %1019 = math.tanh %1018 : vector<16x128xf32>
    %cst_372 = arith.constant 5.000000e-01 : f32
    %1020 = vector.broadcast %cst_372 : f32 to vector<16x128xf32>
    %1021 = arith.mulf %1020, %1019 : vector<16x128xf32>
    %cst_373 = arith.constant 5.000000e-01 : f32
    %1022 = vector.broadcast %cst_373 : f32 to vector<16x128xf32>
    %1023 = arith.addf %1021, %1022 : vector<16x128xf32>
    %1024 = vector.extract_strided_slice %989 {offsets = [0, 640], sizes = [16, 128], strides = [1, 1]} : vector<16x1024xf32> to vector<16x128xf32>
    %cst_374 = arith.constant 5.000000e-01 : f32
    %1025 = vector.broadcast %cst_374 : f32 to vector<16x128xf32>
    %1026 = arith.mulf %1025, %1024 : vector<16x128xf32>
    %1027 = math.tanh %1026 : vector<16x128xf32>
    %cst_375 = arith.constant 5.000000e-01 : f32
    %1028 = vector.broadcast %cst_375 : f32 to vector<16x128xf32>
    %1029 = arith.mulf %1028, %1027 : vector<16x128xf32>
    %cst_376 = arith.constant 5.000000e-01 : f32
    %1030 = vector.broadcast %cst_376 : f32 to vector<16x128xf32>
    %1031 = arith.addf %1029, %1030 : vector<16x128xf32>
    %1032 = vector.extract_strided_slice %989 {offsets = [0, 768], sizes = [16, 128], strides = [1, 1]} : vector<16x1024xf32> to vector<16x128xf32>
    %1033 = math.tanh %1032 : vector<16x128xf32>
    %1034 = vector.extract_strided_slice %989 {offsets = [0, 896], sizes = [16, 128], strides = [1, 1]} : vector<16x1024xf32> to vector<16x128xf32>
    %cst_377 = arith.constant 5.000000e-01 : f32
    %1035 = vector.broadcast %cst_377 : f32 to vector<16x128xf32>
    %1036 = arith.mulf %1035, %1034 : vector<16x128xf32>
    %1037 = math.tanh %1036 : vector<16x128xf32>
    %cst_378 = arith.constant 5.000000e-01 : f32
    %1038 = vector.broadcast %cst_378 : f32 to vector<16x128xf32>
    %1039 = arith.mulf %1038, %1037 : vector<16x128xf32>
    %cst_379 = arith.constant 5.000000e-01 : f32
    %1040 = vector.broadcast %cst_379 : f32 to vector<16x128xf32>
    %1041 = arith.addf %1039, %1040 : vector<16x128xf32>
    %1042 = arith.mulf %1005, %969 : vector<16x128xf32>
    %1043 = arith.mulf %997, %1007 : vector<16x128xf32>
    %1044 = arith.addf %1042, %1043 : vector<16x128xf32>
    %1045 = arith.mulf %1031, %972 : vector<16x128xf32>
    %1046 = arith.mulf %1023, %1033 : vector<16x128xf32>
    %1047 = arith.addf %1045, %1046 : vector<16x128xf32>
    %1048 = math.tanh %1044 : vector<16x128xf32>
    %1049 = arith.mulf %1015, %1048 : vector<16x128xf32>
    %1050 = math.tanh %1047 : vector<16x128xf32>
    %1051 = arith.mulf %1041, %1050 : vector<16x128xf32>
    %c13_380 = arith.constant 13 : index
    %c0_381 = arith.constant 0 : index
    %c0_382 = arith.constant 0 : index
    %1052 = vector.load %arg4[%c13_380, %c0_381, %c0_382] : memref<16x16x128xf32, #tpu.memory_space<vmem>>, vector<1x16x128xf32>
    %1053 = vector.shape_cast %1052 : vector<1x16x128xf32> to vector<16x128xf32>
    %1054 = vector.shape_cast %1049 : vector<16x128xf32> to vector<1x16x128xf32>
    tpu.vector_store %arg4[%c13_380, %c0_381, %c0_382], %1054 {strides = array<i32>} : memref<16x16x128xf32, #tpu.memory_space<vmem>>, vector<1x16x128xf32>,
    %c2_383 = arith.constant 2 : index
    %c0_384 = arith.constant 0 : index
    %c0_385 = arith.constant 0 : index
    %1055 = vector.load %arg5[%c2_383, %c0_384, %c0_385] : memref<16x16x128xf32, #tpu.memory_space<vmem>>, vector<1x16x128xf32>
    %1056 = vector.shape_cast %1055 : vector<1x16x128xf32> to vector<16x128xf32>
    %1057 = vector.shape_cast %1051 : vector<16x128xf32> to vector<1x16x128xf32>
    tpu.vector_store %arg5[%c2_383, %c0_384, %c0_385], %1057 {strides = array<i32>} : memref<16x16x128xf32, #tpu.memory_space<vmem>>, vector<1x16x128xf32>,
    %c14_386 = arith.constant 14 : index
    %c0_387 = arith.constant 0 : index
    %c0_388 = arith.constant 0 : index
    %1058 = vector.load %arg2[%c14_386, %c0_387, %c0_388] : memref<16x16x1024xbf16, #tpu.memory_space<vmem>>, vector<1x16x1024xbf16>
    %1059 = vector.shape_cast %1058 : vector<1x16x1024xbf16> to vector<16x1024xbf16>
    %1060 = arith.extf %1059 : vector<16x1024xbf16> to vector<16x1024xf32>
    %1061 = tpu.concatenate %1049, %1051 in 1 : vector<16x128xf32>, vector<16x128xf32> -> vector<16x256xf32>
    %1062 = arith.truncf %1061 : vector<16x256xf32> to vector<16x256xbf16>
    %cst_389 = arith.constant dense<0.000000e+00> : vector<16x1024xf32>
    %1063 = tpu.matmul %1062, %3, %cst_389 {dimension_numbers = #tpu.dot_dimension_numbers<[1], [0], [0], [1], [0, 0, 1, 1], [], []>} : vector<16x256xbf16>, vector<256x1024xbf16>, vector<16x1024xf32> -> vector<16x1024xf32>
    %1064 = arith.addf %1060, %1063 : vector<16x1024xf32>
    %1065 = vector.extract_strided_slice %1064 {offsets = [0, 0], sizes = [16, 128], strides = [1, 1]} : vector<16x1024xf32> to vector<16x128xf32>
    %cst_390 = arith.constant 5.000000e-01 : f32
    %1066 = vector.broadcast %cst_390 : f32 to vector<16x128xf32>
    %1067 = arith.mulf %1066, %1065 : vector<16x128xf32>
    %1068 = math.tanh %1067 : vector<16x128xf32>
    %cst_391 = arith.constant 5.000000e-01 : f32
    %1069 = vector.broadcast %cst_391 : f32 to vector<16x128xf32>
    %1070 = arith.mulf %1069, %1068 : vector<16x128xf32>
    %cst_392 = arith.constant 5.000000e-01 : f32
    %1071 = vector.broadcast %cst_392 : f32 to vector<16x128xf32>
    %1072 = arith.addf %1070, %1071 : vector<16x128xf32>
    %1073 = vector.extract_strided_slice %1064 {offsets = [0, 128], sizes = [16, 128], strides = [1, 1]} : vector<16x1024xf32> to vector<16x128xf32>
    %cst_393 = arith.constant 5.000000e-01 : f32
    %1074 = vector.broadcast %cst_393 : f32 to vector<16x128xf32>
    %1075 = arith.mulf %1074, %1073 : vector<16x128xf32>
    %1076 = math.tanh %1075 : vector<16x128xf32>
    %cst_394 = arith.constant 5.000000e-01 : f32
    %1077 = vector.broadcast %cst_394 : f32 to vector<16x128xf32>
    %1078 = arith.mulf %1077, %1076 : vector<16x128xf32>
    %cst_395 = arith.constant 5.000000e-01 : f32
    %1079 = vector.broadcast %cst_395 : f32 to vector<16x128xf32>
    %1080 = arith.addf %1078, %1079 : vector<16x128xf32>
    %1081 = vector.extract_strided_slice %1064 {offsets = [0, 256], sizes = [16, 128], strides = [1, 1]} : vector<16x1024xf32> to vector<16x128xf32>
    %1082 = math.tanh %1081 : vector<16x128xf32>
    %1083 = vector.extract_strided_slice %1064 {offsets = [0, 384], sizes = [16, 128], strides = [1, 1]} : vector<16x1024xf32> to vector<16x128xf32>
    %cst_396 = arith.constant 5.000000e-01 : f32
    %1084 = vector.broadcast %cst_396 : f32 to vector<16x128xf32>
    %1085 = arith.mulf %1084, %1083 : vector<16x128xf32>
    %1086 = math.tanh %1085 : vector<16x128xf32>
    %cst_397 = arith.constant 5.000000e-01 : f32
    %1087 = vector.broadcast %cst_397 : f32 to vector<16x128xf32>
    %1088 = arith.mulf %1087, %1086 : vector<16x128xf32>
    %cst_398 = arith.constant 5.000000e-01 : f32
    %1089 = vector.broadcast %cst_398 : f32 to vector<16x128xf32>
    %1090 = arith.addf %1088, %1089 : vector<16x128xf32>
    %1091 = vector.extract_strided_slice %1064 {offsets = [0, 512], sizes = [16, 128], strides = [1, 1]} : vector<16x1024xf32> to vector<16x128xf32>
    %cst_399 = arith.constant 5.000000e-01 : f32
    %1092 = vector.broadcast %cst_399 : f32 to vector<16x128xf32>
    %1093 = arith.mulf %1092, %1091 : vector<16x128xf32>
    %1094 = math.tanh %1093 : vector<16x128xf32>
    %cst_400 = arith.constant 5.000000e-01 : f32
    %1095 = vector.broadcast %cst_400 : f32 to vector<16x128xf32>
    %1096 = arith.mulf %1095, %1094 : vector<16x128xf32>
    %cst_401 = arith.constant 5.000000e-01 : f32
    %1097 = vector.broadcast %cst_401 : f32 to vector<16x128xf32>
    %1098 = arith.addf %1096, %1097 : vector<16x128xf32>
    %1099 = vector.extract_strided_slice %1064 {offsets = [0, 640], sizes = [16, 128], strides = [1, 1]} : vector<16x1024xf32> to vector<16x128xf32>
    %cst_402 = arith.constant 5.000000e-01 : f32
    %1100 = vector.broadcast %cst_402 : f32 to vector<16x128xf32>
    %1101 = arith.mulf %1100, %1099 : vector<16x128xf32>
    %1102 = math.tanh %1101 : vector<16x128xf32>
    %cst_403 = arith.constant 5.000000e-01 : f32
    %1103 = vector.broadcast %cst_403 : f32 to vector<16x128xf32>
    %1104 = arith.mulf %1103, %1102 : vector<16x128xf32>
    %cst_404 = arith.constant 5.000000e-01 : f32
    %1105 = vector.broadcast %cst_404 : f32 to vector<16x128xf32>
    %1106 = arith.addf %1104, %1105 : vector<16x128xf32>
    %1107 = vector.extract_strided_slice %1064 {offsets = [0, 768], sizes = [16, 128], strides = [1, 1]} : vector<16x1024xf32> to vector<16x128xf32>
    %1108 = math.tanh %1107 : vector<16x128xf32>
    %1109 = vector.extract_strided_slice %1064 {offsets = [0, 896], sizes = [16, 128], strides = [1, 1]} : vector<16x1024xf32> to vector<16x128xf32>
    %cst_405 = arith.constant 5.000000e-01 : f32
    %1110 = vector.broadcast %cst_405 : f32 to vector<16x128xf32>
    %1111 = arith.mulf %1110, %1109 : vector<16x128xf32>
    %1112 = math.tanh %1111 : vector<16x128xf32>
    %cst_406 = arith.constant 5.000000e-01 : f32
    %1113 = vector.broadcast %cst_406 : f32 to vector<16x128xf32>
    %1114 = arith.mulf %1113, %1112 : vector<16x128xf32>
    %cst_407 = arith.constant 5.000000e-01 : f32
    %1115 = vector.broadcast %cst_407 : f32 to vector<16x128xf32>
    %1116 = arith.addf %1114, %1115 : vector<16x128xf32>
    %1117 = arith.mulf %1080, %1044 : vector<16x128xf32>
    %1118 = arith.mulf %1072, %1082 : vector<16x128xf32>
    %1119 = arith.addf %1117, %1118 : vector<16x128xf32>
    %1120 = arith.mulf %1106, %1047 : vector<16x128xf32>
    %1121 = arith.mulf %1098, %1108 : vector<16x128xf32>
    %1122 = arith.addf %1120, %1121 : vector<16x128xf32>
    %1123 = math.tanh %1119 : vector<16x128xf32>
    %1124 = arith.mulf %1090, %1123 : vector<16x128xf32>
    %1125 = math.tanh %1122 : vector<16x128xf32>
    %1126 = arith.mulf %1116, %1125 : vector<16x128xf32>
    %c14_408 = arith.constant 14 : index
    %c0_409 = arith.constant 0 : index
    %c0_410 = arith.constant 0 : index
    %1127 = vector.load %arg4[%c14_408, %c0_409, %c0_410] : memref<16x16x128xf32, #tpu.memory_space<vmem>>, vector<1x16x128xf32>
    %1128 = vector.shape_cast %1127 : vector<1x16x128xf32> to vector<16x128xf32>
    %1129 = vector.shape_cast %1124 : vector<16x128xf32> to vector<1x16x128xf32>
    tpu.vector_store %arg4[%c14_408, %c0_409, %c0_410], %1129 {strides = array<i32>} : memref<16x16x128xf32, #tpu.memory_space<vmem>>, vector<1x16x128xf32>,
    %c1_411 = arith.constant 1 : index
    %c0_412 = arith.constant 0 : index
    %c0_413 = arith.constant 0 : index
    %1130 = vector.load %arg5[%c1_411, %c0_412, %c0_413] : memref<16x16x128xf32, #tpu.memory_space<vmem>>, vector<1x16x128xf32>
    %1131 = vector.shape_cast %1130 : vector<1x16x128xf32> to vector<16x128xf32>
    %1132 = vector.shape_cast %1126 : vector<16x128xf32> to vector<1x16x128xf32>
    tpu.vector_store %arg5[%c1_411, %c0_412, %c0_413], %1132 {strides = array<i32>} : memref<16x16x128xf32, #tpu.memory_space<vmem>>, vector<1x16x128xf32>,
    %c15_414 = arith.constant 15 : index
    %c0_415 = arith.constant 0 : index
    %c0_416 = arith.constant 0 : index
    %1133 = vector.load %arg2[%c15_414, %c0_415, %c0_416] : memref<16x16x1024xbf16, #tpu.memory_space<vmem>>, vector<1x16x1024xbf16>
    %1134 = vector.shape_cast %1133 : vector<1x16x1024xbf16> to vector<16x1024xbf16>
    %1135 = arith.extf %1134 : vector<16x1024xbf16> to vector<16x1024xf32>
    %1136 = tpu.concatenate %1124, %1126 in 1 : vector<16x128xf32>, vector<16x128xf32> -> vector<16x256xf32>
    %1137 = arith.truncf %1136 : vector<16x256xf32> to vector<16x256xbf16>
    %cst_417 = arith.constant dense<0.000000e+00> : vector<16x1024xf32>
    %1138 = tpu.matmul %1137, %3, %cst_417 {dimension_numbers = #tpu.dot_dimension_numbers<[1], [0], [0], [1], [0, 0, 1, 1], [], []>} : vector<16x256xbf16>, vector<256x1024xbf16>, vector<16x1024xf32> -> vector<16x1024xf32>
    %1139 = arith.addf %1135, %1138 : vector<16x1024xf32>
    %1140 = vector.extract_strided_slice %1139 {offsets = [0, 0], sizes = [16, 128], strides = [1, 1]} : vector<16x1024xf32> to vector<16x128xf32>
    %cst_418 = arith.constant 5.000000e-01 : f32
    %1141 = vector.broadcast %cst_418 : f32 to vector<16x128xf32>
    %1142 = arith.mulf %1141, %1140 : vector<16x128xf32>
    %1143 = math.tanh %1142 : vector<16x128xf32>
    %cst_419 = arith.constant 5.000000e-01 : f32
    %1144 = vector.broadcast %cst_419 : f32 to vector<16x128xf32>
    %1145 = arith.mulf %1144, %1143 : vector<16x128xf32>
    %cst_420 = arith.constant 5.000000e-01 : f32
    %1146 = vector.broadcast %cst_420 : f32 to vector<16x128xf32>
    %1147 = arith.addf %1145, %1146 : vector<16x128xf32>
    %1148 = vector.extract_strided_slice %1139 {offsets = [0, 128], sizes = [16, 128], strides = [1, 1]} : vector<16x1024xf32> to vector<16x128xf32>
    %cst_421 = arith.constant 5.000000e-01 : f32
    %1149 = vector.broadcast %cst_421 : f32 to vector<16x128xf32>
    %1150 = arith.mulf %1149, %1148 : vector<16x128xf32>
    %1151 = math.tanh %1150 : vector<16x128xf32>
    %cst_422 = arith.constant 5.000000e-01 : f32
    %1152 = vector.broadcast %cst_422 : f32 to vector<16x128xf32>
    %1153 = arith.mulf %1152, %1151 : vector<16x128xf32>
    %cst_423 = arith.constant 5.000000e-01 : f32
    %1154 = vector.broadcast %cst_423 : f32 to vector<16x128xf32>
    %1155 = arith.addf %1153, %1154 : vector<16x128xf32>
    %1156 = vector.extract_strided_slice %1139 {offsets = [0, 256], sizes = [16, 128], strides = [1, 1]} : vector<16x1024xf32> to vector<16x128xf32>
    %1157 = math.tanh %1156 : vector<16x128xf32>
    %1158 = vector.extract_strided_slice %1139 {offsets = [0, 384], sizes = [16, 128], strides = [1, 1]} : vector<16x1024xf32> to vector<16x128xf32>
    %cst_424 = arith.constant 5.000000e-01 : f32
    %1159 = vector.broadcast %cst_424 : f32 to vector<16x128xf32>
    %1160 = arith.mulf %1159, %1158 : vector<16x128xf32>
    %1161 = math.tanh %1160 : vector<16x128xf32>
    %cst_425 = arith.constant 5.000000e-01 : f32
    %1162 = vector.broadcast %cst_425 : f32 to vector<16x128xf32>
    %1163 = arith.mulf %1162, %1161 : vector<16x128xf32>
    %cst_426 = arith.constant 5.000000e-01 : f32
    %1164 = vector.broadcast %cst_426 : f32 to vector<16x128xf32>
    %1165 = arith.addf %1163, %1164 : vector<16x128xf32>
    %1166 = vector.extract_strided_slice %1139 {offsets = [0, 512], sizes = [16, 128], strides = [1, 1]} : vector<16x1024xf32> to vector<16x128xf32>
    %cst_427 = arith.constant 5.000000e-01 : f32
    %1167 = vector.broadcast %cst_427 : f32 to vector<16x128xf32>
    %1168 = arith.mulf %1167, %1166 : vector<16x128xf32>
    %1169 = math.tanh %1168 : vector<16x128xf32>
    %cst_428 = arith.constant 5.000000e-01 : f32
    %1170 = vector.broadcast %cst_428 : f32 to vector<16x128xf32>
    %1171 = arith.mulf %1170, %1169 : vector<16x128xf32>
    %cst_429 = arith.constant 5.000000e-01 : f32
    %1172 = vector.broadcast %cst_429 : f32 to vector<16x128xf32>
    %1173 = arith.addf %1171, %1172 : vector<16x128xf32>
    %1174 = vector.extract_strided_slice %1139 {offsets = [0, 640], sizes = [16, 128], strides = [1, 1]} : vector<16x1024xf32> to vector<16x128xf32>
    %cst_430 = arith.constant 5.000000e-01 : f32
    %1175 = vector.broadcast %cst_430 : f32 to vector<16x128xf32>
    %1176 = arith.mulf %1175, %1174 : vector<16x128xf32>
    %1177 = math.tanh %1176 : vector<16x128xf32>
    %cst_431 = arith.constant 5.000000e-01 : f32
    %1178 = vector.broadcast %cst_431 : f32 to vector<16x128xf32>
    %1179 = arith.mulf %1178, %1177 : vector<16x128xf32>
    %cst_432 = arith.constant 5.000000e-01 : f32
    %1180 = vector.broadcast %cst_432 : f32 to vector<16x128xf32>
    %1181 = arith.addf %1179, %1180 : vector<16x128xf32>
    %1182 = vector.extract_strided_slice %1139 {offsets = [0, 768], sizes = [16, 128], strides = [1, 1]} : vector<16x1024xf32> to vector<16x128xf32>
    %1183 = math.tanh %1182 : vector<16x128xf32>
    %1184 = vector.extract_strided_slice %1139 {offsets = [0, 896], sizes = [16, 128], strides = [1, 1]} : vector<16x1024xf32> to vector<16x128xf32>
    %cst_433 = arith.constant 5.000000e-01 : f32
    %1185 = vector.broadcast %cst_433 : f32 to vector<16x128xf32>
    %1186 = arith.mulf %1185, %1184 : vector<16x128xf32>
    %1187 = math.tanh %1186 : vector<16x128xf32>
    %cst_434 = arith.constant 5.000000e-01 : f32
    %1188 = vector.broadcast %cst_434 : f32 to vector<16x128xf32>
    %1189 = arith.mulf %1188, %1187 : vector<16x128xf32>
    %cst_435 = arith.constant 5.000000e-01 : f32
    %1190 = vector.broadcast %cst_435 : f32 to vector<16x128xf32>
    %1191 = arith.addf %1189, %1190 : vector<16x128xf32>
    %1192 = arith.mulf %1155, %1119 : vector<16x128xf32>
    %1193 = arith.mulf %1147, %1157 : vector<16x128xf32>
    %1194 = arith.addf %1192, %1193 : vector<16x128xf32>
    %1195 = arith.mulf %1181, %1122 : vector<16x128xf32>
    %1196 = arith.mulf %1173, %1183 : vector<16x128xf32>
    %1197 = arith.addf %1195, %1196 : vector<16x128xf32>
    %1198 = math.tanh %1194 : vector<16x128xf32>
    %1199 = arith.mulf %1165, %1198 : vector<16x128xf32>
    %1200 = math.tanh %1197 : vector<16x128xf32>
    %1201 = arith.mulf %1191, %1200 : vector<16x128xf32>
    %c15_436 = arith.constant 15 : index
    %c0_437 = arith.constant 0 : index
    %c0_438 = arith.constant 0 : index
    %1202 = vector.load %arg4[%c15_436, %c0_437, %c0_438] : memref<16x16x128xf32, #tpu.memory_space<vmem>>, vector<1x16x128xf32>
    %1203 = vector.shape_cast %1202 : vector<1x16x128xf32> to vector<16x128xf32>
    %1204 = vector.shape_cast %1199 : vector<16x128xf32> to vector<1x16x128xf32>
    tpu.vector_store %arg4[%c15_436, %c0_437, %c0_438], %1204 {strides = array<i32>} : memref<16x16x128xf32, #tpu.memory_space<vmem>>, vector<1x16x128xf32>,
    %c0_439 = arith.constant 0 : index
    %c0_440 = arith.constant 0 : index
    %c0_441 = arith.constant 0 : index
    %1205 = vector.load %arg5[%c0_439, %c0_440, %c0_441] : memref<16x16x128xf32, #tpu.memory_space<vmem>>, vector<1x16x128xf32>
    %1206 = vector.shape_cast %1205 : vector<1x16x128xf32> to vector<16x128xf32>
    %1207 = vector.shape_cast %1201 : vector<16x128xf32> to vector<1x16x128xf32>
    tpu.vector_store %arg5[%c0_439, %c0_440, %c0_441], %1207 {strides = array<i32>} : memref<16x16x128xf32, #tpu.memory_space<vmem>>, vector<1x16x128xf32>,
    %c0_442 = arith.constant 0 : index
    %c0_443 = arith.constant 0 : index
    %1208 = vector.load %arg6[%c0_442, %c0_443] : memref<16x128xf32, #tpu.memory_space<vmem>>, vector<16x128xf32>
    tpu.vector_store %arg6[%c0_442, %c0_443], %1199 {strides = array<i32>} : memref<16x128xf32, #tpu.memory_space<vmem>>, vector<16x128xf32>,
    %c0_444 = arith.constant 0 : index
    %c0_445 = arith.constant 0 : index
    %1209 = vector.load %arg7[%c0_444, %c0_445] : memref<16x128xf32, #tpu.memory_space<vmem>>, vector<16x128xf32>
    tpu.vector_store %arg7[%c0_444, %c0_445], %1201 {strides = array<i32>} : memref<16x128xf32, #tpu.memory_space<vmem>>, vector<16x128xf32>,
    %c0_446 = arith.constant 0 : index
    %c0_447 = arith.constant 0 : index
    %1210 = vector.load %arg8[%c0_446, %c0_447] : memref<16x128xf32, #tpu.memory_space<vmem>>, vector<16x128xf32>
    tpu.vector_store %arg8[%c0_446, %c0_447], %1194 {strides = array<i32>} : memref<16x128xf32, #tpu.memory_space<vmem>>, vector<16x128xf32>,
    %c0_448 = arith.constant 0 : index
    %c0_449 = arith.constant 0 : index
    %1211 = vector.load %arg9[%c0_448, %c0_449] : memref<16x128xf32, #tpu.memory_space<vmem>>, vector<16x128xf32>
    tpu.vector_store %arg9[%c0_448, %c0_449], %1197 {strides = array<i32>} : memref<16x128xf32, #tpu.memory_space<vmem>>, vector<16x128xf32>,
    return
  }
  func.func @transform_0(%arg0: i32, %arg1: i32) -> (i32, i32, i32) {
    %c0_i32 = arith.constant 0 : i32
    %c0_i32_0 = arith.constant 0 : i32
    return %arg1, %arg0, %c0_i32 : i32, i32, i32
  }
  func.func @transform_1(%arg0: i32, %arg1: i32) -> (i32, i32) {
    %c0_i32 = arith.constant 0 : i32
    %c0_i32_0 = arith.constant 0 : i32
    %c0_i32_1 = arith.constant 0 : i32
    return %c0_i32, %c0_i32_0 : i32, i32
  }
  func.func @transform_2(%arg0: i32, %arg1: i32) -> (i32, i32, i32) {
    %c0_i32 = arith.constant 0 : i32
    %c0_i32_0 = arith.constant 0 : i32
    return %arg1, %arg0, %c0_i32 : i32, i32, i32
  }
  func.func @transform_3(%arg0: i32, %arg1: i32) -> (i32, i32, i32) {
    %c0_i32 = arith.constant 0 : i32
    %0 = arith.subi %c0_i32, %arg1 : i32
    %c0_i32_0 = arith.constant 0 : i32
    %c0_i32_1 = arith.constant 0 : i32
    return %0, %arg0, %c0_i32_0 : i32, i32, i32
  }
}

</mosaic_0001>

<llo_original>
// kernel: dual_computation_block_forward.2
$region0: #{dual_computation_block_forward.2}
  #allocation0 [shape = 'u32[]', space=smem, size = 0x4, offset = 0x4, fixed_abs, tag = 'smem constant byte address 0x4 - core index']
  #allocation1 [shape = 'u32[144,128]{1,0:T(1,128)}', space=vmem, size = 0x12000, scoped, tag = 'internal scratch']
  #allocation2 [shape = 'f32[16,128]{1,0:T(8,128)}', space=vmem, size = 0x2000, scoped, tag = 'scratch operand']
  #allocation3 [shape = 'f32[16,128]{1,0:T(8,128)}', space=vmem, size = 0x2000, scoped, tag = 'scratch operand']
  #allocation4 [shape = 'f32[16,128]{1,0:T(8,128)}', space=vmem, size = 0x2000, scoped, tag = 'scratch operand']
  #allocation5 [shape = 'f32[16,128]{1,0:T(8,128)}', space=vmem, size = 0x2000, scoped, tag = 'scratch operand']
  %s0 = inlined_call_operand.vmem [shape: bf16[16,32,1024], index: 0, kind: input, shape index: {}]
  %s1 = inlined_call_operand.vmem [shape: bf16[256,1024], index: 1, kind: input, shape index: {}]
  %s2 = inlined_call_operand.vmem [shape: f32[16,32,128], index: 2, kind: output, shape index: {0}]
  %s3 = inlined_call_operand.vmem [shape: f32[16,32,128], index: 3, kind: output, shape index: {1}]
  %4 = xla_tuple %s2, %s3
  %s5 = sld [smem:[#allocation0]]
  $region144: #{dual_computation_block_forward.2} parent=0
    _
  %s7 = ssub.s32 1, %s5
  %s8 = scalar_select 0, %s7, %s5
  $region1: #{dual_computation_block_forward.2} parent=0
    #allocation6 [shape = 'u8[1048576]{0}', space=vmem, size = 0x100000, scoped, tag = 'input window, operand 0']
    #allocation7 [shape = 'u8[262144]{0}', space=vmem, size = 0x40000, scoped, tag = 'output window, operand 0']
    #allocation8 [shape = 'u8[262144]{0}', space=vmem, size = 0x40000, scoped, tag = 'output window, operand 1']
    loop: start=0, step=1, limit=4
    $region2: #{dual_computation_block_forward.2} parent=1 // loop_pre_header
      _
    $region3: #{dual_computation_block_forward.2} parent=1 // loop_header
      %s10 = sphi 0, %s14
      %p11 = scmp.ge.s32.totalorder %s10, 4
      %s17 = sphi 0, %s29
      %s18 = sphi 0, %s25
      %s19 = sphi 0, %s17
      %s20 = sphi 0, %s18
      %s21 = sphi 0, %s19
      %s22 = sphi 0, %s20
      %s34 = sphi 0, %s36
      %s37 = sphi 0, %s34
      %s38 = sphi 0, %s37
      %s54 = sphi 0, %s38
      %s58 = sphi 0, %s58
      %s60 = sphi 0, %s58
      %s61 = sphi 0, %s60
      %s75 = sphi 0, %s61
      %s83 = sphi 0, %s85
      %s86 = sphi 0, %s83
      %s87 = sphi 0, %s86
      %s103 = sphi 0, %s87
      %s113 = sphi 0, %s115
      %s116 = sphi 0, %s113
      %s117 = sphi 0, %s116
      %s133 = sphi 0, %s117
    $region4: #{dual_computation_block_forward.2} parent=1 // loop_header_branch
      %13 = sbr.rel (%p11) target = $region8
    $region5: #{dual_computation_block_forward.2} parent=1 // loop_body
      %s15 = ssub.s32 %s10, 1
      %s16 = ssub.s32 %s10, 2
      %s23 = sadd.s32 1, %s18
      %p24 = scmp.ge.s32.totalorder %s23, 1
      %s25 = scalar_select %p24, 0, %s23
      %s26 = sadd.s32 1, %s17
      %s27 = scalar_select %p24, %s26, %s17
      %p28 = scmp.ge.s32.totalorder %s27, 2
      %s29 = scalar_select %p28, 0, %s27
      %s30 = ssub.s32 %s18, %s25
      %s31 = ssub.s32 %s17, %s29
      %s32 = sor.u32 %s30, %s31
      %p33 = scmp.eq.s32.totalorder %s32, 0
      %s35 = sadd.s32 %s34, 1
      %s36 = scalar_select %p33, %s34, %s35
      %p39 = pneg %p33
      %p40 = scmp.eq.s32.totalorder %s10, 1
      %p41 = por %p39, %p40
      %p42 = scmp.ne.s32.totalorder %s34, %s37
      %p43 = scmp.eq.s32.totalorder %s10, 0
      %p44 = por %p42, %p43
      %p45 = scmp.ne.s32.totalorder %s34, %s37
      %p46 = scmp.eq.s32.totalorder %s15, 1
      %p47 = por %p45, %p46
      %p48 = scmp.ne.s32.totalorder %s37, %s38
      %p49 = scmp.eq.s32.totalorder %s15, 0
      %p50 = por %p48, %p49
      %p51 = scmp.ne.s32.totalorder %s37, %s38
      %p52 = scmp.eq.s32.totalorder %s16, 1
      %p53 = por %p51, %p52
      %p55 = scmp.ne.s32.totalorder %s38, %s54
      %p56 = scmp.eq.s32.totalorder %s16, 0
      %p57 = por %p55, %p56
      %s59 = sadd.s32 %s58, 1
      %p62 = scmp.eq.s32.totalorder %s10, 1
      %p63 = scmp.ne.s32.totalorder %s58, %s60
      %p64 = scmp.eq.s32.totalorder %s10, 0
      %p65 = por %p63, %p64
      %p66 = scmp.ne.s32.totalorder %s58, %s60
      %p67 = scmp.eq.s32.totalorder %s15, 1
      %p68 = por %p66, %p67
      %p69 = scmp.ne.s32.totalorder %s60, %s61
      %p70 = scmp.eq.s32.totalorder %s15, 0
      %p71 = por %p69, %p70
      %p72 = scmp.ne.s32.totalorder %s60, %s61
      %p73 = scmp.eq.s32.totalorder %s16, 1
      %p74 = por %p72, %p73
      %p76 = scmp.ne.s32.totalorder %s61, %s75
      %p77 = scmp.eq.s32.totalorder %s16, 0
      %p78 = por %p76, %p77
      %s79 = ssub.s32 %s18, %s25
      %s80 = ssub.s32 %s17, %s29
      %s81 = sor.u32 %s79, %s80
      %p82 = scmp.eq.s32.totalorder %s81, 0
      %s84 = sadd.s32 %s83, 1
      %s85 = scalar_select %p82, %s83, %s84
      %p88 = pneg %p82
      %p89 = scmp.eq.s32.totalorder %s10, 1
      %p90 = por %p88, %p89
      %p91 = scmp.ne.s32.totalorder %s83, %s86
      %p92 = scmp.eq.s32.totalorder %s10, 0
      %p93 = por %p91, %p92
      %p94 = scmp.ne.s32.totalorder %s83, %s86
      %p95 = scmp.eq.s32.totalorder %s15, 1
      %p96 = por %p94, %p95
      %p97 = scmp.ne.s32.totalorder %s86, %s87
      %p98 = scmp.eq.s32.totalorder %s15, 0
      %p99 = por %p97, %p98
      %p100 = scmp.ne.s32.totalorder %s86, %s87
      %p101 = scmp.eq.s32.totalorder %s16, 1
      %p102 = por %p100, %p101
      %p104 = scmp.ne.s32.totalorder %s87, %s103
      %p105 = scmp.eq.s32.totalorder %s16, 0
      %p106 = por %p104, %p105
      %s107 = ssub.s32 0, %s18
      %s108 = ssub.s32 0, %s25
      %s109 = ssub.s32 %s107, %s108
      %s110 = ssub.s32 %s17, %s29
      %s111 = sor.u32 %s109, %s110
      %p112 = scmp.eq.s32.totalorder %s111, 0
      %s114 = sadd.s32 %s113, 1
      %s115 = scalar_select %p112, %s113, %s114
      %p118 = pneg %p112
      %p119 = scmp.eq.s32.totalorder %s10, 1
      %p120 = por %p118, %p119
      %p121 = scmp.ne.s32.totalorder %s113, %s116
      %p122 = scmp.eq.s32.totalorder %s10, 0
      %p123 = por %p121, %p122
      %p124 = scmp.ne.s32.totalorder %s113, %s116
      %p125 = scmp.eq.s32.totalorder %s15, 1
      %p126 = por %p124, %p125
      %p127 = scmp.ne.s32.totalorder %s116, %s117
      %p128 = scmp.eq.s32.totalorder %s15, 0
      %p129 = por %p127, %p128
      %p130 = scmp.ne.s32.totalorder %s116, %s117
      %p131 = scmp.eq.s32.totalorder %s16, 1
      %p132 = por %p130, %p131
      %p134 = scmp.ne.s32.totalorder %s117, %s133
      %p135 = scmp.eq.s32.totalorder %s16, 0
      %p136 = por %p134, %p135
      %p137 = scmp.le.s32.totalorder 1, %s10
      %p138 = scmp.lt.s32.totalorder %s10, 3
      %p139 = pnand %p137, %p138
      %p140 = pneg %p139
      // Predicated region
      $region9: #{dual_computation_block_forward.2} parent=5 // pred_check
        _
      $region10: #{dual_computation_block_forward.2} parent=5 // pred_check_branch
        %142 = sbr.rel (%p139) target = $region12
      $region11: #{dual_computation_block_forward.2} parent=5 // pred_region
        %s143 = ssub.s32 %s10, 1
        // Predicated region
        $region13: #{dual_computation_block_forward.2} parent=11 // pred_check
          %p144 = pneg %p71
        $region14: #{dual_computation_block_forward.2} parent=11 // pred_check_branch
          %146 = sbr.rel (%p144) target = $region16
        $region15: #{dual_computation_block_forward.2} parent=11 // pred_region
          _
        $region16: #{dual_computation_block_forward.2} parent=11 // pred_fallthru
          _
      $region12: #{dual_computation_block_forward.2} parent=5 // pred_fallthru
        _
      %p147 = scmp.lt.s32.totalorder %s10, 2
      // Predicated region
      $region17: #{dual_computation_block_forward.2} parent=5 // pred_check
        %p148 = pneg %p147
      $region18: #{dual_computation_block_forward.2} parent=5 // pred_check_branch
        %150 = sbr.rel (%p148) target = $region20
      $region19: #{dual_computation_block_forward.2} parent=5 // pred_region
        // Predicated region
        $region21: #{dual_computation_block_forward.2} parent=19 // pred_check
          %p151 = pneg %p44
        $region22: #{dual_computation_block_forward.2} parent=19 // pred_check_branch
          %153 = sbr.rel (%p151) target = $region24
        $region23: #{dual_computation_block_forward.2} parent=19 // pred_region
          %s154 = sand.u32 %s34, 1
          %s155 = sand.u32 %s34, 1
          %s156 = smul.addr %s155, 1024
          %s157 = scalar_lea.vmem [#allocation6], %s156
          %s158 = smul.u32 16, %s18
          %s159 = smul.u32 2, %s17
          %s160 = smul.addr %s159, 8
          %s161 = smul.addr %s158, 32
          %s162 = sadd.s32 %s160, %s161
          %s163 = smul.addr %s162, 4
          %s164 = scalar_lea.vmem %s0, %s163
          // Predicated region
          $region25: #{dual_computation_block_forward.2} parent=23 // pred_check
            _
          $region26: #{dual_computation_block_forward.2} parent=23 // pred_check_branch
            %166 = sbr.rel (0) target = $region28
          $region27: #{dual_computation_block_forward.2} parent=23 // pred_region
            // Predicated region
            $region29: #{dual_computation_block_forward.2} parent=27 // pred_check
              _
            $region30: #{dual_computation_block_forward.2} parent=27 // pred_check_branch
              %168 = sbr.rel (0) target = $region32
            $region31: #{dual_computation_block_forward.2} parent=27 // pred_region
              loop: start=0, step=1, limit=1
              $region33: #{dual_computation_block_forward.2} parent=31 // loop_pre_header
                _
              $region34: #{dual_computation_block_forward.2} parent=31 // loop_header
                %s170 = sphi 0, %s174
                %p171 = scmp.ge.s32.totalorder %s170, 1
                %s175 = sphi %s164, %s164
                %s176 = sphi %s157, %s157
              $region35: #{dual_computation_block_forward.2} parent=31 // loop_header_branch
                %173 = sbr.rel (%p171) target = $region39
              $region36: #{dual_computation_block_forward.2} parent=31 // loop_body
                %v177 = vld [vmem:[%s175] sm:$0xff]
                %178 = vst [vmem:[%s176] sm:$0xff] %v177
                %v179 = vld [vmem:[%s175 + $0x8] sm:$0xff]
                %180 = vst [vmem:[%s176 + $0x8] sm:$0xff] %v179
                %v181 = vld [vmem:[%s175 + $0x10] sm:$0xff]
                %182 = vst [vmem:[%s176 + $0x10] sm:$0xff] %v181
                %v183 = vld [vmem:[%s175 + $0x18] sm:$0xff]
                %184 = vst [vmem:[%s176 + $0x18] sm:$0xff] %v183
                %v185 = vld [vmem:[%s175 + $0x20] sm:$0xff]
                %186 = vst [vmem:[%s176 + $0x20] sm:$0xff] %v185
                %v187 = vld [vmem:[%s175 + $0x28] sm:$0xff]
                %188 = vst [vmem:[%s176 + $0x28] sm:$0xff] %v187
                %v189 = vld [vmem:[%s175 + $0x30] sm:$0xff]
                %190 = vst [vmem:[%s176 + $0x30] sm:$0xff] %v189
                %v191 = vld [vmem:[%s175 + $0x38] sm:$0xff]
                %192 = vst [vmem:[%s176 + $0x38] sm:$0xff] %v191
                %v193 = vld [vmem:[%s175 + $0x80] sm:$0xff]
                %194 = vst [vmem:[%s176 + $0x40] sm:$0xff] %v193
                %v195 = vld [vmem:[%s175 + $0x88] sm:$0xff]
                %196 = vst [vmem:[%s176 + $0x48] sm:$0xff] %v195
                %v197 = vld [vmem:[%s175 + $0x90] sm:$0xff]
                %198 = vst [vmem:[%s176 + $0x50] sm:$0xff] %v197
                %v199 = vld [vmem:[%s175 + $0x98] sm:$0xff]
                %200 = vst [vmem:[%s176 + $0x58] sm:$0xff] %v199
                %v201 = vld [vmem:[%s175 + $0xa0] sm:$0xff]
                %202 = vst [vmem:[%s176 + $0x60] sm:$0xff] %v201
                %v203 = vld [vmem:[%s175 + $0xa8] sm:$0xff]
                %204 = vst [vmem:[%s176 + $0x68] sm:$0xff] %v203
                %v205 = vld [vmem:[%s175 + $0xb0] sm:$0xff]
                %206 = vst [vmem:[%s176 + $0x70] sm:$0xff] %v205
                %v207 = vld [vmem:[%s175 + $0xb8] sm:$0xff]
                %208 = vst [vmem:[%s176 + $0x78] sm:$0xff] %v207
                %v209 = vld [vmem:[%s175 + $0x100] sm:$0xff]
                %210 = vst [vmem:[%s176 + $0x80] sm:$0xff] %v209
                %v211 = vld [vmem:[%s175 + $0x108] sm:$0xff]
                %212 = vst [vmem:[%s176 + $0x88] sm:$0xff] %v211
                %v213 = vld [vmem:[%s175 + $0x110] sm:$0xff]
                %214 = vst [vmem:[%s176 + $0x90] sm:$0xff] %v213
                %v215 = vld [vmem:[%s175 + $0x118] sm:$0xff]
                %216 = vst [vmem:[%s176 + $0x98] sm:$0xff] %v215
                %v217 = vld [vmem:[%s175 + $0x120] sm:$0xff]
                %218 = vst [vmem:[%s176 + $0xa0] sm:$0xff] %v217
                %v219 = vld [vmem:[%s175 + $0x128] sm:$0xff]
                %220 = vst [vmem:[%s176 + $0xa8] sm:$0xff] %v219
                %v221 = vld [vmem:[%s175 + $0x130] sm:$0xff]
                %222 = vst [vmem:[%s176 + $0xb0] sm:$0xff] %v221
                %v223 = vld [vmem:[%s175 + $0x138] sm:$0xff]
                %224 = vst [vmem:[%s176 + $0xb8] sm:$0xff] %v223
                %v225 = vld [vmem:[%s175 + $0x180] sm:$0xff]
                %226 = vst [vmem:[%s176 + $0xc0] sm:$0xff] %v225
                %v227 = vld [vmem:[%s175 + $0x188] sm:$0xff]
                %228 = vst [vmem:[%s176 + $0xc8] sm:$0xff] %v227
                %v229 = vld [vmem:[%s175 + $0x190] sm:$0xff]
                %230 = vst [vmem:[%s176 + $0xd0] sm:$0xff] %v229
                %v231 = vld [vmem:[%s175 + $0x198] sm:$0xff]
                %232 = vst [vmem:[%s176 + $0xd8] sm:$0xff] %v231
                %v233 = vld [vmem:[%s175 + $0x1a0] sm:$0xff]
                %234 = vst [vmem:[%s176 + $0xe0] sm:$0xff] %v233
                %v235 = vld [vmem:[%s175 + $0x1a8] sm:$0xff]
                %236 = vst [vmem:[%s176 + $0xe8] sm:$0xff] %v235
                %v237 = vld [vmem:[%s175 + $0x1b0] sm:$0xff]
                %238 = vst [vmem:[%s176 + $0xf0] sm:$0xff] %v237
                %v239 = vld [vmem:[%s175 + $0x1b8] sm:$0xff]
                %240 = vst [vmem:[%s176 + $0xf8] sm:$0xff] %v239
                %v241 = vld [vmem:[%s175 + $0x200] sm:$0xff]
                %242 = vst [vmem:[%s176 + $0x100] sm:$0xff] %v241
                %v243 = vld [vmem:[%s175 + $0x208] sm:$0xff]
                %244 = vst [vmem:[%s176 + $0x108] sm:$0xff] %v243
                %v245 = vld [vmem:[%s175 + $0x210] sm:$0xff]
                %246 = vst [vmem:[%s176 + $0x110] sm:$0xff] %v245
                %v247 = vld [vmem:[%s175 + $0x218] sm:$0xff]
                %248 = vst [vmem:[%s176 + $0x118] sm:$0xff] %v247
                %v249 = vld [vmem:[%s175 + $0x220] sm:$0xff]
                %250 = vst [vmem:[%s176 + $0x120] sm:$0xff] %v249
                %v251 = vld [vmem:[%s175 + $0x228] sm:$0xff]
                %252 = vst [vmem:[%s176 + $0x128] sm:$0xff] %v251
                %v253 = vld [vmem:[%s175 + $0x230] sm:$0xff]
                %254 = vst [vmem:[%s176 + $0x130] sm:$0xff] %v253
                %v255 = vld [vmem:[%s175 + $0x238] sm:$0xff]
                %256 = vst [vmem:[%s176 + $0x138] sm:$0xff] %v255
                %v257 = vld [vmem:[%s175 + $0x280] sm:$0xff]
                %258 = vst [vmem:[%s176 + $0x140] sm:$0xff] %v257
                %v259 = vld [vmem:[%s175 + $0x288] sm:$0xff]
                %260 = vst [vmem:[%s176 + $0x148] sm:$0xff] %v259
                %v261 = vld [vmem:[%s175 + $0x290] sm:$0xff]
                %262 = vst [vmem:[%s176 + $0x150] sm:$0xff] %v261
                %v263 = vld [vmem:[%s175 + $0x298] sm:$0xff]
                %264 = vst [vmem:[%s176 + $0x158] sm:$0xff] %v263
                %v265 = vld [vmem:[%s175 + $0x2a0] sm:$0xff]
                %266 = vst [vmem:[%s176 + $0x160] sm:$0xff] %v265
                %v267 = vld [vmem:[%s175 + $0x2a8] sm:$0xff]
                %268 = vst [vmem:[%s176 + $0x168] sm:$0xff] %v267
                %v269 = vld [vmem:[%s175 + $0x2b0] sm:$0xff]
                %270 = vst [vmem:[%s176 + $0x170] sm:$0xff] %v269
                %v271 = vld [vmem:[%s175 + $0x2b8] sm:$0xff]
                %272 = vst [vmem:[%s176 + $0x178] sm:$0xff] %v271
                %v273 = vld [vmem:[%s175 + $0x300] sm:$0xff]
                %274 = vst [vmem:[%s176 + $0x180] sm:$0xff] %v273
                %v275 = vld [vmem:[%s175 + $0x308] sm:$0xff]
                %276 = vst [vmem:[%s176 + $0x188] sm:$0xff] %v275
                %v277 = vld [vmem:[%s175 + $0x310] sm:$0xff]
                %278 = vst [vmem:[%s176 + $0x190] sm:$0xff] %v277
                %v279 = vld [vmem:[%s175 + $0x318] sm:$0xff]
                %280 = vst [vmem:[%s176 + $0x198] sm:$0xff] %v279
                %v281 = vld [vmem:[%s175 + $0x320] sm:$0xff]
                %282 = vst [vmem:[%s176 + $0x1a0] sm:$0xff] %v281
                %v283 = vld [vmem:[%s175 + $0x328] sm:$0xff]
                %284 = vst [vmem:[%s176 + $0x1a8] sm:$0xff] %v283
                %v285 = vld [vmem:[%s175 + $0x330] sm:$0xff]
                %286 = vst [vmem:[%s176 + $0x1b0] sm:$0xff] %v285
                %v287 = vld [vmem:[%s175 + $0x338] sm:$0xff]
                %288 = vst [vmem:[%s176 + $0x1b8] sm:$0xff] %v287
                %v289 = vld [vmem:[%s175 + $0x380] sm:$0xff]
                %290 = vst [vmem:[%s176 + $0x1c0] sm:$0xff] %v289
                %v291 = vld [vmem:[%s175 + $0x388] sm:$0xff]
                %292 = vst [vmem:[%s176 + $0x1c8] sm:$0xff] %v291
                %v293 = vld [vmem:[%s175 + $0x390] sm:$0xff]
                %294 = vst [vmem:[%s176 + $0x1d0] sm:$0xff] %v293
                %v295 = vld [vmem:[%s175 + $0x398] sm:$0xff]
                %296 = vst [vmem:[%s176 + $0x1d8] sm:$0xff] %v295
                %v297 = vld [vmem:[%s175 + $0x3a0] sm:$0xff]
                %298 = vst [vmem:[%s176 + $0x1e0] sm:$0xff] %v297
                %v299 = vld [vmem:[%s175 + $0x3a8] sm:$0xff]
                %300 = vst [vmem:[%s176 + $0x1e8] sm:$0xff] %v299
                %v301 = vld [vmem:[%s175 + $0x3b0] sm:$0xff]
                %302 = vst [vmem:[%s176 + $0x1f0] sm:$0xff] %v301
                %v303 = vld [vmem:[%s175 + $0x3b8] sm:$0xff]
                %304 = vst [vmem:[%s176 + $0x1f8] sm:$0xff] %v303
                %v305 = vld [vmem:[%s175 + $0x400] sm:$0xff]
                %306 = vst [vmem:[%s176 + $0x200] sm:$0xff] %v305
                %v307 = vld [vmem:[%s175 + $0x408] sm:$0xff]
                %308 = vst [vmem:[%s176 + $0x208] sm:$0xff] %v307
                %v309 = vld [vmem:[%s175 + $0x410] sm:$0xff]
                %310 = vst [vmem:[%s176 + $0x210] sm:$0xff] %v309
                %v311 = vld [vmem:[%s175 + $0x418] sm:$0xff]
                %312 = vst [vmem:[%s176 + $0x218] sm:$0xff] %v311
                %v313 = vld [vmem:[%s175 + $0x420] sm:$0xff]
                %314 = vst [vmem:[%s176 + $0x220] sm:$0xff] %v313
                %v315 = vld [vmem:[%s175 + $0x428] sm:$0xff]
                %316 = vst [vmem:[%s176 + $0x228] sm:$0xff] %v315
                %v317 = vld [vmem:[%s175 + $0x430] sm:$0xff]
                %318 = vst [vmem:[%s176 + $0x230] sm:$0xff] %v317
                %v319 = vld [vmem:[%s175 + $0x438] sm:$0xff]
                %320 = vst [vmem:[%s176 + $0x238] sm:$0xff] %v319
                %v321 = vld [vmem:[%s175 + $0x480] sm:$0xff]
                %322 = vst [vmem:[%s176 + $0x240] sm:$0xff] %v321
                %v323 = vld [vmem:[%s175 + $0x488] sm:$0xff]
                %324 = vst [vmem:[%s176 + $0x248] sm:$0xff] %v323
                %v325 = vld [vmem:[%s175 + $0x490] sm:$0xff]
                %326 = vst [vmem:[%s176 + $0x250] sm:$0xff] %v325
                %v327 = vld [vmem:[%s175 + $0x498] sm:$0xff]
                %328 = vst [vmem:[%s176 + $0x258] sm:$0xff] %v327
                %v329 = vld [vmem:[%s175 + $0x4a0] sm:$0xff]
                %330 = vst [vmem:[%s176 + $0x260] sm:$0xff] %v329
                %v331 = vld [vmem:[%s175 + $0x4a8] sm:$0xff]
                %332 = vst [vmem:[%s176 + $0x268] sm:$0xff] %v331
                %v333 = vld [vmem:[%s175 + $0x4b0] sm:$0xff]
                %334 = vst [vmem:[%s176 + $0x270] sm:$0xff] %v333
                %v335 = vld [vmem:[%s175 + $0x4b8] sm:$0xff]
                %336 = vst [vmem:[%s176 + $0x278] sm:$0xff] %v335
                %v337 = vld [vmem:[%s175 + $0x500] sm:$0xff]
                %338 = vst [vmem:[%s176 + $0x280] sm:$0xff] %v337
                %v339 = vld [vmem:[%s175 + $0x508] sm:$0xff]
                %340 = vst [vmem:[%s176 + $0x288] sm:$0xff] %v339
                %v341 = vld [vmem:[%s175 + $0x510] sm:$0xff]
                %342 = vst [vmem:[%s176 + $0x290] sm:$0xff] %v341
                %v343 = vld [vmem:[%s175 + $0x518] sm:$0xff]
                %344 = vst [vmem:[%s176 + $0x298] sm:$0xff] %v343
                %v345 = vld [vmem:[%s175 + $0x520] sm:$0xff]
                %346 = vst [vmem:[%s176 + $0x2a0] sm:$0xff] %v345
                %v347 = vld [vmem:[%s175 + $0x528] sm:$0xff]
                %348 = vst [vmem:[%s176 + $0x2a8] sm:$0xff] %v347
                %v349 = vld [vmem:[%s175 + $0x530] sm:$0xff]
                %350 = vst [vmem:[%s176 + $0x2b0] sm:$0xff] %v349
                %v351 = vld [vmem:[%s175 + $0x538] sm:$0xff]
                %352 = vst [vmem:[%s176 + $0x2b8] sm:$0xff] %v351
                %v353 = vld [vmem:[%s175 + $0x580] sm:$0xff]
                %354 = vst [vmem:[%s176 + $0x2c0] sm:$0xff] %v353
                %v355 = vld [vmem:[%s175 + $0x588] sm:$0xff]
                %356 = vst [vmem:[%s176 + $0x2c8] sm:$0xff] %v355
                %v357 = vld [vmem:[%s175 + $0x590] sm:$0xff]
                %358 = vst [vmem:[%s176 + $0x2d0] sm:$0xff] %v357
                %v359 = vld [vmem:[%s175 + $0x598] sm:$0xff]
                %360 = vst [vmem:[%s176 + $0x2d8] sm:$0xff] %v359
                %v361 = vld [vmem:[%s175 + $0x5a0] sm:$0xff]
                %362 = vst [vmem:[%s176 + $0x2e0] sm:$0xff] %v361
                %v363 = vld [vmem:[%s175 + $0x5a8] sm:$0xff]
                %364 = vst [vmem:[%s176 + $0x2e8] sm:$0xff] %v363
                %v365 = vld [vmem:[%s175 + $0x5b0] sm:$0xff]
                %366 = vst [vmem:[%s176 + $0x2f0] sm:$0xff] %v365
                %v367 = vld [vmem:[%s175 + $0x5b8] sm:$0xff]
                %368 = vst [vmem:[%s176 + $0x2f8] sm:$0xff] %v367
                %v369 = vld [vmem:[%s175 + $0x600] sm:$0xff]
                %370 = vst [vmem:[%s176 + $0x300] sm:$0xff] %v369
                %v371 = vld [vmem:[%s175 + $0x608] sm:$0xff]
                %372 = vst [vmem:[%s176 + $0x308] sm:$0xff] %v371
                %v373 = vld [vmem:[%s175 + $0x610] sm:$0xff]
                %374 = vst [vmem:[%s176 + $0x310] sm:$0xff] %v373
                %v375 = vld [vmem:[%s175 + $0x618] sm:$0xff]
                %376 = vst [vmem:[%s176 + $0x318] sm:$0xff] %v375
                %v377 = vld [vmem:[%s175 + $0x620] sm:$0xff]
                %378 = vst [vmem:[%s176 + $0x320] sm:$0xff] %v377
                %v379 = vld [vmem:[%s175 + $0x628] sm:$0xff]
                %380 = vst [vmem:[%s176 + $0x328] sm:$0xff] %v379
                %v381 = vld [vmem:[%s175 + $0x630] sm:$0xff]
                %382 = vst [vmem:[%s176 + $0x330] sm:$0xff] %v381
                %v383 = vld [vmem:[%s175 + $0x638] sm:$0xff]
                %384 = vst [vmem:[%s176 + $0x338] sm:$0xff] %v383
                %v385 = vld [vmem:[%s175 + $0x680] sm:$0xff]
                %386 = vst [vmem:[%s176 + $0x340] sm:$0xff] %v385
                %v387 = vld [vmem:[%s175 + $0x688] sm:$0xff]
                %388 = vst [vmem:[%s176 + $0x348] sm:$0xff] %v387
                %v389 = vld [vmem:[%s175 + $0x690] sm:$0xff]
                %390 = vst [vmem:[%s176 + $0x350] sm:$0xff] %v389
                %v391 = vld [vmem:[%s175 + $0x698] sm:$0xff]
                %392 = vst [vmem:[%s176 + $0x358] sm:$0xff] %v391
                %v393 = vld [vmem:[%s175 + $0x6a0] sm:$0xff]
                %394 = vst [vmem:[%s176 + $0x360] sm:$0xff] %v393
                %v395 = vld [vmem:[%s175 + $0x6a8] sm:$0xff]
                %396 = vst [vmem:[%s176 + $0x368] sm:$0xff] %v395
                %v397 = vld [vmem:[%s175 + $0x6b0] sm:$0xff]
                %398 = vst [vmem:[%s176 + $0x370] sm:$0xff] %v397
                %v399 = vld [vmem:[%s175 + $0x6b8] sm:$0xff]
                %400 = vst [vmem:[%s176 + $0x378] sm:$0xff] %v399
                %v401 = vld [vmem:[%s175 + $0x700] sm:$0xff]
                %402 = vst [vmem:[%s176 + $0x380] sm:$0xff] %v401
                %v403 = vld [vmem:[%s175 + $0x708] sm:$0xff]
                %404 = vst [vmem:[%s176 + $0x388] sm:$0xff] %v403
                %v405 = vld [vmem:[%s175 + $0x710] sm:$0xff]
                %406 = vst [vmem:[%s176 + $0x390] sm:$0xff] %v405
                %v407 = vld [vmem:[%s175 + $0x718] sm:$0xff]
                %408 = vst [vmem:[%s176 + $0x398] sm:$0xff] %v407
                %v409 = vld [vmem:[%s175 + $0x720] sm:$0xff]
                %410 = vst [vmem:[%s176 + $0x3a0] sm:$0xff] %v409
                %v411 = vld [vmem:[%s175 + $0x728] sm:$0xff]
                %412 = vst [vmem:[%s176 + $0x3a8] sm:$0xff] %v411
                %v413 = vld [vmem:[%s175 + $0x730] sm:$0xff]
                %414 = vst [vmem:[%s176 + $0x3b0] sm:$0xff] %v413
                %v415 = vld [vmem:[%s175 + $0x738] sm:$0xff]
                %416 = vst [vmem:[%s176 + $0x3b8] sm:$0xff] %v415
                %v417 = vld [vmem:[%s175 + $0x780] sm:$0xff]
                %418 = vst [vmem:[%s176 + $0x3c0] sm:$0xff] %v417
                %v419 = vld [vmem:[%s175 + $0x788] sm:$0xff]
                %420 = vst [vmem:[%s176 + $0x3c8] sm:$0xff] %v419
                %v421 = vld [vmem:[%s175 + $0x790] sm:$0xff]
                %422 = vst [vmem:[%s176 + $0x3d0] sm:$0xff] %v421
                %v423 = vld [vmem:[%s175 + $0x798] sm:$0xff]
                %424 = vst [vmem:[%s176 + $0x3d8] sm:$0xff] %v423
                %v425 = vld [vmem:[%s175 + $0x7a0] sm:$0xff]
                %426 = vst [vmem:[%s176 + $0x3e0] sm:$0xff] %v425
                %v427 = vld [vmem:[%s175 + $0x7a8] sm:$0xff]
                %428 = vst [vmem:[%s176 + $0x3e8] sm:$0xff] %v427
                %v429 = vld [vmem:[%s175 + $0x7b0] sm:$0xff]
                %430 = vst [vmem:[%s176 + $0x3f0] sm:$0xff] %v429
                %v431 = vld [vmem:[%s175 + $0x7b8] sm:$0xff]
                %432 = vst [vmem:[%s176 + $0x3f8] sm:$0xff] %v431
              $region37: #{dual_computation_block_forward.2} parent=31 // loop_footer
                %s174 = sadd.s32 1, %s170
              $region38: #{dual_computation_block_forward.2} parent=31 // loop_footer_branch
                %169 = sbr.rel target = $region34
              $region39: #{dual_computation_block_forward.2} parent=31 // loop_exit
                _
            $region32: #{dual_computation_block_forward.2} parent=27 // pred_fallthru
              _
            // Predicated region
            $region40: #{dual_computation_block_forward.2} parent=27 // pred_check
              _
            $region41: #{dual_computation_block_forward.2} parent=27 // pred_check_branch
              %434 = sbr.rel target = $region43
            $region42: #{dual_computation_block_forward.2} parent=27 // pred_region
              _
            $region43: #{dual_computation_block_forward.2} parent=27 // pred_fallthru
              _
          $region28: #{dual_computation_block_forward.2} parent=23 // pred_fallthru
            _
          %435 = vnop
        $region24: #{dual_computation_block_forward.2} parent=19 // pred_fallthru
          _
      $region20: #{dual_computation_block_forward.2} parent=5 // pred_fallthru
        _
      %p436 = scmp.le.s32.totalorder 1, %s10
      %p437 = scmp.lt.s32.totalorder %s10, 3
      %p438 = pnand %p436, %p437
      %p439 = pneg %p438
      // Predicated region
      $region44: #{dual_computation_block_forward.2} parent=5 // pred_check
        _
      $region45: #{dual_computation_block_forward.2} parent=5 // pred_check_branch
        %441 = sbr.rel (%p438) target = $region47
      $region46: #{dual_computation_block_forward.2} parent=5 // pred_region
        %s442 = ssub.s32 %s10, 1
        %s443 = sand.u32 %s37, 1
        %s444 = sand.u32 %s37, 1
        %s445 = smul.addr %s444, 1024
        %s446 = scalar_lea.vmem [#allocation6], %s445
        // Predicated region
        $region48: #{dual_computation_block_forward.2} parent=46 // pred_check
          %p447 = pneg %p50
        $region49: #{dual_computation_block_forward.2} parent=46 // pred_check_branch
          %449 = sbr.rel (%p447) target = $region51
        $region50: #{dual_computation_block_forward.2} parent=46 // pred_region
          _
        $region51: #{dual_computation_block_forward.2} parent=46 // pred_fallthru
          _
        %s450 = sand.u32 %s37, 1
        %s451 = sand.u32 %s37, 1
        %s452 = smul.addr %s451, 1024
        %s453 = scalar_lea.vmem [#allocation6], %s452
        %p454 = pneg %p50
        %p455 = pneg %p47
        %p456 = pneg %p71
        %p457 = pneg %p68
        %p458 = pneg %p99
        %p459 = pneg %p96
        %s460 = sand.u32 %s86, 1
        %s461 = sand.u32 %s86, 1
        %s462 = smul.addr %s461, 256
        %s463 = scalar_lea.vmem [#allocation7], %s462
        %p464 = pneg %p129
        %p465 = pneg %p126
        %s466 = sand.u32 %s116, 1
        %s467 = sand.u32 %s116, 1
        %s468 = smul.addr %s467, 256
        %s469 = scalar_lea.vmem [#allocation8], %s468
        %s470 = smul.u32 16, %s20
        %s471 = smul.u32 2, %s19
        %s472 = smul.u32 16, %s20
        %s473 = smul.u32 2, %s19
        %s474 = ssub.s32 0, %s20
        %s475 = smul.u32 16, %s474
        %s476 = smul.u32 2, %s19
        %p477 = scmp.eq.s32.totalorder %s20, 0
        // Predicated region
        $region52: #{dual_computation_block_forward.2} parent=46 // pred_check
          %p478 = pneg %p477
        $region53: #{dual_computation_block_forward.2} parent=46 // pred_check_branch
          %480 = sbr.rel (%p478) target = $region55
        $region54: #{dual_computation_block_forward.2} parent=46 // pred_region
          %481 = vst [vmem:[#allocation2] sm:$0xff] 0.0
          %482 = vst [vmem:[#allocation2 + $0x8] sm:$0xff] 0.0
          %483 = vst [vmem:[#allocation3] sm:$0xff] 0.0
          %484 = vst [vmem:[#allocation3 + $0x8] sm:$0xff] 0.0
          %485 = vst [vmem:[#allocation4] sm:$0xff] 0.0
          %486 = vst [vmem:[#allocation4 + $0x8] sm:$0xff] 0.0
          %487 = vst [vmem:[#allocation5] sm:$0xff] 0.0
          %488 = vst [vmem:[#allocation5 + $0x8] sm:$0xff] 0.0
        $region55: #{dual_computation_block_forward.2} parent=46 // pred_fallthru
          _
        %v489 = vld [vmem:[%s1] sm:$0xff]
        %v490 = vld [vmem:[%s1 + $0x8] sm:$0xff]
        %v491 = vld [vmem:[%s1 + $0x10] sm:$0xff]
        %v492 = vld [vmem:[%s1 + $0x18] sm:$0xff]
        %v493 = vld [vmem:[%s1 + $0x20] sm:$0xff]
        %v494 = vld [vmem:[%s1 + $0x28] sm:$0xff]
        %v495 = vld [vmem:[%s1 + $0x30] sm:$0xff]
        %v496 = vld [vmem:[%s1 + $0x38] sm:$0xff]
        %v497 = vld [vmem:[%s1 + $0x40] sm:$0xff]
        %v498 = vld [vmem:[%s1 + $0x48] sm:$0xff]
        %v499 = vld [vmem:[%s1 + $0x50] sm:$0xff]
        %v500 = vld [vmem:[%s1 + $0x58] sm:$0xff]
        %v501 = vld [vmem:[%s1 + $0x60] sm:$0xff]
        %v502 = vld [vmem:[%s1 + $0x68] sm:$0xff]
        %v503 = vld [vmem:[%s1 + $0x70] sm:$0xff]
        %v504 = vld [vmem:[%s1 + $0x78] sm:$0xff]
        %v505 = vld [vmem:[%s1 + $0x80] sm:$0xff]
        %v506 = vld [vmem:[%s1 + $0x88] sm:$0xff]
        %v507 = vld [vmem:[%s1 + $0x90] sm:$0xff]
        %v508 = vld [vmem:[%s1 + $0x98] sm:$0xff]
        %v509 = vld [vmem:[%s1 + $0xa0] sm:$0xff]
        %v510 = vld [vmem:[%s1 + $0xa8] sm:$0xff]
        %v511 = vld [vmem:[%s1 + $0xb0] sm:$0xff]
        %v512 = vld [vmem:[%s1 + $0xb8] sm:$0xff]
        %v513 = vld [vmem:[%s1 + $0xc0] sm:$0xff]
        %v514 = vld [vmem:[%s1 + $0xc8] sm:$0xff]
        %v515 = vld [vmem:[%s1 + $0xd0] sm:$0xff]
        %v516 = vld [vmem:[%s1 + $0xd8] sm:$0xff]
        %v517 = vld [vmem:[%s1 + $0xe0] sm:$0xff]
        %v518 = vld [vmem:[%s1 + $0xe8] sm:$0xff]
        %v519 = vld [vmem:[%s1 + $0xf0] sm:$0xff]
        %v520 = vld [vmem:[%s1 + $0xf8] sm:$0xff]
        %v521 = vld [vmem:[%s1 + $0x100] sm:$0xff]
        %v522 = vld [vmem:[%s1 + $0x108] sm:$0xff]
        %v523 = vld [vmem:[%s1 + $0x110] sm:$0xff]
        %v524 = vld [vmem:[%s1 + $0x118] sm:$0xff]
        %v525 = vld [vmem:[%s1 + $0x120] sm:$0xff]
        %v526 = vld [vmem:[%s1 + $0x128] sm:$0xff]
        %v527 = vld [vmem:[%s1 + $0x130] sm:$0xff]
        %v528 = vld [vmem:[%s1 + $0x138] sm:$0xff]
        %v529 = vld [vmem:[%s1 + $0x140] sm:$0xff]
        %v530 = vld [vmem:[%s1 + $0x148] sm:$0xff]
        %v531 = vld [vmem:[%s1 + $0x150] sm:$0xff]
        %v532 = vld [vmem:[%s1 + $0x158] sm:$0xff]
        %v533 = vld [vmem:[%s1 + $0x160] sm:$0xff]
        %v534 = vld [vmem:[%s1 + $0x168] sm:$0xff]
        %v535 = vld [vmem:[%s1 + $0x170] sm:$0xff]
        %v536 = vld [vmem:[%s1 + $0x178] sm:$0xff]
        %v537 = vld [vmem:[%s1 + $0x180] sm:$0xff]
        %v538 = vld [vmem:[%s1 + $0x188] sm:$0xff]
        %v539 = vld [vmem:[%s1 + $0x190] sm:$0xff]
        %v540 = vld [vmem:[%s1 + $0x198] sm:$0xff]
        %v541 = vld [vmem:[%s1 + $0x1a0] sm:$0xff]
        %v542 = vld [vmem:[%s1 + $0x1a8] sm:$0xff]
        %v543 = vld [vmem:[%s1 + $0x1b0] sm:$0xff]
        %v544 = vld [vmem:[%s1 + $0x1b8] sm:$0xff]
        %v545 = vld [vmem:[%s1 + $0x1c0] sm:$0xff]
        %v546 = vld [vmem:[%s1 + $0x1c8] sm:$0xff]
        %v547 = vld [vmem:[%s1 + $0x1d0] sm:$0xff]
        %v548 = vld [vmem:[%s1 + $0x1d8] sm:$0xff]
        %v549 = vld [vmem:[%s1 + $0x1e0] sm:$0xff]
        %v550 = vld [vmem:[%s1 + $0x1e8] sm:$0xff]
        %v551 = vld [vmem:[%s1 + $0x1f0] sm:$0xff]
        %v552 = vld [vmem:[%s1 + $0x1f8] sm:$0xff]
        %v553 = vld [vmem:[%s1 + $0x200] sm:$0xff]
        %v554 = vld [vmem:[%s1 + $0x208] sm:$0xff]
        %v555 = vld [vmem:[%s1 + $0x210] sm:$0xff]
        %v556 = vld [vmem:[%s1 + $0x218] sm:$0xff]
        %v557 = vld [vmem:[%s1 + $0x220] sm:$0xff]
        %v558 = vld [vmem:[%s1 + $0x228] sm:$0xff]
        %v559 = vld [vmem:[%s1 + $0x230] sm:$0xff]
        %v560 = vld [vmem:[%s1 + $0x238] sm:$0xff]
        %v561 = vld [vmem:[%s1 + $0x240] sm:$0xff]
        %v562 = vld [vmem:[%s1 + $0x248] sm:$0xff]
        %v563 = vld [vmem:[%s1 + $0x250] sm:$0xff]
        %v564 = vld [vmem:[%s1 + $0x258] sm:$0xff]
        %v565 = vld [vmem:[%s1 + $0x260] sm:$0xff]
        %v566 = vld [vmem:[%s1 + $0x268] sm:$0xff]
        %v567 = vld [vmem:[%s1 + $0x270] sm:$0xff]
        %v568 = vld [vmem:[%s1 + $0x278] sm:$0xff]
        %v569 = vld [vmem:[%s1 + $0x280] sm:$0xff]
        %v570 = vld [vmem:[%s1 + $0x288] sm:$0xff]
        %v571 = vld [vmem:[%s1 + $0x290] sm:$0xff]
        %v572 = vld [vmem:[%s1 + $0x298] sm:$0xff]
        %v573 = vld [vmem:[%s1 + $0x2a0] sm:$0xff]
        %v574 = vld [vmem:[%s1 + $0x2a8] sm:$0xff]
        %v575 = vld [vmem:[%s1 + $0x2b0] sm:$0xff]
        %v576 = vld [vmem:[%s1 + $0x2b8] sm:$0xff]
        %v577 = vld [vmem:[%s1 + $0x2c0] sm:$0xff]
        %v578 = vld [vmem:[%s1 + $0x2c8] sm:$0xff]
        %v579 = vld [vmem:[%s1 + $0x2d0] sm:$0xff]
        %v580 = vld [vmem:[%s1 + $0x2d8] sm:$0xff]
        %v581 = vld [vmem:[%s1 + $0x2e0] sm:$0xff]
        %v582 = vld [vmem:[%s1 + $0x2e8] sm:$0xff]
        %v583 = vld [vmem:[%s1 + $0x2f0] sm:$0xff]
        %v584 = vld [vmem:[%s1 + $0x2f8] sm:$0xff]
        %v585 = vld [vmem:[%s1 + $0x300] sm:$0xff]
        %v586 = vld [vmem:[%s1 + $0x308] sm:$0xff]
        %v587 = vld [vmem:[%s1 + $0x310] sm:$0xff]
        %v588 = vld [vmem:[%s1 + $0x318] sm:$0xff]
        %v589 = vld [vmem:[%s1 + $0x320] sm:$0xff]
        %v590 = vld [vmem:[%s1 + $0x328] sm:$0xff]
        %v591 = vld [vmem:[%s1 + $0x330] sm:$0xff]
        %v592 = vld [vmem:[%s1 + $0x338] sm:$0xff]
        %v593 = vld [vmem:[%s1 + $0x340] sm:$0xff]
        %v594 = vld [vmem:[%s1 + $0x348] sm:$0xff]
        %v595 = vld [vmem:[%s1 + $0x350] sm:$0xff]
        %v596 = vld [vmem:[%s1 + $0x358] sm:$0xff]
        %v597 = vld [vmem:[%s1 + $0x360] sm:$0xff]
        %v598 = vld [vmem:[%s1 + $0x368] sm:$0xff]
        %v599 = vld [vmem:[%s1 + $0x370] sm:$0xff]
        %v600 = vld [vmem:[%s1 + $0x378] sm:$0xff]
        %v601 = vld [vmem:[%s1 + $0x380] sm:$0xff]
        %v602 = vld [vmem:[%s1 + $0x388] sm:$0xff]
        %v603 = vld [vmem:[%s1 + $0x390] sm:$0xff]
        %v604 = vld [vmem:[%s1 + $0x398] sm:$0xff]
        %v605 = vld [vmem:[%s1 + $0x3a0] sm:$0xff]
        %v606 = vld [vmem:[%s1 + $0x3a8] sm:$0xff]
        %v607 = vld [vmem:[%s1 + $0x3b0] sm:$0xff]
        %v608 = vld [vmem:[%s1 + $0x3b8] sm:$0xff]
        %v609 = vld [vmem:[%s1 + $0x3c0] sm:$0xff]
        %v610 = vld [vmem:[%s1 + $0x3c8] sm:$0xff]
        %v611 = vld [vmem:[%s1 + $0x3d0] sm:$0xff]
        %v612 = vld [vmem:[%s1 + $0x3d8] sm:$0xff]
        %v613 = vld [vmem:[%s1 + $0x3e0] sm:$0xff]
        %v614 = vld [vmem:[%s1 + $0x3e8] sm:$0xff]
        %v615 = vld [vmem:[%s1 + $0x3f0] sm:$0xff]
        %v616 = vld [vmem:[%s1 + $0x3f8] sm:$0xff]
        %v617 = vld [vmem:[#allocation2] sm:$0xff]
        %v618 = vld [vmem:[#allocation2 + $0x8] sm:$0xff]
        %v619 = vld [vmem:[#allocation3] sm:$0xff]
        %v620 = vld [vmem:[#allocation3 + $0x8] sm:$0xff]
        %v621 = vld [vmem:[#allocation4] sm:$0xff]
        %v622 = vld [vmem:[#allocation4 + $0x8] sm:$0xff]
        %v623 = vld [vmem:[#allocation5] sm:$0xff]
        %v624 = vld [vmem:[#allocation5 + $0x8] sm:$0xff]
        %v625 = vld [vmem:[%s446] sm:$0xff]
        %v626 = vld [vmem:[%s446 + $0x8] sm:$0xff]
        %v627 = vld [vmem:[%s446 + $0x10] sm:$0xff]
        %v628 = vld [vmem:[%s446 + $0x18] sm:$0xff]
        %v629 = vld [vmem:[%s446 + $0x20] sm:$0xff]
        %v630 = vld [vmem:[%s446 + $0x28] sm:$0xff]
        %v631 = vld [vmem:[%s446 + $0x30] sm:$0xff]
        %v632 = vld [vmem:[%s446 + $0x38] sm:$0xff]
        %v633 = vunpack.c.l.bf16 %v625
        %v634 = vunpack.c.h.bf16 %v625
        %v635 = vunpack.c.l.bf16 %v626
        %v636 = vunpack.c.h.bf16 %v626
        %v637 = vunpack.c.l.bf16 %v627
        %v638 = vunpack.c.h.bf16 %v627
        %v639 = vunpack.c.l.bf16 %v628
        %v640 = vunpack.c.h.bf16 %v628
        %v641 = vunpack.c.l.bf16 %v629
        %v642 = vunpack.c.h.bf16 %v629
        %v643 = vunpack.c.l.bf16 %v630
        %v644 = vunpack.c.h.bf16 %v630
        %v645 = vunpack.c.l.bf16 %v631
        %v646 = vunpack.c.h.bf16 %v631
        %v647 = vunpack.c.l.bf16 %v632
        %v648 = vunpack.c.h.bf16 %v632
        %v649 = vpack.c.bf16 %v618, %v617
        %v650 = vpack.c.bf16 %v620, %v619
        %v779 = vunpack.c.l.b16 %v489
        %v780 = vunpack.c.h.b16 %v489
        %v781 = vunpack.c.l.b16 %v490
        %v782 = vunpack.c.h.b16 %v490
        %v783 = vunpack.c.l.b16 %v491
        %v784 = vunpack.c.h.b16 %v491
        %v785 = vunpack.c.l.b16 %v492
        %v786 = vunpack.c.h.b16 %v492
        %v787 = vunpack.c.l.b16 %v493
        %v788 = vunpack.c.h.b16 %v493
        %v789 = vunpack.c.l.b16 %v494
        %v790 = vunpack.c.h.b16 %v494
        %v791 = vunpack.c.l.b16 %v495
        %v792 = vunpack.c.h.b16 %v495
        %v793 = vunpack.c.l.b16 %v496
        %v794 = vunpack.c.h.b16 %v496
        %v795 = vunpack.c.l.b16 %v497
        %v796 = vunpack.c.h.b16 %v497
        %v797 = vunpack.c.l.b16 %v498
        %v798 = vunpack.c.h.b16 %v498
        %v799 = vunpack.c.l.b16 %v499
        %v800 = vunpack.c.h.b16 %v499
        %v801 = vunpack.c.l.b16 %v500
        %v802 = vunpack.c.h.b16 %v500
        %v803 = vunpack.c.l.b16 %v501
        %v804 = vunpack.c.h.b16 %v501
        %v805 = vunpack.c.l.b16 %v502
        %v806 = vunpack.c.h.b16 %v502
        %v807 = vunpack.c.l.b16 %v503
        %v808 = vunpack.c.h.b16 %v503
        %v809 = vunpack.c.l.b16 %v504
        %v810 = vunpack.c.h.b16 %v504
        %v811 = vunpack.c.l.b16 %v505
        %v812 = vunpack.c.h.b16 %v505
        %v813 = vunpack.c.l.b16 %v506
        %v814 = vunpack.c.h.b16 %v506
        %v815 = vunpack.c.l.b16 %v507
        %v816 = vunpack.c.h.b16 %v507
        %v817 = vunpack.c.l.b16 %v508
        %v818 = vunpack.c.h.b16 %v508
        %v819 = vunpack.c.l.b16 %v509
        %v820 = vunpack.c.h.b16 %v509
        %v821 = vunpack.c.l.b16 %v510
        %v822 = vunpack.c.h.b16 %v510
        %v823 = vunpack.c.l.b16 %v511
        %v824 = vunpack.c.h.b16 %v511
        %v825 = vunpack.c.l.b16 %v512
        %v826 = vunpack.c.h.b16 %v512
        %v827 = vunpack.c.l.b16 %v513
        %v828 = vunpack.c.h.b16 %v513
        %v829 = vunpack.c.l.b16 %v514
        %v830 = vunpack.c.h.b16 %v514
        %v831 = vunpack.c.l.b16 %v515
        %v832 = vunpack.c.h.b16 %v515
        %v833 = vunpack.c.l.b16 %v516
        %v834 = vunpack.c.h.b16 %v516
        %v835 = vunpack.c.l.b16 %v517
        %v836 = vunpack.c.h.b16 %v517
        %v837 = vunpack.c.l.b16 %v518
        %v838 = vunpack.c.h.b16 %v518
        %v839 = vunpack.c.l.b16 %v519
        %v840 = vunpack.c.h.b16 %v519
        %v841 = vunpack.c.l.b16 %v520
        %v842 = vunpack.c.h.b16 %v520
        %v843 = vunpack.c.l.b16 %v521
        %v844 = vunpack.c.h.b16 %v521
        %v845 = vunpack.c.l.b16 %v522
        %v846 = vunpack.c.h.b16 %v522
        %v847 = vunpack.c.l.b16 %v523
        %v848 = vunpack.c.h.b16 %v523
        %v849 = vunpack.c.l.b16 %v524
        %v850 = vunpack.c.h.b16 %v524
        %v851 = vunpack.c.l.b16 %v525
        %v852 = vunpack.c.h.b16 %v525
        %v853 = vunpack.c.l.b16 %v526
        %v854 = vunpack.c.h.b16 %v526
        %v855 = vunpack.c.l.b16 %v527
        %v856 = vunpack.c.h.b16 %v527
        %v857 = vunpack.c.l.b16 %v528
        %v858 = vunpack.c.h.b16 %v528
        %v859 = vunpack.c.l.b16 %v529
        %v860 = vunpack.c.h.b16 %v529
        %v861 = vunpack.c.l.b16 %v530
        %v862 = vunpack.c.h.b16 %v530
        %v863 = vunpack.c.l.b16 %v531
        %v864 = vunpack.c.h.b16 %v531
        %v865 = vunpack.c.l.b16 %v532
        %v866 = vunpack.c.h.b16 %v532
        %v867 = vunpack.c.l.b16 %v533
        %v868 = vunpack.c.h.b16 %v533
        %v869 = vunpack.c.l.b16 %v534
        %v870 = vunpack.c.h.b16 %v534
        %v871 = vunpack.c.l.b16 %v535
        %v872 = vunpack.c.h.b16 %v535
        %v873 = vunpack.c.l.b16 %v536
        %v874 = vunpack.c.h.b16 %v536
        %v875 = vunpack.c.l.b16 %v537
        %v876 = vunpack.c.h.b16 %v537
        %v877 = vunpack.c.l.b16 %v538
        %v878 = vunpack.c.h.b16 %v538
        %v879 = vunpack.c.l.b16 %v539
        %v880 = vunpack.c.h.b16 %v539
        %v881 = vunpack.c.l.b16 %v540
        %v882 = vunpack.c.h.b16 %v540
        %v883 = vunpack.c.l.b16 %v541
        %v884 = vunpack.c.h.b16 %v541
        %v885 = vunpack.c.l.b16 %v542
        %v886 = vunpack.c.h.b16 %v542
        %v887 = vunpack.c.l.b16 %v543
        %v888 = vunpack.c.h.b16 %v543
        %v889 = vunpack.c.l.b16 %v544
        %v890 = vunpack.c.h.b16 %v544
        %v891 = vunpack.c.l.b16 %v545
        %v892 = vunpack.c.h.b16 %v545
        %v893 = vunpack.c.l.b16 %v546
        %v894 = vunpack.c.h.b16 %v546
        %v895 = vunpack.c.l.b16 %v547
        %v896 = vunpack.c.h.b16 %v547
        %v897 = vunpack.c.l.b16 %v548
        %v898 = vunpack.c.h.b16 %v548
        %v899 = vunpack.c.l.b16 %v549
        %v900 = vunpack.c.h.b16 %v549
        %v901 = vunpack.c.l.b16 %v550
        %v902 = vunpack.c.h.b16 %v550
        %v903 = vunpack.c.l.b16 %v551
        %v904 = vunpack.c.h.b16 %v551
        %v905 = vunpack.c.l.b16 %v552
        %v906 = vunpack.c.h.b16 %v552
        %v907 = vunpack.c.l.b16 %v553
        %v908 = vunpack.c.h.b16 %v553
        %v909 = vunpack.c.l.b16 %v554
        %v910 = vunpack.c.h.b16 %v554
        %v911 = vunpack.c.l.b16 %v555
        %v912 = vunpack.c.h.b16 %v555
        %v913 = vunpack.c.l.b16 %v556
        %v914 = vunpack.c.h.b16 %v556
        %v915 = vunpack.c.l.b16 %v557
        %v916 = vunpack.c.h.b16 %v557
        %v917 = vunpack.c.l.b16 %v558
        %v918 = vunpack.c.h.b16 %v558
        %v919 = vunpack.c.l.b16 %v559
        %v920 = vunpack.c.h.b16 %v559
        %v921 = vunpack.c.l.b16 %v560
        %v922 = vunpack.c.h.b16 %v560
        %v923 = vunpack.c.l.b16 %v561
        %v924 = vunpack.c.h.b16 %v561
        %v925 = vunpack.c.l.b16 %v562
        %v926 = vunpack.c.h.b16 %v562
        %v927 = vunpack.c.l.b16 %v563
        %v928 = vunpack.c.h.b16 %v563
        %v929 = vunpack.c.l.b16 %v564
        %v930 = vunpack.c.h.b16 %v564
        %v931 = vunpack.c.l.b16 %v565
        %v932 = vunpack.c.h.b16 %v565
        %v933 = vunpack.c.l.b16 %v566
        %v934 = vunpack.c.h.b16 %v566
        %v935 = vunpack.c.l.b16 %v567
        %v936 = vunpack.c.h.b16 %v567
        %v937 = vunpack.c.l.b16 %v568
        %v938 = vunpack.c.h.b16 %v568
        %v939 = vunpack.c.l.b16 %v569
        %v940 = vunpack.c.h.b16 %v569
        %v941 = vunpack.c.l.b16 %v570
        %v942 = vunpack.c.h.b16 %v570
        %v943 = vunpack.c.l.b16 %v571
        %v944 = vunpack.c.h.b16 %v571
        %v945 = vunpack.c.l.b16 %v572
        %v946 = vunpack.c.h.b16 %v572
        %v947 = vunpack.c.l.b16 %v573
        %v948 = vunpack.c.h.b16 %v573
        %v949 = vunpack.c.l.b16 %v574
        %v950 = vunpack.c.h.b16 %v574
        %v951 = vunpack.c.l.b16 %v575
        %v952 = vunpack.c.h.b16 %v575
        %v953 = vunpack.c.l.b16 %v576
        %v954 = vunpack.c.h.b16 %v576
        %v955 = vunpack.c.l.b16 %v577
        %v956 = vunpack.c.h.b16 %v577
        %v957 = vunpack.c.l.b16 %v578
        %v958 = vunpack.c.h.b16 %v578
        %v959 = vunpack.c.l.b16 %v579
        %v960 = vunpack.c.h.b16 %v579
        %v961 = vunpack.c.l.b16 %v580
        %v962 = vunpack.c.h.b16 %v580
        %v963 = vunpack.c.l.b16 %v581
        %v964 = vunpack.c.h.b16 %v581
        %v965 = vunpack.c.l.b16 %v582
        %v966 = vunpack.c.h.b16 %v582
        %v967 = vunpack.c.l.b16 %v583
        %v968 = vunpack.c.h.b16 %v583
        %v969 = vunpack.c.l.b16 %v584
        %v970 = vunpack.c.h.b16 %v584
        %v971 = vunpack.c.l.b16 %v585
        %v972 = vunpack.c.h.b16 %v585
        %v973 = vunpack.c.l.b16 %v586
        %v974 = vunpack.c.h.b16 %v586
        %v975 = vunpack.c.l.b16 %v587
        %v976 = vunpack.c.h.b16 %v587
        %v977 = vunpack.c.l.b16 %v588
        %v978 = vunpack.c.h.b16 %v588
        %v979 = vunpack.c.l.b16 %v589
        %v980 = vunpack.c.h.b16 %v589
        %v981 = vunpack.c.l.b16 %v590
        %v982 = vunpack.c.h.b16 %v590
        %v983 = vunpack.c.l.b16 %v591
        %v984 = vunpack.c.h.b16 %v591
        %v985 = vunpack.c.l.b16 %v592
        %v986 = vunpack.c.h.b16 %v592
        %v987 = vunpack.c.l.b16 %v593
        %v988 = vunpack.c.h.b16 %v593
        %v989 = vunpack.c.l.b16 %v594
        %v990 = vunpack.c.h.b16 %v594
        %v991 = vunpack.c.l.b16 %v595
        %v992 = vunpack.c.h.b16 %v595
        %v993 = vunpack.c.l.b16 %v596
        %v994 = vunpack.c.h.b16 %v596
        %v995 = vunpack.c.l.b16 %v597
        %v996 = vunpack.c.h.b16 %v597
        %v997 = vunpack.c.l.b16 %v598
        %v998 = vunpack.c.h.b16 %v598
        %v999 = vunpack.c.l.b16 %v599
        %v1000 = vunpack.c.h.b16 %v599
        %v1001 = vunpack.c.l.b16 %v600
        %v1002 = vunpack.c.h.b16 %v600
        %v1003 = vunpack.c.l.b16 %v601
        %v1004 = vunpack.c.h.b16 %v601
        %v1005 = vunpack.c.l.b16 %v602
        %v1006 = vunpack.c.h.b16 %v602
        %v1007 = vunpack.c.l.b16 %v603
        %v1008 = vunpack.c.h.b16 %v603
        %v1009 = vunpack.c.l.b16 %v604
        %v1010 = vunpack.c.h.b16 %v604
        %v1011 = vunpack.c.l.b16 %v605
        %v1012 = vunpack.c.h.b16 %v605
        %v1013 = vunpack.c.l.b16 %v606
        %v1014 = vunpack.c.h.b16 %v606
        %v1015 = vunpack.c.l.b16 %v607
        %v1016 = vunpack.c.h.b16 %v607
        %v1017 = vunpack.c.l.b16 %v608
        %v1018 = vunpack.c.h.b16 %v608
        %v1019 = vunpack.c.l.b16 %v609
        %v1020 = vunpack.c.h.b16 %v609
        %v1021 = vunpack.c.l.b16 %v610
        %v1022 = vunpack.c.h.b16 %v610
        %v1023 = vunpack.c.l.b16 %v611
        %v1024 = vunpack.c.h.b16 %v611
        %v1025 = vunpack.c.l.b16 %v612
        %v1026 = vunpack.c.h.b16 %v612
        %v1027 = vunpack.c.l.b16 %v613
        %v1028 = vunpack.c.h.b16 %v613
        %v1029 = vunpack.c.l.b16 %v614
        %v1030 = vunpack.c.h.b16 %v614
        %v1031 = vunpack.c.l.b16 %v615
        %v1032 = vunpack.c.h.b16 %v615
        %v1033 = vunpack.c.l.b16 %v616
        %v1034 = vunpack.c.h.b16 %v616
        %v1035 = vpack.c.b16 %v787, %v779
        %v1036 = vpack.c.b16 %v788, %v780
        %v1037 = vpack.c.b16 %v789, %v781
        %v1038 = vpack.c.b16 %v790, %v782
        %v1039 = vpack.c.b16 %v791, %v783
        %v1040 = vpack.c.b16 %v792, %v784
        %v1041 = vpack.c.b16 %v793, %v785
        %v1042 = vpack.c.b16 %v794, %v786
        %v1043 = vpack.c.b16 %v803, %v795
        %v1044 = vpack.c.b16 %v804, %v796
        %v1045 = vpack.c.b16 %v805, %v797
        %v1046 = vpack.c.b16 %v806, %v798
        %v1047 = vpack.c.b16 %v807, %v799
        %v1048 = vpack.c.b16 %v808, %v800
        %v1049 = vpack.c.b16 %v809, %v801
        %v1050 = vpack.c.b16 %v810, %v802
        %v1051 = vpack.c.b16 %v819, %v811
        %v1052 = vpack.c.b16 %v820, %v812
        %v1053 = vpack.c.b16 %v821, %v813
        %v1054 = vpack.c.b16 %v822, %v814
        %v1055 = vpack.c.b16 %v823, %v815
        %v1056 = vpack.c.b16 %v824, %v816
        %v1057 = vpack.c.b16 %v825, %v817
        %v1058 = vpack.c.b16 %v826, %v818
        %v1059 = vpack.c.b16 %v835, %v827
        %v1060 = vpack.c.b16 %v836, %v828
        %v1061 = vpack.c.b16 %v837, %v829
        %v1062 = vpack.c.b16 %v838, %v830
        %v1063 = vpack.c.b16 %v839, %v831
        %v1064 = vpack.c.b16 %v840, %v832
        %v1065 = vpack.c.b16 %v841, %v833
        %v1066 = vpack.c.b16 %v842, %v834
        %v1067 = vpack.c.b16 %v851, %v843
        %v1068 = vpack.c.b16 %v852, %v844
        %v1069 = vpack.c.b16 %v853, %v845
        %v1070 = vpack.c.b16 %v854, %v846
        %v1071 = vpack.c.b16 %v855, %v847
        %v1072 = vpack.c.b16 %v856, %v848
        %v1073 = vpack.c.b16 %v857, %v849
        %v1074 = vpack.c.b16 %v858, %v850
        %v1075 = vpack.c.b16 %v867, %v859
        %v1076 = vpack.c.b16 %v868, %v860
        %v1077 = vpack.c.b16 %v869, %v861
        %v1078 = vpack.c.b16 %v870, %v862
        %v1079 = vpack.c.b16 %v871, %v863
        %v1080 = vpack.c.b16 %v872, %v864
        %v1081 = vpack.c.b16 %v873, %v865
        %v1082 = vpack.c.b16 %v874, %v866
        %v1083 = vpack.c.b16 %v883, %v875
        %v1084 = vpack.c.b16 %v884, %v876
        %v1085 = vpack.c.b16 %v885, %v877
        %v1086 = vpack.c.b16 %v886, %v878
        %v1087 = vpack.c.b16 %v887, %v879
        %v1088 = vpack.c.b16 %v888, %v880
        %v1089 = vpack.c.b16 %v889, %v881
        %v1090 = vpack.c.b16 %v890, %v882
        %v1091 = vpack.c.b16 %v899, %v891
        %v1092 = vpack.c.b16 %v900, %v892
        %v1093 = vpack.c.b16 %v901, %v893
        %v1094 = vpack.c.b16 %v902, %v894
        %v1095 = vpack.c.b16 %v903, %v895
        %v1096 = vpack.c.b16 %v904, %v896
        %v1097 = vpack.c.b16 %v905, %v897
        %v1098 = vpack.c.b16 %v906, %v898
        %v1099 = vpack.c.b16 %v915, %v907
        %v1100 = vpack.c.b16 %v916, %v908
        %v1101 = vpack.c.b16 %v917, %v909
        %v1102 = vpack.c.b16 %v918, %v910
        %v1103 = vpack.c.b16 %v919, %v911
        %v1104 = vpack.c.b16 %v920, %v912
        %v1105 = vpack.c.b16 %v921, %v913
        %v1106 = vpack.c.b16 %v922, %v914
        %v1107 = vpack.c.b16 %v931, %v923
        %v1108 = vpack.c.b16 %v932, %v924
        %v1109 = vpack.c.b16 %v933, %v925
        %v1110 = vpack.c.b16 %v934, %v926
        %v1111 = vpack.c.b16 %v935, %v927
        %v1112 = vpack.c.b16 %v936, %v928
        %v1113 = vpack.c.b16 %v937, %v929
        %v1114 = vpack.c.b16 %v938, %v930
        %v1115 = vpack.c.b16 %v947, %v939
        %v1116 = vpack.c.b16 %v948, %v940
        %v1117 = vpack.c.b16 %v949, %v941
        %v1118 = vpack.c.b16 %v950, %v942
        %v1119 = vpack.c.b16 %v951, %v943
        %v1120 = vpack.c.b16 %v952, %v944
        %v1121 = vpack.c.b16 %v953, %v945
        %v1122 = vpack.c.b16 %v954, %v946
        %v1123 = vpack.c.b16 %v963, %v955
        %v1124 = vpack.c.b16 %v964, %v956
        %v1125 = vpack.c.b16 %v965, %v957
        %v1126 = vpack.c.b16 %v966, %v958
        %v1127 = vpack.c.b16 %v967, %v959
        %v1128 = vpack.c.b16 %v968, %v960
        %v1129 = vpack.c.b16 %v969, %v961
        %v1130 = vpack.c.b16 %v970, %v962
        %v1131 = vpack.c.b16 %v979, %v971
        %v1132 = vpack.c.b16 %v980, %v972
        %v1133 = vpack.c.b16 %v981, %v973
        %v1134 = vpack.c.b16 %v982, %v974
        %v1135 = vpack.c.b16 %v983, %v975
        %v1136 = vpack.c.b16 %v984, %v976
        %v1137 = vpack.c.b16 %v985, %v977
        %v1138 = vpack.c.b16 %v986, %v978
        %v1139 = vpack.c.b16 %v995, %v987
        %v1140 = vpack.c.b16 %v996, %v988
        %v1141 = vpack.c.b16 %v997, %v989
        %v1142 = vpack.c.b16 %v998, %v990
        %v1143 = vpack.c.b16 %v999, %v991
        %v1144 = vpack.c.b16 %v1000, %v992
        %v1145 = vpack.c.b16 %v1001, %v993
        %v1146 = vpack.c.b16 %v1002, %v994
        %v1147 = vpack.c.b16 %v1011, %v1003
        %v1148 = vpack.c.b16 %v1012, %v1004
        %v1149 = vpack.c.b16 %v1013, %v1005
        %v1150 = vpack.c.b16 %v1014, %v1006
        %v1151 = vpack.c.b16 %v1015, %v1007
        %v1152 = vpack.c.b16 %v1016, %v1008
        %v1153 = vpack.c.b16 %v1017, %v1009
        %v1154 = vpack.c.b16 %v1018, %v1010
        %v1155 = vpack.c.b16 %v1027, %v1019
        %v1156 = vpack.c.b16 %v1028, %v1020
        %v1157 = vpack.c.b16 %v1029, %v1021
        %v1158 = vpack.c.b16 %v1030, %v1022
        %v1159 = vpack.c.b16 %v1031, %v1023
        %v1160 = vpack.c.b16 %v1032, %v1024
        %v1161 = vpack.c.b16 %v1033, %v1025
        %v1162 = vpack.c.b16 %v1034, %v1026
        %1291 = vmatprep.subr.bf16.mxu0 %v1036
        %1292 = vmatpush1.bf16.msra.mxu0 %v1035
        %1293 = vmatprep.subr.bf16.mxu0 %v1044
        %1294 = vmatpush1.bf16.msra.mxu0 %v1043
        %1295 = vmatprep.subr.bf16.mxu0 %v1052
        %1296 = vmatpush1.bf16.msra.mxu0 %v1051
        %1297 = vmatprep.subr.bf16.mxu0 %v1060
        %1298 = vmatpush1.bf16.msra.mxu0 %v1059
        %1299 = vmatprep.subr.bf16.mxu0 %v1068
        %1300 = vmatpush1.bf16.msra.mxu0 %v1067
        %1301 = vmatprep.subr.bf16.mxu0 %v1076
        %1302 = vmatpush1.bf16.msra.mxu0 %v1075
        %1303 = vmatprep.subr.bf16.mxu0 %v1084
        %1304 = vmatpush1.bf16.msra.mxu0 %v1083
        %1305 = vmatprep.subr.bf16.mxu0 %v1092
        %1306 = vmatpush1.bf16.msra.mxu0 %v1091
        %1307 = vmatprep.subr.bf16.mxu0 %v1100
        %1308 = vmatpush1.bf16.msra.mxu0 %v1099
        %1309 = vmatprep.subr.bf16.mxu0 %v1108
        %1310 = vmatpush1.bf16.msra.mxu0 %v1107
        %1311 = vmatprep.subr.bf16.mxu0 %v1116
        %1312 = vmatpush1.bf16.msra.mxu0 %v1115
        %1313 = vmatprep.subr.bf16.mxu0 %v1124
        %1314 = vmatpush1.bf16.msra.mxu0 %v1123
        %1315 = vmatprep.subr.bf16.mxu0 %v1132
        %1316 = vmatpush1.bf16.msra.mxu0 %v1131
        %1317 = vmatprep.subr.bf16.mxu0 %v1140
        %1318 = vmatpush1.bf16.msra.mxu0 %v1139
        %1319 = vmatprep.subr.bf16.mxu0 %v1148
        %1320 = vmatpush1.bf16.msra.mxu0 %v1147
        %1321 = vmatprep.subr.bf16.mxu0 %v1156
        %1322 = vmatpush1.bf16.msra.mxu0 %v1155
        %1323 = vmatprep.mubr.bf16.mxu0 %v650
        %1324 = vmatmul.mubr.bf16.gmra.mrb[0].mxu0 %v649
        %v1325 = vpop.f32.mrb[0].mxu0
        %v1326 = vadd.f32 0.0, %v1325
        %v1327 = vpop.f32.mrb[0].mxu0
        %v1328 = vadd.f32 0.0, %v1327
        %v1329 = vpop.f32.mrb[0].mxu0
        %v1330 = vadd.f32 0.0, %v1329
        %v1331 = vpop.f32.mrb[0].mxu0
        %v1332 = vadd.f32 0.0, %v1331
        %1333 = vdwg.mxu0
        %1334 = vmatprep.subr.bf16.mxu0 %v1038
        %1335 = vmatpush1.bf16.msra.mxu0 %v1037
        %1336 = vmatprep.subr.bf16.mxu0 %v1046
        %1337 = vmatpush1.bf16.msra.mxu0 %v1045
        %1338 = vmatprep.subr.bf16.mxu0 %v1054
        %1339 = vmatpush1.bf16.msra.mxu0 %v1053
        %1340 = vmatprep.subr.bf16.mxu0 %v1062
        %1341 = vmatpush1.bf16.msra.mxu0 %v1061
        %1342 = vmatprep.subr.bf16.mxu0 %v1070
        %1343 = vmatpush1.bf16.msra.mxu0 %v1069
        %1344 = vmatprep.subr.bf16.mxu0 %v1078
        %1345 = vmatpush1.bf16.msra.mxu0 %v1077
        %1346 = vmatprep.subr.bf16.mxu0 %v1086
        %1347 = vmatpush1.bf16.msra.mxu0 %v1085
        %1348 = vmatprep.subr.bf16.mxu0 %v1094
        %1349 = vmatpush1.bf16.msra.mxu0 %v1093
        %1350 = vmatprep.subr.bf16.mxu0 %v1102
        %1351 = vmatpush1.bf16.msra.mxu0 %v1101
        %1352 = vmatprep.subr.bf16.mxu0 %v1110
        %1353 = vmatpush1.bf16.msra.mxu0 %v1109
        %1354 = vmatprep.subr.bf16.mxu0 %v1118
        %1355 = vmatpush1.bf16.msra.mxu0 %v1117
        %1356 = vmatprep.subr.bf16.mxu0 %v1126
        %1357 = vmatpush1.bf16.msra.mxu0 %v1125
        %1358 = vmatprep.subr.bf16.mxu0 %v1134
        %1359 = vmatpush1.bf16.msra.mxu0 %v1133
        %1360 = vmatprep.subr.bf16.mxu0 %v1142
        %1361 = vmatpush1.bf16.msra.mxu0 %v1141
        %1362 = vmatprep.subr.bf16.mxu0 %v1150
        %1363 = vmatpush1.bf16.msra.mxu0 %v1149
        %1364 = vmatprep.subr.bf16.mxu0 %v1158
        %1365 = vmatpush1.bf16.msra.mxu0 %v1157
        %1366 = vmatprep.mubr.bf16.mxu0 %v650
        %1367 = vmatmul.mubr.bf16.gmra.mrb[0].mxu0 %v649
        %v1368 = vpop.f32.mrb[0].mxu0
        %v1369 = vadd.f32 0.0, %v1368
        %v1370 = vpop.f32.mrb[0].mxu0
        %v1371 = vadd.f32 0.0, %v1370
        %v1372 = vpop.f32.mrb[0].mxu0
        %v1373 = vadd.f32 0.0, %v1372
        %v1374 = vpop.f32.mrb[0].mxu0
        %v1375 = vadd.f32 0.0, %v1374
        %1376 = vdwg.mxu0
        %1377 = vmatprep.subr.bf16.mxu0 %v1040
        %1378 = vmatpush1.bf16.msra.mxu0 %v1039
        %1379 = vmatprep.subr.bf16.mxu0 %v1048
        %1380 = vmatpush1.bf16.msra.mxu0 %v1047
        %1381 = vmatprep.subr.bf16.mxu0 %v1056
        %1382 = vmatpush1.bf16.msra.mxu0 %v1055
        %1383 = vmatprep.subr.bf16.mxu0 %v1064
        %1384 = vmatpush1.bf16.msra.mxu0 %v1063
        %1385 = vmatprep.subr.bf16.mxu0 %v1072
        %1386 = vmatpush1.bf16.msra.mxu0 %v1071
        %1387 = vmatprep.subr.bf16.mxu0 %v1080
        %1388 = vmatpush1.bf16.msra.mxu0 %v1079
        %1389 = vmatprep.subr.bf16.mxu0 %v1088
        %1390 = vmatpush1.bf16.msra.mxu0 %v1087
        %1391 = vmatprep.subr.bf16.mxu0 %v1096
        %1392 = vmatpush1.bf16.msra.mxu0 %v1095
        %1393 = vmatprep.subr.bf16.mxu0 %v1104
        %1394 = vmatpush1.bf16.msra.mxu0 %v1103
        %1395 = vmatprep.subr.bf16.mxu0 %v1112
        %1396 = vmatpush1.bf16.msra.mxu0 %v1111
        %1397 = vmatprep.subr.bf16.mxu0 %v1120
        %1398 = vmatpush1.bf16.msra.mxu0 %v1119
        %1399 = vmatprep.subr.bf16.mxu0 %v1128
        %1400 = vmatpush1.bf16.msra.mxu0 %v1127
        %1401 = vmatprep.subr.bf16.mxu0 %v1136
        %1402 = vmatpush1.bf16.msra.mxu0 %v1135
        %1403 = vmatprep.subr.bf16.mxu0 %v1144
        %1404 = vmatpush1.bf16.msra.mxu0 %v1143
        %1405 = vmatprep.subr.bf16.mxu0 %v1152
        %1406 = vmatpush1.bf16.msra.mxu0 %v1151
        %1407 = vmatprep.subr.bf16.mxu0 %v1160
        %1408 = vmatpush1.bf16.msra.mxu0 %v1159
        %1409 = vmatprep.mubr.bf16.mxu0 %v650
        %1410 = vmatmul.mubr.bf16.gmra.mrb[0].mxu0 %v649
        %v1411 = vpop.f32.mrb[0].mxu0
        %v1412 = vadd.f32 0.0, %v1411
        %v1413 = vpop.f32.mrb[0].mxu0
        %v1414 = vadd.f32 0.0, %v1413
        %v1415 = vpop.f32.mrb[0].mxu0
        %v1416 = vadd.f32 0.0, %v1415
        %v1417 = vpop.f32.mrb[0].mxu0
        %v1418 = vadd.f32 0.0, %v1417
        %1419 = vdwg.mxu0
        %1420 = vmatprep.subr.bf16.mxu0 %v1042
        %1421 = vmatpush1.bf16.msra.mxu0 %v1041
        %1422 = vmatprep.subr.bf16.mxu0 %v1050
        %1423 = vmatpush1.bf16.msra.mxu0 %v1049
        %1424 = vmatprep.subr.bf16.mxu0 %v1058
        %1425 = vmatpush1.bf16.msra.mxu0 %v1057
        %1426 = vmatprep.subr.bf16.mxu0 %v1066
        %1427 = vmatpush1.bf16.msra.mxu0 %v1065
        %1428 = vmatprep.subr.bf16.mxu0 %v1074
        %1429 = vmatpush1.bf16.msra.mxu0 %v1073
        %1430 = vmatprep.subr.bf16.mxu0 %v1082
        %1431 = vmatpush1.bf16.msra.mxu0 %v1081
        %1432 = vmatprep.subr.bf16.mxu0 %v1090
        %1433 = vmatpush1.bf16.msra.mxu0 %v1089
        %1434 = vmatprep.subr.bf16.mxu0 %v1098
        %1435 = vmatpush1.bf16.msra.mxu0 %v1097
        %1436 = vmatprep.subr.bf16.mxu0 %v1106
        %1437 = vmatpush1.bf16.msra.mxu0 %v1105
        %1438 = vmatprep.subr.bf16.mxu0 %v1114
        %1439 = vmatpush1.bf16.msra.mxu0 %v1113
        %1440 = vmatprep.subr.bf16.mxu0 %v1122
        %1441 = vmatpush1.bf16.msra.mxu0 %v1121
        %1442 = vmatprep.subr.bf16.mxu0 %v1130
        %1443 = vmatpush1.bf16.msra.mxu0 %v1129
        %1444 = vmatprep.subr.bf16.mxu0 %v1138
        %1445 = vmatpush1.bf16.msra.mxu0 %v1137
        %1446 = vmatprep.subr.bf16.mxu0 %v1146
        %1447 = vmatpush1.bf16.msra.mxu0 %v1145
        %1448 = vmatprep.subr.bf16.mxu0 %v1154
        %1449 = vmatpush1.bf16.msra.mxu0 %v1153
        %1450 = vmatprep.subr.bf16.mxu0 %v1162
        %1451 = vmatpush1.bf16.msra.mxu0 %v1161
        %1452 = vmatprep.mubr.bf16.mxu0 %v650
        %1453 = vmatmul.mubr.bf16.gmra.mrb[0].mxu0 %v649
        %v1454 = vpop.f32.mrb[0].mxu0
        %v1455 = vadd.f32 0.0, %v1454
        %v1456 = vpop.f32.mrb[0].mxu0
        %v1457 = vadd.f32 0.0, %v1456
        %v1458 = vpop.f32.mrb[0].mxu0
        %v1459 = vadd.f32 0.0, %v1458
        %v1460 = vpop.f32.mrb[0].mxu0
        %v1461 = vadd.f32 0.0, %v1460
        %1462 = vdwg.mxu0
        %v1463 = vadd.f32 %v633, %v1326
        %v1464 = vadd.f32 %v634, %v1328
        %v1465 = vadd.f32 %v635, %v1369
        %v1466 = vadd.f32 %v636, %v1371
        %v1467 = vadd.f32 %v637, %v1412
        %v1468 = vadd.f32 %v638, %v1414
        %v1469 = vadd.f32 %v639, %v1455
        %v1470 = vadd.f32 %v640, %v1457
        %v1471 = vadd.f32 %v641, %v1330
        %v1472 = vadd.f32 %v642, %v1332
        %v1473 = vadd.f32 %v643, %v1373
        %v1474 = vadd.f32 %v644, %v1375
        %v1475 = vadd.f32 %v645, %v1416
        %v1476 = vadd.f32 %v646, %v1418
        %v1477 = vadd.f32 %v647, %v1459
        %v1478 = vadd.f32 %v648, %v1461
        %v1479 = vmul.f32 %v1463, 0.5
        %v1480 = vmul.f32 %v1471, 0.5
        %v1481 = vtanh.pop %v1479
        %v1482 = vtanh.pop %v1480
        %v1483 = vmul.f32 %v1481, 0.5
        %v1484 = vmul.f32 %v1482, 0.5
        %v1485 = vadd.f32 %v1483, 0.5
        %v1486 = vadd.f32 %v1484, 0.5
        %v1487 = vmul.f32 %v1464, 0.5
        %v1488 = vmul.f32 %v1472, 0.5
        %v1489 = vtanh.pop %v1487
        %v1490 = vtanh.pop %v1488
        %v1491 = vmul.f32 %v1489, 0.5
        %v1492 = vmul.f32 %v1490, 0.5
        %v1493 = vadd.f32 %v1491, 0.5
        %v1494 = vadd.f32 %v1492, 0.5
        %v1495 = vtanh.pop %v1465
        %v1496 = vtanh.pop %v1473
        %v1497 = vmul.f32 %v1466, 0.5
        %v1498 = vmul.f32 %v1474, 0.5
        %v1499 = vtanh.pop %v1497
        %v1500 = vtanh.pop %v1498
        %v1501 = vmul.f32 %v1499, 0.5
        %v1502 = vmul.f32 %v1500, 0.5
        %v1503 = vadd.f32 %v1501, 0.5
        %v1504 = vadd.f32 %v1502, 0.5
        %v1505 = vmul.f32 %v1467, 0.5
        %v1506 = vmul.f32 %v1475, 0.5
        %v1507 = vtanh.pop %v1505
        %v1508 = vtanh.pop %v1506
        %v1509 = vmul.f32 %v1507, 0.5
        %v1510 = vmul.f32 %v1508, 0.5
        %v1511 = vadd.f32 %v1509, 0.5
        %v1512 = vadd.f32 %v1510, 0.5
        %v1513 = vmul.f32 %v1468, 0.5
        %v1514 = vmul.f32 %v1476, 0.5
        %v1515 = vtanh.pop %v1513
        %v1516 = vtanh.pop %v1514
        %v1517 = vmul.f32 %v1515, 0.5
        %v1518 = vmul.f32 %v1516, 0.5
        %v1519 = vadd.f32 %v1517, 0.5
        %v1520 = vadd.f32 %v1518, 0.5
        %v1521 = vtanh.pop %v1469
        %v1522 = vtanh.pop %v1477
        %v1523 = vmul.f32 %v1470, 0.5
        %v1524 = vmul.f32 %v1478, 0.5
        %v1525 = vtanh.pop %v1523
        %v1526 = vtanh.pop %v1524
        %v1527 = vmul.f32 %v1525, 0.5
        %v1528 = vmul.f32 %v1526, 0.5
        %v1529 = vadd.f32 %v1527, 0.5
        %v1530 = vadd.f32 %v1528, 0.5
        %v1531 = vmul.f32 %v1493, %v621
        %v1532 = vmul.f32 %v1494, %v622
        %v1533 = vmul.f32 %v1485, %v1495
        %v1534 = vmul.f32 %v1486, %v1496
        %v1535 = vadd.f32 %v1531, %v1533
        %v1536 = vadd.f32 %v1532, %v1534
        %v1537 = vmul.f32 %v1519, %v623
        %v1538 = vmul.f32 %v1520, %v624
        %v1539 = vmul.f32 %v1511, %v1521
        %v1540 = vmul.f32 %v1512, %v1522
        %v1541 = vadd.f32 %v1537, %v1539
        %v1542 = vadd.f32 %v1538, %v1540
        %v1543 = vtanh.pop %v1535
        %v1544 = vtanh.pop %v1536
        %v1545 = vmul.f32 %v1503, %v1543
        %v1546 = vmul.f32 %v1504, %v1544
        %v1547 = vtanh.pop %v1541
        %v1548 = vtanh.pop %v1542
        %v1549 = vmul.f32 %v1529, %v1547
        %v1550 = vmul.f32 %v1530, %v1548
        %1551 = vst [vmem:[%s463] sm:$0xff] %v1545
        %1552 = vst [vmem:[%s463 + $0x8] sm:$0xff] %v1546
        %s1553 = scalar_lea.vmem %s469, 240 [#allocation8]
        %1554 = vst [vmem:[%s1553] sm:$0xff] %v1549
        %1555 = vst [vmem:[%s1553 + $0x8] sm:$0xff] %v1550
        %s1556 = scalar_lea.vmem %s446, 64 [#allocation6]
        %v1557 = vld [vmem:[%s1556] sm:$0xff]
        %v1558 = vld [vmem:[%s1556 + $0x8] sm:$0xff]
        %v1559 = vld [vmem:[%s1556 + $0x10] sm:$0xff]
        %v1560 = vld [vmem:[%s1556 + $0x18] sm:$0xff]
        %v1561 = vld [vmem:[%s1556 + $0x20] sm:$0xff]
        %v1562 = vld [vmem:[%s1556 + $0x28] sm:$0xff]
        %v1563 = vld [vmem:[%s1556 + $0x30] sm:$0xff]
        %v1564 = vld [vmem:[%s1556 + $0x38] sm:$0xff]
        %v1565 = vunpack.c.l.bf16 %v1557
        %v1566 = vunpack.c.h.bf16 %v1557
        %v1567 = vunpack.c.l.bf16 %v1558
        %v1568 = vunpack.c.h.bf16 %v1558
        %v1569 = vunpack.c.l.bf16 %v1559
        %v1570 = vunpack.c.h.bf16 %v1559
        %v1571 = vunpack.c.l.bf16 %v1560
        %v1572 = vunpack.c.h.bf16 %v1560
        %v1573 = vunpack.c.l.bf16 %v1561
        %v1574 = vunpack.c.h.bf16 %v1561
        %v1575 = vunpack.c.l.bf16 %v1562
        %v1576 = vunpack.c.h.bf16 %v1562
        %v1577 = vunpack.c.l.bf16 %v1563
        %v1578 = vunpack.c.h.bf16 %v1563
        %v1579 = vunpack.c.l.bf16 %v1564
        %v1580 = vunpack.c.h.bf16 %v1564
        %v1581 = vpack.c.bf16 %v1546, %v1545
        %v1582 = vpack.c.bf16 %v1550, %v1549
        %1583 = vmatprep.subr.bf16.mxu0 %v1036
        %1584 = vmatpush1.bf16.msra.mxu0 %v1035
        %1585 = vmatprep.subr.bf16.mxu0 %v1044
        %1586 = vmatpush1.bf16.msra.mxu0 %v1043
        %1587 = vmatprep.subr.bf16.mxu0 %v1052
        %1588 = vmatpush1.bf16.msra.mxu0 %v1051
        %1589 = vmatprep.subr.bf16.mxu0 %v1060
        %1590 = vmatpush1.bf16.msra.mxu0 %v1059
        %1591 = vmatprep.subr.bf16.mxu0 %v1068
        %1592 = vmatpush1.bf16.msra.mxu0 %v1067
        %1593 = vmatprep.subr.bf16.mxu0 %v1076
        %1594 = vmatpush1.bf16.msra.mxu0 %v1075
        %1595 = vmatprep.subr.bf16.mxu0 %v1084
        %1596 = vmatpush1.bf16.msra.mxu0 %v1083
        %1597 = vmatprep.subr.bf16.mxu0 %v1092
        %1598 = vmatpush1.bf16.msra.mxu0 %v1091
        %1599 = vmatprep.subr.bf16.mxu0 %v1100
        %1600 = vmatpush1.bf16.msra.mxu0 %v1099
        %1601 = vmatprep.subr.bf16.mxu0 %v1108
        %1602 = vmatpush1.bf16.msra.mxu0 %v1107
        %1603 = vmatprep.subr.bf16.mxu0 %v1116
        %1604 = vmatpush1.bf16.msra.mxu0 %v1115
        %1605 = vmatprep.subr.bf16.mxu0 %v1124
        %1606 = vmatpush1.bf16.msra.mxu0 %v1123
        %1607 = vmatprep.subr.bf16.mxu0 %v1132
        %1608 = vmatpush1.bf16.msra.mxu0 %v1131
        %1609 = vmatprep.subr.bf16.mxu0 %v1140
        %1610 = vmatpush1.bf16.msra.mxu0 %v1139
        %1611 = vmatprep.subr.bf16.mxu0 %v1148
        %1612 = vmatpush1.bf16.msra.mxu0 %v1147
        %1613 = vmatprep.subr.bf16.mxu0 %v1156
        %1614 = vmatpush1.bf16.msra.mxu0 %v1155
        %1615 = vmatprep.mubr.bf16.mxu0 %v1582
        %1616 = vmatmul.mubr.bf16.gmra.mrb[0].mxu0 %v1581
        %v1617 = vpop.f32.mrb[0].mxu0
        %v1618 = vadd.f32 0.0, %v1617
        %v1619 = vpop.f32.mrb[0].mxu0
        %v1620 = vadd.f32 0.0, %v1619
        %v1621 = vpop.f32.mrb[0].mxu0
        %v1622 = vadd.f32 0.0, %v1621
        %v1623 = vpop.f32.mrb[0].mxu0
        %v1624 = vadd.f32 0.0, %v1623
        %1625 = vdwg.mxu0
        %1626 = vmatprep.subr.bf16.mxu0 %v1038
        %1627 = vmatpush1.bf16.msra.mxu0 %v1037
        %1628 = vmatprep.subr.bf16.mxu0 %v1046
        %1629 = vmatpush1.bf16.msra.mxu0 %v1045
        %1630 = vmatprep.subr.bf16.mxu0 %v1054
        %1631 = vmatpush1.bf16.msra.mxu0 %v1053
        %1632 = vmatprep.subr.bf16.mxu0 %v1062
        %1633 = vmatpush1.bf16.msra.mxu0 %v1061
        %1634 = vmatprep.subr.bf16.mxu0 %v1070
        %1635 = vmatpush1.bf16.msra.mxu0 %v1069
        %1636 = vmatprep.subr.bf16.mxu0 %v1078
        %1637 = vmatpush1.bf16.msra.mxu0 %v1077
        %1638 = vmatprep.subr.bf16.mxu0 %v1086
        %1639 = vmatpush1.bf16.msra.mxu0 %v1085
        %1640 = vmatprep.subr.bf16.mxu0 %v1094
        %1641 = vmatpush1.bf16.msra.mxu0 %v1093
        %1642 = vmatprep.subr.bf16.mxu0 %v1102
        %1643 = vmatpush1.bf16.msra.mxu0 %v1101
        %1644 = vmatprep.subr.bf16.mxu0 %v1110
        %1645 = vmatpush1.bf16.msra.mxu0 %v1109
        %1646 = vmatprep.subr.bf16.mxu0 %v1118
        %1647 = vmatpush1.bf16.msra.mxu0 %v1117
        %1648 = vmatprep.subr.bf16.mxu0 %v1126
        %1649 = vmatpush1.bf16.msra.mxu0 %v1125
        %1650 = vmatprep.subr.bf16.mxu0 %v1134
        %1651 = vmatpush1.bf16.msra.mxu0 %v1133
        %1652 = vmatprep.subr.bf16.mxu0 %v1142
        %1653 = vmatpush1.bf16.msra.mxu0 %v1141
        %1654 = vmatprep.subr.bf16.mxu0 %v1150
        %1655 = vmatpush1.bf16.msra.mxu0 %v1149
        %1656 = vmatprep.subr.bf16.mxu0 %v1158
        %1657 = vmatpush1.bf16.msra.mxu0 %v1157
        %1658 = vmatprep.mubr.bf16.mxu0 %v1582
        %1659 = vmatmul.mubr.bf16.gmra.mrb[0].mxu0 %v1581
        %v1660 = vpop.f32.mrb[0].mxu0
        %v1661 = vadd.f32 0.0, %v1660
        %v1662 = vpop.f32.mrb[0].mxu0
        %v1663 = vadd.f32 0.0, %v1662
        %v1664 = vpop.f32.mrb[0].mxu0
        %v1665 = vadd.f32 0.0, %v1664
        %v1666 = vpop.f32.mrb[0].mxu0
        %v1667 = vadd.f32 0.0, %v1666
        %1668 = vdwg.mxu0
        %1669 = vmatprep.subr.bf16.mxu0 %v1040
        %1670 = vmatpush1.bf16.msra.mxu0 %v1039
        %1671 = vmatprep.subr.bf16.mxu0 %v1048
        %1672 = vmatpush1.bf16.msra.mxu0 %v1047
        %1673 = vmatprep.subr.bf16.mxu0 %v1056
        %1674 = vmatpush1.bf16.msra.mxu0 %v1055
        %1675 = vmatprep.subr.bf16.mxu0 %v1064
        %1676 = vmatpush1.bf16.msra.mxu0 %v1063
        %1677 = vmatprep.subr.bf16.mxu0 %v1072
        %1678 = vmatpush1.bf16.msra.mxu0 %v1071
        %1679 = vmatprep.subr.bf16.mxu0 %v1080
        %1680 = vmatpush1.bf16.msra.mxu0 %v1079
        %1681 = vmatprep.subr.bf16.mxu0 %v1088
        %1682 = vmatpush1.bf16.msra.mxu0 %v1087
        %1683 = vmatprep.subr.bf16.mxu0 %v1096
        %1684 = vmatpush1.bf16.msra.mxu0 %v1095
        %1685 = vmatprep.subr.bf16.mxu0 %v1104
        %1686 = vmatpush1.bf16.msra.mxu0 %v1103
        %1687 = vmatprep.subr.bf16.mxu0 %v1112
        %1688 = vmatpush1.bf16.msra.mxu0 %v1111
        %1689 = vmatprep.subr.bf16.mxu0 %v1120
        %1690 = vmatpush1.bf16.msra.mxu0 %v1119
        %1691 = vmatprep.subr.bf16.mxu0 %v1128
        %1692 = vmatpush1.bf16.msra.mxu0 %v1127
        %1693 = vmatprep.subr.bf16.mxu0 %v1136
        %1694 = vmatpush1.bf16.msra.mxu0 %v1135
        %1695 = vmatprep.subr.bf16.mxu0 %v1144
        %1696 = vmatpush1.bf16.msra.mxu0 %v1143
        %1697 = vmatprep.subr.bf16.mxu0 %v1152
        %1698 = vmatpush1.bf16.msra.mxu0 %v1151
        %1699 = vmatprep.subr.bf16.mxu0 %v1160
        %1700 = vmatpush1.bf16.msra.mxu0 %v1159
        %1701 = vmatprep.mubr.bf16.mxu0 %v1582
        %1702 = vmatmul.mubr.bf16.gmra.mrb[0].mxu0 %v1581
        %v1703 = vpop.f32.mrb[0].mxu0
        %v1704 = vadd.f32 0.0, %v1703
        %v1705 = vpop.f32.mrb[0].mxu0
        %v1706 = vadd.f32 0.0, %v1705
        %v1707 = vpop.f32.mrb[0].mxu0
        %v1708 = vadd.f32 0.0, %v1707
        %v1709 = vpop.f32.mrb[0].mxu0
        %v1710 = vadd.f32 0.0, %v1709
        %1711 = vdwg.mxu0
        %1712 = vmatprep.subr.bf16.mxu0 %v1042
        %1713 = vmatpush1.bf16.msra.mxu0 %v1041
        %1714 = vmatprep.subr.bf16.mxu0 %v1050
        %1715 = vmatpush1.bf16.msra.mxu0 %v1049
        %1716 = vmatprep.subr.bf16.mxu0 %v1058
        %1717 = vmatpush1.bf16.msra.mxu0 %v1057
        %1718 = vmatprep.subr.bf16.mxu0 %v1066
        %1719 = vmatpush1.bf16.msra.mxu0 %v1065
        %1720 = vmatprep.subr.bf16.mxu0 %v1074
        %1721 = vmatpush1.bf16.msra.mxu0 %v1073
        %1722 = vmatprep.subr.bf16.mxu0 %v1082
        %1723 = vmatpush1.bf16.msra.mxu0 %v1081
        %1724 = vmatprep.subr.bf16.mxu0 %v1090
        %1725 = vmatpush1.bf16.msra.mxu0 %v1089
        %1726 = vmatprep.subr.bf16.mxu0 %v1098
        %1727 = vmatpush1.bf16.msra.mxu0 %v1097
        %1728 = vmatprep.subr.bf16.mxu0 %v1106
        %1729 = vmatpush1.bf16.msra.mxu0 %v1105
        %1730 = vmatprep.subr.bf16.mxu0 %v1114
        %1731 = vmatpush1.bf16.msra.mxu0 %v1113
        %1732 = vmatprep.subr.bf16.mxu0 %v1122
        %1733 = vmatpush1.bf16.msra.mxu0 %v1121
        %1734 = vmatprep.subr.bf16.mxu0 %v1130
        %1735 = vmatpush1.bf16.msra.mxu0 %v1129
        %1736 = vmatprep.subr.bf16.mxu0 %v1138
        %1737 = vmatpush1.bf16.msra.mxu0 %v1137
        %1738 = vmatprep.subr.bf16.mxu0 %v1146
        %1739 = vmatpush1.bf16.msra.mxu0 %v1145
        %1740 = vmatprep.subr.bf16.mxu0 %v1154
        %1741 = vmatpush1.bf16.msra.mxu0 %v1153
        %1742 = vmatprep.subr.bf16.mxu0 %v1162
        %1743 = vmatpush1.bf16.msra.mxu0 %v1161
        %1744 = vmatprep.mubr.bf16.mxu0 %v1582
        %1745 = vmatmul.mubr.bf16.gmra.mrb[0].mxu0 %v1581
        %v1746 = vpop.f32.mrb[0].mxu0
        %v1747 = vadd.f32 0.0, %v1746
        %v1748 = vpop.f32.mrb[0].mxu0
        %v1749 = vadd.f32 0.0, %v1748
        %v1750 = vpop.f32.mrb[0].mxu0
        %v1751 = vadd.f32 0.0, %v1750
        %v1752 = vpop.f32.mrb[0].mxu0
        %v1753 = vadd.f32 0.0, %v1752
        %1754 = vdwg.mxu0
        %v1755 = vadd.f32 %v1565, %v1618
        %v1756 = vadd.f32 %v1566, %v1620
        %v1757 = vadd.f32 %v1567, %v1661
        %v1758 = vadd.f32 %v1568, %v1663
        %v1759 = vadd.f32 %v1569, %v1704
        %v1760 = vadd.f32 %v1570, %v1706
        %v1761 = vadd.f32 %v1571, %v1747
        %v1762 = vadd.f32 %v1572, %v1749
        %v1763 = vadd.f32 %v1573, %v1622
        %v1764 = vadd.f32 %v1574, %v1624
        %v1765 = vadd.f32 %v1575, %v1665
        %v1766 = vadd.f32 %v1576, %v1667
        %v1767 = vadd.f32 %v1577, %v1708
        %v1768 = vadd.f32 %v1578, %v1710
        %v1769 = vadd.f32 %v1579, %v1751
        %v1770 = vadd.f32 %v1580, %v1753
        %v1771 = vmul.f32 %v1755, 0.5
        %v1772 = vmul.f32 %v1763, 0.5
        %v1773 = vtanh.pop %v1771
        %v1774 = vtanh.pop %v1772
        %v1775 = vmul.f32 %v1773, 0.5
        %v1776 = vmul.f32 %v1774, 0.5
        %v1777 = vadd.f32 %v1775, 0.5
        %v1778 = vadd.f32 %v1776, 0.5
        %v1779 = vmul.f32 %v1756, 0.5
        %v1780 = vmul.f32 %v1764, 0.5
        %v1781 = vtanh.pop %v1779
        %v1782 = vtanh.pop %v1780
        %v1783 = vmul.f32 %v1781, 0.5
        %v1784 = vmul.f32 %v1782, 0.5
        %v1785 = vadd.f32 %v1783, 0.5
        %v1786 = vadd.f32 %v1784, 0.5
        %v1787 = vtanh.pop %v1757
        %v1788 = vtanh.pop %v1765
        %v1789 = vmul.f32 %v1758, 0.5
        %v1790 = vmul.f32 %v1766, 0.5
        %v1791 = vtanh.pop %v1789
        %v1792 = vtanh.pop %v1790
        %v1793 = vmul.f32 %v1791, 0.5
        %v1794 = vmul.f32 %v1792, 0.5
        %v1795 = vadd.f32 %v1793, 0.5
        %v1796 = vadd.f32 %v1794, 0.5
        %v1797 = vmul.f32 %v1759, 0.5
        %v1798 = vmul.f32 %v1767, 0.5
        %v1799 = vtanh.pop %v1797
        %v1800 = vtanh.pop %v1798
        %v1801 = vmul.f32 %v1799, 0.5
        %v1802 = vmul.f32 %v1800, 0.5
        %v1803 = vadd.f32 %v1801, 0.5
        %v1804 = vadd.f32 %v1802, 0.5
        %v1805 = vmul.f32 %v1760, 0.5
        %v1806 = vmul.f32 %v1768, 0.5
        %v1807 = vtanh.pop %v1805
        %v1808 = vtanh.pop %v1806
        %v1809 = vmul.f32 %v1807, 0.5
        %v1810 = vmul.f32 %v1808, 0.5
        %v1811 = vadd.f32 %v1809, 0.5
        %v1812 = vadd.f32 %v1810, 0.5
        %v1813 = vtanh.pop %v1761
        %v1814 = vtanh.pop %v1769
        %v1815 = vmul.f32 %v1762, 0.5
        %v1816 = vmul.f32 %v1770, 0.5
        %v1817 = vtanh.pop %v1815
        %v1818 = vtanh.pop %v1816
        %v1819 = vmul.f32 %v1817, 0.5
        %v1820 = vmul.f32 %v1818, 0.5
        %v1821 = vadd.f32 %v1819, 0.5
        %v1822 = vadd.f32 %v1820, 0.5
        %v1823 = vmul.f32 %v1785, %v1535
        %v1824 = vmul.f32 %v1786, %v1536
        %v1825 = vmul.f32 %v1777, %v1787
        %v1826 = vmul.f32 %v1778, %v1788
        %v1827 = vadd.f32 %v1823, %v1825
        %v1828 = vadd.f32 %v1824, %v1826
        %v1829 = vmul.f32 %v1811, %v1541
        %v1830 = vmul.f32 %v1812, %v1542
        %v1831 = vmul.f32 %v1803, %v1813
        %v1832 = vmul.f32 %v1804, %v1814
        %v1833 = vadd.f32 %v1829, %v1831
        %v1834 = vadd.f32 %v1830, %v1832
        %v1835 = vtanh.pop %v1827
        %v1836 = vtanh.pop %v1828
        %v1837 = vmul.f32 %v1795, %v1835
        %v1838 = vmul.f32 %v1796, %v1836
        %v1839 = vtanh.pop %v1833
        %v1840 = vtanh.pop %v1834
        %v1841 = vmul.f32 %v1821, %v1839
        %v1842 = vmul.f32 %v1822, %v1840
        %s1843 = scalar_lea.vmem %s463, 16 [#allocation7]
        %1844 = vst [vmem:[%s1843] sm:$0xff] %v1837
        %1845 = vst [vmem:[%s1843 + $0x8] sm:$0xff] %v1838
        %s1846 = scalar_lea.vmem %s469, 224 [#allocation8]
        %1847 = vst [vmem:[%s1846] sm:$0xff] %v1841
        %1848 = vst [vmem:[%s1846 + $0x8] sm:$0xff] %v1842
        %s1849 = scalar_lea.vmem %s446, 128 [#allocation6]
        %v1850 = vld [vmem:[%s1849] sm:$0xff]
        %v1851 = vld [vmem:[%s1849 + $0x8] sm:$0xff]
        %v1852 = vld [vmem:[%s1849 + $0x10] sm:$0xff]
        %v1853 = vld [vmem:[%s1849 + $0x18] sm:$0xff]
        %v1854 = vld [vmem:[%s1849 + $0x20] sm:$0xff]
        %v1855 = vld [vmem:[%s1849 + $0x28] sm:$0xff]
        %v1856 = vld [vmem:[%s1849 + $0x30] sm:$0xff]
        %v1857 = vld [vmem:[%s1849 + $0x38] sm:$0xff]
        %v1858 = vunpack.c.l.bf16 %v1850
        %v1859 = vunpack.c.h.bf16 %v1850
        %v1860 = vunpack.c.l.bf16 %v1851
        %v1861 = vunpack.c.h.bf16 %v1851
        %v1862 = vunpack.c.l.bf16 %v1852
        %v1863 = vunpack.c.h.bf16 %v1852
        %v1864 = vunpack.c.l.bf16 %v1853
        %v1865 = vunpack.c.h.bf16 %v1853
        %v1866 = vunpack.c.l.bf16 %v1854
        %v1867 = vunpack.c.h.bf16 %v1854
        %v1868 = vunpack.c.l.bf16 %v1855
        %v1869 = vunpack.c.h.bf16 %v1855
        %v1870 = vunpack.c.l.bf16 %v1856
        %v1871 = vunpack.c.h.bf16 %v1856
        %v1872 = vunpack.c.l.bf16 %v1857
        %v1873 = vunpack.c.h.bf16 %v1857
        %v1874 = vpack.c.bf16 %v1838, %v1837
        %v1875 = vpack.c.bf16 %v1842, %v1841
        %1876 = vmatprep.subr.bf16.mxu0 %v1036
        %1877 = vmatpush1.bf16.msra.mxu0 %v1035
        %1878 = vmatprep.subr.bf16.mxu0 %v1044
        %1879 = vmatpush1.bf16.msra.mxu0 %v1043
        %1880 = vmatprep.subr.bf16.mxu0 %v1052
        %1881 = vmatpush1.bf16.msra.mxu0 %v1051
        %1882 = vmatprep.subr.bf16.mxu0 %v1060
        %1883 = vmatpush1.bf16.msra.mxu0 %v1059
        %1884 = vmatprep.subr.bf16.mxu0 %v1068
        %1885 = vmatpush1.bf16.msra.mxu0 %v1067
        %1886 = vmatprep.subr.bf16.mxu0 %v1076
        %1887 = vmatpush1.bf16.msra.mxu0 %v1075
        %1888 = vmatprep.subr.bf16.mxu0 %v1084
        %1889 = vmatpush1.bf16.msra.mxu0 %v1083
        %1890 = vmatprep.subr.bf16.mxu0 %v1092
        %1891 = vmatpush1.bf16.msra.mxu0 %v1091
        %1892 = vmatprep.subr.bf16.mxu0 %v1100
        %1893 = vmatpush1.bf16.msra.mxu0 %v1099
        %1894 = vmatprep.subr.bf16.mxu0 %v1108
        %1895 = vmatpush1.bf16.msra.mxu0 %v1107
        %1896 = vmatprep.subr.bf16.mxu0 %v1116
        %1897 = vmatpush1.bf16.msra.mxu0 %v1115
        %1898 = vmatprep.subr.bf16.mxu0 %v1124
        %1899 = vmatpush1.bf16.msra.mxu0 %v1123
        %1900 = vmatprep.subr.bf16.mxu0 %v1132
        %1901 = vmatpush1.bf16.msra.mxu0 %v1131
        %1902 = vmatprep.subr.bf16.mxu0 %v1140
        %1903 = vmatpush1.bf16.msra.mxu0 %v1139
        %1904 = vmatprep.subr.bf16.mxu0 %v1148
        %1905 = vmatpush1.bf16.msra.mxu0 %v1147
        %1906 = vmatprep.subr.bf16.mxu0 %v1156
        %1907 = vmatpush1.bf16.msra.mxu0 %v1155
        %1908 = vmatprep.mubr.bf16.mxu0 %v1875
        %1909 = vmatmul.mubr.bf16.gmra.mrb[0].mxu0 %v1874
        %v1910 = vpop.f32.mrb[0].mxu0
        %v1911 = vadd.f32 0.0, %v1910
        %v1912 = vpop.f32.mrb[0].mxu0
        %v1913 = vadd.f32 0.0, %v1912
        %v1914 = vpop.f32.mrb[0].mxu0
        %v1915 = vadd.f32 0.0, %v1914
        %v1916 = vpop.f32.mrb[0].mxu0
        %v1917 = vadd.f32 0.0, %v1916
        %1918 = vdwg.mxu0
        %1919 = vmatprep.subr.bf16.mxu0 %v1038
        %1920 = vmatpush1.bf16.msra.mxu0 %v1037
        %1921 = vmatprep.subr.bf16.mxu0 %v1046
        %1922 = vmatpush1.bf16.msra.mxu0 %v1045
        %1923 = vmatprep.subr.bf16.mxu0 %v1054
        %1924 = vmatpush1.bf16.msra.mxu0 %v1053
        %1925 = vmatprep.subr.bf16.mxu0 %v1062
        %1926 = vmatpush1.bf16.msra.mxu0 %v1061
        %1927 = vmatprep.subr.bf16.mxu0 %v1070
        %1928 = vmatpush1.bf16.msra.mxu0 %v1069
        %1929 = vmatprep.subr.bf16.mxu0 %v1078
        %1930 = vmatpush1.bf16.msra.mxu0 %v1077
        %1931 = vmatprep.subr.bf16.mxu0 %v1086
        %1932 = vmatpush1.bf16.msra.mxu0 %v1085
        %1933 = vmatprep.subr.bf16.mxu0 %v1094
        %1934 = vmatpush1.bf16.msra.mxu0 %v1093
        %1935 = vmatprep.subr.bf16.mxu0 %v1102
        %1936 = vmatpush1.bf16.msra.mxu0 %v1101
        %1937 = vmatprep.subr.bf16.mxu0 %v1110
        %1938 = vmatpush1.bf16.msra.mxu0 %v1109
        %1939 = vmatprep.subr.bf16.mxu0 %v1118
        %1940 = vmatpush1.bf16.msra.mxu0 %v1117
        %1941 = vmatprep.subr.bf16.mxu0 %v1126
        %1942 = vmatpush1.bf16.msra.mxu0 %v1125
        %1943 = vmatprep.subr.bf16.mxu0 %v1134
        %1944 = vmatpush1.bf16.msra.mxu0 %v1133
        %1945 = vmatprep.subr.bf16.mxu0 %v1142
        %1946 = vmatpush1.bf16.msra.mxu0 %v1141
        %1947 = vmatprep.subr.bf16.mxu0 %v1150
        %1948 = vmatpush1.bf16.msra.mxu0 %v1149
        %1949 = vmatprep.subr.bf16.mxu0 %v1158
        %1950 = vmatpush1.bf16.msra.mxu0 %v1157
        %1951 = vmatprep.mubr.bf16.mxu0 %v1875
        %1952 = vmatmul.mubr.bf16.gmra.mrb[0].mxu0 %v1874
        %v1953 = vpop.f32.mrb[0].mxu0
        %v1954 = vadd.f32 0.0, %v1953
        %v1955 = vpop.f32.mrb[0].mxu0
        %v1956 = vadd.f32 0.0, %v1955
        %v1957 = vpop.f32.mrb[0].mxu0
        %v1958 = vadd.f32 0.0, %v1957
        %v1959 = vpop.f32.mrb[0].mxu0
        %v1960 = vadd.f32 0.0, %v1959
        %1961 = vdwg.mxu0
        %1962 = vmatprep.subr.bf16.mxu0 %v1040
        %1963 = vmatpush1.bf16.msra.mxu0 %v1039
        %1964 = vmatprep.subr.bf16.mxu0 %v1048
        %1965 = vmatpush1.bf16.msra.mxu0 %v1047
        %1966 = vmatprep.subr.bf16.mxu0 %v1056
        %1967 = vmatpush1.bf16.msra.mxu0 %v1055
        %1968 = vmatprep.subr.bf16.mxu0 %v1064
        %1969 = vmatpush1.bf16.msra.mxu0 %v1063
        %1970 = vmatprep.subr.bf16.mxu0 %v1072
        %1971 = vmatpush1.bf16.msra.mxu0 %v1071
        %1972 = vmatprep.subr.bf16.mxu0 %v1080
        %1973 = vmatpush1.bf16.msra.mxu0 %v1079
        %1974 = vmatprep.subr.bf16.mxu0 %v1088
        %1975 = vmatpush1.bf16.msra.mxu0 %v1087
        %1976 = vmatprep.subr.bf16.mxu0 %v1096
        %1977 = vmatpush1.bf16.msra.mxu0 %v1095
        %1978 = vmatprep.subr.bf16.mxu0 %v1104
        %1979 = vmatpush1.bf16.msra.mxu0 %v1103
        %1980 = vmatprep.subr.bf16.mxu0 %v1112
        %1981 = vmatpush1.bf16.msra.mxu0 %v1111
        %1982 = vmatprep.subr.bf16.mxu0 %v1120
        %1983 = vmatpush1.bf16.msra.mxu0 %v1119
        %1984 = vmatprep.subr.bf16.mxu0 %v1128
        %1985 = vmatpush1.bf16.msra.mxu0 %v1127
        %1986 = vmatprep.subr.bf16.mxu0 %v1136
        %1987 = vmatpush1.bf16.msra.mxu0 %v1135
        %1988 = vmatprep.subr.bf16.mxu0 %v1144
        %1989 = vmatpush1.bf16.msra.mxu0 %v1143
        %1990 = vmatprep.subr.bf16.mxu0 %v1152
        %1991 = vmatpush1.bf16.msra.mxu0 %v1151
        %1992 = vmatprep.subr.bf16.mxu0 %v1160
        %1993 = vmatpush1.bf16.msra.mxu0 %v1159
        %1994 = vmatprep.mubr.bf16.mxu0 %v1875
        %1995 = vmatmul.mubr.bf16.gmra.mrb[0].mxu0 %v1874
        %v1996 = vpop.f32.mrb[0].mxu0
        %v1997 = vadd.f32 0.0, %v1996
        %v1998 = vpop.f32.mrb[0].mxu0
        %v1999 = vadd.f32 0.0, %v1998
        %v2000 = vpop.f32.mrb[0].mxu0
        %v2001 = vadd.f32 0.0, %v2000
        %v2002 = vpop.f32.mrb[0].mxu0
        %v2003 = vadd.f32 0.0, %v2002
        %2004 = vdwg.mxu0
        %2005 = vmatprep.subr.bf16.mxu0 %v1042
        %2006 = vmatpush1.bf16.msra.mxu0 %v1041
        %2007 = vmatprep.subr.bf16.mxu0 %v1050
        %2008 = vmatpush1.bf16.msra.mxu0 %v1049
        %2009 = vmatprep.subr.bf16.mxu0 %v1058
        %2010 = vmatpush1.bf16.msra.mxu0 %v1057
        %2011 = vmatprep.subr.bf16.mxu0 %v1066
        %2012 = vmatpush1.bf16.msra.mxu0 %v1065
        %2013 = vmatprep.subr.bf16.mxu0 %v1074
        %2014 = vmatpush1.bf16.msra.mxu0 %v1073
        %2015 = vmatprep.subr.bf16.mxu0 %v1082
        %2016 = vmatpush1.bf16.msra.mxu0 %v1081
        %2017 = vmatprep.subr.bf16.mxu0 %v1090
        %2018 = vmatpush1.bf16.msra.mxu0 %v1089
        %2019 = vmatprep.subr.bf16.mxu0 %v1098
        %2020 = vmatpush1.bf16.msra.mxu0 %v1097
        %2021 = vmatprep.subr.bf16.mxu0 %v1106
        %2022 = vmatpush1.bf16.msra.mxu0 %v1105
        %2023 = vmatprep.subr.bf16.mxu0 %v1114
        %2024 = vmatpush1.bf16.msra.mxu0 %v1113
        %2025 = vmatprep.subr.bf16.mxu0 %v1122
        %2026 = vmatpush1.bf16.msra.mxu0 %v1121
        %2027 = vmatprep.subr.bf16.mxu0 %v1130
        %2028 = vmatpush1.bf16.msra.mxu0 %v1129
        %2029 = vmatprep.subr.bf16.mxu0 %v1138
        %2030 = vmatpush1.bf16.msra.mxu0 %v1137
        %2031 = vmatprep.subr.bf16.mxu0 %v1146
        %2032 = vmatpush1.bf16.msra.mxu0 %v1145
        %2033 = vmatprep.subr.bf16.mxu0 %v1154
        %2034 = vmatpush1.bf16.msra.mxu0 %v1153
        %2035 = vmatprep.subr.bf16.mxu0 %v1162
        %2036 = vmatpush1.bf16.msra.mxu0 %v1161
        %2037 = vmatprep.mubr.bf16.mxu0 %v1875
        %2038 = vmatmul.mubr.bf16.gmra.mrb[0].mxu0 %v1874
        %v2039 = vpop.f32.mrb[0].mxu0
        %v2040 = vadd.f32 0.0, %v2039
        %v2041 = vpop.f32.mrb[0].mxu0
        %v2042 = vadd.f32 0.0, %v2041
        %v2043 = vpop.f32.mrb[0].mxu0
        %v2044 = vadd.f32 0.0, %v2043
        %v2045 = vpop.f32.mrb[0].mxu0
        %v2046 = vadd.f32 0.0, %v2045
        %2047 = vdwg.mxu0
        %v2048 = vadd.f32 %v1858, %v1911
        %v2049 = vadd.f32 %v1859, %v1913
        %v2050 = vadd.f32 %v1860, %v1954
        %v2051 = vadd.f32 %v1861, %v1956
        %v2052 = vadd.f32 %v1862, %v1997
        %v2053 = vadd.f32 %v1863, %v1999
        %v2054 = vadd.f32 %v1864, %v2040
        %v2055 = vadd.f32 %v1865, %v2042
        %v2056 = vadd.f32 %v1866, %v1915
        %v2057 = vadd.f32 %v1867, %v1917
        %v2058 = vadd.f32 %v1868, %v1958
        %v2059 = vadd.f32 %v1869, %v1960
        %v2060 = vadd.f32 %v1870, %v2001
        %v2061 = vadd.f32 %v1871, %v2003
        %v2062 = vadd.f32 %v1872, %v2044
        %v2063 = vadd.f32 %v1873, %v2046
        %v2064 = vmul.f32 %v2048, 0.5
        %v2065 = vmul.f32 %v2056, 0.5
        %v2066 = vtanh.pop %v2064
        %v2067 = vtanh.pop %v2065
        %v2068 = vmul.f32 %v2066, 0.5
        %v2069 = vmul.f32 %v2067, 0.5
        %v2070 = vadd.f32 %v2068, 0.5
        %v2071 = vadd.f32 %v2069, 0.5
        %v2072 = vmul.f32 %v2049, 0.5
        %v2073 = vmul.f32 %v2057, 0.5
        %v2074 = vtanh.pop %v2072
        %v2075 = vtanh.pop %v2073
        %v2076 = vmul.f32 %v2074, 0.5
        %v2077 = vmul.f32 %v2075, 0.5
        %v2078 = vadd.f32 %v2076, 0.5
        %v2079 = vadd.f32 %v2077, 0.5
        %v2080 = vtanh.pop %v2050
        %v2081 = vtanh.pop %v2058
        %v2082 = vmul.f32 %v2051, 0.5
        %v2083 = vmul.f32 %v2059, 0.5
        %v2084 = vtanh.pop %v2082
        %v2085 = vtanh.pop %v2083
        %v2086 = vmul.f32 %v2084, 0.5
        %v2087 = vmul.f32 %v2085, 0.5
        %v2088 = vadd.f32 %v2086, 0.5
        %v2089 = vadd.f32 %v2087, 0.5
        %v2090 = vmul.f32 %v2052, 0.5
        %v2091 = vmul.f32 %v2060, 0.5
        %v2092 = vtanh.pop %v2090
        %v2093 = vtanh.pop %v2091
        %v2094 = vmul.f32 %v2092, 0.5
        %v2095 = vmul.f32 %v2093, 0.5
        %v2096 = vadd.f32 %v2094, 0.5
        %v2097 = vadd.f32 %v2095, 0.5
        %v2098 = vmul.f32 %v2053, 0.5
        %v2099 = vmul.f32 %v2061, 0.5
        %v2100 = vtanh.pop %v2098
        %v2101 = vtanh.pop %v2099
        %v2102 = vmul.f32 %v2100, 0.5
        %v2103 = vmul.f32 %v2101, 0.5
        %v2104 = vadd.f32 %v2102, 0.5
        %v2105 = vadd.f32 %v2103, 0.5
        %v2106 = vtanh.pop %v2054
        %v2107 = vtanh.pop %v2062
        %v2108 = vmul.f32 %v2055, 0.5
        %v2109 = vmul.f32 %v2063, 0.5
        %v2110 = vtanh.pop %v2108
        %v2111 = vtanh.pop %v2109
        %v2112 = vmul.f32 %v2110, 0.5
        %v2113 = vmul.f32 %v2111, 0.5
        %v2114 = vadd.f32 %v2112, 0.5
        %v2115 = vadd.f32 %v2113, 0.5
        %v2116 = vmul.f32 %v2078, %v1827
        %v2117 = vmul.f32 %v2079, %v1828
        %v2118 = vmul.f32 %v2070, %v2080
        %v2119 = vmul.f32 %v2071, %v2081
        %v2120 = vadd.f32 %v2116, %v2118
        %v2121 = vadd.f32 %v2117, %v2119
        %v2122 = vmul.f32 %v2104, %v1833
        %v2123 = vmul.f32 %v2105, %v1834
        %v2124 = vmul.f32 %v2096, %v2106
        %v2125 = vmul.f32 %v2097, %v2107
        %v2126 = vadd.f32 %v2122, %v2124
        %v2127 = vadd.f32 %v2123, %v2125
        %v2128 = vtanh.pop %v2120
        %v2129 = vtanh.pop %v2121
        %v2130 = vmul.f32 %v2088, %v2128
        %v2131 = vmul.f32 %v2089, %v2129
        %v2132 = vtanh.pop %v2126
        %v2133 = vtanh.pop %v2127
        %v2134 = vmul.f32 %v2114, %v2132
        %v2135 = vmul.f32 %v2115, %v2133
        %s2136 = scalar_lea.vmem %s463, 32 [#allocation7]
        %2137 = vst [vmem:[%s2136] sm:$0xff] %v2130
        %2138 = vst [vmem:[%s2136 + $0x8] sm:$0xff] %v2131
        %s2139 = scalar_lea.vmem %s469, 208 [#allocation8]
        %2140 = vst [vmem:[%s2139] sm:$0xff] %v2134
        %2141 = vst [vmem:[%s2139 + $0x8] sm:$0xff] %v2135
        %s2142 = scalar_lea.vmem %s446, 192 [#allocation6]
        %v2143 = vld [vmem:[%s2142] sm:$0xff]
        %v2144 = vld [vmem:[%s2142 + $0x8] sm:$0xff]
        %v2145 = vld [vmem:[%s2142 + $0x10] sm:$0xff]
        %v2146 = vld [vmem:[%s2142 + $0x18] sm:$0xff]
        %v2147 = vld [vmem:[%s2142 + $0x20] sm:$0xff]
        %v2148 = vld [vmem:[%s2142 + $0x28] sm:$0xff]
        %v2149 = vld [vmem:[%s2142 + $0x30] sm:$0xff]
        %v2150 = vld [vmem:[%s2142 + $0x38] sm:$0xff]
        %v2151 = vunpack.c.l.bf16 %v2143
        %v2152 = vunpack.c.h.bf16 %v2143
        %v2153 = vunpack.c.l.bf16 %v2144
        %v2154 = vunpack.c.h.bf16 %v2144
        %v2155 = vunpack.c.l.bf16 %v2145
        %v2156 = vunpack.c.h.bf16 %v2145
        %v2157 = vunpack.c.l.bf16 %v2146
        %v2158 = vunpack.c.h.bf16 %v2146
        %v2159 = vunpack.c.l.bf16 %v2147
        %v2160 = vunpack.c.h.bf16 %v2147
        %v2161 = vunpack.c.l.bf16 %v2148
        %v2162 = vunpack.c.h.bf16 %v2148
        %v2163 = vunpack.c.l.bf16 %v2149
        %v2164 = vunpack.c.h.bf16 %v2149
        %v2165 = vunpack.c.l.bf16 %v2150
        %v2166 = vunpack.c.h.bf16 %v2150
        %v2167 = vpack.c.bf16 %v2131, %v2130
        %v2168 = vpack.c.bf16 %v2135, %v2134
        %2169 = vmatprep.subr.bf16.mxu0 %v1036
        %2170 = vmatpush1.bf16.msra.mxu0 %v1035
        %2171 = vmatprep.subr.bf16.mxu0 %v1044
        %2172 = vmatpush1.bf16.msra.mxu0 %v1043
        %2173 = vmatprep.subr.bf16.mxu0 %v1052
        %2174 = vmatpush1.bf16.msra.mxu0 %v1051
        %2175 = vmatprep.subr.bf16.mxu0 %v1060
        %2176 = vmatpush1.bf16.msra.mxu0 %v1059
        %2177 = vmatprep.subr.bf16.mxu0 %v1068
        %2178 = vmatpush1.bf16.msra.mxu0 %v1067
        %2179 = vmatprep.subr.bf16.mxu0 %v1076
        %2180 = vmatpush1.bf16.msra.mxu0 %v1075
        %2181 = vmatprep.subr.bf16.mxu0 %v1084
        %2182 = vmatpush1.bf16.msra.mxu0 %v1083
        %2183 = vmatprep.subr.bf16.mxu0 %v1092
        %2184 = vmatpush1.bf16.msra.mxu0 %v1091
        %2185 = vmatprep.subr.bf16.mxu0 %v1100
        %2186 = vmatpush1.bf16.msra.mxu0 %v1099
        %2187 = vmatprep.subr.bf16.mxu0 %v1108
        %2188 = vmatpush1.bf16.msra.mxu0 %v1107
        %2189 = vmatprep.subr.bf16.mxu0 %v1116
        %2190 = vmatpush1.bf16.msra.mxu0 %v1115
        %2191 = vmatprep.subr.bf16.mxu0 %v1124
        %2192 = vmatpush1.bf16.msra.mxu0 %v1123
        %2193 = vmatprep.subr.bf16.mxu0 %v1132
        %2194 = vmatpush1.bf16.msra.mxu0 %v1131
        %2195 = vmatprep.subr.bf16.mxu0 %v1140
        %2196 = vmatpush1.bf16.msra.mxu0 %v1139
        %2197 = vmatprep.subr.bf16.mxu0 %v1148
        %2198 = vmatpush1.bf16.msra.mxu0 %v1147
        %2199 = vmatprep.subr.bf16.mxu0 %v1156
        %2200 = vmatpush1.bf16.msra.mxu0 %v1155
        %2201 = vmatprep.mubr.bf16.mxu0 %v2168
        %2202 = vmatmul.mubr.bf16.gmra.mrb[0].mxu0 %v2167
        %v2203 = vpop.f32.mrb[0].mxu0
        %v2204 = vadd.f32 0.0, %v2203
        %v2205 = vpop.f32.mrb[0].mxu0
        %v2206 = vadd.f32 0.0, %v2205
        %v2207 = vpop.f32.mrb[0].mxu0
        %v2208 = vadd.f32 0.0, %v2207
        %v2209 = vpop.f32.mrb[0].mxu0
        %v2210 = vadd.f32 0.0, %v2209
        %2211 = vdwg.mxu0
        %2212 = vmatprep.subr.bf16.mxu0 %v1038
        %2213 = vmatpush1.bf16.msra.mxu0 %v1037
        %2214 = vmatprep.subr.bf16.mxu0 %v1046
        %2215 = vmatpush1.bf16.msra.mxu0 %v1045
        %2216 = vmatprep.subr.bf16.mxu0 %v1054
        %2217 = vmatpush1.bf16.msra.mxu0 %v1053
        %2218 = vmatprep.subr.bf16.mxu0 %v1062
        %2219 = vmatpush1.bf16.msra.mxu0 %v1061
        %2220 = vmatprep.subr.bf16.mxu0 %v1070
        %2221 = vmatpush1.bf16.msra.mxu0 %v1069
        %2222 = vmatprep.subr.bf16.mxu0 %v1078
        %2223 = vmatpush1.bf16.msra.mxu0 %v1077
        %2224 = vmatprep.subr.bf16.mxu0 %v1086
        %2225 = vmatpush1.bf16.msra.mxu0 %v1085
        %2226 = vmatprep.subr.bf16.mxu0 %v1094
        %2227 = vmatpush1.bf16.msra.mxu0 %v1093
        %2228 = vmatprep.subr.bf16.mxu0 %v1102
        %2229 = vmatpush1.bf16.msra.mxu0 %v1101
        %2230 = vmatprep.subr.bf16.mxu0 %v1110
        %2231 = vmatpush1.bf16.msra.mxu0 %v1109
        %2232 = vmatprep.subr.bf16.mxu0 %v1118
        %2233 = vmatpush1.bf16.msra.mxu0 %v1117
        %2234 = vmatprep.subr.bf16.mxu0 %v1126
        %2235 = vmatpush1.bf16.msra.mxu0 %v1125
        %2236 = vmatprep.subr.bf16.mxu0 %v1134
        %2237 = vmatpush1.bf16.msra.mxu0 %v1133
        %2238 = vmatprep.subr.bf16.mxu0 %v1142
        %2239 = vmatpush1.bf16.msra.mxu0 %v1141
        %2240 = vmatprep.subr.bf16.mxu0 %v1150
        %2241 = vmatpush1.bf16.msra.mxu0 %v1149
        %2242 = vmatprep.subr.bf16.mxu0 %v1158
        %2243 = vmatpush1.bf16.msra.mxu0 %v1157
        %2244 = vmatprep.mubr.bf16.mxu0 %v2168
        %2245 = vmatmul.mubr.bf16.gmra.mrb[0].mxu0 %v2167
        %v2246 = vpop.f32.mrb[0].mxu0
        %v2247 = vadd.f32 0.0, %v2246
        %v2248 = vpop.f32.mrb[0].mxu0
        %v2249 = vadd.f32 0.0, %v2248
        %v2250 = vpop.f32.mrb[0].mxu0
        %v2251 = vadd.f32 0.0, %v2250
        %v2252 = vpop.f32.mrb[0].mxu0
        %v2253 = vadd.f32 0.0, %v2252
        %2254 = vdwg.mxu0
        %2255 = vmatprep.subr.bf16.mxu0 %v1040
        %2256 = vmatpush1.bf16.msra.mxu0 %v1039
        %2257 = vmatprep.subr.bf16.mxu0 %v1048
        %2258 = vmatpush1.bf16.msra.mxu0 %v1047
        %2259 = vmatprep.subr.bf16.mxu0 %v1056
        %2260 = vmatpush1.bf16.msra.mxu0 %v1055
        %2261 = vmatprep.subr.bf16.mxu0 %v1064
        %2262 = vmatpush1.bf16.msra.mxu0 %v1063
        %2263 = vmatprep.subr.bf16.mxu0 %v1072
        %2264 = vmatpush1.bf16.msra.mxu0 %v1071
        %2265 = vmatprep.subr.bf16.mxu0 %v1080
        %2266 = vmatpush1.bf16.msra.mxu0 %v1079
        %2267 = vmatprep.subr.bf16.mxu0 %v1088
        %2268 = vmatpush1.bf16.msra.mxu0 %v1087
        %2269 = vmatprep.subr.bf16.mxu0 %v1096
        %2270 = vmatpush1.bf16.msra.mxu0 %v1095
        %2271 = vmatprep.subr.bf16.mxu0 %v1104
        %2272 = vmatpush1.bf16.msra.mxu0 %v1103
        %2273 = vmatprep.subr.bf16.mxu0 %v1112
        %2274 = vmatpush1.bf16.msra.mxu0 %v1111
        %2275 = vmatprep.subr.bf16.mxu0 %v1120
        %2276 = vmatpush1.bf16.msra.mxu0 %v1119
        %2277 = vmatprep.subr.bf16.mxu0 %v1128
        %2278 = vmatpush1.bf16.msra.mxu0 %v1127
        %2279 = vmatprep.subr.bf16.mxu0 %v1136
        %2280 = vmatpush1.bf16.msra.mxu0 %v1135
        %2281 = vmatprep.subr.bf16.mxu0 %v1144
        %2282 = vmatpush1.bf16.msra.mxu0 %v1143
        %2283 = vmatprep.subr.bf16.mxu0 %v1152
        %2284 = vmatpush1.bf16.msra.mxu0 %v1151
        %2285 = vmatprep.subr.bf16.mxu0 %v1160
        %2286 = vmatpush1.bf16.msra.mxu0 %v1159
        %2287 = vmatprep.mubr.bf16.mxu0 %v2168
        %2288 = vmatmul.mubr.bf16.gmra.mrb[0].mxu0 %v2167
        %v2289 = vpop.f32.mrb[0].mxu0
        %v2290 = vadd.f32 0.0, %v2289
        %v2291 = vpop.f32.mrb[0].mxu0
        %v2292 = vadd.f32 0.0, %v2291
        %v2293 = vpop.f32.mrb[0].mxu0
        %v2294 = vadd.f32 0.0, %v2293
        %v2295 = vpop.f32.mrb[0].mxu0
        %v2296 = vadd.f32 0.0, %v2295
        %2297 = vdwg.mxu0
        %2298 = vmatprep.subr.bf16.mxu0 %v1042
        %2299 = vmatpush1.bf16.msra.mxu0 %v1041
        %2300 = vmatprep.subr.bf16.mxu0 %v1050
        %2301 = vmatpush1.bf16.msra.mxu0 %v1049
        %2302 = vmatprep.subr.bf16.mxu0 %v1058
        %2303 = vmatpush1.bf16.msra.mxu0 %v1057
        %2304 = vmatprep.subr.bf16.mxu0 %v1066
        %2305 = vmatpush1.bf16.msra.mxu0 %v1065
        %2306 = vmatprep.subr.bf16.mxu0 %v1074
        %2307 = vmatpush1.bf16.msra.mxu0 %v1073
        %2308 = vmatprep.subr.bf16.mxu0 %v1082
        %2309 = vmatpush1.bf16.msra.mxu0 %v1081
        %2310 = vmatprep.subr.bf16.mxu0 %v1090
        %2311 = vmatpush1.bf16.msra.mxu0 %v1089
        %2312 = vmatprep.subr.bf16.mxu0 %v1098
        %2313 = vmatpush1.bf16.msra.mxu0 %v1097
        %2314 = vmatprep.subr.bf16.mxu0 %v1106
        %2315 = vmatpush1.bf16.msra.mxu0 %v1105
        %2316 = vmatprep.subr.bf16.mxu0 %v1114
        %2317 = vmatpush1.bf16.msra.mxu0 %v1113
        %2318 = vmatprep.subr.bf16.mxu0 %v1122
        %2319 = vmatpush1.bf16.msra.mxu0 %v1121
        %2320 = vmatprep.subr.bf16.mxu0 %v1130
        %2321 = vmatpush1.bf16.msra.mxu0 %v1129
        %2322 = vmatprep.subr.bf16.mxu0 %v1138
        %2323 = vmatpush1.bf16.msra.mxu0 %v1137
        %2324 = vmatprep.subr.bf16.mxu0 %v1146
        %2325 = vmatpush1.bf16.msra.mxu0 %v1145
        %2326 = vmatprep.subr.bf16.mxu0 %v1154
        %2327 = vmatpush1.bf16.msra.mxu0 %v1153
        %2328 = vmatprep.subr.bf16.mxu0 %v1162
        %2329 = vmatpush1.bf16.msra.mxu0 %v1161
        %2330 = vmatprep.mubr.bf16.mxu0 %v2168
        %2331 = vmatmul.mubr.bf16.gmra.mrb[0].mxu0 %v2167
        %v2332 = vpop.f32.mrb[0].mxu0
        %v2333 = vadd.f32 0.0, %v2332
        %v2334 = vpop.f32.mrb[0].mxu0
        %v2335 = vadd.f32 0.0, %v2334
        %v2336 = vpop.f32.mrb[0].mxu0
        %v2337 = vadd.f32 0.0, %v2336
        %v2338 = vpop.f32.mrb[0].mxu0
        %v2339 = vadd.f32 0.0, %v2338
        %2340 = vdwg.mxu0
        %v2341 = vadd.f32 %v2151, %v2204
        %v2342 = vadd.f32 %v2152, %v2206
        %v2343 = vadd.f32 %v2153, %v2247
        %v2344 = vadd.f32 %v2154, %v2249
        %v2345 = vadd.f32 %v2155, %v2290
        %v2346 = vadd.f32 %v2156, %v2292
        %v2347 = vadd.f32 %v2157, %v2333
        %v2348 = vadd.f32 %v2158, %v2335
        %v2349 = vadd.f32 %v2159, %v2208
        %v2350 = vadd.f32 %v2160, %v2210
        %v2351 = vadd.f32 %v2161, %v2251
        %v2352 = vadd.f32 %v2162, %v2253
        %v2353 = vadd.f32 %v2163, %v2294
        %v2354 = vadd.f32 %v2164, %v2296
        %v2355 = vadd.f32 %v2165, %v2337
        %v2356 = vadd.f32 %v2166, %v2339
        %v2357 = vmul.f32 %v2341, 0.5
        %v2358 = vmul.f32 %v2349, 0.5
        %v2359 = vtanh.pop %v2357
        %v2360 = vtanh.pop %v2358
        %v2361 = vmul.f32 %v2359, 0.5
        %v2362 = vmul.f32 %v2360, 0.5
        %v2363 = vadd.f32 %v2361, 0.5
        %v2364 = vadd.f32 %v2362, 0.5
        %v2365 = vmul.f32 %v2342, 0.5
        %v2366 = vmul.f32 %v2350, 0.5
        %v2367 = vtanh.pop %v2365
        %v2368 = vtanh.pop %v2366
        %v2369 = vmul.f32 %v2367, 0.5
        %v2370 = vmul.f32 %v2368, 0.5
        %v2371 = vadd.f32 %v2369, 0.5
        %v2372 = vadd.f32 %v2370, 0.5
        %v2373 = vtanh.pop %v2343
        %v2374 = vtanh.pop %v2351
        %v2375 = vmul.f32 %v2344, 0.5
        %v2376 = vmul.f32 %v2352, 0.5
        %v2377 = vtanh.pop %v2375
        %v2378 = vtanh.pop %v2376
        %v2379 = vmul.f32 %v2377, 0.5
        %v2380 = vmul.f32 %v2378, 0.5
        %v2381 = vadd.f32 %v2379, 0.5
        %v2382 = vadd.f32 %v2380, 0.5
        %v2383 = vmul.f32 %v2345, 0.5
        %v2384 = vmul.f32 %v2353, 0.5
        %v2385 = vtanh.pop %v2383
        %v2386 = vtanh.pop %v2384
        %v2387 = vmul.f32 %v2385, 0.5
        %v2388 = vmul.f32 %v2386, 0.5
        %v2389 = vadd.f32 %v2387, 0.5
        %v2390 = vadd.f32 %v2388, 0.5
        %v2391 = vmul.f32 %v2346, 0.5
        %v2392 = vmul.f32 %v2354, 0.5
        %v2393 = vtanh.pop %v2391
        %v2394 = vtanh.pop %v2392
        %v2395 = vmul.f32 %v2393, 0.5
        %v2396 = vmul.f32 %v2394, 0.5
        %v2397 = vadd.f32 %v2395, 0.5
        %v2398 = vadd.f32 %v2396, 0.5
        %v2399 = vtanh.pop %v2347
        %v2400 = vtanh.pop %v2355
        %v2401 = vmul.f32 %v2348, 0.5
        %v2402 = vmul.f32 %v2356, 0.5
        %v2403 = vtanh.pop %v2401
        %v2404 = vtanh.pop %v2402
        %v2405 = vmul.f32 %v2403, 0.5
        %v2406 = vmul.f32 %v2404, 0.5
        %v2407 = vadd.f32 %v2405, 0.5
        %v2408 = vadd.f32 %v2406, 0.5
        %v2409 = vmul.f32 %v2371, %v2120
        %v2410 = vmul.f32 %v2372, %v2121
        %v2411 = vmul.f32 %v2363, %v2373
        %v2412 = vmul.f32 %v2364, %v2374
        %v2413 = vadd.f32 %v2409, %v2411
        %v2414 = vadd.f32 %v2410, %v2412
        %v2415 = vmul.f32 %v2397, %v2126
        %v2416 = vmul.f32 %v2398, %v2127
        %v2417 = vmul.f32 %v2389, %v2399
        %v2418 = vmul.f32 %v2390, %v2400
        %v2419 = vadd.f32 %v2415, %v2417
        %v2420 = vadd.f32 %v2416, %v2418
        %v2421 = vtanh.pop %v2413
        %v2422 = vtanh.pop %v2414
        %v2423 = vmul.f32 %v2381, %v2421
        %v2424 = vmul.f32 %v2382, %v2422
        %v2425 = vtanh.pop %v2419
        %v2426 = vtanh.pop %v2420
        %v2427 = vmul.f32 %v2407, %v2425
        %v2428 = vmul.f32 %v2408, %v2426
        %s2429 = scalar_lea.vmem %s463, 48 [#allocation7]
        %2430 = vst [vmem:[%s2429] sm:$0xff] %v2423
        %2431 = vst [vmem:[%s2429 + $0x8] sm:$0xff] %v2424
        %s2432 = scalar_lea.vmem %s469, 192 [#allocation8]
        %2433 = vst [vmem:[%s2432] sm:$0xff] %v2427
        %2434 = vst [vmem:[%s2432 + $0x8] sm:$0xff] %v2428
        %s2435 = scalar_lea.vmem %s446, 256 [#allocation6]
        %v2436 = vld [vmem:[%s2435] sm:$0xff]
        %v2437 = vld [vmem:[%s2435 + $0x8] sm:$0xff]
        %v2438 = vld [vmem:[%s2435 + $0x10] sm:$0xff]
        %v2439 = vld [vmem:[%s2435 + $0x18] sm:$0xff]
        %v2440 = vld [vmem:[%s2435 + $0x20] sm:$0xff]
        %v2441 = vld [vmem:[%s2435 + $0x28] sm:$0xff]
        %v2442 = vld [vmem:[%s2435 + $0x30] sm:$0xff]
        %v2443 = vld [vmem:[%s2435 + $0x38] sm:$0xff]
        %v2444 = vunpack.c.l.bf16 %v2436
        %v2445 = vunpack.c.h.bf16 %v2436
        %v2446 = vunpack.c.l.bf16 %v2437
        %v2447 = vunpack.c.h.bf16 %v2437
        %v2448 = vunpack.c.l.bf16 %v2438
        %v2449 = vunpack.c.h.bf16 %v2438
        %v2450 = vunpack.c.l.bf16 %v2439
        %v2451 = vunpack.c.h.bf16 %v2439
        %v2452 = vunpack.c.l.bf16 %v2440
        %v2453 = vunpack.c.h.bf16 %v2440
        %v2454 = vunpack.c.l.bf16 %v2441
        %v2455 = vunpack.c.h.bf16 %v2441
        %v2456 = vunpack.c.l.bf16 %v2442
        %v2457 = vunpack.c.h.bf16 %v2442
        %v2458 = vunpack.c.l.bf16 %v2443
        %v2459 = vunpack.c.h.bf16 %v2443
        %v2460 = vpack.c.bf16 %v2424, %v2423
        %v2461 = vpack.c.bf16 %v2428, %v2427
        %2462 = vmatprep.subr.bf16.mxu0 %v1036
        %2463 = vmatpush1.bf16.msra.mxu0 %v1035
        %2464 = vmatprep.subr.bf16.mxu0 %v1044
        %2465 = vmatpush1.bf16.msra.mxu0 %v1043
        %2466 = vmatprep.subr.bf16.mxu0 %v1052
        %2467 = vmatpush1.bf16.msra.mxu0 %v1051
        %2468 = vmatprep.subr.bf16.mxu0 %v1060
        %2469 = vmatpush1.bf16.msra.mxu0 %v1059
        %2470 = vmatprep.subr.bf16.mxu0 %v1068
        %2471 = vmatpush1.bf16.msra.mxu0 %v1067
        %2472 = vmatprep.subr.bf16.mxu0 %v1076
        %2473 = vmatpush1.bf16.msra.mxu0 %v1075
        %2474 = vmatprep.subr.bf16.mxu0 %v1084
        %2475 = vmatpush1.bf16.msra.mxu0 %v1083
        %2476 = vmatprep.subr.bf16.mxu0 %v1092
        %2477 = vmatpush1.bf16.msra.mxu0 %v1091
        %2478 = vmatprep.subr.bf16.mxu0 %v1100
        %2479 = vmatpush1.bf16.msra.mxu0 %v1099
        %2480 = vmatprep.subr.bf16.mxu0 %v1108
        %2481 = vmatpush1.bf16.msra.mxu0 %v1107
        %2482 = vmatprep.subr.bf16.mxu0 %v1116
        %2483 = vmatpush1.bf16.msra.mxu0 %v1115
        %2484 = vmatprep.subr.bf16.mxu0 %v1124
        %2485 = vmatpush1.bf16.msra.mxu0 %v1123
        %2486 = vmatprep.subr.bf16.mxu0 %v1132
        %2487 = vmatpush1.bf16.msra.mxu0 %v1131
        %2488 = vmatprep.subr.bf16.mxu0 %v1140
        %2489 = vmatpush1.bf16.msra.mxu0 %v1139
        %2490 = vmatprep.subr.bf16.mxu0 %v1148
        %2491 = vmatpush1.bf16.msra.mxu0 %v1147
        %2492 = vmatprep.subr.bf16.mxu0 %v1156
        %2493 = vmatpush1.bf16.msra.mxu0 %v1155
        %2494 = vmatprep.mubr.bf16.mxu0 %v2461
        %2495 = vmatmul.mubr.bf16.gmra.mrb[0].mxu0 %v2460
        %v2496 = vpop.f32.mrb[0].mxu0
        %v2497 = vadd.f32 0.0, %v2496
        %v2498 = vpop.f32.mrb[0].mxu0
        %v2499 = vadd.f32 0.0, %v2498
        %v2500 = vpop.f32.mrb[0].mxu0
        %v2501 = vadd.f32 0.0, %v2500
        %v2502 = vpop.f32.mrb[0].mxu0
        %v2503 = vadd.f32 0.0, %v2502
        %2504 = vdwg.mxu0
        %2505 = vmatprep.subr.bf16.mxu0 %v1038
        %2506 = vmatpush1.bf16.msra.mxu0 %v1037
        %2507 = vmatprep.subr.bf16.mxu0 %v1046
        %2508 = vmatpush1.bf16.msra.mxu0 %v1045
        %2509 = vmatprep.subr.bf16.mxu0 %v1054
        %2510 = vmatpush1.bf16.msra.mxu0 %v1053
        %2511 = vmatprep.subr.bf16.mxu0 %v1062
        %2512 = vmatpush1.bf16.msra.mxu0 %v1061
        %2513 = vmatprep.subr.bf16.mxu0 %v1070
        %2514 = vmatpush1.bf16.msra.mxu0 %v1069
        %2515 = vmatprep.subr.bf16.mxu0 %v1078
        %2516 = vmatpush1.bf16.msra.mxu0 %v1077
        %2517 = vmatprep.subr.bf16.mxu0 %v1086
        %2518 = vmatpush1.bf16.msra.mxu0 %v1085
        %2519 = vmatprep.subr.bf16.mxu0 %v1094
        %2520 = vmatpush1.bf16.msra.mxu0 %v1093
        %2521 = vmatprep.subr.bf16.mxu0 %v1102
        %2522 = vmatpush1.bf16.msra.mxu0 %v1101
        %2523 = vmatprep.subr.bf16.mxu0 %v1110
        %2524 = vmatpush1.bf16.msra.mxu0 %v1109
        %2525 = vmatprep.subr.bf16.mxu0 %v1118
        %2526 = vmatpush1.bf16.msra.mxu0 %v1117
        %2527 = vmatprep.subr.bf16.mxu0 %v1126
        %2528 = vmatpush1.bf16.msra.mxu0 %v1125
        %2529 = vmatprep.subr.bf16.mxu0 %v1134
        %2530 = vmatpush1.bf16.msra.mxu0 %v1133
        %2531 = vmatprep.subr.bf16.mxu0 %v1142
        %2532 = vmatpush1.bf16.msra.mxu0 %v1141
        %2533 = vmatprep.subr.bf16.mxu0 %v1150
        %2534 = vmatpush1.bf16.msra.mxu0 %v1149
        %2535 = vmatprep.subr.bf16.mxu0 %v1158
        %2536 = vmatpush1.bf16.msra.mxu0 %v1157
        %2537 = vmatprep.mubr.bf16.mxu0 %v2461
        %2538 = vmatmul.mubr.bf16.gmra.mrb[0].mxu0 %v2460
        %v2539 = vpop.f32.mrb[0].mxu0
        %v2540 = vadd.f32 0.0, %v2539
        %v2541 = vpop.f32.mrb[0].mxu0
        %v2542 = vadd.f32 0.0, %v2541
        %v2543 = vpop.f32.mrb[0].mxu0
        %v2544 = vadd.f32 0.0, %v2543
        %v2545 = vpop.f32.mrb[0].mxu0
        %v2546 = vadd.f32 0.0, %v2545
        %2547 = vdwg.mxu0
        %2548 = vmatprep.subr.bf16.mxu0 %v1040
        %2549 = vmatpush1.bf16.msra.mxu0 %v1039
        %2550 = vmatprep.subr.bf16.mxu0 %v1048
        %2551 = vmatpush1.bf16.msra.mxu0 %v1047
        %2552 = vmatprep.subr.bf16.mxu0 %v1056
        %2553 = vmatpush1.bf16.msra.mxu0 %v1055
        %2554 = vmatprep.subr.bf16.mxu0 %v1064
        %2555 = vmatpush1.bf16.msra.mxu0 %v1063
        %2556 = vmatprep.subr.bf16.mxu0 %v1072
        %2557 = vmatpush1.bf16.msra.mxu0 %v1071
        %2558 = vmatprep.subr.bf16.mxu0 %v1080
        %2559 = vmatpush1.bf16.msra.mxu0 %v1079
        %2560 = vmatprep.subr.bf16.mxu0 %v1088
        %2561 = vmatpush1.bf16.msra.mxu0 %v1087
        %2562 = vmatprep.subr.bf16.mxu0 %v1096
        %2563 = vmatpush1.bf16.msra.mxu0 %v1095
        %2564 = vmatprep.subr.bf16.mxu0 %v1104
        %2565 = vmatpush1.bf16.msra.mxu0 %v1103
        %2566 = vmatprep.subr.bf16.mxu0 %v1112
        %2567 = vmatpush1.bf16.msra.mxu0 %v1111
        %2568 = vmatprep.subr.bf16.mxu0 %v1120
        %2569 = vmatpush1.bf16.msra.mxu0 %v1119
        %2570 = vmatprep.subr.bf16.mxu0 %v1128
        %2571 = vmatpush1.bf16.msra.mxu0 %v1127
        %2572 = vmatprep.subr.bf16.mxu0 %v1136
        %2573 = vmatpush1.bf16.msra.mxu0 %v1135
        %2574 = vmatprep.subr.bf16.mxu0 %v1144
        %2575 = vmatpush1.bf16.msra.mxu0 %v1143
        %2576 = vmatprep.subr.bf16.mxu0 %v1152
        %2577 = vmatpush1.bf16.msra.mxu0 %v1151
        %2578 = vmatprep.subr.bf16.mxu0 %v1160
        %2579 = vmatpush1.bf16.msra.mxu0 %v1159
        %2580 = vmatprep.mubr.bf16.mxu0 %v2461
        %2581 = vmatmul.mubr.bf16.gmra.mrb[0].mxu0 %v2460
        %v2582 = vpop.f32.mrb[0].mxu0
        %v2583 = vadd.f32 0.0, %v2582
        %v2584 = vpop.f32.mrb[0].mxu0
        %v2585 = vadd.f32 0.0, %v2584
        %v2586 = vpop.f32.mrb[0].mxu0
        %v2587 = vadd.f32 0.0, %v2586
        %v2588 = vpop.f32.mrb[0].mxu0
        %v2589 = vadd.f32 0.0, %v2588
        %2590 = vdwg.mxu0
        %2591 = vmatprep.subr.bf16.mxu0 %v1042
        %2592 = vmatpush1.bf16.msra.mxu0 %v1041
        %2593 = vmatprep.subr.bf16.mxu0 %v1050
        %2594 = vmatpush1.bf16.msra.mxu0 %v1049
        %2595 = vmatprep.subr.bf16.mxu0 %v1058
        %2596 = vmatpush1.bf16.msra.mxu0 %v1057
        %2597 = vmatprep.subr.bf16.mxu0 %v1066
        %2598 = vmatpush1.bf16.msra.mxu0 %v1065
        %2599 = vmatprep.subr.bf16.mxu0 %v1074
        %2600 = vmatpush1.bf16.msra.mxu0 %v1073
        %2601 = vmatprep.subr.bf16.mxu0 %v1082
        %2602 = vmatpush1.bf16.msra.mxu0 %v1081
        %2603 = vmatprep.subr.bf16.mxu0 %v1090
        %2604 = vmatpush1.bf16.msra.mxu0 %v1089
        %2605 = vmatprep.subr.bf16.mxu0 %v1098
        %2606 = vmatpush1.bf16.msra.mxu0 %v1097
        %2607 = vmatprep.subr.bf16.mxu0 %v1106
        %2608 = vmatpush1.bf16.msra.mxu0 %v1105
        %2609 = vmatprep.subr.bf16.mxu0 %v1114
        %2610 = vmatpush1.bf16.msra.mxu0 %v1113
        %2611 = vmatprep.subr.bf16.mxu0 %v1122
        %2612 = vmatpush1.bf16.msra.mxu0 %v1121
        %2613 = vmatprep.subr.bf16.mxu0 %v1130
        %2614 = vmatpush1.bf16.msra.mxu0 %v1129
        %2615 = vmatprep.subr.bf16.mxu0 %v1138
        %2616 = vmatpush1.bf16.msra.mxu0 %v1137
        %2617 = vmatprep.subr.bf16.mxu0 %v1146
        %2618 = vmatpush1.bf16.msra.mxu0 %v1145
        %2619 = vmatprep.subr.bf16.mxu0 %v1154
        %2620 = vmatpush1.bf16.msra.mxu0 %v1153
        %2621 = vmatprep.subr.bf16.mxu0 %v1162
        %2622 = vmatpush1.bf16.msra.mxu0 %v1161
        %2623 = vmatprep.mubr.bf16.mxu0 %v2461
        %2624 = vmatmul.mubr.bf16.gmra.mrb[0].mxu0 %v2460
        %v2625 = vpop.f32.mrb[0].mxu0
        %v2626 = vadd.f32 0.0, %v2625
        %v2627 = vpop.f32.mrb[0].mxu0
        %v2628 = vadd.f32 0.0, %v2627
        %v2629 = vpop.f32.mrb[0].mxu0
        %v2630 = vadd.f32 0.0, %v2629
        %v2631 = vpop.f32.mrb[0].mxu0
        %v2632 = vadd.f32 0.0, %v2631
        %2633 = vdwg.mxu0
        %v2634 = vadd.f32 %v2444, %v2497
        %v2635 = vadd.f32 %v2445, %v2499
        %v2636 = vadd.f32 %v2446, %v2540
        %v2637 = vadd.f32 %v2447, %v2542
        %v2638 = vadd.f32 %v2448, %v2583
        %v2639 = vadd.f32 %v2449, %v2585
        %v2640 = vadd.f32 %v2450, %v2626
        %v2641 = vadd.f32 %v2451, %v2628
        %v2642 = vadd.f32 %v2452, %v2501
        %v2643 = vadd.f32 %v2453, %v2503
        %v2644 = vadd.f32 %v2454, %v2544
        %v2645 = vadd.f32 %v2455, %v2546
        %v2646 = vadd.f32 %v2456, %v2587
        %v2647 = vadd.f32 %v2457, %v2589
        %v2648 = vadd.f32 %v2458, %v2630
        %v2649 = vadd.f32 %v2459, %v2632
        %v2650 = vmul.f32 %v2634, 0.5
        %v2651 = vmul.f32 %v2642, 0.5
        %v2652 = vtanh.pop %v2650
        %v2653 = vtanh.pop %v2651
        %v2654 = vmul.f32 %v2652, 0.5
        %v2655 = vmul.f32 %v2653, 0.5
        %v2656 = vadd.f32 %v2654, 0.5
        %v2657 = vadd.f32 %v2655, 0.5
        %v2658 = vmul.f32 %v2635, 0.5
        %v2659 = vmul.f32 %v2643, 0.5
        %v2660 = vtanh.pop %v2658
        %v2661 = vtanh.pop %v2659
        %v2662 = vmul.f32 %v2660, 0.5
        %v2663 = vmul.f32 %v2661, 0.5
        %v2664 = vadd.f32 %v2662, 0.5
        %v2665 = vadd.f32 %v2663, 0.5
        %v2666 = vtanh.pop %v2636
        %v2667 = vtanh.pop %v2644
        %v2668 = vmul.f32 %v2637, 0.5
        %v2669 = vmul.f32 %v2645, 0.5
        %v2670 = vtanh.pop %v2668
        %v2671 = vtanh.pop %v2669
        %v2672 = vmul.f32 %v2670, 0.5
        %v2673 = vmul.f32 %v2671, 0.5
        %v2674 = vadd.f32 %v2672, 0.5
        %v2675 = vadd.f32 %v2673, 0.5
        %v2676 = vmul.f32 %v2638, 0.5
        %v2677 = vmul.f32 %v2646, 0.5
        %v2678 = vtanh.pop %v2676
        %v2679 = vtanh.pop %v2677
        %v2680 = vmul.f32 %v2678, 0.5
        %v2681 = vmul.f32 %v2679, 0.5
        %v2682 = vadd.f32 %v2680, 0.5
        %v2683 = vadd.f32 %v2681, 0.5
        %v2684 = vmul.f32 %v2639, 0.5
        %v2685 = vmul.f32 %v2647, 0.5
        %v2686 = vtanh.pop %v2684
        %v2687 = vtanh.pop %v2685
        %v2688 = vmul.f32 %v2686, 0.5
        %v2689 = vmul.f32 %v2687, 0.5
        %v2690 = vadd.f32 %v2688, 0.5
        %v2691 = vadd.f32 %v2689, 0.5
        %v2692 = vtanh.pop %v2640
        %v2693 = vtanh.pop %v2648
        %v2694 = vmul.f32 %v2641, 0.5
        %v2695 = vmul.f32 %v2649, 0.5
        %v2696 = vtanh.pop %v2694
        %v2697 = vtanh.pop %v2695
        %v2698 = vmul.f32 %v2696, 0.5
        %v2699 = vmul.f32 %v2697, 0.5
        %v2700 = vadd.f32 %v2698, 0.5
        %v2701 = vadd.f32 %v2699, 0.5
        %v2702 = vmul.f32 %v2664, %v2413
        %v2703 = vmul.f32 %v2665, %v2414
        %v2704 = vmul.f32 %v2656, %v2666
        %v2705 = vmul.f32 %v2657, %v2667
        %v2706 = vadd.f32 %v2702, %v2704
        %v2707 = vadd.f32 %v2703, %v2705
        %v2708 = vmul.f32 %v2690, %v2419
        %v2709 = vmul.f32 %v2691, %v2420
        %v2710 = vmul.f32 %v2682, %v2692
        %v2711 = vmul.f32 %v2683, %v2693
        %v2712 = vadd.f32 %v2708, %v2710
        %v2713 = vadd.f32 %v2709, %v2711
        %v2714 = vtanh.pop %v2706
        %v2715 = vtanh.pop %v2707
        %v2716 = vmul.f32 %v2674, %v2714
        %v2717 = vmul.f32 %v2675, %v2715
        %v2718 = vtanh.pop %v2712
        %v2719 = vtanh.pop %v2713
        %v2720 = vmul.f32 %v2700, %v2718
        %v2721 = vmul.f32 %v2701, %v2719
        %s2722 = scalar_lea.vmem %s463, 64 [#allocation7]
        %2723 = vst [vmem:[%s2722] sm:$0xff] %v2716
        %2724 = vst [vmem:[%s2722 + $0x8] sm:$0xff] %v2717
        %s2725 = scalar_lea.vmem %s469, 176 [#allocation8]
        %2726 = vst [vmem:[%s2725] sm:$0xff] %v2720
        %2727 = vst [vmem:[%s2725 + $0x8] sm:$0xff] %v2721
        %s2728 = scalar_lea.vmem %s446, 320 [#allocation6]
        %v2729 = vld [vmem:[%s2728] sm:$0xff]
        %v2730 = vld [vmem:[%s2728 + $0x8] sm:$0xff]
        %v2731 = vld [vmem:[%s2728 + $0x10] sm:$0xff]
        %v2732 = vld [vmem:[%s2728 + $0x18] sm:$0xff]
        %v2733 = vld [vmem:[%s2728 + $0x20] sm:$0xff]
        %v2734 = vld [vmem:[%s2728 + $0x28] sm:$0xff]
        %v2735 = vld [vmem:[%s2728 + $0x30] sm:$0xff]
        %v2736 = vld [vmem:[%s2728 + $0x38] sm:$0xff]
        %v2737 = vunpack.c.l.bf16 %v2729
        %v2738 = vunpack.c.h.bf16 %v2729
        %v2739 = vunpack.c.l.bf16 %v2730
        %v2740 = vunpack.c.h.bf16 %v2730
        %v2741 = vunpack.c.l.bf16 %v2731
        %v2742 = vunpack.c.h.bf16 %v2731
        %v2743 = vunpack.c.l.bf16 %v2732
        %v2744 = vunpack.c.h.bf16 %v2732
        %v2745 = vunpack.c.l.bf16 %v2733
        %v2746 = vunpack.c.h.bf16 %v2733
        %v2747 = vunpack.c.l.bf16 %v2734
        %v2748 = vunpack.c.h.bf16 %v2734
        %v2749 = vunpack.c.l.bf16 %v2735
        %v2750 = vunpack.c.h.bf16 %v2735
        %v2751 = vunpack.c.l.bf16 %v2736
        %v2752 = vunpack.c.h.bf16 %v2736
        %v2753 = vpack.c.bf16 %v2717, %v2716
        %v2754 = vpack.c.bf16 %v2721, %v2720
        %2755 = vmatprep.subr.bf16.mxu0 %v1036
        %2756 = vmatpush1.bf16.msra.mxu0 %v1035
        %2757 = vmatprep.subr.bf16.mxu0 %v1044
        %2758 = vmatpush1.bf16.msra.mxu0 %v1043
        %2759 = vmatprep.subr.bf16.mxu0 %v1052
        %2760 = vmatpush1.bf16.msra.mxu0 %v1051
        %2761 = vmatprep.subr.bf16.mxu0 %v1060
        %2762 = vmatpush1.bf16.msra.mxu0 %v1059
        %2763 = vmatprep.subr.bf16.mxu0 %v1068
        %2764 = vmatpush1.bf16.msra.mxu0 %v1067
        %2765 = vmatprep.subr.bf16.mxu0 %v1076
        %2766 = vmatpush1.bf16.msra.mxu0 %v1075
        %2767 = vmatprep.subr.bf16.mxu0 %v1084
        %2768 = vmatpush1.bf16.msra.mxu0 %v1083
        %2769 = vmatprep.subr.bf16.mxu0 %v1092
        %2770 = vmatpush1.bf16.msra.mxu0 %v1091
        %2771 = vmatprep.subr.bf16.mxu0 %v1100
        %2772 = vmatpush1.bf16.msra.mxu0 %v1099
        %2773 = vmatprep.subr.bf16.mxu0 %v1108
        %2774 = vmatpush1.bf16.msra.mxu0 %v1107
        %2775 = vmatprep.subr.bf16.mxu0 %v1116
        %2776 = vmatpush1.bf16.msra.mxu0 %v1115
        %2777 = vmatprep.subr.bf16.mxu0 %v1124
        %2778 = vmatpush1.bf16.msra.mxu0 %v1123
        %2779 = vmatprep.subr.bf16.mxu0 %v1132
        %2780 = vmatpush1.bf16.msra.mxu0 %v1131
        %2781 = vmatprep.subr.bf16.mxu0 %v1140
        %2782 = vmatpush1.bf16.msra.mxu0 %v1139
        %2783 = vmatprep.subr.bf16.mxu0 %v1148
        %2784 = vmatpush1.bf16.msra.mxu0 %v1147
        %2785 = vmatprep.subr.bf16.mxu0 %v1156
        %2786 = vmatpush1.bf16.msra.mxu0 %v1155
        %2787 = vmatprep.mubr.bf16.mxu0 %v2754
        %2788 = vmatmul.mubr.bf16.gmra.mrb[0].mxu0 %v2753
        %v2789 = vpop.f32.mrb[0].mxu0
        %v2790 = vadd.f32 0.0, %v2789
        %v2791 = vpop.f32.mrb[0].mxu0
        %v2792 = vadd.f32 0.0, %v2791
        %v2793 = vpop.f32.mrb[0].mxu0
        %v2794 = vadd.f32 0.0, %v2793
        %v2795 = vpop.f32.mrb[0].mxu0
        %v2796 = vadd.f32 0.0, %v2795
        %2797 = vdwg.mxu0
        %2798 = vmatprep.subr.bf16.mxu0 %v1038
        %2799 = vmatpush1.bf16.msra.mxu0 %v1037
        %2800 = vmatprep.subr.bf16.mxu0 %v1046
        %2801 = vmatpush1.bf16.msra.mxu0 %v1045
        %2802 = vmatprep.subr.bf16.mxu0 %v1054
        %2803 = vmatpush1.bf16.msra.mxu0 %v1053
        %2804 = vmatprep.subr.bf16.mxu0 %v1062
        %2805 = vmatpush1.bf16.msra.mxu0 %v1061
        %2806 = vmatprep.subr.bf16.mxu0 %v1070
        %2807 = vmatpush1.bf16.msra.mxu0 %v1069
        %2808 = vmatprep.subr.bf16.mxu0 %v1078
        %2809 = vmatpush1.bf16.msra.mxu0 %v1077
        %2810 = vmatprep.subr.bf16.mxu0 %v1086
        %2811 = vmatpush1.bf16.msra.mxu0 %v1085
        %2812 = vmatprep.subr.bf16.mxu0 %v1094
        %2813 = vmatpush1.bf16.msra.mxu0 %v1093
        %2814 = vmatprep.subr.bf16.mxu0 %v1102
        %2815 = vmatpush1.bf16.msra.mxu0 %v1101
        %2816 = vmatprep.subr.bf16.mxu0 %v1110
        %2817 = vmatpush1.bf16.msra.mxu0 %v1109
        %2818 = vmatprep.subr.bf16.mxu0 %v1118
        %2819 = vmatpush1.bf16.msra.mxu0 %v1117
        %2820 = vmatprep.subr.bf16.mxu0 %v1126
        %2821 = vmatpush1.bf16.msra.mxu0 %v1125
        %2822 = vmatprep.subr.bf16.mxu0 %v1134
        %2823 = vmatpush1.bf16.msra.mxu0 %v1133
        %2824 = vmatprep.subr.bf16.mxu0 %v1142
        %2825 = vmatpush1.bf16.msra.mxu0 %v1141
        %2826 = vmatprep.subr.bf16.mxu0 %v1150
        %2827 = vmatpush1.bf16.msra.mxu0 %v1149
        %2828 = vmatprep.subr.bf16.mxu0 %v1158
        %2829 = vmatpush1.bf16.msra.mxu0 %v1157
        %2830 = vmatprep.mubr.bf16.mxu0 %v2754
        %2831 = vmatmul.mubr.bf16.gmra.mrb[0].mxu0 %v2753
        %v2832 = vpop.f32.mrb[0].mxu0
        %v2833 = vadd.f32 0.0, %v2832
        %v2834 = vpop.f32.mrb[0].mxu0
        %v2835 = vadd.f32 0.0, %v2834
        %v2836 = vpop.f32.mrb[0].mxu0
        %v2837 = vadd.f32 0.0, %v2836
        %v2838 = vpop.f32.mrb[0].mxu0
        %v2839 = vadd.f32 0.0, %v2838
        %2840 = vdwg.mxu0
        %2841 = vmatprep.subr.bf16.mxu0 %v1040
        %2842 = vmatpush1.bf16.msra.mxu0 %v1039
        %2843 = vmatprep.subr.bf16.mxu0 %v1048
        %2844 = vmatpush1.bf16.msra.mxu0 %v1047
        %2845 = vmatprep.subr.bf16.mxu0 %v1056
        %2846 = vmatpush1.bf16.msra.mxu0 %v1055
        %2847 = vmatprep.subr.bf16.mxu0 %v1064
        %2848 = vmatpush1.bf16.msra.mxu0 %v1063
        %2849 = vmatprep.subr.bf16.mxu0 %v1072
        %2850 = vmatpush1.bf16.msra.mxu0 %v1071
        %2851 = vmatprep.subr.bf16.mxu0 %v1080
        %2852 = vmatpush1.bf16.msra.mxu0 %v1079
        %2853 = vmatprep.subr.bf16.mxu0 %v1088
        %2854 = vmatpush1.bf16.msra.mxu0 %v1087
        %2855 = vmatprep.subr.bf16.mxu0 %v1096
        %2856 = vmatpush1.bf16.msra.mxu0 %v1095
        %2857 = vmatprep.subr.bf16.mxu0 %v1104
        %2858 = vmatpush1.bf16.msra.mxu0 %v1103
        %2859 = vmatprep.subr.bf16.mxu0 %v1112
        %2860 = vmatpush1.bf16.msra.mxu0 %v1111
        %2861 = vmatprep.subr.bf16.mxu0 %v1120
        %2862 = vmatpush1.bf16.msra.mxu0 %v1119
        %2863 = vmatprep.subr.bf16.mxu0 %v1128
        %2864 = vmatpush1.bf16.msra.mxu0 %v1127
        %2865 = vmatprep.subr.bf16.mxu0 %v1136
        %2866 = vmatpush1.bf16.msra.mxu0 %v1135
        %2867 = vmatprep.subr.bf16.mxu0 %v1144
        %2868 = vmatpush1.bf16.msra.mxu0 %v1143
        %2869 = vmatprep.subr.bf16.mxu0 %v1152
        %2870 = vmatpush1.bf16.msra.mxu0 %v1151
        %2871 = vmatprep.subr.bf16.mxu0 %v1160
        %2872 = vmatpush1.bf16.msra.mxu0 %v1159
        %2873 = vmatprep.mubr.bf16.mxu0 %v2754
        %2874 = vmatmul.mubr.bf16.gmra.mrb[0].mxu0 %v2753
        %v2875 = vpop.f32.mrb[0].mxu0
        %v2876 = vadd.f32 0.0, %v2875
        %v2877 = vpop.f32.mrb[0].mxu0
        %v2878 = vadd.f32 0.0, %v2877
        %v2879 = vpop.f32.mrb[0].mxu0
        %v2880 = vadd.f32 0.0, %v2879
        %v2881 = vpop.f32.mrb[0].mxu0
        %v2882 = vadd.f32 0.0, %v2881
        %2883 = vdwg.mxu0
        %2884 = vmatprep.subr.bf16.mxu0 %v1042
        %2885 = vmatpush1.bf16.msra.mxu0 %v1041
        %2886 = vmatprep.subr.bf16.mxu0 %v1050
        %2887 = vmatpush1.bf16.msra.mxu0 %v1049
        %2888 = vmatprep.subr.bf16.mxu0 %v1058
        %2889 = vmatpush1.bf16.msra.mxu0 %v1057
        %2890 = vmatprep.subr.bf16.mxu0 %v1066
        %2891 = vmatpush1.bf16.msra.mxu0 %v1065
        %2892 = vmatprep.subr.bf16.mxu0 %v1074
        %2893 = vmatpush1.bf16.msra.mxu0 %v1073
        %2894 = vmatprep.subr.bf16.mxu0 %v1082
        %2895 = vmatpush1.bf16.msra.mxu0 %v1081
        %2896 = vmatprep.subr.bf16.mxu0 %v1090
        %2897 = vmatpush1.bf16.msra.mxu0 %v1089
        %2898 = vmatprep.subr.bf16.mxu0 %v1098
        %2899 = vmatpush1.bf16.msra.mxu0 %v1097
        %2900 = vmatprep.subr.bf16.mxu0 %v1106
        %2901 = vmatpush1.bf16.msra.mxu0 %v1105
        %2902 = vmatprep.subr.bf16.mxu0 %v1114
        %2903 = vmatpush1.bf16.msra.mxu0 %v1113
        %2904 = vmatprep.subr.bf16.mxu0 %v1122
        %2905 = vmatpush1.bf16.msra.mxu0 %v1121
        %2906 = vmatprep.subr.bf16.mxu0 %v1130
        %2907 = vmatpush1.bf16.msra.mxu0 %v1129
        %2908 = vmatprep.subr.bf16.mxu0 %v1138
        %2909 = vmatpush1.bf16.msra.mxu0 %v1137
        %2910 = vmatprep.subr.bf16.mxu0 %v1146
        %2911 = vmatpush1.bf16.msra.mxu0 %v1145
        %2912 = vmatprep.subr.bf16.mxu0 %v1154
        %2913 = vmatpush1.bf16.msra.mxu0 %v1153
        %2914 = vmatprep.subr.bf16.mxu0 %v1162
        %2915 = vmatpush1.bf16.msra.mxu0 %v1161
        %2916 = vmatprep.mubr.bf16.mxu0 %v2754
        %2917 = vmatmul.mubr.bf16.gmra.mrb[0].mxu0 %v2753
        %v2918 = vpop.f32.mrb[0].mxu0
        %v2919 = vadd.f32 0.0, %v2918
        %v2920 = vpop.f32.mrb[0].mxu0
        %v2921 = vadd.f32 0.0, %v2920
        %v2922 = vpop.f32.mrb[0].mxu0
        %v2923 = vadd.f32 0.0, %v2922
        %v2924 = vpop.f32.mrb[0].mxu0
        %v2925 = vadd.f32 0.0, %v2924
        %2926 = vdwg.mxu0
        %v2927 = vadd.f32 %v2737, %v2790
        %v2928 = vadd.f32 %v2738, %v2792
        %v2929 = vadd.f32 %v2739, %v2833
        %v2930 = vadd.f32 %v2740, %v2835
        %v2931 = vadd.f32 %v2741, %v2876
        %v2932 = vadd.f32 %v2742, %v2878
        %v2933 = vadd.f32 %v2743, %v2919
        %v2934 = vadd.f32 %v2744, %v2921
        %v2935 = vadd.f32 %v2745, %v2794
        %v2936 = vadd.f32 %v2746, %v2796
        %v2937 = vadd.f32 %v2747, %v2837
        %v2938 = vadd.f32 %v2748, %v2839
        %v2939 = vadd.f32 %v2749, %v2880
        %v2940 = vadd.f32 %v2750, %v2882
        %v2941 = vadd.f32 %v2751, %v2923
        %v2942 = vadd.f32 %v2752, %v2925
        %v2943 = vmul.f32 %v2927, 0.5
        %v2944 = vmul.f32 %v2935, 0.5
        %v2945 = vtanh.pop %v2943
        %v2946 = vtanh.pop %v2944
        %v2947 = vmul.f32 %v2945, 0.5
        %v2948 = vmul.f32 %v2946, 0.5
        %v2949 = vadd.f32 %v2947, 0.5
        %v2950 = vadd.f32 %v2948, 0.5
        %v2951 = vmul.f32 %v2928, 0.5
        %v2952 = vmul.f32 %v2936, 0.5
        %v2953 = vtanh.pop %v2951
        %v2954 = vtanh.pop %v2952
        %v2955 = vmul.f32 %v2953, 0.5
        %v2956 = vmul.f32 %v2954, 0.5
        %v2957 = vadd.f32 %v2955, 0.5
        %v2958 = vadd.f32 %v2956, 0.5
        %v2959 = vtanh.pop %v2929
        %v2960 = vtanh.pop %v2937
        %v2961 = vmul.f32 %v2930, 0.5
        %v2962 = vmul.f32 %v2938, 0.5
        %v2963 = vtanh.pop %v2961
        %v2964 = vtanh.pop %v2962
        %v2965 = vmul.f32 %v2963, 0.5
        %v2966 = vmul.f32 %v2964, 0.5
        %v2967 = vadd.f32 %v2965, 0.5
        %v2968 = vadd.f32 %v2966, 0.5
        %v2969 = vmul.f32 %v2931, 0.5
        %v2970 = vmul.f32 %v2939, 0.5
        %v2971 = vtanh.pop %v2969
        %v2972 = vtanh.pop %v2970
        %v2973 = vmul.f32 %v2971, 0.5
        %v2974 = vmul.f32 %v2972, 0.5
        %v2975 = vadd.f32 %v2973, 0.5
        %v2976 = vadd.f32 %v2974, 0.5
        %v2977 = vmul.f32 %v2932, 0.5
        %v2978 = vmul.f32 %v2940, 0.5
        %v2979 = vtanh.pop %v2977
        %v2980 = vtanh.pop %v2978
        %v2981 = vmul.f32 %v2979, 0.5
        %v2982 = vmul.f32 %v2980, 0.5
        %v2983 = vadd.f32 %v2981, 0.5
        %v2984 = vadd.f32 %v2982, 0.5
        %v2985 = vtanh.pop %v2933
        %v2986 = vtanh.pop %v2941
        %v2987 = vmul.f32 %v2934, 0.5
        %v2988 = vmul.f32 %v2942, 0.5
        %v2989 = vtanh.pop %v2987
        %v2990 = vtanh.pop %v2988
        %v2991 = vmul.f32 %v2989, 0.5
        %v2992 = vmul.f32 %v2990, 0.5
        %v2993 = vadd.f32 %v2991, 0.5
        %v2994 = vadd.f32 %v2992, 0.5
        %v2995 = vmul.f32 %v2957, %v2706
        %v2996 = vmul.f32 %v2958, %v2707
        %v2997 = vmul.f32 %v2949, %v2959
        %v2998 = vmul.f32 %v2950, %v2960
        %v2999 = vadd.f32 %v2995, %v2997
        %v3000 = vadd.f32 %v2996, %v2998
        %v3001 = vmul.f32 %v2983, %v2712
        %v3002 = vmul.f32 %v2984, %v2713
        %v3003 = vmul.f32 %v2975, %v2985
        %v3004 = vmul.f32 %v2976, %v2986
        %v3005 = vadd.f32 %v3001, %v3003
        %v3006 = vadd.f32 %v3002, %v3004
        %v3007 = vtanh.pop %v2999
        %v3008 = vtanh.pop %v3000
        %v3009 = vmul.f32 %v2967, %v3007
        %v3010 = vmul.f32 %v2968, %v3008
        %v3011 = vtanh.pop %v3005
        %v3012 = vtanh.pop %v3006
        %v3013 = vmul.f32 %v2993, %v3011
        %v3014 = vmul.f32 %v2994, %v3012
        %s3015 = scalar_lea.vmem %s463, 80 [#allocation7]
        %3016 = vst [vmem:[%s3015] sm:$0xff] %v3009
        %3017 = vst [vmem:[%s3015 + $0x8] sm:$0xff] %v3010
        %s3018 = scalar_lea.vmem %s469, 160 [#allocation8]
        %3019 = vst [vmem:[%s3018] sm:$0xff] %v3013
        %3020 = vst [vmem:[%s3018 + $0x8] sm:$0xff] %v3014
        %s3021 = scalar_lea.vmem %s446, 384 [#allocation6]
        %v3022 = vld [vmem:[%s3021] sm:$0xff]
        %v3023 = vld [vmem:[%s3021 + $0x8] sm:$0xff]
        %v3024 = vld [vmem:[%s3021 + $0x10] sm:$0xff]
        %v3025 = vld [vmem:[%s3021 + $0x18] sm:$0xff]
        %v3026 = vld [vmem:[%s3021 + $0x20] sm:$0xff]
        %v3027 = vld [vmem:[%s3021 + $0x28] sm:$0xff]
        %v3028 = vld [vmem:[%s3021 + $0x30] sm:$0xff]
        %v3029 = vld [vmem:[%s3021 + $0x38] sm:$0xff]
        %v3030 = vunpack.c.l.bf16 %v3022
        %v3031 = vunpack.c.h.bf16 %v3022
        %v3032 = vunpack.c.l.bf16 %v3023
        %v3033 = vunpack.c.h.bf16 %v3023
        %v3034 = vunpack.c.l.bf16 %v3024
        %v3035 = vunpack.c.h.bf16 %v3024
        %v3036 = vunpack.c.l.bf16 %v3025
        %v3037 = vunpack.c.h.bf16 %v3025
        %v3038 = vunpack.c.l.bf16 %v3026
        %v3039 = vunpack.c.h.bf16 %v3026
        %v3040 = vunpack.c.l.bf16 %v3027
        %v3041 = vunpack.c.h.bf16 %v3027
        %v3042 = vunpack.c.l.bf16 %v3028
        %v3043 = vunpack.c.h.bf16 %v3028
        %v3044 = vunpack.c.l.bf16 %v3029
        %v3045 = vunpack.c.h.bf16 %v3029
        %v3046 = vpack.c.bf16 %v3010, %v3009
        %v3047 = vpack.c.bf16 %v3014, %v3013
        %3048 = vmatprep.subr.bf16.mxu0 %v1036
        %3049 = vmatpush1.bf16.msra.mxu0 %v1035
        %3050 = vmatprep.subr.bf16.mxu0 %v1044
        %3051 = vmatpush1.bf16.msra.mxu0 %v1043
        %3052 = vmatprep.subr.bf16.mxu0 %v1052
        %3053 = vmatpush1.bf16.msra.mxu0 %v1051
        %3054 = vmatprep.subr.bf16.mxu0 %v1060
        %3055 = vmatpush1.bf16.msra.mxu0 %v1059
        %3056 = vmatprep.subr.bf16.mxu0 %v1068
        %3057 = vmatpush1.bf16.msra.mxu0 %v1067
        %3058 = vmatprep.subr.bf16.mxu0 %v1076
        %3059 = vmatpush1.bf16.msra.mxu0 %v1075
        %3060 = vmatprep.subr.bf16.mxu0 %v1084
        %3061 = vmatpush1.bf16.msra.mxu0 %v1083
        %3062 = vmatprep.subr.bf16.mxu0 %v1092
        %3063 = vmatpush1.bf16.msra.mxu0 %v1091
        %3064 = vmatprep.subr.bf16.mxu0 %v1100
        %3065 = vmatpush1.bf16.msra.mxu0 %v1099
        %3066 = vmatprep.subr.bf16.mxu0 %v1108
        %3067 = vmatpush1.bf16.msra.mxu0 %v1107
        %3068 = vmatprep.subr.bf16.mxu0 %v1116
        %3069 = vmatpush1.bf16.msra.mxu0 %v1115
        %3070 = vmatprep.subr.bf16.mxu0 %v1124
        %3071 = vmatpush1.bf16.msra.mxu0 %v1123
        %3072 = vmatprep.subr.bf16.mxu0 %v1132
        %3073 = vmatpush1.bf16.msra.mxu0 %v1131
        %3074 = vmatprep.subr.bf16.mxu0 %v1140
        %3075 = vmatpush1.bf16.msra.mxu0 %v1139
        %3076 = vmatprep.subr.bf16.mxu0 %v1148
        %3077 = vmatpush1.bf16.msra.mxu0 %v1147
        %3078 = vmatprep.subr.bf16.mxu0 %v1156
        %3079 = vmatpush1.bf16.msra.mxu0 %v1155
        %3080 = vmatprep.mubr.bf16.mxu0 %v3047
        %3081 = vmatmul.mubr.bf16.gmra.mrb[0].mxu0 %v3046
        %v3082 = vpop.f32.mrb[0].mxu0
        %v3083 = vadd.f32 0.0, %v3082
        %v3084 = vpop.f32.mrb[0].mxu0
        %v3085 = vadd.f32 0.0, %v3084
        %v3086 = vpop.f32.mrb[0].mxu0
        %v3087 = vadd.f32 0.0, %v3086
        %v3088 = vpop.f32.mrb[0].mxu0
        %v3089 = vadd.f32 0.0, %v3088
        %3090 = vdwg.mxu0
        %3091 = vmatprep.subr.bf16.mxu0 %v1038
        %3092 = vmatpush1.bf16.msra.mxu0 %v1037
        %3093 = vmatprep.subr.bf16.mxu0 %v1046
        %3094 = vmatpush1.bf16.msra.mxu0 %v1045
        %3095 = vmatprep.subr.bf16.mxu0 %v1054
        %3096 = vmatpush1.bf16.msra.mxu0 %v1053
        %3097 = vmatprep.subr.bf16.mxu0 %v1062
        %3098 = vmatpush1.bf16.msra.mxu0 %v1061
        %3099 = vmatprep.subr.bf16.mxu0 %v1070
        %3100 = vmatpush1.bf16.msra.mxu0 %v1069
        %3101 = vmatprep.subr.bf16.mxu0 %v1078
        %3102 = vmatpush1.bf16.msra.mxu0 %v1077
        %3103 = vmatprep.subr.bf16.mxu0 %v1086
        %3104 = vmatpush1.bf16.msra.mxu0 %v1085
        %3105 = vmatprep.subr.bf16.mxu0 %v1094
        %3106 = vmatpush1.bf16.msra.mxu0 %v1093
        %3107 = vmatprep.subr.bf16.mxu0 %v1102
        %3108 = vmatpush1.bf16.msra.mxu0 %v1101
        %3109 = vmatprep.subr.bf16.mxu0 %v1110
        %3110 = vmatpush1.bf16.msra.mxu0 %v1109
        %3111 = vmatprep.subr.bf16.mxu0 %v1118
        %3112 = vmatpush1.bf16.msra.mxu0 %v1117
        %3113 = vmatprep.subr.bf16.mxu0 %v1126
        %3114 = vmatpush1.bf16.msra.mxu0 %v1125
        %3115 = vmatprep.subr.bf16.mxu0 %v1134
        %3116 = vmatpush1.bf16.msra.mxu0 %v1133
        %3117 = vmatprep.subr.bf16.mxu0 %v1142
        %3118 = vmatpush1.bf16.msra.mxu0 %v1141
        %3119 = vmatprep.subr.bf16.mxu0 %v1150
        %3120 = vmatpush1.bf16.msra.mxu0 %v1149
        %3121 = vmatprep.subr.bf16.mxu0 %v1158
        %3122 = vmatpush1.bf16.msra.mxu0 %v1157
        %3123 = vmatprep.mubr.bf16.mxu0 %v3047
        %3124 = vmatmul.mubr.bf16.gmra.mrb[0].mxu0 %v3046
        %v3125 = vpop.f32.mrb[0].mxu0
        %v3126 = vadd.f32 0.0, %v3125
        %v3127 = vpop.f32.mrb[0].mxu0
        %v3128 = vadd.f32 0.0, %v3127
        %v3129 = vpop.f32.mrb[0].mxu0
        %v3130 = vadd.f32 0.0, %v3129
        %v3131 = vpop.f32.mrb[0].mxu0
        %v3132 = vadd.f32 0.0, %v3131
        %3133 = vdwg.mxu0
        %3134 = vmatprep.subr.bf16.mxu0 %v1040
        %3135 = vmatpush1.bf16.msra.mxu0 %v1039
        %3136 = vmatprep.subr.bf16.mxu0 %v1048
        %3137 = vmatpush1.bf16.msra.mxu0 %v1047
        %3138 = vmatprep.subr.bf16.mxu0 %v1056
        %3139 = vmatpush1.bf16.msra.mxu0 %v1055
        %3140 = vmatprep.subr.bf16.mxu0 %v1064
        %3141 = vmatpush1.bf16.msra.mxu0 %v1063
        %3142 = vmatprep.subr.bf16.mxu0 %v1072
        %3143 = vmatpush1.bf16.msra.mxu0 %v1071
        %3144 = vmatprep.subr.bf16.mxu0 %v1080
        %3145 = vmatpush1.bf16.msra.mxu0 %v1079
        %3146 = vmatprep.subr.bf16.mxu0 %v1088
        %3147 = vmatpush1.bf16.msra.mxu0 %v1087
        %3148 = vmatprep.subr.bf16.mxu0 %v1096
        %3149 = vmatpush1.bf16.msra.mxu0 %v1095
        %3150 = vmatprep.subr.bf16.mxu0 %v1104
        %3151 = vmatpush1.bf16.msra.mxu0 %v1103
        %3152 = vmatprep.subr.bf16.mxu0 %v1112
        %3153 = vmatpush1.bf16.msra.mxu0 %v1111
        %3154 = vmatprep.subr.bf16.mxu0 %v1120
        %3155 = vmatpush1.bf16.msra.mxu0 %v1119
        %3156 = vmatprep.subr.bf16.mxu0 %v1128
        %3157 = vmatpush1.bf16.msra.mxu0 %v1127
        %3158 = vmatprep.subr.bf16.mxu0 %v1136
        %3159 = vmatpush1.bf16.msra.mxu0 %v1135
        %3160 = vmatprep.subr.bf16.mxu0 %v1144
        %3161 = vmatpush1.bf16.msra.mxu0 %v1143
        %3162 = vmatprep.subr.bf16.mxu0 %v1152
        %3163 = vmatpush1.bf16.msra.mxu0 %v1151
        %3164 = vmatprep.subr.bf16.mxu0 %v1160
        %3165 = vmatpush1.bf16.msra.mxu0 %v1159
        %3166 = vmatprep.mubr.bf16.mxu0 %v3047
        %3167 = vmatmul.mubr.bf16.gmra.mrb[0].mxu0 %v3046
        %v3168 = vpop.f32.mrb[0].mxu0
        %v3169 = vadd.f32 0.0, %v3168
        %v3170 = vpop.f32.mrb[0].mxu0
        %v3171 = vadd.f32 0.0, %v3170
        %v3172 = vpop.f32.mrb[0].mxu0
        %v3173 = vadd.f32 0.0, %v3172
        %v3174 = vpop.f32.mrb[0].mxu0
        %v3175 = vadd.f32 0.0, %v3174
        %3176 = vdwg.mxu0
        %3177 = vmatprep.subr.bf16.mxu0 %v1042
        %3178 = vmatpush1.bf16.msra.mxu0 %v1041
        %3179 = vmatprep.subr.bf16.mxu0 %v1050
        %3180 = vmatpush1.bf16.msra.mxu0 %v1049
        %3181 = vmatprep.subr.bf16.mxu0 %v1058
        %3182 = vmatpush1.bf16.msra.mxu0 %v1057
        %3183 = vmatprep.subr.bf16.mxu0 %v1066
        %3184 = vmatpush1.bf16.msra.mxu0 %v1065
        %3185 = vmatprep.subr.bf16.mxu0 %v1074
        %3186 = vmatpush1.bf16.msra.mxu0 %v1073
        %3187 = vmatprep.subr.bf16.mxu0 %v1082
        %3188 = vmatpush1.bf16.msra.mxu0 %v1081
        %3189 = vmatprep.subr.bf16.mxu0 %v1090
        %3190 = vmatpush1.bf16.msra.mxu0 %v1089
        %3191 = vmatprep.subr.bf16.mxu0 %v1098
        %3192 = vmatpush1.bf16.msra.mxu0 %v1097
        %3193 = vmatprep.subr.bf16.mxu0 %v1106
        %3194 = vmatpush1.bf16.msra.mxu0 %v1105
        %3195 = vmatprep.subr.bf16.mxu0 %v1114
        %3196 = vmatpush1.bf16.msra.mxu0 %v1113
        %3197 = vmatprep.subr.bf16.mxu0 %v1122
        %3198 = vmatpush1.bf16.msra.mxu0 %v1121
        %3199 = vmatprep.subr.bf16.mxu0 %v1130
        %3200 = vmatpush1.bf16.msra.mxu0 %v1129
        %3201 = vmatprep.subr.bf16.mxu0 %v1138
        %3202 = vmatpush1.bf16.msra.mxu0 %v1137
        %3203 = vmatprep.subr.bf16.mxu0 %v1146
        %3204 = vmatpush1.bf16.msra.mxu0 %v1145
        %3205 = vmatprep.subr.bf16.mxu0 %v1154
        %3206 = vmatpush1.bf16.msra.mxu0 %v1153
        %3207 = vmatprep.subr.bf16.mxu0 %v1162
        %3208 = vmatpush1.bf16.msra.mxu0 %v1161
        %3209 = vmatprep.mubr.bf16.mxu0 %v3047
        %3210 = vmatmul.mubr.bf16.gmra.mrb[0].mxu0 %v3046
        %v3211 = vpop.f32.mrb[0].mxu0
        %v3212 = vadd.f32 0.0, %v3211
        %v3213 = vpop.f32.mrb[0].mxu0
        %v3214 = vadd.f32 0.0, %v3213
        %v3215 = vpop.f32.mrb[0].mxu0
        %v3216 = vadd.f32 0.0, %v3215
        %v3217 = vpop.f32.mrb[0].mxu0
        %v3218 = vadd.f32 0.0, %v3217
        %3219 = vdwg.mxu0
        %v3220 = vadd.f32 %v3030, %v3083
        %v3221 = vadd.f32 %v3031, %v3085
        %v3222 = vadd.f32 %v3032, %v3126
        %v3223 = vadd.f32 %v3033, %v3128
        %v3224 = vadd.f32 %v3034, %v3169
        %v3225 = vadd.f32 %v3035, %v3171
        %v3226 = vadd.f32 %v3036, %v3212
        %v3227 = vadd.f32 %v3037, %v3214
        %v3228 = vadd.f32 %v3038, %v3087
        %v3229 = vadd.f32 %v3039, %v3089
        %v3230 = vadd.f32 %v3040, %v3130
        %v3231 = vadd.f32 %v3041, %v3132
        %v3232 = vadd.f32 %v3042, %v3173
        %v3233 = vadd.f32 %v3043, %v3175
        %v3234 = vadd.f32 %v3044, %v3216
        %v3235 = vadd.f32 %v3045, %v3218
        %v3236 = vmul.f32 %v3220, 0.5
        %v3237 = vmul.f32 %v3228, 0.5
        %v3238 = vtanh.pop %v3236
        %v3239 = vtanh.pop %v3237
        %v3240 = vmul.f32 %v3238, 0.5
        %v3241 = vmul.f32 %v3239, 0.5
        %v3242 = vadd.f32 %v3240, 0.5
        %v3243 = vadd.f32 %v3241, 0.5
        %v3244 = vmul.f32 %v3221, 0.5
        %v3245 = vmul.f32 %v3229, 0.5
        %v3246 = vtanh.pop %v3244
        %v3247 = vtanh.pop %v3245
        %v3248 = vmul.f32 %v3246, 0.5
        %v3249 = vmul.f32 %v3247, 0.5
        %v3250 = vadd.f32 %v3248, 0.5
        %v3251 = vadd.f32 %v3249, 0.5
        %v3252 = vtanh.pop %v3222
        %v3253 = vtanh.pop %v3230
        %v3254 = vmul.f32 %v3223, 0.5
        %v3255 = vmul.f32 %v3231, 0.5
        %v3256 = vtanh.pop %v3254
        %v3257 = vtanh.pop %v3255
        %v3258 = vmul.f32 %v3256, 0.5
        %v3259 = vmul.f32 %v3257, 0.5
        %v3260 = vadd.f32 %v3258, 0.5
        %v3261 = vadd.f32 %v3259, 0.5
        %v3262 = vmul.f32 %v3224, 0.5
        %v3263 = vmul.f32 %v3232, 0.5
        %v3264 = vtanh.pop %v3262
        %v3265 = vtanh.pop %v3263
        %v3266 = vmul.f32 %v3264, 0.5
        %v3267 = vmul.f32 %v3265, 0.5
        %v3268 = vadd.f32 %v3266, 0.5
        %v3269 = vadd.f32 %v3267, 0.5
        %v3270 = vmul.f32 %v3225, 0.5
        %v3271 = vmul.f32 %v3233, 0.5
        %v3272 = vtanh.pop %v3270
        %v3273 = vtanh.pop %v3271
        %v3274 = vmul.f32 %v3272, 0.5
        %v3275 = vmul.f32 %v3273, 0.5
        %v3276 = vadd.f32 %v3274, 0.5
        %v3277 = vadd.f32 %v3275, 0.5
        %v3278 = vtanh.pop %v3226
        %v3279 = vtanh.pop %v3234
        %v3280 = vmul.f32 %v3227, 0.5
        %v3281 = vmul.f32 %v3235, 0.5
        %v3282 = vtanh.pop %v3280
        %v3283 = vtanh.pop %v3281
        %v3284 = vmul.f32 %v3282, 0.5
        %v3285 = vmul.f32 %v3283, 0.5
        %v3286 = vadd.f32 %v3284, 0.5
        %v3287 = vadd.f32 %v3285, 0.5
        %v3288 = vmul.f32 %v3250, %v2999
        %v3289 = vmul.f32 %v3251, %v3000
        %v3290 = vmul.f32 %v3242, %v3252
        %v3291 = vmul.f32 %v3243, %v3253
        %v3292 = vadd.f32 %v3288, %v3290
        %v3293 = vadd.f32 %v3289, %v3291
        %v3294 = vmul.f32 %v3276, %v3005
        %v3295 = vmul.f32 %v3277, %v3006
        %v3296 = vmul.f32 %v3268, %v3278
        %v3297 = vmul.f32 %v3269, %v3279
        %v3298 = vadd.f32 %v3294, %v3296
        %v3299 = vadd.f32 %v3295, %v3297
        %v3300 = vtanh.pop %v3292
        %v3301 = vtanh.pop %v3293
        %v3302 = vmul.f32 %v3260, %v3300
        %v3303 = vmul.f32 %v3261, %v3301
        %v3304 = vtanh.pop %v3298
        %v3305 = vtanh.pop %v3299
        %v3306 = vmul.f32 %v3286, %v3304
        %v3307 = vmul.f32 %v3287, %v3305
        %s3308 = scalar_lea.vmem %s463, 96 [#allocation7]
        %3309 = vst [vmem:[%s3308] sm:$0xff] %v3302
        %3310 = vst [vmem:[%s3308 + $0x8] sm:$0xff] %v3303
        %s3311 = scalar_lea.vmem %s469, 144 [#allocation8]
        %3312 = vst [vmem:[%s3311] sm:$0xff] %v3306
        %3313 = vst [vmem:[%s3311 + $0x8] sm:$0xff] %v3307
        %s3314 = scalar_lea.vmem %s446, 448 [#allocation6]
        %v3315 = vld [vmem:[%s3314] sm:$0xff]
        %v3316 = vld [vmem:[%s3314 + $0x8] sm:$0xff]
        %v3317 = vld [vmem:[%s3314 + $0x10] sm:$0xff]
        %v3318 = vld [vmem:[%s3314 + $0x18] sm:$0xff]
        %v3319 = vld [vmem:[%s3314 + $0x20] sm:$0xff]
        %v3320 = vld [vmem:[%s3314 + $0x28] sm:$0xff]
        %v3321 = vld [vmem:[%s3314 + $0x30] sm:$0xff]
        %v3322 = vld [vmem:[%s3314 + $0x38] sm:$0xff]
        %v3323 = vunpack.c.l.bf16 %v3315
        %v3324 = vunpack.c.h.bf16 %v3315
        %v3325 = vunpack.c.l.bf16 %v3316
        %v3326 = vunpack.c.h.bf16 %v3316
        %v3327 = vunpack.c.l.bf16 %v3317
        %v3328 = vunpack.c.h.bf16 %v3317
        %v3329 = vunpack.c.l.bf16 %v3318
        %v3330 = vunpack.c.h.bf16 %v3318
        %v3331 = vunpack.c.l.bf16 %v3319
        %v3332 = vunpack.c.h.bf16 %v3319
        %v3333 = vunpack.c.l.bf16 %v3320
        %v3334 = vunpack.c.h.bf16 %v3320
        %v3335 = vunpack.c.l.bf16 %v3321
        %v3336 = vunpack.c.h.bf16 %v3321
        %v3337 = vunpack.c.l.bf16 %v3322
        %v3338 = vunpack.c.h.bf16 %v3322
        %v3339 = vpack.c.bf16 %v3303, %v3302
        %v3340 = vpack.c.bf16 %v3307, %v3306
        %3341 = vmatprep.subr.bf16.mxu0 %v1036
        %3342 = vmatpush1.bf16.msra.mxu0 %v1035
        %3343 = vmatprep.subr.bf16.mxu0 %v1044
        %3344 = vmatpush1.bf16.msra.mxu0 %v1043
        %3345 = vmatprep.subr.bf16.mxu0 %v1052
        %3346 = vmatpush1.bf16.msra.mxu0 %v1051
        %3347 = vmatprep.subr.bf16.mxu0 %v1060
        %3348 = vmatpush1.bf16.msra.mxu0 %v1059
        %3349 = vmatprep.subr.bf16.mxu0 %v1068
        %3350 = vmatpush1.bf16.msra.mxu0 %v1067
        %3351 = vmatprep.subr.bf16.mxu0 %v1076
        %3352 = vmatpush1.bf16.msra.mxu0 %v1075
        %3353 = vmatprep.subr.bf16.mxu0 %v1084
        %3354 = vmatpush1.bf16.msra.mxu0 %v1083
        %3355 = vmatprep.subr.bf16.mxu0 %v1092
        %3356 = vmatpush1.bf16.msra.mxu0 %v1091
        %3357 = vmatprep.subr.bf16.mxu0 %v1100
        %3358 = vmatpush1.bf16.msra.mxu0 %v1099
        %3359 = vmatprep.subr.bf16.mxu0 %v1108
        %3360 = vmatpush1.bf16.msra.mxu0 %v1107
        %3361 = vmatprep.subr.bf16.mxu0 %v1116
        %3362 = vmatpush1.bf16.msra.mxu0 %v1115
        %3363 = vmatprep.subr.bf16.mxu0 %v1124
        %3364 = vmatpush1.bf16.msra.mxu0 %v1123
        %3365 = vmatprep.subr.bf16.mxu0 %v1132
        %3366 = vmatpush1.bf16.msra.mxu0 %v1131
        %3367 = vmatprep.subr.bf16.mxu0 %v1140
        %3368 = vmatpush1.bf16.msra.mxu0 %v1139
        %3369 = vmatprep.subr.bf16.mxu0 %v1148
        %3370 = vmatpush1.bf16.msra.mxu0 %v1147
        %3371 = vmatprep.subr.bf16.mxu0 %v1156
        %3372 = vmatpush1.bf16.msra.mxu0 %v1155
        %3373 = vmatprep.mubr.bf16.mxu0 %v3340
        %3374 = vmatmul.mubr.bf16.gmra.mrb[0].mxu0 %v3339
        %v3375 = vpop.f32.mrb[0].mxu0
        %v3376 = vadd.f32 0.0, %v3375
        %v3377 = vpop.f32.mrb[0].mxu0
        %v3378 = vadd.f32 0.0, %v3377
        %v3379 = vpop.f32.mrb[0].mxu0
        %v3380 = vadd.f32 0.0, %v3379
        %v3381 = vpop.f32.mrb[0].mxu0
        %v3382 = vadd.f32 0.0, %v3381
        %3383 = vdwg.mxu0
        %3384 = vmatprep.subr.bf16.mxu0 %v1038
        %3385 = vmatpush1.bf16.msra.mxu0 %v1037
        %3386 = vmatprep.subr.bf16.mxu0 %v1046
        %3387 = vmatpush1.bf16.msra.mxu0 %v1045
        %3388 = vmatprep.subr.bf16.mxu0 %v1054
        %3389 = vmatpush1.bf16.msra.mxu0 %v1053
        %3390 = vmatprep.subr.bf16.mxu0 %v1062
        %3391 = vmatpush1.bf16.msra.mxu0 %v1061
        %3392 = vmatprep.subr.bf16.mxu0 %v1070
        %3393 = vmatpush1.bf16.msra.mxu0 %v1069
        %3394 = vmatprep.subr.bf16.mxu0 %v1078
        %3395 = vmatpush1.bf16.msra.mxu0 %v1077
        %3396 = vmatprep.subr.bf16.mxu0 %v1086
        %3397 = vmatpush1.bf16.msra.mxu0 %v1085
        %3398 = vmatprep.subr.bf16.mxu0 %v1094
        %3399 = vmatpush1.bf16.msra.mxu0 %v1093
        %3400 = vmatprep.subr.bf16.mxu0 %v1102
        %3401 = vmatpush1.bf16.msra.mxu0 %v1101
        %3402 = vmatprep.subr.bf16.mxu0 %v1110
        %3403 = vmatpush1.bf16.msra.mxu0 %v1109
        %3404 = vmatprep.subr.bf16.mxu0 %v1118
        %3405 = vmatpush1.bf16.msra.mxu0 %v1117
        %3406 = vmatprep.subr.bf16.mxu0 %v1126
        %3407 = vmatpush1.bf16.msra.mxu0 %v1125
        %3408 = vmatprep.subr.bf16.mxu0 %v1134
        %3409 = vmatpush1.bf16.msra.mxu0 %v1133
        %3410 = vmatprep.subr.bf16.mxu0 %v1142
        %3411 = vmatpush1.bf16.msra.mxu0 %v1141
        %3412 = vmatprep.subr.bf16.mxu0 %v1150
        %3413 = vmatpush1.bf16.msra.mxu0 %v1149
        %3414 = vmatprep.subr.bf16.mxu0 %v1158
        %3415 = vmatpush1.bf16.msra.mxu0 %v1157
        %3416 = vmatprep.mubr.bf16.mxu0 %v3340
        %3417 = vmatmul.mubr.bf16.gmra.mrb[0].mxu0 %v3339
        %v3418 = vpop.f32.mrb[0].mxu0
        %v3419 = vadd.f32 0.0, %v3418
        %v3420 = vpop.f32.mrb[0].mxu0
        %v3421 = vadd.f32 0.0, %v3420
        %v3422 = vpop.f32.mrb[0].mxu0
        %v3423 = vadd.f32 0.0, %v3422
        %v3424 = vpop.f32.mrb[0].mxu0
        %v3425 = vadd.f32 0.0, %v3424
        %3426 = vdwg.mxu0
        %3427 = vmatprep.subr.bf16.mxu0 %v1040
        %3428 = vmatpush1.bf16.msra.mxu0 %v1039
        %3429 = vmatprep.subr.bf16.mxu0 %v1048
        %3430 = vmatpush1.bf16.msra.mxu0 %v1047
        %3431 = vmatprep.subr.bf16.mxu0 %v1056
        %3432 = vmatpush1.bf16.msra.mxu0 %v1055
        %3433 = vmatprep.subr.bf16.mxu0 %v1064
        %3434 = vmatpush1.bf16.msra.mxu0 %v1063
        %3435 = vmatprep.subr.bf16.mxu0 %v1072
        %3436 = vmatpush1.bf16.msra.mxu0 %v1071
        %3437 = vmatprep.subr.bf16.mxu0 %v1080
        %3438 = vmatpush1.bf16.msra.mxu0 %v1079
        %3439 = vmatprep.subr.bf16.mxu0 %v1088
        %3440 = vmatpush1.bf16.msra.mxu0 %v1087
        %3441 = vmatprep.subr.bf16.mxu0 %v1096
        %3442 = vmatpush1.bf16.msra.mxu0 %v1095
        %3443 = vmatprep.subr.bf16.mxu0 %v1104
        %3444 = vmatpush1.bf16.msra.mxu0 %v1103
        %3445 = vmatprep.subr.bf16.mxu0 %v1112
        %3446 = vmatpush1.bf16.msra.mxu0 %v1111
        %3447 = vmatprep.subr.bf16.mxu0 %v1120
        %3448 = vmatpush1.bf16.msra.mxu0 %v1119
        %3449 = vmatprep.subr.bf16.mxu0 %v1128
        %3450 = vmatpush1.bf16.msra.mxu0 %v1127
        %3451 = vmatprep.subr.bf16.mxu0 %v1136
        %3452 = vmatpush1.bf16.msra.mxu0 %v1135
        %3453 = vmatprep.subr.bf16.mxu0 %v1144
        %3454 = vmatpush1.bf16.msra.mxu0 %v1143
        %3455 = vmatprep.subr.bf16.mxu0 %v1152
        %3456 = vmatpush1.bf16.msra.mxu0 %v1151
        %3457 = vmatprep.subr.bf16.mxu0 %v1160
        %3458 = vmatpush1.bf16.msra.mxu0 %v1159
        %3459 = vmatprep.mubr.bf16.mxu0 %v3340
        %3460 = vmatmul.mubr.bf16.gmra.mrb[0].mxu0 %v3339
        %v3461 = vpop.f32.mrb[0].mxu0
        %v3462 = vadd.f32 0.0, %v3461
        %v3463 = vpop.f32.mrb[0].mxu0
        %v3464 = vadd.f32 0.0, %v3463
        %v3465 = vpop.f32.mrb[0].mxu0
        %v3466 = vadd.f32 0.0, %v3465
        %v3467 = vpop.f32.mrb[0].mxu0
        %v3468 = vadd.f32 0.0, %v3467
        %3469 = vdwg.mxu0
        %3470 = vmatprep.subr.bf16.mxu0 %v1042
        %3471 = vmatpush1.bf16.msra.mxu0 %v1041
        %3472 = vmatprep.subr.bf16.mxu0 %v1050
        %3473 = vmatpush1.bf16.msra.mxu0 %v1049
        %3474 = vmatprep.subr.bf16.mxu0 %v1058
        %3475 = vmatpush1.bf16.msra.mxu0 %v1057
        %3476 = vmatprep.subr.bf16.mxu0 %v1066
        %3477 = vmatpush1.bf16.msra.mxu0 %v1065
        %3478 = vmatprep.subr.bf16.mxu0 %v1074
        %3479 = vmatpush1.bf16.msra.mxu0 %v1073
        %3480 = vmatprep.subr.bf16.mxu0 %v1082
        %3481 = vmatpush1.bf16.msra.mxu0 %v1081
        %3482 = vmatprep.subr.bf16.mxu0 %v1090
        %3483 = vmatpush1.bf16.msra.mxu0 %v1089
        %3484 = vmatprep.subr.bf16.mxu0 %v1098
        %3485 = vmatpush1.bf16.msra.mxu0 %v1097
        %3486 = vmatprep.subr.bf16.mxu0 %v1106
        %3487 = vmatpush1.bf16.msra.mxu0 %v1105
        %3488 = vmatprep.subr.bf16.mxu0 %v1114
        %3489 = vmatpush1.bf16.msra.mxu0 %v1113
        %3490 = vmatprep.subr.bf16.mxu0 %v1122
        %3491 = vmatpush1.bf16.msra.mxu0 %v1121
        %3492 = vmatprep.subr.bf16.mxu0 %v1130
        %3493 = vmatpush1.bf16.msra.mxu0 %v1129
        %3494 = vmatprep.subr.bf16.mxu0 %v1138
        %3495 = vmatpush1.bf16.msra.mxu0 %v1137
        %3496 = vmatprep.subr.bf16.mxu0 %v1146
        %3497 = vmatpush1.bf16.msra.mxu0 %v1145
        %3498 = vmatprep.subr.bf16.mxu0 %v1154
        %3499 = vmatpush1.bf16.msra.mxu0 %v1153
        %3500 = vmatprep.subr.bf16.mxu0 %v1162
        %3501 = vmatpush1.bf16.msra.mxu0 %v1161
        %3502 = vmatprep.mubr.bf16.mxu0 %v3340
        %3503 = vmatmul.mubr.bf16.gmra.mrb[0].mxu0 %v3339
        %v3504 = vpop.f32.mrb[0].mxu0
        %v3505 = vadd.f32 0.0, %v3504
        %v3506 = vpop.f32.mrb[0].mxu0
        %v3507 = vadd.f32 0.0, %v3506
        %v3508 = vpop.f32.mrb[0].mxu0
        %v3509 = vadd.f32 0.0, %v3508
        %v3510 = vpop.f32.mrb[0].mxu0
        %v3511 = vadd.f32 0.0, %v3510
        %3512 = vdwg.mxu0
        %v3513 = vadd.f32 %v3323, %v3376
        %v3514 = vadd.f32 %v3324, %v3378
        %v3515 = vadd.f32 %v3325, %v3419
        %v3516 = vadd.f32 %v3326, %v3421
        %v3517 = vadd.f32 %v3327, %v3462
        %v3518 = vadd.f32 %v3328, %v3464
        %v3519 = vadd.f32 %v3329, %v3505
        %v3520 = vadd.f32 %v3330, %v3507
        %v3521 = vadd.f32 %v3331, %v3380
        %v3522 = vadd.f32 %v3332, %v3382
        %v3523 = vadd.f32 %v3333, %v3423
        %v3524 = vadd.f32 %v3334, %v3425
        %v3525 = vadd.f32 %v3335, %v3466
        %v3526 = vadd.f32 %v3336, %v3468
        %v3527 = vadd.f32 %v3337, %v3509
        %v3528 = vadd.f32 %v3338, %v3511
        %v3529 = vmul.f32 %v3513, 0.5
        %v3530 = vmul.f32 %v3521, 0.5
        %v3531 = vtanh.pop %v3529
        %v3532 = vtanh.pop %v3530
        %v3533 = vmul.f32 %v3531, 0.5
        %v3534 = vmul.f32 %v3532, 0.5
        %v3535 = vadd.f32 %v3533, 0.5
        %v3536 = vadd.f32 %v3534, 0.5
        %v3537 = vmul.f32 %v3514, 0.5
        %v3538 = vmul.f32 %v3522, 0.5
        %v3539 = vtanh.pop %v3537
        %v3540 = vtanh.pop %v3538
        %v3541 = vmul.f32 %v3539, 0.5
        %v3542 = vmul.f32 %v3540, 0.5
        %v3543 = vadd.f32 %v3541, 0.5
        %v3544 = vadd.f32 %v3542, 0.5
        %v3545 = vtanh.pop %v3515
        %v3546 = vtanh.pop %v3523
        %v3547 = vmul.f32 %v3516, 0.5
        %v3548 = vmul.f32 %v3524, 0.5
        %v3549 = vtanh.pop %v3547
        %v3550 = vtanh.pop %v3548
        %v3551 = vmul.f32 %v3549, 0.5
        %v3552 = vmul.f32 %v3550, 0.5
        %v3553 = vadd.f32 %v3551, 0.5
        %v3554 = vadd.f32 %v3552, 0.5
        %v3555 = vmul.f32 %v3517, 0.5
        %v3556 = vmul.f32 %v3525, 0.5
        %v3557 = vtanh.pop %v3555
        %v3558 = vtanh.pop %v3556
        %v3559 = vmul.f32 %v3557, 0.5
        %v3560 = vmul.f32 %v3558, 0.5
        %v3561 = vadd.f32 %v3559, 0.5
        %v3562 = vadd.f32 %v3560, 0.5
        %v3563 = vmul.f32 %v3518, 0.5
        %v3564 = vmul.f32 %v3526, 0.5
        %v3565 = vtanh.pop %v3563
        %v3566 = vtanh.pop %v3564
        %v3567 = vmul.f32 %v3565, 0.5
        %v3568 = vmul.f32 %v3566, 0.5
        %v3569 = vadd.f32 %v3567, 0.5
        %v3570 = vadd.f32 %v3568, 0.5
        %v3571 = vtanh.pop %v3519
        %v3572 = vtanh.pop %v3527
        %v3573 = vmul.f32 %v3520, 0.5
        %v3574 = vmul.f32 %v3528, 0.5
        %v3575 = vtanh.pop %v3573
        %v3576 = vtanh.pop %v3574
        %v3577 = vmul.f32 %v3575, 0.5
        %v3578 = vmul.f32 %v3576, 0.5
        %v3579 = vadd.f32 %v3577, 0.5
        %v3580 = vadd.f32 %v3578, 0.5
        %v3581 = vmul.f32 %v3543, %v3292
        %v3582 = vmul.f32 %v3544, %v3293
        %v3583 = vmul.f32 %v3535, %v3545
        %v3584 = vmul.f32 %v3536, %v3546
        %v3585 = vadd.f32 %v3581, %v3583
        %v3586 = vadd.f32 %v3582, %v3584
        %v3587 = vmul.f32 %v3569, %v3298
        %v3588 = vmul.f32 %v3570, %v3299
        %v3589 = vmul.f32 %v3561, %v3571
        %v3590 = vmul.f32 %v3562, %v3572
        %v3591 = vadd.f32 %v3587, %v3589
        %v3592 = vadd.f32 %v3588, %v3590
        %v3593 = vtanh.pop %v3585
        %v3594 = vtanh.pop %v3586
        %v3595 = vmul.f32 %v3553, %v3593
        %v3596 = vmul.f32 %v3554, %v3594
        %v3597 = vtanh.pop %v3591
        %v3598 = vtanh.pop %v3592
        %v3599 = vmul.f32 %v3579, %v3597
        %v3600 = vmul.f32 %v3580, %v3598
        %s3601 = scalar_lea.vmem %s463, 112 [#allocation7]
        %3602 = vst [vmem:[%s3601] sm:$0xff] %v3595
        %3603 = vst [vmem:[%s3601 + $0x8] sm:$0xff] %v3596
        %s3604 = scalar_lea.vmem %s469, 128 [#allocation8]
        %3605 = vst [vmem:[%s3604] sm:$0xff] %v3599
        %3606 = vst [vmem:[%s3604 + $0x8] sm:$0xff] %v3600
        %s3607 = scalar_lea.vmem %s446, 512 [#allocation6]
        %v3608 = vld [vmem:[%s3607] sm:$0xff]
        %v3609 = vld [vmem:[%s3607 + $0x8] sm:$0xff]
        %v3610 = vld [vmem:[%s3607 + $0x10] sm:$0xff]
        %v3611 = vld [vmem:[%s3607 + $0x18] sm:$0xff]
        %v3612 = vld [vmem:[%s3607 + $0x20] sm:$0xff]
        %v3613 = vld [vmem:[%s3607 + $0x28] sm:$0xff]
        %v3614 = vld [vmem:[%s3607 + $0x30] sm:$0xff]
        %v3615 = vld [vmem:[%s3607 + $0x38] sm:$0xff]
        %v3616 = vunpack.c.l.bf16 %v3608
        %v3617 = vunpack.c.h.bf16 %v3608
        %v3618 = vunpack.c.l.bf16 %v3609
        %v3619 = vunpack.c.h.bf16 %v3609
        %v3620 = vunpack.c.l.bf16 %v3610
        %v3621 = vunpack.c.h.bf16 %v3610
        %v3622 = vunpack.c.l.bf16 %v3611
        %v3623 = vunpack.c.h.bf16 %v3611
        %v3624 = vunpack.c.l.bf16 %v3612
        %v3625 = vunpack.c.h.bf16 %v3612
        %v3626 = vunpack.c.l.bf16 %v3613
        %v3627 = vunpack.c.h.bf16 %v3613
        %v3628 = vunpack.c.l.bf16 %v3614
        %v3629 = vunpack.c.h.bf16 %v3614
        %v3630 = vunpack.c.l.bf16 %v3615
        %v3631 = vunpack.c.h.bf16 %v3615
        %v3632 = vpack.c.bf16 %v3596, %v3595
        %v3633 = vpack.c.bf16 %v3600, %v3599
        %3634 = vmatprep.subr.bf16.mxu0 %v1036
        %3635 = vmatpush1.bf16.msra.mxu0 %v1035
        %3636 = vmatprep.subr.bf16.mxu0 %v1044
        %3637 = vmatpush1.bf16.msra.mxu0 %v1043
        %3638 = vmatprep.subr.bf16.mxu0 %v1052
        %3639 = vmatpush1.bf16.msra.mxu0 %v1051
        %3640 = vmatprep.subr.bf16.mxu0 %v1060
        %3641 = vmatpush1.bf16.msra.mxu0 %v1059
        %3642 = vmatprep.subr.bf16.mxu0 %v1068
        %3643 = vmatpush1.bf16.msra.mxu0 %v1067
        %3644 = vmatprep.subr.bf16.mxu0 %v1076
        %3645 = vmatpush1.bf16.msra.mxu0 %v1075
        %3646 = vmatprep.subr.bf16.mxu0 %v1084
        %3647 = vmatpush1.bf16.msra.mxu0 %v1083
        %3648 = vmatprep.subr.bf16.mxu0 %v1092
        %3649 = vmatpush1.bf16.msra.mxu0 %v1091
        %3650 = vmatprep.subr.bf16.mxu0 %v1100
        %3651 = vmatpush1.bf16.msra.mxu0 %v1099
        %3652 = vmatprep.subr.bf16.mxu0 %v1108
        %3653 = vmatpush1.bf16.msra.mxu0 %v1107
        %3654 = vmatprep.subr.bf16.mxu0 %v1116
        %3655 = vmatpush1.bf16.msra.mxu0 %v1115
        %3656 = vmatprep.subr.bf16.mxu0 %v1124
        %3657 = vmatpush1.bf16.msra.mxu0 %v1123
        %3658 = vmatprep.subr.bf16.mxu0 %v1132
        %3659 = vmatpush1.bf16.msra.mxu0 %v1131
        %3660 = vmatprep.subr.bf16.mxu0 %v1140
        %3661 = vmatpush1.bf16.msra.mxu0 %v1139
        %3662 = vmatprep.subr.bf16.mxu0 %v1148
        %3663 = vmatpush1.bf16.msra.mxu0 %v1147
        %3664 = vmatprep.subr.bf16.mxu0 %v1156
        %3665 = vmatpush1.bf16.msra.mxu0 %v1155
        %3666 = vmatprep.mubr.bf16.mxu0 %v3633
        %3667 = vmatmul.mubr.bf16.gmra.mrb[0].mxu0 %v3632
        %v3668 = vpop.f32.mrb[0].mxu0
        %v3669 = vadd.f32 0.0, %v3668
        %v3670 = vpop.f32.mrb[0].mxu0
        %v3671 = vadd.f32 0.0, %v3670
        %v3672 = vpop.f32.mrb[0].mxu0
        %v3673 = vadd.f32 0.0, %v3672
        %v3674 = vpop.f32.mrb[0].mxu0
        %v3675 = vadd.f32 0.0, %v3674
        %3676 = vdwg.mxu0
        %3677 = vmatprep.subr.bf16.mxu0 %v1038
        %3678 = vmatpush1.bf16.msra.mxu0 %v1037
        %3679 = vmatprep.subr.bf16.mxu0 %v1046
        %3680 = vmatpush1.bf16.msra.mxu0 %v1045
        %3681 = vmatprep.subr.bf16.mxu0 %v1054
        %3682 = vmatpush1.bf16.msra.mxu0 %v1053
        %3683 = vmatprep.subr.bf16.mxu0 %v1062
        %3684 = vmatpush1.bf16.msra.mxu0 %v1061
        %3685 = vmatprep.subr.bf16.mxu0 %v1070
        %3686 = vmatpush1.bf16.msra.mxu0 %v1069
        %3687 = vmatprep.subr.bf16.mxu0 %v1078
        %3688 = vmatpush1.bf16.msra.mxu0 %v1077
        %3689 = vmatprep.subr.bf16.mxu0 %v1086
        %3690 = vmatpush1.bf16.msra.mxu0 %v1085
        %3691 = vmatprep.subr.bf16.mxu0 %v1094
        %3692 = vmatpush1.bf16.msra.mxu0 %v1093
        %3693 = vmatprep.subr.bf16.mxu0 %v1102
        %3694 = vmatpush1.bf16.msra.mxu0 %v1101
        %3695 = vmatprep.subr.bf16.mxu0 %v1110
        %3696 = vmatpush1.bf16.msra.mxu0 %v1109
        %3697 = vmatprep.subr.bf16.mxu0 %v1118
        %3698 = vmatpush1.bf16.msra.mxu0 %v1117
        %3699 = vmatprep.subr.bf16.mxu0 %v1126
        %3700 = vmatpush1.bf16.msra.mxu0 %v1125
        %3701 = vmatprep.subr.bf16.mxu0 %v1134
        %3702 = vmatpush1.bf16.msra.mxu0 %v1133
        %3703 = vmatprep.subr.bf16.mxu0 %v1142
        %3704 = vmatpush1.bf16.msra.mxu0 %v1141
        %3705 = vmatprep.subr.bf16.mxu0 %v1150
        %3706 = vmatpush1.bf16.msra.mxu0 %v1149
        %3707 = vmatprep.subr.bf16.mxu0 %v1158
        %3708 = vmatpush1.bf16.msra.mxu0 %v1157
        %3709 = vmatprep.mubr.bf16.mxu0 %v3633
        %3710 = vmatmul.mubr.bf16.gmra.mrb[0].mxu0 %v3632
        %v3711 = vpop.f32.mrb[0].mxu0
        %v3712 = vadd.f32 0.0, %v3711
        %v3713 = vpop.f32.mrb[0].mxu0
        %v3714 = vadd.f32 0.0, %v3713
        %v3715 = vpop.f32.mrb[0].mxu0
        %v3716 = vadd.f32 0.0, %v3715
        %v3717 = vpop.f32.mrb[0].mxu0
        %v3718 = vadd.f32 0.0, %v3717
        %3719 = vdwg.mxu0
        %3720 = vmatprep.subr.bf16.mxu0 %v1040
        %3721 = vmatpush1.bf16.msra.mxu0 %v1039
        %3722 = vmatprep.subr.bf16.mxu0 %v1048
        %3723 = vmatpush1.bf16.msra.mxu0 %v1047
        %3724 = vmatprep.subr.bf16.mxu0 %v1056
        %3725 = vmatpush1.bf16.msra.mxu0 %v1055
        %3726 = vmatprep.subr.bf16.mxu0 %v1064
        %3727 = vmatpush1.bf16.msra.mxu0 %v1063
        %3728 = vmatprep.subr.bf16.mxu0 %v1072
        %3729 = vmatpush1.bf16.msra.mxu0 %v1071
        %3730 = vmatprep.subr.bf16.mxu0 %v1080
        %3731 = vmatpush1.bf16.msra.mxu0 %v1079
        %3732 = vmatprep.subr.bf16.mxu0 %v1088
        %3733 = vmatpush1.bf16.msra.mxu0 %v1087
        %3734 = vmatprep.subr.bf16.mxu0 %v1096
        %3735 = vmatpush1.bf16.msra.mxu0 %v1095
        %3736 = vmatprep.subr.bf16.mxu0 %v1104
        %3737 = vmatpush1.bf16.msra.mxu0 %v1103
        %3738 = vmatprep.subr.bf16.mxu0 %v1112
        %3739 = vmatpush1.bf16.msra.mxu0 %v1111
        %3740 = vmatprep.subr.bf16.mxu0 %v1120
        %3741 = vmatpush1.bf16.msra.mxu0 %v1119
        %3742 = vmatprep.subr.bf16.mxu0 %v1128
        %3743 = vmatpush1.bf16.msra.mxu0 %v1127
        %3744 = vmatprep.subr.bf16.mxu0 %v1136
        %3745 = vmatpush1.bf16.msra.mxu0 %v1135
        %3746 = vmatprep.subr.bf16.mxu0 %v1144
        %3747 = vmatpush1.bf16.msra.mxu0 %v1143
        %3748 = vmatprep.subr.bf16.mxu0 %v1152
        %3749 = vmatpush1.bf16.msra.mxu0 %v1151
        %3750 = vmatprep.subr.bf16.mxu0 %v1160
        %3751 = vmatpush1.bf16.msra.mxu0 %v1159
        %3752 = vmatprep.mubr.bf16.mxu0 %v3633
        %3753 = vmatmul.mubr.bf16.gmra.mrb[0].mxu0 %v3632
        %v3754 = vpop.f32.mrb[0].mxu0
        %v3755 = vadd.f32 0.0, %v3754
        %v3756 = vpop.f32.mrb[0].mxu0
        %v3757 = vadd.f32 0.0, %v3756
        %v3758 = vpop.f32.mrb[0].mxu0
        %v3759 = vadd.f32 0.0, %v3758
        %v3760 = vpop.f32.mrb[0].mxu0
        %v3761 = vadd.f32 0.0, %v3760
        %3762 = vdwg.mxu0
        %3763 = vmatprep.subr.bf16.mxu0 %v1042
        %3764 = vmatpush1.bf16.msra.mxu0 %v1041
        %3765 = vmatprep.subr.bf16.mxu0 %v1050
        %3766 = vmatpush1.bf16.msra.mxu0 %v1049
        %3767 = vmatprep.subr.bf16.mxu0 %v1058
        %3768 = vmatpush1.bf16.msra.mxu0 %v1057
        %3769 = vmatprep.subr.bf16.mxu0 %v1066
        %3770 = vmatpush1.bf16.msra.mxu0 %v1065
        %3771 = vmatprep.subr.bf16.mxu0 %v1074
        %3772 = vmatpush1.bf16.msra.mxu0 %v1073
        %3773 = vmatprep.subr.bf16.mxu0 %v1082
        %3774 = vmatpush1.bf16.msra.mxu0 %v1081
        %3775 = vmatprep.subr.bf16.mxu0 %v1090
        %3776 = vmatpush1.bf16.msra.mxu0 %v1089
        %3777 = vmatprep.subr.bf16.mxu0 %v1098
        %3778 = vmatpush1.bf16.msra.mxu0 %v1097
        %3779 = vmatprep.subr.bf16.mxu0 %v1106
        %3780 = vmatpush1.bf16.msra.mxu0 %v1105
        %3781 = vmatprep.subr.bf16.mxu0 %v1114
        %3782 = vmatpush1.bf16.msra.mxu0 %v1113
        %3783 = vmatprep.subr.bf16.mxu0 %v1122
        %3784 = vmatpush1.bf16.msra.mxu0 %v1121
        %3785 = vmatprep.subr.bf16.mxu0 %v1130
        %3786 = vmatpush1.bf16.msra.mxu0 %v1129
        %3787 = vmatprep.subr.bf16.mxu0 %v1138
        %3788 = vmatpush1.bf16.msra.mxu0 %v1137
        %3789 = vmatprep.subr.bf16.mxu0 %v1146
        %3790 = vmatpush1.bf16.msra.mxu0 %v1145
        %3791 = vmatprep.subr.bf16.mxu0 %v1154
        %3792 = vmatpush1.bf16.msra.mxu0 %v1153
        %3793 = vmatprep.subr.bf16.mxu0 %v1162
        %3794 = vmatpush1.bf16.msra.mxu0 %v1161
        %3795 = vmatprep.mubr.bf16.mxu0 %v3633
        %3796 = vmatmul.mubr.bf16.gmra.mrb[0].mxu0 %v3632
        %v3797 = vpop.f32.mrb[0].mxu0
        %v3798 = vadd.f32 0.0, %v3797
        %v3799 = vpop.f32.mrb[0].mxu0
        %v3800 = vadd.f32 0.0, %v3799
        %v3801 = vpop.f32.mrb[0].mxu0
        %v3802 = vadd.f32 0.0, %v3801
        %v3803 = vpop.f32.mrb[0].mxu0
        %v3804 = vadd.f32 0.0, %v3803
        %3805 = vdwg.mxu0
        %v3806 = vadd.f32 %v3616, %v3669
        %v3807 = vadd.f32 %v3617, %v3671
        %v3808 = vadd.f32 %v3618, %v3712
        %v3809 = vadd.f32 %v3619, %v3714
        %v3810 = vadd.f32 %v3620, %v3755
        %v3811 = vadd.f32 %v3621, %v3757
        %v3812 = vadd.f32 %v3622, %v3798
        %v3813 = vadd.f32 %v3623, %v3800
        %v3814 = vadd.f32 %v3624, %v3673
        %v3815 = vadd.f32 %v3625, %v3675
        %v3816 = vadd.f32 %v3626, %v3716
        %v3817 = vadd.f32 %v3627, %v3718
        %v3818 = vadd.f32 %v3628, %v3759
        %v3819 = vadd.f32 %v3629, %v3761
        %v3820 = vadd.f32 %v3630, %v3802
        %v3821 = vadd.f32 %v3631, %v3804
        %v3822 = vmul.f32 %v3806, 0.5
        %v3823 = vmul.f32 %v3814, 0.5
        %v3824 = vtanh.pop %v3822
        %v3825 = vtanh.pop %v3823
        %v3826 = vmul.f32 %v3824, 0.5
        %v3827 = vmul.f32 %v3825, 0.5
        %v3828 = vadd.f32 %v3826, 0.5
        %v3829 = vadd.f32 %v3827, 0.5
        %v3830 = vmul.f32 %v3807, 0.5
        %v3831 = vmul.f32 %v3815, 0.5
        %v3832 = vtanh.pop %v3830
        %v3833 = vtanh.pop %v3831
        %v3834 = vmul.f32 %v3832, 0.5
        %v3835 = vmul.f32 %v3833, 0.5
        %v3836 = vadd.f32 %v3834, 0.5
        %v3837 = vadd.f32 %v3835, 0.5
        %v3838 = vtanh.pop %v3808
        %v3839 = vtanh.pop %v3816
        %v3840 = vmul.f32 %v3809, 0.5
        %v3841 = vmul.f32 %v3817, 0.5
        %v3842 = vtanh.pop %v3840
        %v3843 = vtanh.pop %v3841
        %v3844 = vmul.f32 %v3842, 0.5
        %v3845 = vmul.f32 %v3843, 0.5
        %v3846 = vadd.f32 %v3844, 0.5
        %v3847 = vadd.f32 %v3845, 0.5
        %v3848 = vmul.f32 %v3810, 0.5
        %v3849 = vmul.f32 %v3818, 0.5
        %v3850 = vtanh.pop %v3848
        %v3851 = vtanh.pop %v3849
        %v3852 = vmul.f32 %v3850, 0.5
        %v3853 = vmul.f32 %v3851, 0.5
        %v3854 = vadd.f32 %v3852, 0.5
        %v3855 = vadd.f32 %v3853, 0.5
        %v3856 = vmul.f32 %v3811, 0.5
        %v3857 = vmul.f32 %v3819, 0.5
        %v3858 = vtanh.pop %v3856
        %v3859 = vtanh.pop %v3857
        %v3860 = vmul.f32 %v3858, 0.5
        %v3861 = vmul.f32 %v3859, 0.5
        %v3862 = vadd.f32 %v3860, 0.5
        %v3863 = vadd.f32 %v3861, 0.5
        %v3864 = vtanh.pop %v3812
        %v3865 = vtanh.pop %v3820
        %v3866 = vmul.f32 %v3813, 0.5
        %v3867 = vmul.f32 %v3821, 0.5
        %v3868 = vtanh.pop %v3866
        %v3869 = vtanh.pop %v3867
        %v3870 = vmul.f32 %v3868, 0.5
        %v3871 = vmul.f32 %v3869, 0.5
        %v3872 = vadd.f32 %v3870, 0.5
        %v3873 = vadd.f32 %v3871, 0.5
        %v3874 = vmul.f32 %v3836, %v3585
        %v3875 = vmul.f32 %v3837, %v3586
        %v3876 = vmul.f32 %v3828, %v3838
        %v3877 = vmul.f32 %v3829, %v3839
        %v3878 = vadd.f32 %v3874, %v3876
        %v3879 = vadd.f32 %v3875, %v3877
        %v3880 = vmul.f32 %v3862, %v3591
        %v3881 = vmul.f32 %v3863, %v3592
        %v3882 = vmul.f32 %v3854, %v3864
        %v3883 = vmul.f32 %v3855, %v3865
        %v3884 = vadd.f32 %v3880, %v3882
        %v3885 = vadd.f32 %v3881, %v3883
        %v3886 = vtanh.pop %v3878
        %v3887 = vtanh.pop %v3879
        %v3888 = vmul.f32 %v3846, %v3886
        %v3889 = vmul.f32 %v3847, %v3887
        %v3890 = vtanh.pop %v3884
        %v3891 = vtanh.pop %v3885
        %v3892 = vmul.f32 %v3872, %v3890
        %v3893 = vmul.f32 %v3873, %v3891
        %s3894 = scalar_lea.vmem %s463, 128 [#allocation7]
        %3895 = vst [vmem:[%s3894] sm:$0xff] %v3888
        %3896 = vst [vmem:[%s3894 + $0x8] sm:$0xff] %v3889
        %s3897 = scalar_lea.vmem %s469, 112 [#allocation8]
        %3898 = vst [vmem:[%s3897] sm:$0xff] %v3892
        %3899 = vst [vmem:[%s3897 + $0x8] sm:$0xff] %v3893
        %s3900 = scalar_lea.vmem %s446, 576 [#allocation6]
        %v3901 = vld [vmem:[%s3900] sm:$0xff]
        %v3902 = vld [vmem:[%s3900 + $0x8] sm:$0xff]
        %v3903 = vld [vmem:[%s3900 + $0x10] sm:$0xff]
        %v3904 = vld [vmem:[%s3900 + $0x18] sm:$0xff]
        %v3905 = vld [vmem:[%s3900 + $0x20] sm:$0xff]
        %v3906 = vld [vmem:[%s3900 + $0x28] sm:$0xff]
        %v3907 = vld [vmem:[%s3900 + $0x30] sm:$0xff]
        %v3908 = vld [vmem:[%s3900 + $0x38] sm:$0xff]
        %v3909 = vunpack.c.l.bf16 %v3901
        %v3910 = vunpack.c.h.bf16 %v3901
        %v3911 = vunpack.c.l.bf16 %v3902
        %v3912 = vunpack.c.h.bf16 %v3902
        %v3913 = vunpack.c.l.bf16 %v3903
        %v3914 = vunpack.c.h.bf16 %v3903
        %v3915 = vunpack.c.l.bf16 %v3904
        %v3916 = vunpack.c.h.bf16 %v3904
        %v3917 = vunpack.c.l.bf16 %v3905
        %v3918 = vunpack.c.h.bf16 %v3905
        %v3919 = vunpack.c.l.bf16 %v3906
        %v3920 = vunpack.c.h.bf16 %v3906
        %v3921 = vunpack.c.l.bf16 %v3907
        %v3922 = vunpack.c.h.bf16 %v3907
        %v3923 = vunpack.c.l.bf16 %v3908
        %v3924 = vunpack.c.h.bf16 %v3908
        %v3925 = vpack.c.bf16 %v3889, %v3888
        %v3926 = vpack.c.bf16 %v3893, %v3892
        %3927 = vmatprep.subr.bf16.mxu0 %v1036
        %3928 = vmatpush1.bf16.msra.mxu0 %v1035
        %3929 = vmatprep.subr.bf16.mxu0 %v1044
        %3930 = vmatpush1.bf16.msra.mxu0 %v1043
        %3931 = vmatprep.subr.bf16.mxu0 %v1052
        %3932 = vmatpush1.bf16.msra.mxu0 %v1051
        %3933 = vmatprep.subr.bf16.mxu0 %v1060
        %3934 = vmatpush1.bf16.msra.mxu0 %v1059
        %3935 = vmatprep.subr.bf16.mxu0 %v1068
        %3936 = vmatpush1.bf16.msra.mxu0 %v1067
        %3937 = vmatprep.subr.bf16.mxu0 %v1076
        %3938 = vmatpush1.bf16.msra.mxu0 %v1075
        %3939 = vmatprep.subr.bf16.mxu0 %v1084
        %3940 = vmatpush1.bf16.msra.mxu0 %v1083
        %3941 = vmatprep.subr.bf16.mxu0 %v1092
        %3942 = vmatpush1.bf16.msra.mxu0 %v1091
        %3943 = vmatprep.subr.bf16.mxu0 %v1100
        %3944 = vmatpush1.bf16.msra.mxu0 %v1099
        %3945 = vmatprep.subr.bf16.mxu0 %v1108
        %3946 = vmatpush1.bf16.msra.mxu0 %v1107
        %3947 = vmatprep.subr.bf16.mxu0 %v1116
        %3948 = vmatpush1.bf16.msra.mxu0 %v1115
        %3949 = vmatprep.subr.bf16.mxu0 %v1124
        %3950 = vmatpush1.bf16.msra.mxu0 %v1123
        %3951 = vmatprep.subr.bf16.mxu0 %v1132
        %3952 = vmatpush1.bf16.msra.mxu0 %v1131
        %3953 = vmatprep.subr.bf16.mxu0 %v1140
        %3954 = vmatpush1.bf16.msra.mxu0 %v1139
        %3955 = vmatprep.subr.bf16.mxu0 %v1148
        %3956 = vmatpush1.bf16.msra.mxu0 %v1147
        %3957 = vmatprep.subr.bf16.mxu0 %v1156
        %3958 = vmatpush1.bf16.msra.mxu0 %v1155
        %3959 = vmatprep.mubr.bf16.mxu0 %v3926
        %3960 = vmatmul.mubr.bf16.gmra.mrb[0].mxu0 %v3925
        %v3961 = vpop.f32.mrb[0].mxu0
        %v3962 = vadd.f32 0.0, %v3961
        %v3963 = vpop.f32.mrb[0].mxu0
        %v3964 = vadd.f32 0.0, %v3963
        %v3965 = vpop.f32.mrb[0].mxu0
        %v3966 = vadd.f32 0.0, %v3965
        %v3967 = vpop.f32.mrb[0].mxu0
        %v3968 = vadd.f32 0.0, %v3967
        %3969 = vdwg.mxu0
        %3970 = vmatprep.subr.bf16.mxu0 %v1038
        %3971 = vmatpush1.bf16.msra.mxu0 %v1037
        %3972 = vmatprep.subr.bf16.mxu0 %v1046
        %3973 = vmatpush1.bf16.msra.mxu0 %v1045
        %3974 = vmatprep.subr.bf16.mxu0 %v1054
        %3975 = vmatpush1.bf16.msra.mxu0 %v1053
        %3976 = vmatprep.subr.bf16.mxu0 %v1062
        %3977 = vmatpush1.bf16.msra.mxu0 %v1061
        %3978 = vmatprep.subr.bf16.mxu0 %v1070
        %3979 = vmatpush1.bf16.msra.mxu0 %v1069
        %3980 = vmatprep.subr.bf16.mxu0 %v1078
        %3981 = vmatpush1.bf16.msra.mxu0 %v1077
        %3982 = vmatprep.subr.bf16.mxu0 %v1086
        %3983 = vmatpush1.bf16.msra.mxu0 %v1085
        %3984 = vmatprep.subr.bf16.mxu0 %v1094
        %3985 = vmatpush1.bf16.msra.mxu0 %v1093
        %3986 = vmatprep.subr.bf16.mxu0 %v1102
        %3987 = vmatpush1.bf16.msra.mxu0 %v1101
        %3988 = vmatprep.subr.bf16.mxu0 %v1110
        %3989 = vmatpush1.bf16.msra.mxu0 %v1109
        %3990 = vmatprep.subr.bf16.mxu0 %v1118
        %3991 = vmatpush1.bf16.msra.mxu0 %v1117
        %3992 = vmatprep.subr.bf16.mxu0 %v1126
        %3993 = vmatpush1.bf16.msra.mxu0 %v1125
        %3994 = vmatprep.subr.bf16.mxu0 %v1134
        %3995 = vmatpush1.bf16.msra.mxu0 %v1133
        %3996 = vmatprep.subr.bf16.mxu0 %v1142
        %3997 = vmatpush1.bf16.msra.mxu0 %v1141
        %3998 = vmatprep.subr.bf16.mxu0 %v1150
        %3999 = vmatpush1.bf16.msra.mxu0 %v1149
        %4000 = vmatprep.subr.bf16.mxu0 %v1158
        %4001 = vmatpush1.bf16.msra.mxu0 %v1157
        %4002 = vmatprep.mubr.bf16.mxu0 %v3926
        %4003 = vmatmul.mubr.bf16.gmra.mrb[0].mxu0 %v3925
        %v4004 = vpop.f32.mrb[0].mxu0
        %v4005 = vadd.f32 0.0, %v4004
        %v4006 = vpop.f32.mrb[0].mxu0
        %v4007 = vadd.f32 0.0, %v4006
        %v4008 = vpop.f32.mrb[0].mxu0
        %v4009 = vadd.f32 0.0, %v4008
        %v4010 = vpop.f32.mrb[0].mxu0
        %v4011 = vadd.f32 0.0, %v4010
        %4012 = vdwg.mxu0
        %4013 = vmatprep.subr.bf16.mxu0 %v1040
        %4014 = vmatpush1.bf16.msra.mxu0 %v1039
        %4015 = vmatprep.subr.bf16.mxu0 %v1048
        %4016 = vmatpush1.bf16.msra.mxu0 %v1047
        %4017 = vmatprep.subr.bf16.mxu0 %v1056
        %4018 = vmatpush1.bf16.msra.mxu0 %v1055
        %4019 = vmatprep.subr.bf16.mxu0 %v1064
        %4020 = vmatpush1.bf16.msra.mxu0 %v1063
        %4021 = vmatprep.subr.bf16.mxu0 %v1072
        %4022 = vmatpush1.bf16.msra.mxu0 %v1071
        %4023 = vmatprep.subr.bf16.mxu0 %v1080
        %4024 = vmatpush1.bf16.msra.mxu0 %v1079
        %4025 = vmatprep.subr.bf16.mxu0 %v1088
        %4026 = vmatpush1.bf16.msra.mxu0 %v1087
        %4027 = vmatprep.subr.bf16.mxu0 %v1096
        %4028 = vmatpush1.bf16.msra.mxu0 %v1095
        %4029 = vmatprep.subr.bf16.mxu0 %v1104
        %4030 = vmatpush1.bf16.msra.mxu0 %v1103
        %4031 = vmatprep.subr.bf16.mxu0 %v1112
        %4032 = vmatpush1.bf16.msra.mxu0 %v1111
        %4033 = vmatprep.subr.bf16.mxu0 %v1120
        %4034 = vmatpush1.bf16.msra.mxu0 %v1119
        %4035 = vmatprep.subr.bf16.mxu0 %v1128
        %4036 = vmatpush1.bf16.msra.mxu0 %v1127
        %4037 = vmatprep.subr.bf16.mxu0 %v1136
        %4038 = vmatpush1.bf16.msra.mxu0 %v1135
        %4039 = vmatprep.subr.bf16.mxu0 %v1144
        %4040 = vmatpush1.bf16.msra.mxu0 %v1143
        %4041 = vmatprep.subr.bf16.mxu0 %v1152
        %4042 = vmatpush1.bf16.msra.mxu0 %v1151
        %4043 = vmatprep.subr.bf16.mxu0 %v1160
        %4044 = vmatpush1.bf16.msra.mxu0 %v1159
        %4045 = vmatprep.mubr.bf16.mxu0 %v3926
        %4046 = vmatmul.mubr.bf16.gmra.mrb[0].mxu0 %v3925
        %v4047 = vpop.f32.mrb[0].mxu0
        %v4048 = vadd.f32 0.0, %v4047
        %v4049 = vpop.f32.mrb[0].mxu0
        %v4050 = vadd.f32 0.0, %v4049
        %v4051 = vpop.f32.mrb[0].mxu0
        %v4052 = vadd.f32 0.0, %v4051
        %v4053 = vpop.f32.mrb[0].mxu0
        %v4054 = vadd.f32 0.0, %v4053
        %4055 = vdwg.mxu0
        %4056 = vmatprep.subr.bf16.mxu0 %v1042
        %4057 = vmatpush1.bf16.msra.mxu0 %v1041
        %4058 = vmatprep.subr.bf16.mxu0 %v1050
        %4059 = vmatpush1.bf16.msra.mxu0 %v1049
        %4060 = vmatprep.subr.bf16.mxu0 %v1058
        %4061 = vmatpush1.bf16.msra.mxu0 %v1057
        %4062 = vmatprep.subr.bf16.mxu0 %v1066
        %4063 = vmatpush1.bf16.msra.mxu0 %v1065
        %4064 = vmatprep.subr.bf16.mxu0 %v1074
        %4065 = vmatpush1.bf16.msra.mxu0 %v1073
        %4066 = vmatprep.subr.bf16.mxu0 %v1082
        %4067 = vmatpush1.bf16.msra.mxu0 %v1081
        %4068 = vmatprep.subr.bf16.mxu0 %v1090
        %4069 = vmatpush1.bf16.msra.mxu0 %v1089
        %4070 = vmatprep.subr.bf16.mxu0 %v1098
        %4071 = vmatpush1.bf16.msra.mxu0 %v1097
        %4072 = vmatprep.subr.bf16.mxu0 %v1106
        %4073 = vmatpush1.bf16.msra.mxu0 %v1105
        %4074 = vmatprep.subr.bf16.mxu0 %v1114
        %4075 = vmatpush1.bf16.msra.mxu0 %v1113
        %4076 = vmatprep.subr.bf16.mxu0 %v1122
        %4077 = vmatpush1.bf16.msra.mxu0 %v1121
        %4078 = vmatprep.subr.bf16.mxu0 %v1130
        %4079 = vmatpush1.bf16.msra.mxu0 %v1129
        %4080 = vmatprep.subr.bf16.mxu0 %v1138
        %4081 = vmatpush1.bf16.msra.mxu0 %v1137
        %4082 = vmatprep.subr.bf16.mxu0 %v1146
        %4083 = vmatpush1.bf16.msra.mxu0 %v1145
        %4084 = vmatprep.subr.bf16.mxu0 %v1154
        %4085 = vmatpush1.bf16.msra.mxu0 %v1153
        %4086 = vmatprep.subr.bf16.mxu0 %v1162
        %4087 = vmatpush1.bf16.msra.mxu0 %v1161
        %4088 = vmatprep.mubr.bf16.mxu0 %v3926
        %4089 = vmatmul.mubr.bf16.gmra.mrb[0].mxu0 %v3925
        %v4090 = vpop.f32.mrb[0].mxu0
        %v4091 = vadd.f32 0.0, %v4090
        %v4092 = vpop.f32.mrb[0].mxu0
        %v4093 = vadd.f32 0.0, %v4092
        %v4094 = vpop.f32.mrb[0].mxu0
        %v4095 = vadd.f32 0.0, %v4094
        %v4096 = vpop.f32.mrb[0].mxu0
        %v4097 = vadd.f32 0.0, %v4096
        %4098 = vdwg.mxu0
        %v4099 = vadd.f32 %v3909, %v3962
        %v4100 = vadd.f32 %v3910, %v3964
        %v4101 = vadd.f32 %v3911, %v4005
        %v4102 = vadd.f32 %v3912, %v4007
        %v4103 = vadd.f32 %v3913, %v4048
        %v4104 = vadd.f32 %v3914, %v4050
        %v4105 = vadd.f32 %v3915, %v4091
        %v4106 = vadd.f32 %v3916, %v4093
        %v4107 = vadd.f32 %v3917, %v3966
        %v4108 = vadd.f32 %v3918, %v3968
        %v4109 = vadd.f32 %v3919, %v4009
        %v4110 = vadd.f32 %v3920, %v4011
        %v4111 = vadd.f32 %v3921, %v4052
        %v4112 = vadd.f32 %v3922, %v4054
        %v4113 = vadd.f32 %v3923, %v4095
        %v4114 = vadd.f32 %v3924, %v4097
        %v4115 = vmul.f32 %v4099, 0.5
        %v4116 = vmul.f32 %v4107, 0.5
        %v4117 = vtanh.pop %v4115
        %v4118 = vtanh.pop %v4116
        %v4119 = vmul.f32 %v4117, 0.5
        %v4120 = vmul.f32 %v4118, 0.5
        %v4121 = vadd.f32 %v4119, 0.5
        %v4122 = vadd.f32 %v4120, 0.5
        %v4123 = vmul.f32 %v4100, 0.5
        %v4124 = vmul.f32 %v4108, 0.5
        %v4125 = vtanh.pop %v4123
        %v4126 = vtanh.pop %v4124
        %v4127 = vmul.f32 %v4125, 0.5
        %v4128 = vmul.f32 %v4126, 0.5
        %v4129 = vadd.f32 %v4127, 0.5
        %v4130 = vadd.f32 %v4128, 0.5
        %v4131 = vtanh.pop %v4101
        %v4132 = vtanh.pop %v4109
        %v4133 = vmul.f32 %v4102, 0.5
        %v4134 = vmul.f32 %v4110, 0.5
        %v4135 = vtanh.pop %v4133
        %v4136 = vtanh.pop %v4134
        %v4137 = vmul.f32 %v4135, 0.5
        %v4138 = vmul.f32 %v4136, 0.5
        %v4139 = vadd.f32 %v4137, 0.5
        %v4140 = vadd.f32 %v4138, 0.5
        %v4141 = vmul.f32 %v4103, 0.5
        %v4142 = vmul.f32 %v4111, 0.5
        %v4143 = vtanh.pop %v4141
        %v4144 = vtanh.pop %v4142
        %v4145 = vmul.f32 %v4143, 0.5
        %v4146 = vmul.f32 %v4144, 0.5
        %v4147 = vadd.f32 %v4145, 0.5
        %v4148 = vadd.f32 %v4146, 0.5
        %v4149 = vmul.f32 %v4104, 0.5
        %v4150 = vmul.f32 %v4112, 0.5
        %v4151 = vtanh.pop %v4149
        %v4152 = vtanh.pop %v4150
        %v4153 = vmul.f32 %v4151, 0.5
        %v4154 = vmul.f32 %v4152, 0.5
        %v4155 = vadd.f32 %v4153, 0.5
        %v4156 = vadd.f32 %v4154, 0.5
        %v4157 = vtanh.pop %v4105
        %v4158 = vtanh.pop %v4113
        %v4159 = vmul.f32 %v4106, 0.5
        %v4160 = vmul.f32 %v4114, 0.5
        %v4161 = vtanh.pop %v4159
        %v4162 = vtanh.pop %v4160
        %v4163 = vmul.f32 %v4161, 0.5
        %v4164 = vmul.f32 %v4162, 0.5
        %v4165 = vadd.f32 %v4163, 0.5
        %v4166 = vadd.f32 %v4164, 0.5
        %v4167 = vmul.f32 %v4129, %v3878
        %v4168 = vmul.f32 %v4130, %v3879
        %v4169 = vmul.f32 %v4121, %v4131
        %v4170 = vmul.f32 %v4122, %v4132
        %v4171 = vadd.f32 %v4167, %v4169
        %v4172 = vadd.f32 %v4168, %v4170
        %v4173 = vmul.f32 %v4155, %v3884
        %v4174 = vmul.f32 %v4156, %v3885
        %v4175 = vmul.f32 %v4147, %v4157
        %v4176 = vmul.f32 %v4148, %v4158
        %v4177 = vadd.f32 %v4173, %v4175
        %v4178 = vadd.f32 %v4174, %v4176
        %v4179 = vtanh.pop %v4171
        %v4180 = vtanh.pop %v4172
        %v4181 = vmul.f32 %v4139, %v4179
        %v4182 = vmul.f32 %v4140, %v4180
        %v4183 = vtanh.pop %v4177
        %v4184 = vtanh.pop %v4178
        %v4185 = vmul.f32 %v4165, %v4183
        %v4186 = vmul.f32 %v4166, %v4184
        %s4187 = scalar_lea.vmem %s463, 144 [#allocation7]
        %4188 = vst [vmem:[%s4187] sm:$0xff] %v4181
        %4189 = vst [vmem:[%s4187 + $0x8] sm:$0xff] %v4182
        %s4190 = scalar_lea.vmem %s469, 96 [#allocation8]
        %4191 = vst [vmem:[%s4190] sm:$0xff] %v4185
        %4192 = vst [vmem:[%s4190 + $0x8] sm:$0xff] %v4186
        %s4193 = scalar_lea.vmem %s446, 640 [#allocation6]
        %v4194 = vld [vmem:[%s4193] sm:$0xff]
        %v4195 = vld [vmem:[%s4193 + $0x8] sm:$0xff]
        %v4196 = vld [vmem:[%s4193 + $0x10] sm:$0xff]
        %v4197 = vld [vmem:[%s4193 + $0x18] sm:$0xff]
        %v4198 = vld [vmem:[%s4193 + $0x20] sm:$0xff]
        %v4199 = vld [vmem:[%s4193 + $0x28] sm:$0xff]
        %v4200 = vld [vmem:[%s4193 + $0x30] sm:$0xff]
        %v4201 = vld [vmem:[%s4193 + $0x38] sm:$0xff]
        %v4202 = vunpack.c.l.bf16 %v4194
        %v4203 = vunpack.c.h.bf16 %v4194
        %v4204 = vunpack.c.l.bf16 %v4195
        %v4205 = vunpack.c.h.bf16 %v4195
        %v4206 = vunpack.c.l.bf16 %v4196
        %v4207 = vunpack.c.h.bf16 %v4196
        %v4208 = vunpack.c.l.bf16 %v4197
        %v4209 = vunpack.c.h.bf16 %v4197
        %v4210 = vunpack.c.l.bf16 %v4198
        %v4211 = vunpack.c.h.bf16 %v4198
        %v4212 = vunpack.c.l.bf16 %v4199
        %v4213 = vunpack.c.h.bf16 %v4199
        %v4214 = vunpack.c.l.bf16 %v4200
        %v4215 = vunpack.c.h.bf16 %v4200
        %v4216 = vunpack.c.l.bf16 %v4201
        %v4217 = vunpack.c.h.bf16 %v4201
        %v4218 = vpack.c.bf16 %v4182, %v4181
        %v4219 = vpack.c.bf16 %v4186, %v4185
        %4220 = vmatprep.subr.bf16.mxu0 %v1036
        %4221 = vmatpush1.bf16.msra.mxu0 %v1035
        %4222 = vmatprep.subr.bf16.mxu0 %v1044
        %4223 = vmatpush1.bf16.msra.mxu0 %v1043
        %4224 = vmatprep.subr.bf16.mxu0 %v1052
        %4225 = vmatpush1.bf16.msra.mxu0 %v1051
        %4226 = vmatprep.subr.bf16.mxu0 %v1060
        %4227 = vmatpush1.bf16.msra.mxu0 %v1059
        %4228 = vmatprep.subr.bf16.mxu0 %v1068
        %4229 = vmatpush1.bf16.msra.mxu0 %v1067
        %4230 = vmatprep.subr.bf16.mxu0 %v1076
        %4231 = vmatpush1.bf16.msra.mxu0 %v1075
        %4232 = vmatprep.subr.bf16.mxu0 %v1084
        %4233 = vmatpush1.bf16.msra.mxu0 %v1083
        %4234 = vmatprep.subr.bf16.mxu0 %v1092
        %4235 = vmatpush1.bf16.msra.mxu0 %v1091
        %4236 = vmatprep.subr.bf16.mxu0 %v1100
        %4237 = vmatpush1.bf16.msra.mxu0 %v1099
        %4238 = vmatprep.subr.bf16.mxu0 %v1108
        %4239 = vmatpush1.bf16.msra.mxu0 %v1107
        %4240 = vmatprep.subr.bf16.mxu0 %v1116
        %4241 = vmatpush1.bf16.msra.mxu0 %v1115
        %4242 = vmatprep.subr.bf16.mxu0 %v1124
        %4243 = vmatpush1.bf16.msra.mxu0 %v1123
        %4244 = vmatprep.subr.bf16.mxu0 %v1132
        %4245 = vmatpush1.bf16.msra.mxu0 %v1131
        %4246 = vmatprep.subr.bf16.mxu0 %v1140
        %4247 = vmatpush1.bf16.msra.mxu0 %v1139
        %4248 = vmatprep.subr.bf16.mxu0 %v1148
        %4249 = vmatpush1.bf16.msra.mxu0 %v1147
        %4250 = vmatprep.subr.bf16.mxu0 %v1156
        %4251 = vmatpush1.bf16.msra.mxu0 %v1155
        %4252 = vmatprep.mubr.bf16.mxu0 %v4219
        %4253 = vmatmul.mubr.bf16.gmra.mrb[0].mxu0 %v4218
        %v4254 = vpop.f32.mrb[0].mxu0
        %v4255 = vadd.f32 0.0, %v4254
        %v4256 = vpop.f32.mrb[0].mxu0
        %v4257 = vadd.f32 0.0, %v4256
        %v4258 = vpop.f32.mrb[0].mxu0
        %v4259 = vadd.f32 0.0, %v4258
        %v4260 = vpop.f32.mrb[0].mxu0
        %v4261 = vadd.f32 0.0, %v4260
        %4262 = vdwg.mxu0
        %4263 = vmatprep.subr.bf16.mxu0 %v1038
        %4264 = vmatpush1.bf16.msra.mxu0 %v1037
        %4265 = vmatprep.subr.bf16.mxu0 %v1046
        %4266 = vmatpush1.bf16.msra.mxu0 %v1045
        %4267 = vmatprep.subr.bf16.mxu0 %v1054
        %4268 = vmatpush1.bf16.msra.mxu0 %v1053
        %4269 = vmatprep.subr.bf16.mxu0 %v1062
        %4270 = vmatpush1.bf16.msra.mxu0 %v1061
        %4271 = vmatprep.subr.bf16.mxu0 %v1070
        %4272 = vmatpush1.bf16.msra.mxu0 %v1069
        %4273 = vmatprep.subr.bf16.mxu0 %v1078
        %4274 = vmatpush1.bf16.msra.mxu0 %v1077
        %4275 = vmatprep.subr.bf16.mxu0 %v1086
        %4276 = vmatpush1.bf16.msra.mxu0 %v1085
        %4277 = vmatprep.subr.bf16.mxu0 %v1094
        %4278 = vmatpush1.bf16.msra.mxu0 %v1093
        %4279 = vmatprep.subr.bf16.mxu0 %v1102
        %4280 = vmatpush1.bf16.msra.mxu0 %v1101
        %4281 = vmatprep.subr.bf16.mxu0 %v1110
        %4282 = vmatpush1.bf16.msra.mxu0 %v1109
        %4283 = vmatprep.subr.bf16.mxu0 %v1118
        %4284 = vmatpush1.bf16.msra.mxu0 %v1117
        %4285 = vmatprep.subr.bf16.mxu0 %v1126
        %4286 = vmatpush1.bf16.msra.mxu0 %v1125
        %4287 = vmatprep.subr.bf16.mxu0 %v1134
        %4288 = vmatpush1.bf16.msra.mxu0 %v1133
        %4289 = vmatprep.subr.bf16.mxu0 %v1142
        %4290 = vmatpush1.bf16.msra.mxu0 %v1141
        %4291 = vmatprep.subr.bf16.mxu0 %v1150
        %4292 = vmatpush1.bf16.msra.mxu0 %v1149
        %4293 = vmatprep.subr.bf16.mxu0 %v1158
        %4294 = vmatpush1.bf16.msra.mxu0 %v1157
        %4295 = vmatprep.mubr.bf16.mxu0 %v4219
        %4296 = vmatmul.mubr.bf16.gmra.mrb[0].mxu0 %v4218
        %v4297 = vpop.f32.mrb[0].mxu0
        %v4298 = vadd.f32 0.0, %v4297
        %v4299 = vpop.f32.mrb[0].mxu0
        %v4300 = vadd.f32 0.0, %v4299
        %v4301 = vpop.f32.mrb[0].mxu0
        %v4302 = vadd.f32 0.0, %v4301
        %v4303 = vpop.f32.mrb[0].mxu0
        %v4304 = vadd.f32 0.0, %v4303
        %4305 = vdwg.mxu0
        %4306 = vmatprep.subr.bf16.mxu0 %v1040
        %4307 = vmatpush1.bf16.msra.mxu0 %v1039
        %4308 = vmatprep.subr.bf16.mxu0 %v1048
        %4309 = vmatpush1.bf16.msra.mxu0 %v1047
        %4310 = vmatprep.subr.bf16.mxu0 %v1056
        %4311 = vmatpush1.bf16.msra.mxu0 %v1055
        %4312 = vmatprep.subr.bf16.mxu0 %v1064
        %4313 = vmatpush1.bf16.msra.mxu0 %v1063
        %4314 = vmatprep.subr.bf16.mxu0 %v1072
        %4315 = vmatpush1.bf16.msra.mxu0 %v1071
        %4316 = vmatprep.subr.bf16.mxu0 %v1080
        %4317 = vmatpush1.bf16.msra.mxu0 %v1079
        %4318 = vmatprep.subr.bf16.mxu0 %v1088
        %4319 = vmatpush1.bf16.msra.mxu0 %v1087
        %4320 = vmatprep.subr.bf16.mxu0 %v1096
        %4321 = vmatpush1.bf16.msra.mxu0 %v1095
        %4322 = vmatprep.subr.bf16.mxu0 %v1104
        %4323 = vmatpush1.bf16.msra.mxu0 %v1103
        %4324 = vmatprep.subr.bf16.mxu0 %v1112
        %4325 = vmatpush1.bf16.msra.mxu0 %v1111
        %4326 = vmatprep.subr.bf16.mxu0 %v1120
        %4327 = vmatpush1.bf16.msra.mxu0 %v1119
        %4328 = vmatprep.subr.bf16.mxu0 %v1128
        %4329 = vmatpush1.bf16.msra.mxu0 %v1127
        %4330 = vmatprep.subr.bf16.mxu0 %v1136
        %4331 = vmatpush1.bf16.msra.mxu0 %v1135
        %4332 = vmatprep.subr.bf16.mxu0 %v1144
        %4333 = vmatpush1.bf16.msra.mxu0 %v1143
        %4334 = vmatprep.subr.bf16.mxu0 %v1152
        %4335 = vmatpush1.bf16.msra.mxu0 %v1151
        %4336 = vmatprep.subr.bf16.mxu0 %v1160
        %4337 = vmatpush1.bf16.msra.mxu0 %v1159
        %4338 = vmatprep.mubr.bf16.mxu0 %v4219
        %4339 = vmatmul.mubr.bf16.gmra.mrb[0].mxu0 %v4218
        %v4340 = vpop.f32.mrb[0].mxu0
        %v4341 = vadd.f32 0.0, %v4340
        %v4342 = vpop.f32.mrb[0].mxu0
        %v4343 = vadd.f32 0.0, %v4342
        %v4344 = vpop.f32.mrb[0].mxu0
        %v4345 = vadd.f32 0.0, %v4344
        %v4346 = vpop.f32.mrb[0].mxu0
        %v4347 = vadd.f32 0.0, %v4346
        %4348 = vdwg.mxu0
        %4349 = vmatprep.subr.bf16.mxu0 %v1042
        %4350 = vmatpush1.bf16.msra.mxu0 %v1041
        %4351 = vmatprep.subr.bf16.mxu0 %v1050
        %4352 = vmatpush1.bf16.msra.mxu0 %v1049
        %4353 = vmatprep.subr.bf16.mxu0 %v1058
        %4354 = vmatpush1.bf16.msra.mxu0 %v1057
        %4355 = vmatprep.subr.bf16.mxu0 %v1066
        %4356 = vmatpush1.bf16.msra.mxu0 %v1065
        %4357 = vmatprep.subr.bf16.mxu0 %v1074
        %4358 = vmatpush1.bf16.msra.mxu0 %v1073
        %4359 = vmatprep.subr.bf16.mxu0 %v1082
        %4360 = vmatpush1.bf16.msra.mxu0 %v1081
        %4361 = vmatprep.subr.bf16.mxu0 %v1090
        %4362 = vmatpush1.bf16.msra.mxu0 %v1089
        %4363 = vmatprep.subr.bf16.mxu0 %v1098
        %4364 = vmatpush1.bf16.msra.mxu0 %v1097
        %4365 = vmatprep.subr.bf16.mxu0 %v1106
        %4366 = vmatpush1.bf16.msra.mxu0 %v1105
        %4367 = vmatprep.subr.bf16.mxu0 %v1114
        %4368 = vmatpush1.bf16.msra.mxu0 %v1113
        %4369 = vmatprep.subr.bf16.mxu0 %v1122
        %4370 = vmatpush1.bf16.msra.mxu0 %v1121
        %4371 = vmatprep.subr.bf16.mxu0 %v1130
        %4372 = vmatpush1.bf16.msra.mxu0 %v1129
        %4373 = vmatprep.subr.bf16.mxu0 %v1138
        %4374 = vmatpush1.bf16.msra.mxu0 %v1137
        %4375 = vmatprep.subr.bf16.mxu0 %v1146
        %4376 = vmatpush1.bf16.msra.mxu0 %v1145
        %4377 = vmatprep.subr.bf16.mxu0 %v1154
        %4378 = vmatpush1.bf16.msra.mxu0 %v1153
        %4379 = vmatprep.subr.bf16.mxu0 %v1162
        %4380 = vmatpush1.bf16.msra.mxu0 %v1161
        %4381 = vmatprep.mubr.bf16.mxu0 %v4219
        %4382 = vmatmul.mubr.bf16.gmra.mrb[0].mxu0 %v4218
        %v4383 = vpop.f32.mrb[0].mxu0
        %v4384 = vadd.f32 0.0, %v4383
        %v4385 = vpop.f32.mrb[0].mxu0
        %v4386 = vadd.f32 0.0, %v4385
        %v4387 = vpop.f32.mrb[0].mxu0
        %v4388 = vadd.f32 0.0, %v4387
        %v4389 = vpop.f32.mrb[0].mxu0
        %v4390 = vadd.f32 0.0, %v4389
        %4391 = vdwg.mxu0
        %v4392 = vadd.f32 %v4202, %v4255
        %v4393 = vadd.f32 %v4203, %v4257
        %v4394 = vadd.f32 %v4204, %v4298
        %v4395 = vadd.f32 %v4205, %v4300
        %v4396 = vadd.f32 %v4206, %v4341
        %v4397 = vadd.f32 %v4207, %v4343
        %v4398 = vadd.f32 %v4208, %v4384
        %v4399 = vadd.f32 %v4209, %v4386
        %v4400 = vadd.f32 %v4210, %v4259
        %v4401 = vadd.f32 %v4211, %v4261
        %v4402 = vadd.f32 %v4212, %v4302
        %v4403 = vadd.f32 %v4213, %v4304
        %v4404 = vadd.f32 %v4214, %v4345
        %v4405 = vadd.f32 %v4215, %v4347
        %v4406 = vadd.f32 %v4216, %v4388
        %v4407 = vadd.f32 %v4217, %v4390
        %v4408 = vmul.f32 %v4392, 0.5
        %v4409 = vmul.f32 %v4400, 0.5
        %v4410 = vtanh.pop %v4408
        %v4411 = vtanh.pop %v4409
        %v4412 = vmul.f32 %v4410, 0.5
        %v4413 = vmul.f32 %v4411, 0.5
        %v4414 = vadd.f32 %v4412, 0.5
        %v4415 = vadd.f32 %v4413, 0.5
        %v4416 = vmul.f32 %v4393, 0.5
        %v4417 = vmul.f32 %v4401, 0.5
        %v4418 = vtanh.pop %v4416
        %v4419 = vtanh.pop %v4417
        %v4420 = vmul.f32 %v4418, 0.5
        %v4421 = vmul.f32 %v4419, 0.5
        %v4422 = vadd.f32 %v4420, 0.5
        %v4423 = vadd.f32 %v4421, 0.5
        %v4424 = vtanh.pop %v4394
        %v4425 = vtanh.pop %v4402
        %v4426 = vmul.f32 %v4395, 0.5
        %v4427 = vmul.f32 %v4403, 0.5
        %v4428 = vtanh.pop %v4426
        %v4429 = vtanh.pop %v4427
        %v4430 = vmul.f32 %v4428, 0.5
        %v4431 = vmul.f32 %v4429, 0.5
        %v4432 = vadd.f32 %v4430, 0.5
        %v4433 = vadd.f32 %v4431, 0.5
        %v4434 = vmul.f32 %v4396, 0.5
        %v4435 = vmul.f32 %v4404, 0.5
        %v4436 = vtanh.pop %v4434
        %v4437 = vtanh.pop %v4435
        %v4438 = vmul.f32 %v4436, 0.5
        %v4439 = vmul.f32 %v4437, 0.5
        %v4440 = vadd.f32 %v4438, 0.5
        %v4441 = vadd.f32 %v4439, 0.5
        %v4442 = vmul.f32 %v4397, 0.5
        %v4443 = vmul.f32 %v4405, 0.5
        %v4444 = vtanh.pop %v4442
        %v4445 = vtanh.pop %v4443
        %v4446 = vmul.f32 %v4444, 0.5
        %v4447 = vmul.f32 %v4445, 0.5
        %v4448 = vadd.f32 %v4446, 0.5
        %v4449 = vadd.f32 %v4447, 0.5
        %v4450 = vtanh.pop %v4398
        %v4451 = vtanh.pop %v4406
        %v4452 = vmul.f32 %v4399, 0.5
        %v4453 = vmul.f32 %v4407, 0.5
        %v4454 = vtanh.pop %v4452
        %v4455 = vtanh.pop %v4453
        %v4456 = vmul.f32 %v4454, 0.5
        %v4457 = vmul.f32 %v4455, 0.5
        %v4458 = vadd.f32 %v4456, 0.5
        %v4459 = vadd.f32 %v4457, 0.5
        %v4460 = vmul.f32 %v4422, %v4171
        %v4461 = vmul.f32 %v4423, %v4172
        %v4462 = vmul.f32 %v4414, %v4424
        %v4463 = vmul.f32 %v4415, %v4425
        %v4464 = vadd.f32 %v4460, %v4462
        %v4465 = vadd.f32 %v4461, %v4463
        %v4466 = vmul.f32 %v4448, %v4177
        %v4467 = vmul.f32 %v4449, %v4178
        %v4468 = vmul.f32 %v4440, %v4450
        %v4469 = vmul.f32 %v4441, %v4451
        %v4470 = vadd.f32 %v4466, %v4468
        %v4471 = vadd.f32 %v4467, %v4469
        %v4472 = vtanh.pop %v4464
        %v4473 = vtanh.pop %v4465
        %v4474 = vmul.f32 %v4432, %v4472
        %v4475 = vmul.f32 %v4433, %v4473
        %v4476 = vtanh.pop %v4470
        %v4477 = vtanh.pop %v4471
        %v4478 = vmul.f32 %v4458, %v4476
        %v4479 = vmul.f32 %v4459, %v4477
        %s4480 = scalar_lea.vmem %s463, 160 [#allocation7]
        %4481 = vst [vmem:[%s4480] sm:$0xff] %v4474
        %4482 = vst [vmem:[%s4480 + $0x8] sm:$0xff] %v4475
        %s4483 = scalar_lea.vmem %s469, 80 [#allocation8]
        %4484 = vst [vmem:[%s4483] sm:$0xff] %v4478
        %4485 = vst [vmem:[%s4483 + $0x8] sm:$0xff] %v4479
        %s4486 = scalar_lea.vmem %s446, 704 [#allocation6]
        %v4487 = vld [vmem:[%s4486] sm:$0xff]
        %v4488 = vld [vmem:[%s4486 + $0x8] sm:$0xff]
        %v4489 = vld [vmem:[%s4486 + $0x10] sm:$0xff]
        %v4490 = vld [vmem:[%s4486 + $0x18] sm:$0xff]
        %v4491 = vld [vmem:[%s4486 + $0x20] sm:$0xff]
        %v4492 = vld [vmem:[%s4486 + $0x28] sm:$0xff]
        %v4493 = vld [vmem:[%s4486 + $0x30] sm:$0xff]
        %v4494 = vld [vmem:[%s4486 + $0x38] sm:$0xff]
        %v4495 = vunpack.c.l.bf16 %v4487
        %v4496 = vunpack.c.h.bf16 %v4487
        %v4497 = vunpack.c.l.bf16 %v4488
        %v4498 = vunpack.c.h.bf16 %v4488
        %v4499 = vunpack.c.l.bf16 %v4489
        %v4500 = vunpack.c.h.bf16 %v4489
        %v4501 = vunpack.c.l.bf16 %v4490
        %v4502 = vunpack.c.h.bf16 %v4490
        %v4503 = vunpack.c.l.bf16 %v4491
        %v4504 = vunpack.c.h.bf16 %v4491
        %v4505 = vunpack.c.l.bf16 %v4492
        %v4506 = vunpack.c.h.bf16 %v4492
        %v4507 = vunpack.c.l.bf16 %v4493
        %v4508 = vunpack.c.h.bf16 %v4493
        %v4509 = vunpack.c.l.bf16 %v4494
        %v4510 = vunpack.c.h.bf16 %v4494
        %v4511 = vpack.c.bf16 %v4475, %v4474
        %v4512 = vpack.c.bf16 %v4479, %v4478
        %4513 = vmatprep.subr.bf16.mxu0 %v1036
        %4514 = vmatpush1.bf16.msra.mxu0 %v1035
        %4515 = vmatprep.subr.bf16.mxu0 %v1044
        %4516 = vmatpush1.bf16.msra.mxu0 %v1043
        %4517 = vmatprep.subr.bf16.mxu0 %v1052
        %4518 = vmatpush1.bf16.msra.mxu0 %v1051
        %4519 = vmatprep.subr.bf16.mxu0 %v1060
        %4520 = vmatpush1.bf16.msra.mxu0 %v1059
        %4521 = vmatprep.subr.bf16.mxu0 %v1068
        %4522 = vmatpush1.bf16.msra.mxu0 %v1067
        %4523 = vmatprep.subr.bf16.mxu0 %v1076
        %4524 = vmatpush1.bf16.msra.mxu0 %v1075
        %4525 = vmatprep.subr.bf16.mxu0 %v1084
        %4526 = vmatpush1.bf16.msra.mxu0 %v1083
        %4527 = vmatprep.subr.bf16.mxu0 %v1092
        %4528 = vmatpush1.bf16.msra.mxu0 %v1091
        %4529 = vmatprep.subr.bf16.mxu0 %v1100
        %4530 = vmatpush1.bf16.msra.mxu0 %v1099
        %4531 = vmatprep.subr.bf16.mxu0 %v1108
        %4532 = vmatpush1.bf16.msra.mxu0 %v1107
        %4533 = vmatprep.subr.bf16.mxu0 %v1116
        %4534 = vmatpush1.bf16.msra.mxu0 %v1115
        %4535 = vmatprep.subr.bf16.mxu0 %v1124
        %4536 = vmatpush1.bf16.msra.mxu0 %v1123
        %4537 = vmatprep.subr.bf16.mxu0 %v1132
        %4538 = vmatpush1.bf16.msra.mxu0 %v1131
        %4539 = vmatprep.subr.bf16.mxu0 %v1140
        %4540 = vmatpush1.bf16.msra.mxu0 %v1139
        %4541 = vmatprep.subr.bf16.mxu0 %v1148
        %4542 = vmatpush1.bf16.msra.mxu0 %v1147
        %4543 = vmatprep.subr.bf16.mxu0 %v1156
        %4544 = vmatpush1.bf16.msra.mxu0 %v1155
        %4545 = vmatprep.mubr.bf16.mxu0 %v4512
        %4546 = vmatmul.mubr.bf16.gmra.mrb[0].mxu0 %v4511
        %v4547 = vpop.f32.mrb[0].mxu0
        %v4548 = vadd.f32 0.0, %v4547
        %v4549 = vpop.f32.mrb[0].mxu0
        %v4550 = vadd.f32 0.0, %v4549
        %v4551 = vpop.f32.mrb[0].mxu0
        %v4552 = vadd.f32 0.0, %v4551
        %v4553 = vpop.f32.mrb[0].mxu0
        %v4554 = vadd.f32 0.0, %v4553
        %4555 = vdwg.mxu0
        %4556 = vmatprep.subr.bf16.mxu0 %v1038
        %4557 = vmatpush1.bf16.msra.mxu0 %v1037
        %4558 = vmatprep.subr.bf16.mxu0 %v1046
        %4559 = vmatpush1.bf16.msra.mxu0 %v1045
        %4560 = vmatprep.subr.bf16.mxu0 %v1054
        %4561 = vmatpush1.bf16.msra.mxu0 %v1053
        %4562 = vmatprep.subr.bf16.mxu0 %v1062
        %4563 = vmatpush1.bf16.msra.mxu0 %v1061
        %4564 = vmatprep.subr.bf16.mxu0 %v1070
        %4565 = vmatpush1.bf16.msra.mxu0 %v1069
        %4566 = vmatprep.subr.bf16.mxu0 %v1078
        %4567 = vmatpush1.bf16.msra.mxu0 %v1077
        %4568 = vmatprep.subr.bf16.mxu0 %v1086
        %4569 = vmatpush1.bf16.msra.mxu0 %v1085
        %4570 = vmatprep.subr.bf16.mxu0 %v1094
        %4571 = vmatpush1.bf16.msra.mxu0 %v1093
        %4572 = vmatprep.subr.bf16.mxu0 %v1102
        %4573 = vmatpush1.bf16.msra.mxu0 %v1101
        %4574 = vmatprep.subr.bf16.mxu0 %v1110
        %4575 = vmatpush1.bf16.msra.mxu0 %v1109
        %4576 = vmatprep.subr.bf16.mxu0 %v1118
        %4577 = vmatpush1.bf16.msra.mxu0 %v1117
        %4578 = vmatprep.subr.bf16.mxu0 %v1126
        %4579 = vmatpush1.bf16.msra.mxu0 %v1125
        %4580 = vmatprep.subr.bf16.mxu0 %v1134
        %4581 = vmatpush1.bf16.msra.mxu0 %v1133
        %4582 = vmatprep.subr.bf16.mxu0 %v1142
        %4583 = vmatpush1.bf16.msra.mxu0 %v1141
        %4584 = vmatprep.subr.bf16.mxu0 %v1150
        %4585 = vmatpush1.bf16.msra.mxu0 %v1149
        %4586 = vmatprep.subr.bf16.mxu0 %v1158
        %4587 = vmatpush1.bf16.msra.mxu0 %v1157
        %4588 = vmatprep.mubr.bf16.mxu0 %v4512
        %4589 = vmatmul.mubr.bf16.gmra.mrb[0].mxu0 %v4511
        %v4590 = vpop.f32.mrb[0].mxu0
        %v4591 = vadd.f32 0.0, %v4590
        %v4592 = vpop.f32.mrb[0].mxu0
        %v4593 = vadd.f32 0.0, %v4592
        %v4594 = vpop.f32.mrb[0].mxu0
        %v4595 = vadd.f32 0.0, %v4594
        %v4596 = vpop.f32.mrb[0].mxu0
        %v4597 = vadd.f32 0.0, %v4596
        %4598 = vdwg.mxu0
        %4599 = vmatprep.subr.bf16.mxu0 %v1040
        %4600 = vmatpush1.bf16.msra.mxu0 %v1039
        %4601 = vmatprep.subr.bf16.mxu0 %v1048
        %4602 = vmatpush1.bf16.msra.mxu0 %v1047
        %4603 = vmatprep.subr.bf16.mxu0 %v1056
        %4604 = vmatpush1.bf16.msra.mxu0 %v1055
        %4605 = vmatprep.subr.bf16.mxu0 %v1064
        %4606 = vmatpush1.bf16.msra.mxu0 %v1063
        %4607 = vmatprep.subr.bf16.mxu0 %v1072
        %4608 = vmatpush1.bf16.msra.mxu0 %v1071
        %4609 = vmatprep.subr.bf16.mxu0 %v1080
        %4610 = vmatpush1.bf16.msra.mxu0 %v1079
        %4611 = vmatprep.subr.bf16.mxu0 %v1088
        %4612 = vmatpush1.bf16.msra.mxu0 %v1087
        %4613 = vmatprep.subr.bf16.mxu0 %v1096
        %4614 = vmatpush1.bf16.msra.mxu0 %v1095
        %4615 = vmatprep.subr.bf16.mxu0 %v1104
        %4616 = vmatpush1.bf16.msra.mxu0 %v1103
        %4617 = vmatprep.subr.bf16.mxu0 %v1112
        %4618 = vmatpush1.bf16.msra.mxu0 %v1111
        %4619 = vmatprep.subr.bf16.mxu0 %v1120
        %4620 = vmatpush1.bf16.msra.mxu0 %v1119
        %4621 = vmatprep.subr.bf16.mxu0 %v1128
        %4622 = vmatpush1.bf16.msra.mxu0 %v1127
        %4623 = vmatprep.subr.bf16.mxu0 %v1136
        %4624 = vmatpush1.bf16.msra.mxu0 %v1135
        %4625 = vmatprep.subr.bf16.mxu0 %v1144
        %4626 = vmatpush1.bf16.msra.mxu0 %v1143
        %4627 = vmatprep.subr.bf16.mxu0 %v1152
        %4628 = vmatpush1.bf16.msra.mxu0 %v1151
        %4629 = vmatprep.subr.bf16.mxu0 %v1160
        %4630 = vmatpush1.bf16.msra.mxu0 %v1159
        %4631 = vmatprep.mubr.bf16.mxu0 %v4512
        %4632 = vmatmul.mubr.bf16.gmra.mrb[0].mxu0 %v4511
        %v4633 = vpop.f32.mrb[0].mxu0
        %v4634 = vadd.f32 0.0, %v4633
        %v4635 = vpop.f32.mrb[0].mxu0
        %v4636 = vadd.f32 0.0, %v4635
        %v4637 = vpop.f32.mrb[0].mxu0
        %v4638 = vadd.f32 0.0, %v4637
        %v4639 = vpop.f32.mrb[0].mxu0
        %v4640 = vadd.f32 0.0, %v4639
        %4641 = vdwg.mxu0
        %4642 = vmatprep.subr.bf16.mxu0 %v1042
        %4643 = vmatpush1.bf16.msra.mxu0 %v1041
        %4644 = vmatprep.subr.bf16.mxu0 %v1050
        %4645 = vmatpush1.bf16.msra.mxu0 %v1049
        %4646 = vmatprep.subr.bf16.mxu0 %v1058
        %4647 = vmatpush1.bf16.msra.mxu0 %v1057
        %4648 = vmatprep.subr.bf16.mxu0 %v1066
        %4649 = vmatpush1.bf16.msra.mxu0 %v1065
        %4650 = vmatprep.subr.bf16.mxu0 %v1074
        %4651 = vmatpush1.bf16.msra.mxu0 %v1073
        %4652 = vmatprep.subr.bf16.mxu0 %v1082
        %4653 = vmatpush1.bf16.msra.mxu0 %v1081
        %4654 = vmatprep.subr.bf16.mxu0 %v1090
        %4655 = vmatpush1.bf16.msra.mxu0 %v1089
        %4656 = vmatprep.subr.bf16.mxu0 %v1098
        %4657 = vmatpush1.bf16.msra.mxu0 %v1097
        %4658 = vmatprep.subr.bf16.mxu0 %v1106
        %4659 = vmatpush1.bf16.msra.mxu0 %v1105
        %4660 = vmatprep.subr.bf16.mxu0 %v1114
        %4661 = vmatpush1.bf16.msra.mxu0 %v1113
        %4662 = vmatprep.subr.bf16.mxu0 %v1122
        %4663 = vmatpush1.bf16.msra.mxu0 %v1121
        %4664 = vmatprep.subr.bf16.mxu0 %v1130
        %4665 = vmatpush1.bf16.msra.mxu0 %v1129
        %4666 = vmatprep.subr.bf16.mxu0 %v1138
        %4667 = vmatpush1.bf16.msra.mxu0 %v1137
        %4668 = vmatprep.subr.bf16.mxu0 %v1146
        %4669 = vmatpush1.bf16.msra.mxu0 %v1145
        %4670 = vmatprep.subr.bf16.mxu0 %v1154
        %4671 = vmatpush1.bf16.msra.mxu0 %v1153
        %4672 = vmatprep.subr.bf16.mxu0 %v1162
        %4673 = vmatpush1.bf16.msra.mxu0 %v1161
        %4674 = vmatprep.mubr.bf16.mxu0 %v4512
        %4675 = vmatmul.mubr.bf16.gmra.mrb[0].mxu0 %v4511
        %v4676 = vpop.f32.mrb[0].mxu0
        %v4677 = vadd.f32 0.0, %v4676
        %v4678 = vpop.f32.mrb[0].mxu0
        %v4679 = vadd.f32 0.0, %v4678
        %v4680 = vpop.f32.mrb[0].mxu0
        %v4681 = vadd.f32 0.0, %v4680
        %v4682 = vpop.f32.mrb[0].mxu0
        %v4683 = vadd.f32 0.0, %v4682
        %4684 = vdwg.mxu0
        %v4685 = vadd.f32 %v4495, %v4548
        %v4686 = vadd.f32 %v4496, %v4550
        %v4687 = vadd.f32 %v4497, %v4591
        %v4688 = vadd.f32 %v4498, %v4593
        %v4689 = vadd.f32 %v4499, %v4634
        %v4690 = vadd.f32 %v4500, %v4636
        %v4691 = vadd.f32 %v4501, %v4677
        %v4692 = vadd.f32 %v4502, %v4679
        %v4693 = vadd.f32 %v4503, %v4552
        %v4694 = vadd.f32 %v4504, %v4554
        %v4695 = vadd.f32 %v4505, %v4595
        %v4696 = vadd.f32 %v4506, %v4597
        %v4697 = vadd.f32 %v4507, %v4638
        %v4698 = vadd.f32 %v4508, %v4640
        %v4699 = vadd.f32 %v4509, %v4681
        %v4700 = vadd.f32 %v4510, %v4683
        %v4701 = vmul.f32 %v4685, 0.5
        %v4702 = vmul.f32 %v4693, 0.5
        %v4703 = vtanh.pop %v4701
        %v4704 = vtanh.pop %v4702
        %v4705 = vmul.f32 %v4703, 0.5
        %v4706 = vmul.f32 %v4704, 0.5
        %v4707 = vadd.f32 %v4705, 0.5
        %v4708 = vadd.f32 %v4706, 0.5
        %v4709 = vmul.f32 %v4686, 0.5
        %v4710 = vmul.f32 %v4694, 0.5
        %v4711 = vtanh.pop %v4709
        %v4712 = vtanh.pop %v4710
        %v4713 = vmul.f32 %v4711, 0.5
        %v4714 = vmul.f32 %v4712, 0.5
        %v4715 = vadd.f32 %v4713, 0.5
        %v4716 = vadd.f32 %v4714, 0.5
        %v4717 = vtanh.pop %v4687
        %v4718 = vtanh.pop %v4695
        %v4719 = vmul.f32 %v4688, 0.5
        %v4720 = vmul.f32 %v4696, 0.5
        %v4721 = vtanh.pop %v4719
        %v4722 = vtanh.pop %v4720
        %v4723 = vmul.f32 %v4721, 0.5
        %v4724 = vmul.f32 %v4722, 0.5
        %v4725 = vadd.f32 %v4723, 0.5
        %v4726 = vadd.f32 %v4724, 0.5
        %v4727 = vmul.f32 %v4689, 0.5
        %v4728 = vmul.f32 %v4697, 0.5
        %v4729 = vtanh.pop %v4727
        %v4730 = vtanh.pop %v4728
        %v4731 = vmul.f32 %v4729, 0.5
        %v4732 = vmul.f32 %v4730, 0.5
        %v4733 = vadd.f32 %v4731, 0.5
        %v4734 = vadd.f32 %v4732, 0.5
        %v4735 = vmul.f32 %v4690, 0.5
        %v4736 = vmul.f32 %v4698, 0.5
        %v4737 = vtanh.pop %v4735
        %v4738 = vtanh.pop %v4736
        %v4739 = vmul.f32 %v4737, 0.5
        %v4740 = vmul.f32 %v4738, 0.5
        %v4741 = vadd.f32 %v4739, 0.5
        %v4742 = vadd.f32 %v4740, 0.5
        %v4743 = vtanh.pop %v4691
        %v4744 = vtanh.pop %v4699
        %v4745 = vmul.f32 %v4692, 0.5
        %v4746 = vmul.f32 %v4700, 0.5
        %v4747 = vtanh.pop %v4745
        %v4748 = vtanh.pop %v4746
        %v4749 = vmul.f32 %v4747, 0.5
        %v4750 = vmul.f32 %v4748, 0.5
        %v4751 = vadd.f32 %v4749, 0.5
        %v4752 = vadd.f32 %v4750, 0.5
        %v4753 = vmul.f32 %v4715, %v4464
        %v4754 = vmul.f32 %v4716, %v4465
        %v4755 = vmul.f32 %v4707, %v4717
        %v4756 = vmul.f32 %v4708, %v4718
        %v4757 = vadd.f32 %v4753, %v4755
        %v4758 = vadd.f32 %v4754, %v4756
        %v4759 = vmul.f32 %v4741, %v4470
        %v4760 = vmul.f32 %v4742, %v4471
        %v4761 = vmul.f32 %v4733, %v4743
        %v4762 = vmul.f32 %v4734, %v4744
        %v4763 = vadd.f32 %v4759, %v4761
        %v4764 = vadd.f32 %v4760, %v4762
        %v4765 = vtanh.pop %v4757
        %v4766 = vtanh.pop %v4758
        %v4767 = vmul.f32 %v4725, %v4765
        %v4768 = vmul.f32 %v4726, %v4766
        %v4769 = vtanh.pop %v4763
        %v4770 = vtanh.pop %v4764
        %v4771 = vmul.f32 %v4751, %v4769
        %v4772 = vmul.f32 %v4752, %v4770
        %s4773 = scalar_lea.vmem %s463, 176 [#allocation7]
        %4774 = vst [vmem:[%s4773] sm:$0xff] %v4767
        %4775 = vst [vmem:[%s4773 + $0x8] sm:$0xff] %v4768
        %s4776 = scalar_lea.vmem %s469, 64 [#allocation8]
        %4777 = vst [vmem:[%s4776] sm:$0xff] %v4771
        %4778 = vst [vmem:[%s4776 + $0x8] sm:$0xff] %v4772
        %s4779 = scalar_lea.vmem %s446, 768 [#allocation6]
        %v4780 = vld [vmem:[%s4779] sm:$0xff]
        %v4781 = vld [vmem:[%s4779 + $0x8] sm:$0xff]
        %v4782 = vld [vmem:[%s4779 + $0x10] sm:$0xff]
        %v4783 = vld [vmem:[%s4779 + $0x18] sm:$0xff]
        %v4784 = vld [vmem:[%s4779 + $0x20] sm:$0xff]
        %v4785 = vld [vmem:[%s4779 + $0x28] sm:$0xff]
        %v4786 = vld [vmem:[%s4779 + $0x30] sm:$0xff]
        %v4787 = vld [vmem:[%s4779 + $0x38] sm:$0xff]
        %v4788 = vunpack.c.l.bf16 %v4780
        %v4789 = vunpack.c.h.bf16 %v4780
        %v4790 = vunpack.c.l.bf16 %v4781
        %v4791 = vunpack.c.h.bf16 %v4781
        %v4792 = vunpack.c.l.bf16 %v4782
        %v4793 = vunpack.c.h.bf16 %v4782
        %v4794 = vunpack.c.l.bf16 %v4783
        %v4795 = vunpack.c.h.bf16 %v4783
        %v4796 = vunpack.c.l.bf16 %v4784
        %v4797 = vunpack.c.h.bf16 %v4784
        %v4798 = vunpack.c.l.bf16 %v4785
        %v4799 = vunpack.c.h.bf16 %v4785
        %v4800 = vunpack.c.l.bf16 %v4786
        %v4801 = vunpack.c.h.bf16 %v4786
        %v4802 = vunpack.c.l.bf16 %v4787
        %v4803 = vunpack.c.h.bf16 %v4787
        %v4804 = vpack.c.bf16 %v4768, %v4767
        %v4805 = vpack.c.bf16 %v4772, %v4771
        %4806 = vmatprep.subr.bf16.mxu0 %v1036
        %4807 = vmatpush1.bf16.msra.mxu0 %v1035
        %4808 = vmatprep.subr.bf16.mxu0 %v1044
        %4809 = vmatpush1.bf16.msra.mxu0 %v1043
        %4810 = vmatprep.subr.bf16.mxu0 %v1052
        %4811 = vmatpush1.bf16.msra.mxu0 %v1051
        %4812 = vmatprep.subr.bf16.mxu0 %v1060
        %4813 = vmatpush1.bf16.msra.mxu0 %v1059
        %4814 = vmatprep.subr.bf16.mxu0 %v1068
        %4815 = vmatpush1.bf16.msra.mxu0 %v1067
        %4816 = vmatprep.subr.bf16.mxu0 %v1076
        %4817 = vmatpush1.bf16.msra.mxu0 %v1075
        %4818 = vmatprep.subr.bf16.mxu0 %v1084
        %4819 = vmatpush1.bf16.msra.mxu0 %v1083
        %4820 = vmatprep.subr.bf16.mxu0 %v1092
        %4821 = vmatpush1.bf16.msra.mxu0 %v1091
        %4822 = vmatprep.subr.bf16.mxu0 %v1100
        %4823 = vmatpush1.bf16.msra.mxu0 %v1099
        %4824 = vmatprep.subr.bf16.mxu0 %v1108
        %4825 = vmatpush1.bf16.msra.mxu0 %v1107
        %4826 = vmatprep.subr.bf16.mxu0 %v1116
        %4827 = vmatpush1.bf16.msra.mxu0 %v1115
        %4828 = vmatprep.subr.bf16.mxu0 %v1124
        %4829 = vmatpush1.bf16.msra.mxu0 %v1123
        %4830 = vmatprep.subr.bf16.mxu0 %v1132
        %4831 = vmatpush1.bf16.msra.mxu0 %v1131
        %4832 = vmatprep.subr.bf16.mxu0 %v1140
        %4833 = vmatpush1.bf16.msra.mxu0 %v1139
        %4834 = vmatprep.subr.bf16.mxu0 %v1148
        %4835 = vmatpush1.bf16.msra.mxu0 %v1147
        %4836 = vmatprep.subr.bf16.mxu0 %v1156
        %4837 = vmatpush1.bf16.msra.mxu0 %v1155
        %4838 = vmatprep.mubr.bf16.mxu0 %v4805
        %4839 = vmatmul.mubr.bf16.gmra.mrb[0].mxu0 %v4804
        %v4840 = vpop.f32.mrb[0].mxu0
        %v4841 = vadd.f32 0.0, %v4840
        %v4842 = vpop.f32.mrb[0].mxu0
        %v4843 = vadd.f32 0.0, %v4842
        %v4844 = vpop.f32.mrb[0].mxu0
        %v4845 = vadd.f32 0.0, %v4844
        %v4846 = vpop.f32.mrb[0].mxu0
        %v4847 = vadd.f32 0.0, %v4846
        %4848 = vdwg.mxu0
        %4849 = vmatprep.subr.bf16.mxu0 %v1038
        %4850 = vmatpush1.bf16.msra.mxu0 %v1037
        %4851 = vmatprep.subr.bf16.mxu0 %v1046
        %4852 = vmatpush1.bf16.msra.mxu0 %v1045
        %4853 = vmatprep.subr.bf16.mxu0 %v1054
        %4854 = vmatpush1.bf16.msra.mxu0 %v1053
        %4855 = vmatprep.subr.bf16.mxu0 %v1062
        %4856 = vmatpush1.bf16.msra.mxu0 %v1061
        %4857 = vmatprep.subr.bf16.mxu0 %v1070
        %4858 = vmatpush1.bf16.msra.mxu0 %v1069
        %4859 = vmatprep.subr.bf16.mxu0 %v1078
        %4860 = vmatpush1.bf16.msra.mxu0 %v1077
        %4861 = vmatprep.subr.bf16.mxu0 %v1086
        %4862 = vmatpush1.bf16.msra.mxu0 %v1085
        %4863 = vmatprep.subr.bf16.mxu0 %v1094
        %4864 = vmatpush1.bf16.msra.mxu0 %v1093
        %4865 = vmatprep.subr.bf16.mxu0 %v1102
        %4866 = vmatpush1.bf16.msra.mxu0 %v1101
        %4867 = vmatprep.subr.bf16.mxu0 %v1110
        %4868 = vmatpush1.bf16.msra.mxu0 %v1109
        %4869 = vmatprep.subr.bf16.mxu0 %v1118
        %4870 = vmatpush1.bf16.msra.mxu0 %v1117
        %4871 = vmatprep.subr.bf16.mxu0 %v1126
        %4872 = vmatpush1.bf16.msra.mxu0 %v1125
        %4873 = vmatprep.subr.bf16.mxu0 %v1134
        %4874 = vmatpush1.bf16.msra.mxu0 %v1133
        %4875 = vmatprep.subr.bf16.mxu0 %v1142
        %4876 = vmatpush1.bf16.msra.mxu0 %v1141
        %4877 = vmatprep.subr.bf16.mxu0 %v1150
        %4878 = vmatpush1.bf16.msra.mxu0 %v1149
        %4879 = vmatprep.subr.bf16.mxu0 %v1158
        %4880 = vmatpush1.bf16.msra.mxu0 %v1157
        %4881 = vmatprep.mubr.bf16.mxu0 %v4805
        %4882 = vmatmul.mubr.bf16.gmra.mrb[0].mxu0 %v4804
        %v4883 = vpop.f32.mrb[0].mxu0
        %v4884 = vadd.f32 0.0, %v4883
        %v4885 = vpop.f32.mrb[0].mxu0
        %v4886 = vadd.f32 0.0, %v4885
        %v4887 = vpop.f32.mrb[0].mxu0
        %v4888 = vadd.f32 0.0, %v4887
        %v4889 = vpop.f32.mrb[0].mxu0
        %v4890 = vadd.f32 0.0, %v4889
        %4891 = vdwg.mxu0
        %4892 = vmatprep.subr.bf16.mxu0 %v1040
        %4893 = vmatpush1.bf16.msra.mxu0 %v1039
        %4894 = vmatprep.subr.bf16.mxu0 %v1048
        %4895 = vmatpush1.bf16.msra.mxu0 %v1047
        %4896 = vmatprep.subr.bf16.mxu0 %v1056
        %4897 = vmatpush1.bf16.msra.mxu0 %v1055
        %4898 = vmatprep.subr.bf16.mxu0 %v1064
        %4899 = vmatpush1.bf16.msra.mxu0 %v1063
        %4900 = vmatprep.subr.bf16.mxu0 %v1072
        %4901 = vmatpush1.bf16.msra.mxu0 %v1071
        %4902 = vmatprep.subr.bf16.mxu0 %v1080
        %4903 = vmatpush1.bf16.msra.mxu0 %v1079
        %4904 = vmatprep.subr.bf16.mxu0 %v1088
        %4905 = vmatpush1.bf16.msra.mxu0 %v1087
        %4906 = vmatprep.subr.bf16.mxu0 %v1096
        %4907 = vmatpush1.bf16.msra.mxu0 %v1095
        %4908 = vmatprep.subr.bf16.mxu0 %v1104
        %4909 = vmatpush1.bf16.msra.mxu0 %v1103
        %4910 = vmatprep.subr.bf16.mxu0 %v1112
        %4911 = vmatpush1.bf16.msra.mxu0 %v1111
        %4912 = vmatprep.subr.bf16.mxu0 %v1120
        %4913 = vmatpush1.bf16.msra.mxu0 %v1119
        %4914 = vmatprep.subr.bf16.mxu0 %v1128
        %4915 = vmatpush1.bf16.msra.mxu0 %v1127
        %4916 = vmatprep.subr.bf16.mxu0 %v1136
        %4917 = vmatpush1.bf16.msra.mxu0 %v1135
        %4918 = vmatprep.subr.bf16.mxu0 %v1144
        %4919 = vmatpush1.bf16.msra.mxu0 %v1143
        %4920 = vmatprep.subr.bf16.mxu0 %v1152
        %4921 = vmatpush1.bf16.msra.mxu0 %v1151
        %4922 = vmatprep.subr.bf16.mxu0 %v1160
        %4923 = vmatpush1.bf16.msra.mxu0 %v1159
        %4924 = vmatprep.mubr.bf16.mxu0 %v4805
        %4925 = vmatmul.mubr.bf16.gmra.mrb[0].mxu0 %v4804
        %v4926 = vpop.f32.mrb[0].mxu0
        %v4927 = vadd.f32 0.0, %v4926
        %v4928 = vpop.f32.mrb[0].mxu0
        %v4929 = vadd.f32 0.0, %v4928
        %v4930 = vpop.f32.mrb[0].mxu0
        %v4931 = vadd.f32 0.0, %v4930
        %v4932 = vpop.f32.mrb[0].mxu0
        %v4933 = vadd.f32 0.0, %v4932
        %4934 = vdwg.mxu0
        %4935 = vmatprep.subr.bf16.mxu0 %v1042
        %4936 = vmatpush1.bf16.msra.mxu0 %v1041
        %4937 = vmatprep.subr.bf16.mxu0 %v1050
        %4938 = vmatpush1.bf16.msra.mxu0 %v1049
        %4939 = vmatprep.subr.bf16.mxu0 %v1058
        %4940 = vmatpush1.bf16.msra.mxu0 %v1057
        %4941 = vmatprep.subr.bf16.mxu0 %v1066
        %4942 = vmatpush1.bf16.msra.mxu0 %v1065
        %4943 = vmatprep.subr.bf16.mxu0 %v1074
        %4944 = vmatpush1.bf16.msra.mxu0 %v1073
        %4945 = vmatprep.subr.bf16.mxu0 %v1082
        %4946 = vmatpush1.bf16.msra.mxu0 %v1081
        %4947 = vmatprep.subr.bf16.mxu0 %v1090
        %4948 = vmatpush1.bf16.msra.mxu0 %v1089
        %4949 = vmatprep.subr.bf16.mxu0 %v1098
        %4950 = vmatpush1.bf16.msra.mxu0 %v1097
        %4951 = vmatprep.subr.bf16.mxu0 %v1106
        %4952 = vmatpush1.bf16.msra.mxu0 %v1105
        %4953 = vmatprep.subr.bf16.mxu0 %v1114
        %4954 = vmatpush1.bf16.msra.mxu0 %v1113
        %4955 = vmatprep.subr.bf16.mxu0 %v1122
        %4956 = vmatpush1.bf16.msra.mxu0 %v1121
        %4957 = vmatprep.subr.bf16.mxu0 %v1130
        %4958 = vmatpush1.bf16.msra.mxu0 %v1129
        %4959 = vmatprep.subr.bf16.mxu0 %v1138
        %4960 = vmatpush1.bf16.msra.mxu0 %v1137
        %4961 = vmatprep.subr.bf16.mxu0 %v1146
        %4962 = vmatpush1.bf16.msra.mxu0 %v1145
        %4963 = vmatprep.subr.bf16.mxu0 %v1154
        %4964 = vmatpush1.bf16.msra.mxu0 %v1153
        %4965 = vmatprep.subr.bf16.mxu0 %v1162
        %4966 = vmatpush1.bf16.msra.mxu0 %v1161
        %4967 = vmatprep.mubr.bf16.mxu0 %v4805
        %4968 = vmatmul.mubr.bf16.gmra.mrb[0].mxu0 %v4804
        %v4969 = vpop.f32.mrb[0].mxu0
        %v4970 = vadd.f32 0.0, %v4969
        %v4971 = vpop.f32.mrb[0].mxu0
        %v4972 = vadd.f32 0.0, %v4971
        %v4973 = vpop.f32.mrb[0].mxu0
        %v4974 = vadd.f32 0.0, %v4973
        %v4975 = vpop.f32.mrb[0].mxu0
        %v4976 = vadd.f32 0.0, %v4975
        %4977 = vdwg.mxu0
        %v4978 = vadd.f32 %v4788, %v4841
        %v4979 = vadd.f32 %v4789, %v4843
        %v4980 = vadd.f32 %v4790, %v4884
        %v4981 = vadd.f32 %v4791, %v4886
        %v4982 = vadd.f32 %v4792, %v4927
        %v4983 = vadd.f32 %v4793, %v4929
        %v4984 = vadd.f32 %v4794, %v4970
        %v4985 = vadd.f32 %v4795, %v4972
        %v4986 = vadd.f32 %v4796, %v4845
        %v4987 = vadd.f32 %v4797, %v4847
        %v4988 = vadd.f32 %v4798, %v4888
        %v4989 = vadd.f32 %v4799, %v4890
        %v4990 = vadd.f32 %v4800, %v4931
        %v4991 = vadd.f32 %v4801, %v4933
        %v4992 = vadd.f32 %v4802, %v4974
        %v4993 = vadd.f32 %v4803, %v4976
        %v4994 = vmul.f32 %v4978, 0.5
        %v4995 = vmul.f32 %v4986, 0.5
        %v4996 = vtanh.pop %v4994
        %v4997 = vtanh.pop %v4995
        %v4998 = vmul.f32 %v4996, 0.5
        %v4999 = vmul.f32 %v4997, 0.5
        %v5000 = vadd.f32 %v4998, 0.5
        %v5001 = vadd.f32 %v4999, 0.5
        %v5002 = vmul.f32 %v4979, 0.5
        %v5003 = vmul.f32 %v4987, 0.5
        %v5004 = vtanh.pop %v5002
        %v5005 = vtanh.pop %v5003
        %v5006 = vmul.f32 %v5004, 0.5
        %v5007 = vmul.f32 %v5005, 0.5
        %v5008 = vadd.f32 %v5006, 0.5
        %v5009 = vadd.f32 %v5007, 0.5
        %v5010 = vtanh.pop %v4980
        %v5011 = vtanh.pop %v4988
        %v5012 = vmul.f32 %v4981, 0.5
        %v5013 = vmul.f32 %v4989, 0.5
        %v5014 = vtanh.pop %v5012
        %v5015 = vtanh.pop %v5013
        %v5016 = vmul.f32 %v5014, 0.5
        %v5017 = vmul.f32 %v5015, 0.5
        %v5018 = vadd.f32 %v5016, 0.5
        %v5019 = vadd.f32 %v5017, 0.5
        %v5020 = vmul.f32 %v4982, 0.5
        %v5021 = vmul.f32 %v4990, 0.5
        %v5022 = vtanh.pop %v5020
        %v5023 = vtanh.pop %v5021
        %v5024 = vmul.f32 %v5022, 0.5
        %v5025 = vmul.f32 %v5023, 0.5
        %v5026 = vadd.f32 %v5024, 0.5
        %v5027 = vadd.f32 %v5025, 0.5
        %v5028 = vmul.f32 %v4983, 0.5
        %v5029 = vmul.f32 %v4991, 0.5
        %v5030 = vtanh.pop %v5028
        %v5031 = vtanh.pop %v5029
        %v5032 = vmul.f32 %v5030, 0.5
        %v5033 = vmul.f32 %v5031, 0.5
        %v5034 = vadd.f32 %v5032, 0.5
        %v5035 = vadd.f32 %v5033, 0.5
        %v5036 = vtanh.pop %v4984
        %v5037 = vtanh.pop %v4992
        %v5038 = vmul.f32 %v4985, 0.5
        %v5039 = vmul.f32 %v4993, 0.5
        %v5040 = vtanh.pop %v5038
        %v5041 = vtanh.pop %v5039
        %v5042 = vmul.f32 %v5040, 0.5
        %v5043 = vmul.f32 %v5041, 0.5
        %v5044 = vadd.f32 %v5042, 0.5
        %v5045 = vadd.f32 %v5043, 0.5
        %v5046 = vmul.f32 %v5008, %v4757
        %v5047 = vmul.f32 %v5009, %v4758
        %v5048 = vmul.f32 %v5000, %v5010
        %v5049 = vmul.f32 %v5001, %v5011
        %v5050 = vadd.f32 %v5046, %v5048
        %v5051 = vadd.f32 %v5047, %v5049
        %v5052 = vmul.f32 %v5034, %v4763
        %v5053 = vmul.f32 %v5035, %v4764
        %v5054 = vmul.f32 %v5026, %v5036
        %v5055 = vmul.f32 %v5027, %v5037
        %v5056 = vadd.f32 %v5052, %v5054
        %v5057 = vadd.f32 %v5053, %v5055
        %v5058 = vtanh.pop %v5050
        %v5059 = vtanh.pop %v5051
        %v5060 = vmul.f32 %v5018, %v5058
        %v5061 = vmul.f32 %v5019, %v5059
        %v5062 = vtanh.pop %v5056
        %v5063 = vtanh.pop %v5057
        %v5064 = vmul.f32 %v5044, %v5062
        %v5065 = vmul.f32 %v5045, %v5063
        %s5066 = scalar_lea.vmem %s463, 192 [#allocation7]
        %5067 = vst [vmem:[%s5066] sm:$0xff] %v5060
        %5068 = vst [vmem:[%s5066 + $0x8] sm:$0xff] %v5061
        %s5069 = scalar_lea.vmem %s469, 48 [#allocation8]
        %5070 = vst [vmem:[%s5069] sm:$0xff] %v5064
        %5071 = vst [vmem:[%s5069 + $0x8] sm:$0xff] %v5065
        %s5072 = scalar_lea.vmem %s446, 832 [#allocation6]
        %v5073 = vld [vmem:[%s5072] sm:$0xff]
        %v5074 = vld [vmem:[%s5072 + $0x8] sm:$0xff]
        %v5075 = vld [vmem:[%s5072 + $0x10] sm:$0xff]
        %v5076 = vld [vmem:[%s5072 + $0x18] sm:$0xff]
        %v5077 = vld [vmem:[%s5072 + $0x20] sm:$0xff]
        %v5078 = vld [vmem:[%s5072 + $0x28] sm:$0xff]
        %v5079 = vld [vmem:[%s5072 + $0x30] sm:$0xff]
        %v5080 = vld [vmem:[%s5072 + $0x38] sm:$0xff]
        %v5081 = vunpack.c.l.bf16 %v5073
        %v5082 = vunpack.c.h.bf16 %v5073
        %v5083 = vunpack.c.l.bf16 %v5074
        %v5084 = vunpack.c.h.bf16 %v5074
        %v5085 = vunpack.c.l.bf16 %v5075
        %v5086 = vunpack.c.h.bf16 %v5075
        %v5087 = vunpack.c.l.bf16 %v5076
        %v5088 = vunpack.c.h.bf16 %v5076
        %v5089 = vunpack.c.l.bf16 %v5077
        %v5090 = vunpack.c.h.bf16 %v5077
        %v5091 = vunpack.c.l.bf16 %v5078
        %v5092 = vunpack.c.h.bf16 %v5078
        %v5093 = vunpack.c.l.bf16 %v5079
        %v5094 = vunpack.c.h.bf16 %v5079
        %v5095 = vunpack.c.l.bf16 %v5080
        %v5096 = vunpack.c.h.bf16 %v5080
        %v5097 = vpack.c.bf16 %v5061, %v5060
        %v5098 = vpack.c.bf16 %v5065, %v5064
        %5099 = vmatprep.subr.bf16.mxu0 %v1036
        %5100 = vmatpush1.bf16.msra.mxu0 %v1035
        %5101 = vmatprep.subr.bf16.mxu0 %v1044
        %5102 = vmatpush1.bf16.msra.mxu0 %v1043
        %5103 = vmatprep.subr.bf16.mxu0 %v1052
        %5104 = vmatpush1.bf16.msra.mxu0 %v1051
        %5105 = vmatprep.subr.bf16.mxu0 %v1060
        %5106 = vmatpush1.bf16.msra.mxu0 %v1059
        %5107 = vmatprep.subr.bf16.mxu0 %v1068
        %5108 = vmatpush1.bf16.msra.mxu0 %v1067
        %5109 = vmatprep.subr.bf16.mxu0 %v1076
        %5110 = vmatpush1.bf16.msra.mxu0 %v1075
        %5111 = vmatprep.subr.bf16.mxu0 %v1084
        %5112 = vmatpush1.bf16.msra.mxu0 %v1083
        %5113 = vmatprep.subr.bf16.mxu0 %v1092
        %5114 = vmatpush1.bf16.msra.mxu0 %v1091
        %5115 = vmatprep.subr.bf16.mxu0 %v1100
        %5116 = vmatpush1.bf16.msra.mxu0 %v1099
        %5117 = vmatprep.subr.bf16.mxu0 %v1108
        %5118 = vmatpush1.bf16.msra.mxu0 %v1107
        %5119 = vmatprep.subr.bf16.mxu0 %v1116
        %5120 = vmatpush1.bf16.msra.mxu0 %v1115
        %5121 = vmatprep.subr.bf16.mxu0 %v1124
        %5122 = vmatpush1.bf16.msra.mxu0 %v1123
        %5123 = vmatprep.subr.bf16.mxu0 %v1132
        %5124 = vmatpush1.bf16.msra.mxu0 %v1131
        %5125 = vmatprep.subr.bf16.mxu0 %v1140
        %5126 = vmatpush1.bf16.msra.mxu0 %v1139
        %5127 = vmatprep.subr.bf16.mxu0 %v1148
        %5128 = vmatpush1.bf16.msra.mxu0 %v1147
        %5129 = vmatprep.subr.bf16.mxu0 %v1156
        %5130 = vmatpush1.bf16.msra.mxu0 %v1155
        %5131 = vmatprep.mubr.bf16.mxu0 %v5098
        %5132 = vmatmul.mubr.bf16.gmra.mrb[0].mxu0 %v5097
        %v5133 = vpop.f32.mrb[0].mxu0
        %v5134 = vadd.f32 0.0, %v5133
        %v5135 = vpop.f32.mrb[0].mxu0
        %v5136 = vadd.f32 0.0, %v5135
        %v5137 = vpop.f32.mrb[0].mxu0
        %v5138 = vadd.f32 0.0, %v5137
        %v5139 = vpop.f32.mrb[0].mxu0
        %v5140 = vadd.f32 0.0, %v5139
        %5141 = vdwg.mxu0
        %5142 = vmatprep.subr.bf16.mxu0 %v1038
        %5143 = vmatpush1.bf16.msra.mxu0 %v1037
        %5144 = vmatprep.subr.bf16.mxu0 %v1046
        %5145 = vmatpush1.bf16.msra.mxu0 %v1045
        %5146 = vmatprep.subr.bf16.mxu0 %v1054
        %5147 = vmatpush1.bf16.msra.mxu0 %v1053
        %5148 = vmatprep.subr.bf16.mxu0 %v1062
        %5149 = vmatpush1.bf16.msra.mxu0 %v1061
        %5150 = vmatprep.subr.bf16.mxu0 %v1070
        %5151 = vmatpush1.bf16.msra.mxu0 %v1069
        %5152 = vmatprep.subr.bf16.mxu0 %v1078
        %5153 = vmatpush1.bf16.msra.mxu0 %v1077
        %5154 = vmatprep.subr.bf16.mxu0 %v1086
        %5155 = vmatpush1.bf16.msra.mxu0 %v1085
        %5156 = vmatprep.subr.bf16.mxu0 %v1094
        %5157 = vmatpush1.bf16.msra.mxu0 %v1093
        %5158 = vmatprep.subr.bf16.mxu0 %v1102
        %5159 = vmatpush1.bf16.msra.mxu0 %v1101
        %5160 = vmatprep.subr.bf16.mxu0 %v1110
        %5161 = vmatpush1.bf16.msra.mxu0 %v1109
        %5162 = vmatprep.subr.bf16.mxu0 %v1118
        %5163 = vmatpush1.bf16.msra.mxu0 %v1117
        %5164 = vmatprep.subr.bf16.mxu0 %v1126
        %5165 = vmatpush1.bf16.msra.mxu0 %v1125
        %5166 = vmatprep.subr.bf16.mxu0 %v1134
        %5167 = vmatpush1.bf16.msra.mxu0 %v1133
        %5168 = vmatprep.subr.bf16.mxu0 %v1142
        %5169 = vmatpush1.bf16.msra.mxu0 %v1141
        %5170 = vmatprep.subr.bf16.mxu0 %v1150
        %5171 = vmatpush1.bf16.msra.mxu0 %v1149
        %5172 = vmatprep.subr.bf16.mxu0 %v1158
        %5173 = vmatpush1.bf16.msra.mxu0 %v1157
        %5174 = vmatprep.mubr.bf16.mxu0 %v5098
        %5175 = vmatmul.mubr.bf16.gmra.mrb[0].mxu0 %v5097
        %v5176 = vpop.f32.mrb[0].mxu0
        %v5177 = vadd.f32 0.0, %v5176
        %v5178 = vpop.f32.mrb[0].mxu0
        %v5179 = vadd.f32 0.0, %v5178
        %v5180 = vpop.f32.mrb[0].mxu0
        %v5181 = vadd.f32 0.0, %v5180
        %v5182 = vpop.f32.mrb[0].mxu0
        %v5183 = vadd.f32 0.0, %v5182
        %5184 = vdwg.mxu0
        %5185 = vmatprep.subr.bf16.mxu0 %v1040
        %5186 = vmatpush1.bf16.msra.mxu0 %v1039
        %5187 = vmatprep.subr.bf16.mxu0 %v1048
        %5188 = vmatpush1.bf16.msra.mxu0 %v1047
        %5189 = vmatprep.subr.bf16.mxu0 %v1056
        %5190 = vmatpush1.bf16.msra.mxu0 %v1055
        %5191 = vmatprep.subr.bf16.mxu0 %v1064
        %5192 = vmatpush1.bf16.msra.mxu0 %v1063
        %5193 = vmatprep.subr.bf16.mxu0 %v1072
        %5194 = vmatpush1.bf16.msra.mxu0 %v1071
        %5195 = vmatprep.subr.bf16.mxu0 %v1080
        %5196 = vmatpush1.bf16.msra.mxu0 %v1079
        %5197 = vmatprep.subr.bf16.mxu0 %v1088
        %5198 = vmatpush1.bf16.msra.mxu0 %v1087
        %5199 = vmatprep.subr.bf16.mxu0 %v1096
        %5200 = vmatpush1.bf16.msra.mxu0 %v1095
        %5201 = vmatprep.subr.bf16.mxu0 %v1104
        %5202 = vmatpush1.bf16.msra.mxu0 %v1103
        %5203 = vmatprep.subr.bf16.mxu0 %v1112
        %5204 = vmatpush1.bf16.msra.mxu0 %v1111
        %5205 = vmatprep.subr.bf16.mxu0 %v1120
        %5206 = vmatpush1.bf16.msra.mxu0 %v1119
        %5207 = vmatprep.subr.bf16.mxu0 %v1128
        %5208 = vmatpush1.bf16.msra.mxu0 %v1127
        %5209 = vmatprep.subr.bf16.mxu0 %v1136
        %5210 = vmatpush1.bf16.msra.mxu0 %v1135
        %5211 = vmatprep.subr.bf16.mxu0 %v1144
        %5212 = vmatpush1.bf16.msra.mxu0 %v1143
        %5213 = vmatprep.subr.bf16.mxu0 %v1152
        %5214 = vmatpush1.bf16.msra.mxu0 %v1151
        %5215 = vmatprep.subr.bf16.mxu0 %v1160
        %5216 = vmatpush1.bf16.msra.mxu0 %v1159
        %5217 = vmatprep.mubr.bf16.mxu0 %v5098
        %5218 = vmatmul.mubr.bf16.gmra.mrb[0].mxu0 %v5097
        %v5219 = vpop.f32.mrb[0].mxu0
        %v5220 = vadd.f32 0.0, %v5219
        %v5221 = vpop.f32.mrb[0].mxu0
        %v5222 = vadd.f32 0.0, %v5221
        %v5223 = vpop.f32.mrb[0].mxu0
        %v5224 = vadd.f32 0.0, %v5223
        %v5225 = vpop.f32.mrb[0].mxu0
        %v5226 = vadd.f32 0.0, %v5225
        %5227 = vdwg.mxu0
        %5228 = vmatprep.subr.bf16.mxu0 %v1042
        %5229 = vmatpush1.bf16.msra.mxu0 %v1041
        %5230 = vmatprep.subr.bf16.mxu0 %v1050
        %5231 = vmatpush1.bf16.msra.mxu0 %v1049
        %5232 = vmatprep.subr.bf16.mxu0 %v1058
        %5233 = vmatpush1.bf16.msra.mxu0 %v1057
        %5234 = vmatprep.subr.bf16.mxu0 %v1066
        %5235 = vmatpush1.bf16.msra.mxu0 %v1065
        %5236 = vmatprep.subr.bf16.mxu0 %v1074
        %5237 = vmatpush1.bf16.msra.mxu0 %v1073
        %5238 = vmatprep.subr.bf16.mxu0 %v1082
        %5239 = vmatpush1.bf16.msra.mxu0 %v1081
        %5240 = vmatprep.subr.bf16.mxu0 %v1090
        %5241 = vmatpush1.bf16.msra.mxu0 %v1089
        %5242 = vmatprep.subr.bf16.mxu0 %v1098
        %5243 = vmatpush1.bf16.msra.mxu0 %v1097
        %5244 = vmatprep.subr.bf16.mxu0 %v1106
        %5245 = vmatpush1.bf16.msra.mxu0 %v1105
        %5246 = vmatprep.subr.bf16.mxu0 %v1114
        %5247 = vmatpush1.bf16.msra.mxu0 %v1113
        %5248 = vmatprep.subr.bf16.mxu0 %v1122
        %5249 = vmatpush1.bf16.msra.mxu0 %v1121
        %5250 = vmatprep.subr.bf16.mxu0 %v1130
        %5251 = vmatpush1.bf16.msra.mxu0 %v1129
        %5252 = vmatprep.subr.bf16.mxu0 %v1138
        %5253 = vmatpush1.bf16.msra.mxu0 %v1137
        %5254 = vmatprep.subr.bf16.mxu0 %v1146
        %5255 = vmatpush1.bf16.msra.mxu0 %v1145
        %5256 = vmatprep.subr.bf16.mxu0 %v1154
        %5257 = vmatpush1.bf16.msra.mxu0 %v1153
        %5258 = vmatprep.subr.bf16.mxu0 %v1162
        %5259 = vmatpush1.bf16.msra.mxu0 %v1161
        %5260 = vmatprep.mubr.bf16.mxu0 %v5098
        %5261 = vmatmul.mubr.bf16.gmra.mrb[0].mxu0 %v5097
        %v5262 = vpop.f32.mrb[0].mxu0
        %v5263 = vadd.f32 0.0, %v5262
        %v5264 = vpop.f32.mrb[0].mxu0
        %v5265 = vadd.f32 0.0, %v5264
        %v5266 = vpop.f32.mrb[0].mxu0
        %v5267 = vadd.f32 0.0, %v5266
        %v5268 = vpop.f32.mrb[0].mxu0
        %v5269 = vadd.f32 0.0, %v5268
        %5270 = vdwg.mxu0
        %v5271 = vadd.f32 %v5081, %v5134
        %v5272 = vadd.f32 %v5082, %v5136
        %v5273 = vadd.f32 %v5083, %v5177
        %v5274 = vadd.f32 %v5084, %v5179
        %v5275 = vadd.f32 %v5085, %v5220
        %v5276 = vadd.f32 %v5086, %v5222
        %v5277 = vadd.f32 %v5087, %v5263
        %v5278 = vadd.f32 %v5088, %v5265
        %v5279 = vadd.f32 %v5089, %v5138
        %v5280 = vadd.f32 %v5090, %v5140
        %v5281 = vadd.f32 %v5091, %v5181
        %v5282 = vadd.f32 %v5092, %v5183
        %v5283 = vadd.f32 %v5093, %v5224
        %v5284 = vadd.f32 %v5094, %v5226
        %v5285 = vadd.f32 %v5095, %v5267
        %v5286 = vadd.f32 %v5096, %v5269
        %v5287 = vmul.f32 %v5271, 0.5
        %v5288 = vmul.f32 %v5279, 0.5
        %v5289 = vtanh.pop %v5287
        %v5290 = vtanh.pop %v5288
        %v5291 = vmul.f32 %v5289, 0.5
        %v5292 = vmul.f32 %v5290, 0.5
        %v5293 = vadd.f32 %v5291, 0.5
        %v5294 = vadd.f32 %v5292, 0.5
        %v5295 = vmul.f32 %v5272, 0.5
        %v5296 = vmul.f32 %v5280, 0.5
        %v5297 = vtanh.pop %v5295
        %v5298 = vtanh.pop %v5296
        %v5299 = vmul.f32 %v5297, 0.5
        %v5300 = vmul.f32 %v5298, 0.5
        %v5301 = vadd.f32 %v5299, 0.5
        %v5302 = vadd.f32 %v5300, 0.5
        %v5303 = vtanh.pop %v5273
        %v5304 = vtanh.pop %v5281
        %v5305 = vmul.f32 %v5274, 0.5
        %v5306 = vmul.f32 %v5282, 0.5
        %v5307 = vtanh.pop %v5305
        %v5308 = vtanh.pop %v5306
        %v5309 = vmul.f32 %v5307, 0.5
        %v5310 = vmul.f32 %v5308, 0.5
        %v5311 = vadd.f32 %v5309, 0.5
        %v5312 = vadd.f32 %v5310, 0.5
        %v5313 = vmul.f32 %v5275, 0.5
        %v5314 = vmul.f32 %v5283, 0.5
        %v5315 = vtanh.pop %v5313
        %v5316 = vtanh.pop %v5314
        %v5317 = vmul.f32 %v5315, 0.5
        %v5318 = vmul.f32 %v5316, 0.5
        %v5319 = vadd.f32 %v5317, 0.5
        %v5320 = vadd.f32 %v5318, 0.5
        %v5321 = vmul.f32 %v5276, 0.5
        %v5322 = vmul.f32 %v5284, 0.5
        %v5323 = vtanh.pop %v5321
        %v5324 = vtanh.pop %v5322
        %v5325 = vmul.f32 %v5323, 0.5
        %v5326 = vmul.f32 %v5324, 0.5
        %v5327 = vadd.f32 %v5325, 0.5
        %v5328 = vadd.f32 %v5326, 0.5
        %v5329 = vtanh.pop %v5277
        %v5330 = vtanh.pop %v5285
        %v5331 = vmul.f32 %v5278, 0.5
        %v5332 = vmul.f32 %v5286, 0.5
        %v5333 = vtanh.pop %v5331
        %v5334 = vtanh.pop %v5332
        %v5335 = vmul.f32 %v5333, 0.5
        %v5336 = vmul.f32 %v5334, 0.5
        %v5337 = vadd.f32 %v5335, 0.5
        %v5338 = vadd.f32 %v5336, 0.5
        %v5339 = vmul.f32 %v5301, %v5050
        %v5340 = vmul.f32 %v5302, %v5051
        %v5341 = vmul.f32 %v5293, %v5303
        %v5342 = vmul.f32 %v5294, %v5304
        %v5343 = vadd.f32 %v5339, %v5341
        %v5344 = vadd.f32 %v5340, %v5342
        %v5345 = vmul.f32 %v5327, %v5056
        %v5346 = vmul.f32 %v5328, %v5057
        %v5347 = vmul.f32 %v5319, %v5329
        %v5348 = vmul.f32 %v5320, %v5330
        %v5349 = vadd.f32 %v5345, %v5347
        %v5350 = vadd.f32 %v5346, %v5348
        %v5351 = vtanh.pop %v5343
        %v5352 = vtanh.pop %v5344
        %v5353 = vmul.f32 %v5311, %v5351
        %v5354 = vmul.f32 %v5312, %v5352
        %v5355 = vtanh.pop %v5349
        %v5356 = vtanh.pop %v5350
        %v5357 = vmul.f32 %v5337, %v5355
        %v5358 = vmul.f32 %v5338, %v5356
        %s5359 = scalar_lea.vmem %s463, 208 [#allocation7]
        %5360 = vst [vmem:[%s5359] sm:$0xff] %v5353
        %5361 = vst [vmem:[%s5359 + $0x8] sm:$0xff] %v5354
        %s5362 = scalar_lea.vmem %s469, 32 [#allocation8]
        %5363 = vst [vmem:[%s5362] sm:$0xff] %v5357
        %5364 = vst [vmem:[%s5362 + $0x8] sm:$0xff] %v5358
        %s5365 = scalar_lea.vmem %s446, 896 [#allocation6]
        %v5366 = vld [vmem:[%s5365] sm:$0xff]
        %v5367 = vld [vmem:[%s5365 + $0x8] sm:$0xff]
        %v5368 = vld [vmem:[%s5365 + $0x10] sm:$0xff]
        %v5369 = vld [vmem:[%s5365 + $0x18] sm:$0xff]
        %v5370 = vld [vmem:[%s5365 + $0x20] sm:$0xff]
        %v5371 = vld [vmem:[%s5365 + $0x28] sm:$0xff]
        %v5372 = vld [vmem:[%s5365 + $0x30] sm:$0xff]
        %v5373 = vld [vmem:[%s5365 + $0x38] sm:$0xff]
        %v5374 = vunpack.c.l.bf16 %v5366
        %v5375 = vunpack.c.h.bf16 %v5366
        %v5376 = vunpack.c.l.bf16 %v5367
        %v5377 = vunpack.c.h.bf16 %v5367
        %v5378 = vunpack.c.l.bf16 %v5368
        %v5379 = vunpack.c.h.bf16 %v5368
        %v5380 = vunpack.c.l.bf16 %v5369
        %v5381 = vunpack.c.h.bf16 %v5369
        %v5382 = vunpack.c.l.bf16 %v5370
        %v5383 = vunpack.c.h.bf16 %v5370
        %v5384 = vunpack.c.l.bf16 %v5371
        %v5385 = vunpack.c.h.bf16 %v5371
        %v5386 = vunpack.c.l.bf16 %v5372
        %v5387 = vunpack.c.h.bf16 %v5372
        %v5388 = vunpack.c.l.bf16 %v5373
        %v5389 = vunpack.c.h.bf16 %v5373
        %v5390 = vpack.c.bf16 %v5354, %v5353
        %v5391 = vpack.c.bf16 %v5358, %v5357
        %5392 = vmatprep.subr.bf16.mxu0 %v1036
        %5393 = vmatpush1.bf16.msra.mxu0 %v1035
        %5394 = vmatprep.subr.bf16.mxu0 %v1044
        %5395 = vmatpush1.bf16.msra.mxu0 %v1043
        %5396 = vmatprep.subr.bf16.mxu0 %v1052
        %5397 = vmatpush1.bf16.msra.mxu0 %v1051
        %5398 = vmatprep.subr.bf16.mxu0 %v1060
        %5399 = vmatpush1.bf16.msra.mxu0 %v1059
        %5400 = vmatprep.subr.bf16.mxu0 %v1068
        %5401 = vmatpush1.bf16.msra.mxu0 %v1067
        %5402 = vmatprep.subr.bf16.mxu0 %v1076
        %5403 = vmatpush1.bf16.msra.mxu0 %v1075
        %5404 = vmatprep.subr.bf16.mxu0 %v1084
        %5405 = vmatpush1.bf16.msra.mxu0 %v1083
        %5406 = vmatprep.subr.bf16.mxu0 %v1092
        %5407 = vmatpush1.bf16.msra.mxu0 %v1091
        %5408 = vmatprep.subr.bf16.mxu0 %v1100
        %5409 = vmatpush1.bf16.msra.mxu0 %v1099
        %5410 = vmatprep.subr.bf16.mxu0 %v1108
        %5411 = vmatpush1.bf16.msra.mxu0 %v1107
        %5412 = vmatprep.subr.bf16.mxu0 %v1116
        %5413 = vmatpush1.bf16.msra.mxu0 %v1115
        %5414 = vmatprep.subr.bf16.mxu0 %v1124
        %5415 = vmatpush1.bf16.msra.mxu0 %v1123
        %5416 = vmatprep.subr.bf16.mxu0 %v1132
        %5417 = vmatpush1.bf16.msra.mxu0 %v1131
        %5418 = vmatprep.subr.bf16.mxu0 %v1140
        %5419 = vmatpush1.bf16.msra.mxu0 %v1139
        %5420 = vmatprep.subr.bf16.mxu0 %v1148
        %5421 = vmatpush1.bf16.msra.mxu0 %v1147
        %5422 = vmatprep.subr.bf16.mxu0 %v1156
        %5423 = vmatpush1.bf16.msra.mxu0 %v1155
        %5424 = vmatprep.mubr.bf16.mxu0 %v5391
        %5425 = vmatmul.mubr.bf16.gmra.mrb[0].mxu0 %v5390
        %v5426 = vpop.f32.mrb[0].mxu0
        %v5427 = vadd.f32 0.0, %v5426
        %v5428 = vpop.f32.mrb[0].mxu0
        %v5429 = vadd.f32 0.0, %v5428
        %v5430 = vpop.f32.mrb[0].mxu0
        %v5431 = vadd.f32 0.0, %v5430
        %v5432 = vpop.f32.mrb[0].mxu0
        %v5433 = vadd.f32 0.0, %v5432
        %5434 = vdwg.mxu0
        %5435 = vmatprep.subr.bf16.mxu0 %v1038
        %5436 = vmatpush1.bf16.msra.mxu0 %v1037
        %5437 = vmatprep.subr.bf16.mxu0 %v1046
        %5438 = vmatpush1.bf16.msra.mxu0 %v1045
        %5439 = vmatprep.subr.bf16.mxu0 %v1054
        %5440 = vmatpush1.bf16.msra.mxu0 %v1053
        %5441 = vmatprep.subr.bf16.mxu0 %v1062
        %5442 = vmatpush1.bf16.msra.mxu0 %v1061
        %5443 = vmatprep.subr.bf16.mxu0 %v1070
        %5444 = vmatpush1.bf16.msra.mxu0 %v1069
        %5445 = vmatprep.subr.bf16.mxu0 %v1078
        %5446 = vmatpush1.bf16.msra.mxu0 %v1077
        %5447 = vmatprep.subr.bf16.mxu0 %v1086
        %5448 = vmatpush1.bf16.msra.mxu0 %v1085
        %5449 = vmatprep.subr.bf16.mxu0 %v1094
        %5450 = vmatpush1.bf16.msra.mxu0 %v1093
        %5451 = vmatprep.subr.bf16.mxu0 %v1102
        %5452 = vmatpush1.bf16.msra.mxu0 %v1101
        %5453 = vmatprep.subr.bf16.mxu0 %v1110
        %5454 = vmatpush1.bf16.msra.mxu0 %v1109
        %5455 = vmatprep.subr.bf16.mxu0 %v1118
        %5456 = vmatpush1.bf16.msra.mxu0 %v1117
        %5457 = vmatprep.subr.bf16.mxu0 %v1126
        %5458 = vmatpush1.bf16.msra.mxu0 %v1125
        %5459 = vmatprep.subr.bf16.mxu0 %v1134
        %5460 = vmatpush1.bf16.msra.mxu0 %v1133
        %5461 = vmatprep.subr.bf16.mxu0 %v1142
        %5462 = vmatpush1.bf16.msra.mxu0 %v1141
        %5463 = vmatprep.subr.bf16.mxu0 %v1150
        %5464 = vmatpush1.bf16.msra.mxu0 %v1149
        %5465 = vmatprep.subr.bf16.mxu0 %v1158
        %5466 = vmatpush1.bf16.msra.mxu0 %v1157
        %5467 = vmatprep.mubr.bf16.mxu0 %v5391
        %5468 = vmatmul.mubr.bf16.gmra.mrb[0].mxu0 %v5390
        %v5469 = vpop.f32.mrb[0].mxu0
        %v5470 = vadd.f32 0.0, %v5469
        %v5471 = vpop.f32.mrb[0].mxu0
        %v5472 = vadd.f32 0.0, %v5471
        %v5473 = vpop.f32.mrb[0].mxu0
        %v5474 = vadd.f32 0.0, %v5473
        %v5475 = vpop.f32.mrb[0].mxu0
        %v5476 = vadd.f32 0.0, %v5475
        %5477 = vdwg.mxu0
        %5478 = vmatprep.subr.bf16.mxu0 %v1040
        %5479 = vmatpush1.bf16.msra.mxu0 %v1039
        %5480 = vmatprep.subr.bf16.mxu0 %v1048
        %5481 = vmatpush1.bf16.msra.mxu0 %v1047
        %5482 = vmatprep.subr.bf16.mxu0 %v1056
        %5483 = vmatpush1.bf16.msra.mxu0 %v1055
        %5484 = vmatprep.subr.bf16.mxu0 %v1064
        %5485 = vmatpush1.bf16.msra.mxu0 %v1063
        %5486 = vmatprep.subr.bf16.mxu0 %v1072
        %5487 = vmatpush1.bf16.msra.mxu0 %v1071
        %5488 = vmatprep.subr.bf16.mxu0 %v1080
        %5489 = vmatpush1.bf16.msra.mxu0 %v1079
        %5490 = vmatprep.subr.bf16.mxu0 %v1088
        %5491 = vmatpush1.bf16.msra.mxu0 %v1087
        %5492 = vmatprep.subr.bf16.mxu0 %v1096
        %5493 = vmatpush1.bf16.msra.mxu0 %v1095
        %5494 = vmatprep.subr.bf16.mxu0 %v1104
        %5495 = vmatpush1.bf16.msra.mxu0 %v1103
        %5496 = vmatprep.subr.bf16.mxu0 %v1112
        %5497 = vmatpush1.bf16.msra.mxu0 %v1111
        %5498 = vmatprep.subr.bf16.mxu0 %v1120
        %5499 = vmatpush1.bf16.msra.mxu0 %v1119
        %5500 = vmatprep.subr.bf16.mxu0 %v1128
        %5501 = vmatpush1.bf16.msra.mxu0 %v1127
        %5502 = vmatprep.subr.bf16.mxu0 %v1136
        %5503 = vmatpush1.bf16.msra.mxu0 %v1135
        %5504 = vmatprep.subr.bf16.mxu0 %v1144
        %5505 = vmatpush1.bf16.msra.mxu0 %v1143
        %5506 = vmatprep.subr.bf16.mxu0 %v1152
        %5507 = vmatpush1.bf16.msra.mxu0 %v1151
        %5508 = vmatprep.subr.bf16.mxu0 %v1160
        %5509 = vmatpush1.bf16.msra.mxu0 %v1159
        %5510 = vmatprep.mubr.bf16.mxu0 %v5391
        %5511 = vmatmul.mubr.bf16.gmra.mrb[0].mxu0 %v5390
        %v5512 = vpop.f32.mrb[0].mxu0
        %v5513 = vadd.f32 0.0, %v5512
        %v5514 = vpop.f32.mrb[0].mxu0
        %v5515 = vadd.f32 0.0, %v5514
        %v5516 = vpop.f32.mrb[0].mxu0
        %v5517 = vadd.f32 0.0, %v5516
        %v5518 = vpop.f32.mrb[0].mxu0
        %v5519 = vadd.f32 0.0, %v5518
        %5520 = vdwg.mxu0
        %5521 = vmatprep.subr.bf16.mxu0 %v1042
        %5522 = vmatpush1.bf16.msra.mxu0 %v1041
        %5523 = vmatprep.subr.bf16.mxu0 %v1050
        %5524 = vmatpush1.bf16.msra.mxu0 %v1049
        %5525 = vmatprep.subr.bf16.mxu0 %v1058
        %5526 = vmatpush1.bf16.msra.mxu0 %v1057
        %5527 = vmatprep.subr.bf16.mxu0 %v1066
        %5528 = vmatpush1.bf16.msra.mxu0 %v1065
        %5529 = vmatprep.subr.bf16.mxu0 %v1074
        %5530 = vmatpush1.bf16.msra.mxu0 %v1073
        %5531 = vmatprep.subr.bf16.mxu0 %v1082
        %5532 = vmatpush1.bf16.msra.mxu0 %v1081
        %5533 = vmatprep.subr.bf16.mxu0 %v1090
        %5534 = vmatpush1.bf16.msra.mxu0 %v1089
        %5535 = vmatprep.subr.bf16.mxu0 %v1098
        %5536 = vmatpush1.bf16.msra.mxu0 %v1097
        %5537 = vmatprep.subr.bf16.mxu0 %v1106
        %5538 = vmatpush1.bf16.msra.mxu0 %v1105
        %5539 = vmatprep.subr.bf16.mxu0 %v1114
        %5540 = vmatpush1.bf16.msra.mxu0 %v1113
        %5541 = vmatprep.subr.bf16.mxu0 %v1122
        %5542 = vmatpush1.bf16.msra.mxu0 %v1121
        %5543 = vmatprep.subr.bf16.mxu0 %v1130
        %5544 = vmatpush1.bf16.msra.mxu0 %v1129
        %5545 = vmatprep.subr.bf16.mxu0 %v1138
        %5546 = vmatpush1.bf16.msra.mxu0 %v1137
        %5547 = vmatprep.subr.bf16.mxu0 %v1146
        %5548 = vmatpush1.bf16.msra.mxu0 %v1145
        %5549 = vmatprep.subr.bf16.mxu0 %v1154
        %5550 = vmatpush1.bf16.msra.mxu0 %v1153
        %5551 = vmatprep.subr.bf16.mxu0 %v1162
        %5552 = vmatpush1.bf16.msra.mxu0 %v1161
        %5553 = vmatprep.mubr.bf16.mxu0 %v5391
        %5554 = vmatmul.mubr.bf16.gmra.mrb[0].mxu0 %v5390
        %v5555 = vpop.f32.mrb[0].mxu0
        %v5556 = vadd.f32 0.0, %v5555
        %v5557 = vpop.f32.mrb[0].mxu0
        %v5558 = vadd.f32 0.0, %v5557
        %v5559 = vpop.f32.mrb[0].mxu0
        %v5560 = vadd.f32 0.0, %v5559
        %v5561 = vpop.f32.mrb[0].mxu0
        %v5562 = vadd.f32 0.0, %v5561
        %5563 = vdwg.mxu0
        %v5564 = vadd.f32 %v5374, %v5427
        %v5565 = vadd.f32 %v5375, %v5429
        %v5566 = vadd.f32 %v5376, %v5470
        %v5567 = vadd.f32 %v5377, %v5472
        %v5568 = vadd.f32 %v5378, %v5513
        %v5569 = vadd.f32 %v5379, %v5515
        %v5570 = vadd.f32 %v5380, %v5556
        %v5571 = vadd.f32 %v5381, %v5558
        %v5572 = vadd.f32 %v5382, %v5431
        %v5573 = vadd.f32 %v5383, %v5433
        %v5574 = vadd.f32 %v5384, %v5474
        %v5575 = vadd.f32 %v5385, %v5476
        %v5576 = vadd.f32 %v5386, %v5517
        %v5577 = vadd.f32 %v5387, %v5519
        %v5578 = vadd.f32 %v5388, %v5560
        %v5579 = vadd.f32 %v5389, %v5562
        %v5580 = vmul.f32 %v5564, 0.5
        %v5581 = vmul.f32 %v5572, 0.5
        %v5582 = vtanh.pop %v5580
        %v5583 = vtanh.pop %v5581
        %v5584 = vmul.f32 %v5582, 0.5
        %v5585 = vmul.f32 %v5583, 0.5
        %v5586 = vadd.f32 %v5584, 0.5
        %v5587 = vadd.f32 %v5585, 0.5
        %v5588 = vmul.f32 %v5565, 0.5
        %v5589 = vmul.f32 %v5573, 0.5
        %v5590 = vtanh.pop %v5588
        %v5591 = vtanh.pop %v5589
        %v5592 = vmul.f32 %v5590, 0.5
        %v5593 = vmul.f32 %v5591, 0.5
        %v5594 = vadd.f32 %v5592, 0.5
        %v5595 = vadd.f32 %v5593, 0.5
        %v5596 = vtanh.pop %v5566
        %v5597 = vtanh.pop %v5574
        %v5598 = vmul.f32 %v5567, 0.5
        %v5599 = vmul.f32 %v5575, 0.5
        %v5600 = vtanh.pop %v5598
        %v5601 = vtanh.pop %v5599
        %v5602 = vmul.f32 %v5600, 0.5
        %v5603 = vmul.f32 %v5601, 0.5
        %v5604 = vadd.f32 %v5602, 0.5
        %v5605 = vadd.f32 %v5603, 0.5
        %v5606 = vmul.f32 %v5568, 0.5
        %v5607 = vmul.f32 %v5576, 0.5
        %v5608 = vtanh.pop %v5606
        %v5609 = vtanh.pop %v5607
        %v5610 = vmul.f32 %v5608, 0.5
        %v5611 = vmul.f32 %v5609, 0.5
        %v5612 = vadd.f32 %v5610, 0.5
        %v5613 = vadd.f32 %v5611, 0.5
        %v5614 = vmul.f32 %v5569, 0.5
        %v5615 = vmul.f32 %v5577, 0.5
        %v5616 = vtanh.pop %v5614
        %v5617 = vtanh.pop %v5615
        %v5618 = vmul.f32 %v5616, 0.5
        %v5619 = vmul.f32 %v5617, 0.5
        %v5620 = vadd.f32 %v5618, 0.5
        %v5621 = vadd.f32 %v5619, 0.5
        %v5622 = vtanh.pop %v5570
        %v5623 = vtanh.pop %v5578
        %v5624 = vmul.f32 %v5571, 0.5
        %v5625 = vmul.f32 %v5579, 0.5
        %v5626 = vtanh.pop %v5624
        %v5627 = vtanh.pop %v5625
        %v5628 = vmul.f32 %v5626, 0.5
        %v5629 = vmul.f32 %v5627, 0.5
        %v5630 = vadd.f32 %v5628, 0.5
        %v5631 = vadd.f32 %v5629, 0.5
        %v5632 = vmul.f32 %v5594, %v5343
        %v5633 = vmul.f32 %v5595, %v5344
        %v5634 = vmul.f32 %v5586, %v5596
        %v5635 = vmul.f32 %v5587, %v5597
        %v5636 = vadd.f32 %v5632, %v5634
        %v5637 = vadd.f32 %v5633, %v5635
        %v5638 = vmul.f32 %v5620, %v5349
        %v5639 = vmul.f32 %v5621, %v5350
        %v5640 = vmul.f32 %v5612, %v5622
        %v5641 = vmul.f32 %v5613, %v5623
        %v5642 = vadd.f32 %v5638, %v5640
        %v5643 = vadd.f32 %v5639, %v5641
        %v5644 = vtanh.pop %v5636
        %v5645 = vtanh.pop %v5637
        %v5646 = vmul.f32 %v5604, %v5644
        %v5647 = vmul.f32 %v5605, %v5645
        %v5648 = vtanh.pop %v5642
        %v5649 = vtanh.pop %v5643
        %v5650 = vmul.f32 %v5630, %v5648
        %v5651 = vmul.f32 %v5631, %v5649
        %s5652 = scalar_lea.vmem %s463, 224 [#allocation7]
        %5653 = vst [vmem:[%s5652] sm:$0xff] %v5646
        %5654 = vst [vmem:[%s5652 + $0x8] sm:$0xff] %v5647
        %s5655 = scalar_lea.vmem %s469, 16 [#allocation8]
        %5656 = vst [vmem:[%s5655] sm:$0xff] %v5650
        %5657 = vst [vmem:[%s5655 + $0x8] sm:$0xff] %v5651
        %s5658 = scalar_lea.vmem %s446, 960 [#allocation6]
        %v5659 = vld [vmem:[%s5658] sm:$0xff]
        %v5660 = vld [vmem:[%s5658 + $0x8] sm:$0xff]
        %v5661 = vld [vmem:[%s5658 + $0x10] sm:$0xff]
        %v5662 = vld [vmem:[%s5658 + $0x18] sm:$0xff]
        %v5663 = vld [vmem:[%s5658 + $0x20] sm:$0xff]
        %v5664 = vld [vmem:[%s5658 + $0x28] sm:$0xff]
        %v5665 = vld [vmem:[%s5658 + $0x30] sm:$0xff]
        %v5666 = vld [vmem:[%s5658 + $0x38] sm:$0xff]
        %v5667 = vunpack.c.l.bf16 %v5659
        %v5668 = vunpack.c.h.bf16 %v5659
        %v5669 = vunpack.c.l.bf16 %v5660
        %v5670 = vunpack.c.h.bf16 %v5660
        %v5671 = vunpack.c.l.bf16 %v5661
        %v5672 = vunpack.c.h.bf16 %v5661
        %v5673 = vunpack.c.l.bf16 %v5662
        %v5674 = vunpack.c.h.bf16 %v5662
        %v5675 = vunpack.c.l.bf16 %v5663
        %v5676 = vunpack.c.h.bf16 %v5663
        %v5677 = vunpack.c.l.bf16 %v5664
        %v5678 = vunpack.c.h.bf16 %v5664
        %v5679 = vunpack.c.l.bf16 %v5665
        %v5680 = vunpack.c.h.bf16 %v5665
        %v5681 = vunpack.c.l.bf16 %v5666
        %v5682 = vunpack.c.h.bf16 %v5666
        %v5683 = vpack.c.bf16 %v5647, %v5646
        %v5684 = vpack.c.bf16 %v5651, %v5650
        %5685 = vmatprep.subr.bf16.mxu0 %v1036
        %5686 = vmatpush1.bf16.msra.mxu0 %v1035
        %5687 = vmatprep.subr.bf16.mxu0 %v1044
        %5688 = vmatpush1.bf16.msra.mxu0 %v1043
        %5689 = vmatprep.subr.bf16.mxu0 %v1052
        %5690 = vmatpush1.bf16.msra.mxu0 %v1051
        %5691 = vmatprep.subr.bf16.mxu0 %v1060
        %5692 = vmatpush1.bf16.msra.mxu0 %v1059
        %5693 = vmatprep.subr.bf16.mxu0 %v1068
        %5694 = vmatpush1.bf16.msra.mxu0 %v1067
        %5695 = vmatprep.subr.bf16.mxu0 %v1076
        %5696 = vmatpush1.bf16.msra.mxu0 %v1075
        %5697 = vmatprep.subr.bf16.mxu0 %v1084
        %5698 = vmatpush1.bf16.msra.mxu0 %v1083
        %5699 = vmatprep.subr.bf16.mxu0 %v1092
        %5700 = vmatpush1.bf16.msra.mxu0 %v1091
        %5701 = vmatprep.subr.bf16.mxu0 %v1100
        %5702 = vmatpush1.bf16.msra.mxu0 %v1099
        %5703 = vmatprep.subr.bf16.mxu0 %v1108
        %5704 = vmatpush1.bf16.msra.mxu0 %v1107
        %5705 = vmatprep.subr.bf16.mxu0 %v1116
        %5706 = vmatpush1.bf16.msra.mxu0 %v1115
        %5707 = vmatprep.subr.bf16.mxu0 %v1124
        %5708 = vmatpush1.bf16.msra.mxu0 %v1123
        %5709 = vmatprep.subr.bf16.mxu0 %v1132
        %5710 = vmatpush1.bf16.msra.mxu0 %v1131
        %5711 = vmatprep.subr.bf16.mxu0 %v1140
        %5712 = vmatpush1.bf16.msra.mxu0 %v1139
        %5713 = vmatprep.subr.bf16.mxu0 %v1148
        %5714 = vmatpush1.bf16.msra.mxu0 %v1147
        %5715 = vmatprep.subr.bf16.mxu0 %v1156
        %5716 = vmatpush1.bf16.msra.mxu0 %v1155
        %5717 = vmatprep.mubr.bf16.mxu0 %v5684
        %5718 = vmatmul.mubr.bf16.gmra.mrb[0].mxu0 %v5683
        %v5719 = vpop.f32.mrb[0].mxu0
        %v5720 = vadd.f32 0.0, %v5719
        %v5721 = vpop.f32.mrb[0].mxu0
        %v5722 = vadd.f32 0.0, %v5721
        %v5723 = vpop.f32.mrb[0].mxu0
        %v5724 = vadd.f32 0.0, %v5723
        %v5725 = vpop.f32.mrb[0].mxu0
        %v5726 = vadd.f32 0.0, %v5725
        %5727 = vdwg.mxu0
        %5728 = vmatprep.subr.bf16.mxu0 %v1038
        %5729 = vmatpush1.bf16.msra.mxu0 %v1037
        %5730 = vmatprep.subr.bf16.mxu0 %v1046
        %5731 = vmatpush1.bf16.msra.mxu0 %v1045
        %5732 = vmatprep.subr.bf16.mxu0 %v1054
        %5733 = vmatpush1.bf16.msra.mxu0 %v1053
        %5734 = vmatprep.subr.bf16.mxu0 %v1062
        %5735 = vmatpush1.bf16.msra.mxu0 %v1061
        %5736 = vmatprep.subr.bf16.mxu0 %v1070
        %5737 = vmatpush1.bf16.msra.mxu0 %v1069
        %5738 = vmatprep.subr.bf16.mxu0 %v1078
        %5739 = vmatpush1.bf16.msra.mxu0 %v1077
        %5740 = vmatprep.subr.bf16.mxu0 %v1086
        %5741 = vmatpush1.bf16.msra.mxu0 %v1085
        %5742 = vmatprep.subr.bf16.mxu0 %v1094
        %5743 = vmatpush1.bf16.msra.mxu0 %v1093
        %5744 = vmatprep.subr.bf16.mxu0 %v1102
        %5745 = vmatpush1.bf16.msra.mxu0 %v1101
        %5746 = vmatprep.subr.bf16.mxu0 %v1110
        %5747 = vmatpush1.bf16.msra.mxu0 %v1109
        %5748 = vmatprep.subr.bf16.mxu0 %v1118
        %5749 = vmatpush1.bf16.msra.mxu0 %v1117
        %5750 = vmatprep.subr.bf16.mxu0 %v1126
        %5751 = vmatpush1.bf16.msra.mxu0 %v1125
        %5752 = vmatprep.subr.bf16.mxu0 %v1134
        %5753 = vmatpush1.bf16.msra.mxu0 %v1133
        %5754 = vmatprep.subr.bf16.mxu0 %v1142
        %5755 = vmatpush1.bf16.msra.mxu0 %v1141
        %5756 = vmatprep.subr.bf16.mxu0 %v1150
        %5757 = vmatpush1.bf16.msra.mxu0 %v1149
        %5758 = vmatprep.subr.bf16.mxu0 %v1158
        %5759 = vmatpush1.bf16.msra.mxu0 %v1157
        %5760 = vmatprep.mubr.bf16.mxu0 %v5684
        %5761 = vmatmul.mubr.bf16.gmra.mrb[0].mxu0 %v5683
        %v5762 = vpop.f32.mrb[0].mxu0
        %v5763 = vadd.f32 0.0, %v5762
        %v5764 = vpop.f32.mrb[0].mxu0
        %v5765 = vadd.f32 0.0, %v5764
        %v5766 = vpop.f32.mrb[0].mxu0
        %v5767 = vadd.f32 0.0, %v5766
        %v5768 = vpop.f32.mrb[0].mxu0
        %v5769 = vadd.f32 0.0, %v5768
        %5770 = vdwg.mxu0
        %5771 = vmatprep.subr.bf16.mxu0 %v1040
        %5772 = vmatpush1.bf16.msra.mxu0 %v1039
        %5773 = vmatprep.subr.bf16.mxu0 %v1048
        %5774 = vmatpush1.bf16.msra.mxu0 %v1047
        %5775 = vmatprep.subr.bf16.mxu0 %v1056
        %5776 = vmatpush1.bf16.msra.mxu0 %v1055
        %5777 = vmatprep.subr.bf16.mxu0 %v1064
        %5778 = vmatpush1.bf16.msra.mxu0 %v1063
        %5779 = vmatprep.subr.bf16.mxu0 %v1072
        %5780 = vmatpush1.bf16.msra.mxu0 %v1071
        %5781 = vmatprep.subr.bf16.mxu0 %v1080
        %5782 = vmatpush1.bf16.msra.mxu0 %v1079
        %5783 = vmatprep.subr.bf16.mxu0 %v1088
        %5784 = vmatpush1.bf16.msra.mxu0 %v1087
        %5785 = vmatprep.subr.bf16.mxu0 %v1096
        %5786 = vmatpush1.bf16.msra.mxu0 %v1095
        %5787 = vmatprep.subr.bf16.mxu0 %v1104
        %5788 = vmatpush1.bf16.msra.mxu0 %v1103
        %5789 = vmatprep.subr.bf16.mxu0 %v1112
        %5790 = vmatpush1.bf16.msra.mxu0 %v1111
        %5791 = vmatprep.subr.bf16.mxu0 %v1120
        %5792 = vmatpush1.bf16.msra.mxu0 %v1119
        %5793 = vmatprep.subr.bf16.mxu0 %v1128
        %5794 = vmatpush1.bf16.msra.mxu0 %v1127
        %5795 = vmatprep.subr.bf16.mxu0 %v1136
        %5796 = vmatpush1.bf16.msra.mxu0 %v1135
        %5797 = vmatprep.subr.bf16.mxu0 %v1144
        %5798 = vmatpush1.bf16.msra.mxu0 %v1143
        %5799 = vmatprep.subr.bf16.mxu0 %v1152
        %5800 = vmatpush1.bf16.msra.mxu0 %v1151
        %5801 = vmatprep.subr.bf16.mxu0 %v1160
        %5802 = vmatpush1.bf16.msra.mxu0 %v1159
        %5803 = vmatprep.mubr.bf16.mxu0 %v5684
        %5804 = vmatmul.mubr.bf16.gmra.mrb[0].mxu0 %v5683
        %v5805 = vpop.f32.mrb[0].mxu0
        %v5806 = vadd.f32 0.0, %v5805
        %v5807 = vpop.f32.mrb[0].mxu0
        %v5808 = vadd.f32 0.0, %v5807
        %v5809 = vpop.f32.mrb[0].mxu0
        %v5810 = vadd.f32 0.0, %v5809
        %v5811 = vpop.f32.mrb[0].mxu0
        %v5812 = vadd.f32 0.0, %v5811
        %5813 = vdwg.mxu0
        %5814 = vmatprep.subr.bf16.mxu0 %v1042
        %5815 = vmatpush1.bf16.msra.mxu0 %v1041
        %5816 = vmatprep.subr.bf16.mxu0 %v1050
        %5817 = vmatpush1.bf16.msra.mxu0 %v1049
        %5818 = vmatprep.subr.bf16.mxu0 %v1058
        %5819 = vmatpush1.bf16.msra.mxu0 %v1057
        %5820 = vmatprep.subr.bf16.mxu0 %v1066
        %5821 = vmatpush1.bf16.msra.mxu0 %v1065
        %5822 = vmatprep.subr.bf16.mxu0 %v1074
        %5823 = vmatpush1.bf16.msra.mxu0 %v1073
        %5824 = vmatprep.subr.bf16.mxu0 %v1082
        %5825 = vmatpush1.bf16.msra.mxu0 %v1081
        %5826 = vmatprep.subr.bf16.mxu0 %v1090
        %5827 = vmatpush1.bf16.msra.mxu0 %v1089
        %5828 = vmatprep.subr.bf16.mxu0 %v1098
        %5829 = vmatpush1.bf16.msra.mxu0 %v1097
        %5830 = vmatprep.subr.bf16.mxu0 %v1106
        %5831 = vmatpush1.bf16.msra.mxu0 %v1105
        %5832 = vmatprep.subr.bf16.mxu0 %v1114
        %5833 = vmatpush1.bf16.msra.mxu0 %v1113
        %5834 = vmatprep.subr.bf16.mxu0 %v1122
        %5835 = vmatpush1.bf16.msra.mxu0 %v1121
        %5836 = vmatprep.subr.bf16.mxu0 %v1130
        %5837 = vmatpush1.bf16.msra.mxu0 %v1129
        %5838 = vmatprep.subr.bf16.mxu0 %v1138
        %5839 = vmatpush1.bf16.msra.mxu0 %v1137
        %5840 = vmatprep.subr.bf16.mxu0 %v1146
        %5841 = vmatpush1.bf16.msra.mxu0 %v1145
        %5842 = vmatprep.subr.bf16.mxu0 %v1154
        %5843 = vmatpush1.bf16.msra.mxu0 %v1153
        %5844 = vmatprep.subr.bf16.mxu0 %v1162
        %5845 = vmatpush1.bf16.msra.mxu0 %v1161
        %5846 = vmatprep.mubr.bf16.mxu0 %v5684
        %5847 = vmatmul.mubr.bf16.gmra.mrb[0].mxu0 %v5683
        %v5848 = vpop.f32.mrb[0].mxu0
        %v5849 = vadd.f32 0.0, %v5848
        %v5850 = vpop.f32.mrb[0].mxu0
        %v5851 = vadd.f32 0.0, %v5850
        %v5852 = vpop.f32.mrb[0].mxu0
        %v5853 = vadd.f32 0.0, %v5852
        %v5854 = vpop.f32.mrb[0].mxu0
        %v5855 = vadd.f32 0.0, %v5854
        %5856 = vdwg.mxu0
        %v5857 = vadd.f32 %v5667, %v5720
        %v5858 = vadd.f32 %v5668, %v5722
        %v5859 = vadd.f32 %v5669, %v5763
        %v5860 = vadd.f32 %v5670, %v5765
        %v5861 = vadd.f32 %v5671, %v5806
        %v5862 = vadd.f32 %v5672, %v5808
        %v5863 = vadd.f32 %v5673, %v5849
        %v5864 = vadd.f32 %v5674, %v5851
        %v5865 = vadd.f32 %v5675, %v5724
        %v5866 = vadd.f32 %v5676, %v5726
        %v5867 = vadd.f32 %v5677, %v5767
        %v5868 = vadd.f32 %v5678, %v5769
        %v5869 = vadd.f32 %v5679, %v5810
        %v5870 = vadd.f32 %v5680, %v5812
        %v5871 = vadd.f32 %v5681, %v5853
        %v5872 = vadd.f32 %v5682, %v5855
        %v5873 = vmul.f32 %v5857, 0.5
        %v5874 = vmul.f32 %v5865, 0.5
        %v5875 = vtanh.pop %v5873
        %v5876 = vtanh.pop %v5874
        %v5877 = vmul.f32 %v5875, 0.5
        %v5878 = vmul.f32 %v5876, 0.5
        %v5879 = vadd.f32 %v5877, 0.5
        %v5880 = vadd.f32 %v5878, 0.5
        %v5881 = vmul.f32 %v5858, 0.5
        %v5882 = vmul.f32 %v5866, 0.5
        %v5883 = vtanh.pop %v5881
        %v5884 = vtanh.pop %v5882
        %v5885 = vmul.f32 %v5883, 0.5
        %v5886 = vmul.f32 %v5884, 0.5
        %v5887 = vadd.f32 %v5885, 0.5
        %v5888 = vadd.f32 %v5886, 0.5
        %v5889 = vtanh.pop %v5859
        %v5890 = vtanh.pop %v5867
        %v5891 = vmul.f32 %v5860, 0.5
        %v5892 = vmul.f32 %v5868, 0.5
        %v5893 = vtanh.pop %v5891
        %v5894 = vtanh.pop %v5892
        %v5895 = vmul.f32 %v5893, 0.5
        %v5896 = vmul.f32 %v5894, 0.5
        %v5897 = vadd.f32 %v5895, 0.5
        %v5898 = vadd.f32 %v5896, 0.5
        %v5899 = vmul.f32 %v5861, 0.5
        %v5900 = vmul.f32 %v5869, 0.5
        %v5901 = vtanh.pop %v5899
        %v5902 = vtanh.pop %v5900
        %v5903 = vmul.f32 %v5901, 0.5
        %v5904 = vmul.f32 %v5902, 0.5
        %v5905 = vadd.f32 %v5903, 0.5
        %v5906 = vadd.f32 %v5904, 0.5
        %v5907 = vmul.f32 %v5862, 0.5
        %v5908 = vmul.f32 %v5870, 0.5
        %v5909 = vtanh.pop %v5907
        %v5910 = vtanh.pop %v5908
        %v5911 = vmul.f32 %v5909, 0.5
        %v5912 = vmul.f32 %v5910, 0.5
        %v5913 = vadd.f32 %v5911, 0.5
        %v5914 = vadd.f32 %v5912, 0.5
        %v5915 = vtanh.pop %v5863
        %v5916 = vtanh.pop %v5871
        %v5917 = vmul.f32 %v5864, 0.5
        %v5918 = vmul.f32 %v5872, 0.5
        %v5919 = vtanh.pop %v5917
        %v5920 = vtanh.pop %v5918
        %v5921 = vmul.f32 %v5919, 0.5
        %v5922 = vmul.f32 %v5920, 0.5
        %v5923 = vadd.f32 %v5921, 0.5
        %v5924 = vadd.f32 %v5922, 0.5
        %v5925 = vmul.f32 %v5887, %v5636
        %v5926 = vmul.f32 %v5888, %v5637
        %v5927 = vmul.f32 %v5879, %v5889
        %v5928 = vmul.f32 %v5880, %v5890
        %v5929 = vadd.f32 %v5925, %v5927
        %v5930 = vadd.f32 %v5926, %v5928
        %v5931 = vmul.f32 %v5913, %v5642
        %v5932 = vmul.f32 %v5914, %v5643
        %v5933 = vmul.f32 %v5905, %v5915
        %v5934 = vmul.f32 %v5906, %v5916
        %v5935 = vadd.f32 %v5931, %v5933
        %v5936 = vadd.f32 %v5932, %v5934
        %v5937 = vtanh.pop %v5929
        %v5938 = vtanh.pop %v5930
        %v5939 = vmul.f32 %v5897, %v5937
        %v5940 = vmul.f32 %v5898, %v5938
        %v5941 = vtanh.pop %v5935
        %v5942 = vtanh.pop %v5936
        %v5943 = vmul.f32 %v5923, %v5941
        %v5944 = vmul.f32 %v5924, %v5942
        %s5945 = scalar_lea.vmem %s463, 240 [#allocation7]
        %5946 = vst [vmem:[%s5945] sm:$0xff] %v5939
        %5947 = vst [vmem:[%s5945 + $0x8] sm:$0xff] %v5940
        %5948 = vst [vmem:[%s469] sm:$0xff] %v5943
        %5949 = vst [vmem:[%s469 + $0x8] sm:$0xff] %v5944
        %5950 = vst [vmem:[#allocation2] sm:$0xff] %v5939
        %5951 = vst [vmem:[#allocation2 + $0x8] sm:$0xff] %v5940
        %5952 = vst [vmem:[#allocation3] sm:$0xff] %v5943
        %5953 = vst [vmem:[#allocation3 + $0x8] sm:$0xff] %v5944
        %5954 = vst [vmem:[#allocation4] sm:$0xff] %v5929
        %5955 = vst [vmem:[#allocation4 + $0x8] sm:$0xff] %v5930
        %5956 = vst [vmem:[#allocation5] sm:$0xff] %v5935
        %5957 = vst [vmem:[#allocation5 + $0x8] sm:$0xff] %v5936
        %s5958 = sand.u32 %s86, 1
        %s5959 = sand.u32 %s86, 1
        %s5960 = smul.addr %s5959, 256
        %s5961 = scalar_lea.vmem [#allocation7], %s5960
        %s5962 = sand.u32 %s116, 1
        %s5963 = sand.u32 %s116, 1
        %s5964 = smul.addr %s5963, 256
        %s5965 = scalar_lea.vmem [#allocation8], %s5964
        // Predicated region
        $region56: #{dual_computation_block_forward.2} parent=46 // pred_check
          %p5966 = pneg %p96
        $region57: #{dual_computation_block_forward.2} parent=46 // pred_check_branch
          %5968 = sbr.rel (%p5966) target = $region59
        $region58: #{dual_computation_block_forward.2} parent=46 // pred_region
          %s5969 = smul.u32 16, %s20
          %s5970 = smul.u32 2, %s19
          %s5971 = smul.addr %s5969, 4
          %s5972 = sadd.s32 %s5970, %s5971
          %s5973 = smul.addr %s5972, 8
          %s5974 = scalar_lea.vmem %s2, %s5973
          // Predicated region
          $region60: #{dual_computation_block_forward.2} parent=58 // pred_check
            _
          $region61: #{dual_computation_block_forward.2} parent=58 // pred_check_branch
            %5976 = sbr.rel (0) target = $region63
          $region62: #{dual_computation_block_forward.2} parent=58 // pred_region
            // Predicated region
            $region64: #{dual_computation_block_forward.2} parent=62 // pred_check
              _
            $region65: #{dual_computation_block_forward.2} parent=62 // pred_check_branch
              %5978 = sbr.rel (0) target = $region67
            $region66: #{dual_computation_block_forward.2} parent=62 // pred_region
              // Predicated region
              $region79: #{dual_computation_block_forward.2} parent=66 // pred_check
                _
              $region80: #{dual_computation_block_forward.2} parent=66 // pred_check_branch
                %6055 = sbr.rel (0) target = $region82
              $region81: #{dual_computation_block_forward.2} parent=66 // pred_region
                loop: start=0, step=1, limit=1
                $region83: #{dual_computation_block_forward.2} parent=81 // loop_pre_header
                  _
                $region84: #{dual_computation_block_forward.2} parent=81 // loop_header
                  %s6057 = sphi 0, %s6061
                  %p6058 = scmp.ge.s32.totalorder %s6057, 1
                  %s6062 = sphi %s5961, %s5961
                  %s6063 = sphi %s5974, %s5974
                $region85: #{dual_computation_block_forward.2} parent=81 // loop_header_branch
                  %6060 = sbr.rel (%p6058) target = $region89
                $region86: #{dual_computation_block_forward.2} parent=81 // loop_body
                  %v6064 = vld [vmem:[%s6062] sm:$0xff]
                  %6065 = vst [vmem:[%s6063] sm:$0xff] %v6064
                  %v6066 = vld [vmem:[%s6062 + $0x8] sm:$0xff]
                  %6067 = vst [vmem:[%s6063 + $0x8] sm:$0xff] %v6066
                  %v6068 = vld [vmem:[%s6062 + $0x10] sm:$0xff]
                  %6069 = vst [vmem:[%s6063 + $0x20] sm:$0xff] %v6068
                  %v6070 = vld [vmem:[%s6062 + $0x18] sm:$0xff]
                  %6071 = vst [vmem:[%s6063 + $0x28] sm:$0xff] %v6070
                  %v6072 = vld [vmem:[%s6062 + $0x20] sm:$0xff]
                  %6073 = vst [vmem:[%s6063 + $0x40] sm:$0xff] %v6072
                  %v6074 = vld [vmem:[%s6062 + $0x28] sm:$0xff]
                  %6075 = vst [vmem:[%s6063 + $0x48] sm:$0xff] %v6074
                  %v6076 = vld [vmem:[%s6062 + $0x30] sm:$0xff]
                  %6077 = vst [vmem:[%s6063 + $0x60] sm:$0xff] %v6076
                  %v6078 = vld [vmem:[%s6062 + $0x38] sm:$0xff]
                  %6079 = vst [vmem:[%s6063 + $0x68] sm:$0xff] %v6078
                  %v6080 = vld [vmem:[%s6062 + $0x40] sm:$0xff]
                  %6081 = vst [vmem:[%s6063 + $0x80] sm:$0xff] %v6080
                  %v6082 = vld [vmem:[%s6062 + $0x48] sm:$0xff]
                  %6083 = vst [vmem:[%s6063 + $0x88] sm:$0xff] %v6082
                  %v6084 = vld [vmem:[%s6062 + $0x50] sm:$0xff]
                  %6085 = vst [vmem:[%s6063 + $0xa0] sm:$0xff] %v6084
                  %v6086 = vld [vmem:[%s6062 + $0x58] sm:$0xff]
                  %6087 = vst [vmem:[%s6063 + $0xa8] sm:$0xff] %v6086
                  %v6088 = vld [vmem:[%s6062 + $0x60] sm:$0xff]
                  %6089 = vst [vmem:[%s6063 + $0xc0] sm:$0xff] %v6088
                  %v6090 = vld [vmem:[%s6062 + $0x68] sm:$0xff]
                  %6091 = vst [vmem:[%s6063 + $0xc8] sm:$0xff] %v6090
                  %v6092 = vld [vmem:[%s6062 + $0x70] sm:$0xff]
                  %6093 = vst [vmem:[%s6063 + $0xe0] sm:$0xff] %v6092
                  %v6094 = vld [vmem:[%s6062 + $0x78] sm:$0xff]
                  %6095 = vst [vmem:[%s6063 + $0xe8] sm:$0xff] %v6094
                  %v6096 = vld [vmem:[%s6062 + $0x80] sm:$0xff]
                  %6097 = vst [vmem:[%s6063 + $0x100] sm:$0xff] %v6096
                  %v6098 = vld [vmem:[%s6062 + $0x88] sm:$0xff]
                  %6099 = vst [vmem:[%s6063 + $0x108] sm:$0xff] %v6098
                  %v6100 = vld [vmem:[%s6062 + $0x90] sm:$0xff]
                  %6101 = vst [vmem:[%s6063 + $0x120] sm:$0xff] %v6100
                  %v6102 = vld [vmem:[%s6062 + $0x98] sm:$0xff]
                  %6103 = vst [vmem:[%s6063 + $0x128] sm:$0xff] %v6102
                  %v6104 = vld [vmem:[%s6062 + $0xa0] sm:$0xff]
                  %6105 = vst [vmem:[%s6063 + $0x140] sm:$0xff] %v6104
                  %v6106 = vld [vmem:[%s6062 + $0xa8] sm:$0xff]
                  %6107 = vst [vmem:[%s6063 + $0x148] sm:$0xff] %v6106
                  %v6108 = vld [vmem:[%s6062 + $0xb0] sm:$0xff]
                  %6109 = vst [vmem:[%s6063 + $0x160] sm:$0xff] %v6108
                  %v6110 = vld [vmem:[%s6062 + $0xb8] sm:$0xff]
                  %6111 = vst [vmem:[%s6063 + $0x168] sm:$0xff] %v6110
                  %v6112 = vld [vmem:[%s6062 + $0xc0] sm:$0xff]
                  %6113 = vst [vmem:[%s6063 + $0x180] sm:$0xff] %v6112
                  %v6114 = vld [vmem:[%s6062 + $0xc8] sm:$0xff]
                  %6115 = vst [vmem:[%s6063 + $0x188] sm:$0xff] %v6114
                  %v6116 = vld [vmem:[%s6062 + $0xd0] sm:$0xff]
                  %6117 = vst [vmem:[%s6063 + $0x1a0] sm:$0xff] %v6116
                  %v6118 = vld [vmem:[%s6062 + $0xd8] sm:$0xff]
                  %6119 = vst [vmem:[%s6063 + $0x1a8] sm:$0xff] %v6118
                  %v6120 = vld [vmem:[%s6062 + $0xe0] sm:$0xff]
                  %6121 = vst [vmem:[%s6063 + $0x1c0] sm:$0xff] %v6120
                  %v6122 = vld [vmem:[%s6062 + $0xe8] sm:$0xff]
                  %6123 = vst [vmem:[%s6063 + $0x1c8] sm:$0xff] %v6122
                  %v6124 = vld [vmem:[%s6062 + $0xf0] sm:$0xff]
                  %6125 = vst [vmem:[%s6063 + $0x1e0] sm:$0xff] %v6124
                  %v6126 = vld [vmem:[%s6062 + $0xf8] sm:$0xff]
                  %6127 = vst [vmem:[%s6063 + $0x1e8] sm:$0xff] %v6126
                $region87: #{dual_computation_block_forward.2} parent=81 // loop_footer
                  %s6061 = sadd.s32 1, %s6057
                $region88: #{dual_computation_block_forward.2} parent=81 // loop_footer_branch
                  %6056 = sbr.rel target = $region84
                $region89: #{dual_computation_block_forward.2} parent=81 // loop_exit
                  _
              $region82: #{dual_computation_block_forward.2} parent=66 // pred_fallthru
                _
              // Predicated region
              $region90: #{dual_computation_block_forward.2} parent=66 // pred_check
                _
              $region91: #{dual_computation_block_forward.2} parent=66 // pred_check_branch
                %6129 = sbr.rel target = $region93
              $region92: #{dual_computation_block_forward.2} parent=66 // pred_region
                _
              $region93: #{dual_computation_block_forward.2} parent=66 // pred_fallthru
                _
            $region67: #{dual_computation_block_forward.2} parent=62 // pred_fallthru
              _
            // Predicated region
            $region68: #{dual_computation_block_forward.2} parent=62 // pred_check
              _
            $region69: #{dual_computation_block_forward.2} parent=62 // pred_check_branch
              %5980 = sbr.rel target = $region71
            $region70: #{dual_computation_block_forward.2} parent=62 // pred_region
              loop: start=0, step=1, limit=1
              $region72: #{dual_computation_block_forward.2} parent=70 // loop_pre_header
                _
              $region73: #{dual_computation_block_forward.2} parent=70 // loop_header
                %s5983 = sphi 0, %s5987
                %p5984 = scmp.ge.s32.totalorder %s5983, 1
                %s5988 = sphi %s5961, %s5961
                %s5989 = sphi %s5974, %s5974
              $region74: #{dual_computation_block_forward.2} parent=70 // loop_header_branch
                %5986 = sbr.rel (%p5984) target = $region78
              $region75: #{dual_computation_block_forward.2} parent=70 // loop_body
                %v5990 = vld [vmem:[%s5988] sm:$0xff]
                %5991 = vst [vmem:[%s5989] sm:$0xff] %v5990
                %v5992 = vld [vmem:[%s5988 + $0x8] sm:$0xff]
                %5993 = vst [vmem:[%s5989 + $0x8] sm:$0xff] %v5992
                %v5994 = vld [vmem:[%s5988 + $0x10] sm:$0xff]
                %5995 = vst [vmem:[%s5989 + $0x20] sm:$0xff] %v5994
                %v5996 = vld [vmem:[%s5988 + $0x18] sm:$0xff]
                %5997 = vst [vmem:[%s5989 + $0x28] sm:$0xff] %v5996
                %v5998 = vld [vmem:[%s5988 + $0x20] sm:$0xff]
                %5999 = vst [vmem:[%s5989 + $0x40] sm:$0xff] %v5998
                %v6000 = vld [vmem:[%s5988 + $0x28] sm:$0xff]
                %6001 = vst [vmem:[%s5989 + $0x48] sm:$0xff] %v6000
                %v6002 = vld [vmem:[%s5988 + $0x30] sm:$0xff]
                %6003 = vst [vmem:[%s5989 + $0x60] sm:$0xff] %v6002
                %v6004 = vld [vmem:[%s5988 + $0x38] sm:$0xff]
                %6005 = vst [vmem:[%s5989 + $0x68] sm:$0xff] %v6004
                %v6006 = vld [vmem:[%s5988 + $0x40] sm:$0xff]
                %6007 = vst [vmem:[%s5989 + $0x80] sm:$0xff] %v6006
                %v6008 = vld [vmem:[%s5988 + $0x48] sm:$0xff]
                %6009 = vst [vmem:[%s5989 + $0x88] sm:$0xff] %v6008
                %v6010 = vld [vmem:[%s5988 + $0x50] sm:$0xff]
                %6011 = vst [vmem:[%s5989 + $0xa0] sm:$0xff] %v6010
                %v6012 = vld [vmem:[%s5988 + $0x58] sm:$0xff]
                %6013 = vst [vmem:[%s5989 + $0xa8] sm:$0xff] %v6012
                %v6014 = vld [vmem:[%s5988 + $0x60] sm:$0xff]
                %6015 = vst [vmem:[%s5989 + $0xc0] sm:$0xff] %v6014
                %v6016 = vld [vmem:[%s5988 + $0x68] sm:$0xff]
                %6017 = vst [vmem:[%s5989 + $0xc8] sm:$0xff] %v6016
                %v6018 = vld [vmem:[%s5988 + $0x70] sm:$0xff]
                %6019 = vst [vmem:[%s5989 + $0xe0] sm:$0xff] %v6018
                %v6020 = vld [vmem:[%s5988 + $0x78] sm:$0xff]
                %6021 = vst [vmem:[%s5989 + $0xe8] sm:$0xff] %v6020
                %v6022 = vld [vmem:[%s5988 + $0x80] sm:$0xff]
                %6023 = vst [vmem:[%s5989 + $0x100] sm:$0xff] %v6022
                %v6024 = vld [vmem:[%s5988 + $0x88] sm:$0xff]
                %6025 = vst [vmem:[%s5989 + $0x108] sm:$0xff] %v6024
                %v6026 = vld [vmem:[%s5988 + $0x90] sm:$0xff]
                %6027 = vst [vmem:[%s5989 + $0x120] sm:$0xff] %v6026
                %v6028 = vld [vmem:[%s5988 + $0x98] sm:$0xff]
                %6029 = vst [vmem:[%s5989 + $0x128] sm:$0xff] %v6028
                %v6030 = vld [vmem:[%s5988 + $0xa0] sm:$0xff]
                %6031 = vst [vmem:[%s5989 + $0x140] sm:$0xff] %v6030
                %v6032 = vld [vmem:[%s5988 + $0xa8] sm:$0xff]
                %6033 = vst [vmem:[%s5989 + $0x148] sm:$0xff] %v6032
                %v6034 = vld [vmem:[%s5988 + $0xb0] sm:$0xff]
                %6035 = vst [vmem:[%s5989 + $0x160] sm:$0xff] %v6034
                %v6036 = vld [vmem:[%s5988 + $0xb8] sm:$0xff]
                %6037 = vst [vmem:[%s5989 + $0x168] sm:$0xff] %v6036
                %v6038 = vld [vmem:[%s5988 + $0xc0] sm:$0xff]
                %6039 = vst [vmem:[%s5989 + $0x180] sm:$0xff] %v6038
                %v6040 = vld [vmem:[%s5988 + $0xc8] sm:$0xff]
                %6041 = vst [vmem:[%s5989 + $0x188] sm:$0xff] %v6040
                %v6042 = vld [vmem:[%s5988 + $0xd0] sm:$0xff]
                %6043 = vst [vmem:[%s5989 + $0x1a0] sm:$0xff] %v6042
                %v6044 = vld [vmem:[%s5988 + $0xd8] sm:$0xff]
                %6045 = vst [vmem:[%s5989 + $0x1a8] sm:$0xff] %v6044
                %v6046 = vld [vmem:[%s5988 + $0xe0] sm:$0xff]
                %6047 = vst [vmem:[%s5989 + $0x1c0] sm:$0xff] %v6046
                %v6048 = vld [vmem:[%s5988 + $0xe8] sm:$0xff]
                %6049 = vst [vmem:[%s5989 + $0x1c8] sm:$0xff] %v6048
                %v6050 = vld [vmem:[%s5988 + $0xf0] sm:$0xff]
                %6051 = vst [vmem:[%s5989 + $0x1e0] sm:$0xff] %v6050
                %v6052 = vld [vmem:[%s5988 + $0xf8] sm:$0xff]
                %6053 = vst [vmem:[%s5989 + $0x1e8] sm:$0xff] %v6052
              $region76: #{dual_computation_block_forward.2} parent=70 // loop_footer
                %s5987 = sadd.s32 1, %s5983
              $region77: #{dual_computation_block_forward.2} parent=70 // loop_footer_branch
                %5982 = sbr.rel target = $region73
              $region78: #{dual_computation_block_forward.2} parent=70 // loop_exit
                _
            $region71: #{dual_computation_block_forward.2} parent=62 // pred_fallthru
              _
          $region63: #{dual_computation_block_forward.2} parent=58 // pred_fallthru
            _
          %6130 = vnop
        $region59: #{dual_computation_block_forward.2} parent=46 // pred_fallthru
          _
        // Predicated region
        $region94: #{dual_computation_block_forward.2} parent=46 // pred_check
          %p6131 = pneg %p126
        $region95: #{dual_computation_block_forward.2} parent=46 // pred_check_branch
          %6133 = sbr.rel (%p6131) target = $region97
        $region96: #{dual_computation_block_forward.2} parent=46 // pred_region
          %s6134 = ssub.s32 0, %s20
          %s6135 = smul.u32 16, %s6134
          %s6136 = smul.u32 2, %s19
          %s6137 = smul.addr %s6135, 4
          %s6138 = sadd.s32 %s6136, %s6137
          %s6139 = smul.addr %s6138, 8
          %s6140 = scalar_lea.vmem %s3, %s6139
          // Predicated region
          $region98: #{dual_computation_block_forward.2} parent=96 // pred_check
            _
          $region99: #{dual_computation_block_forward.2} parent=96 // pred_check_branch
            %6142 = sbr.rel (0) target = $region101
          $region100: #{dual_computation_block_forward.2} parent=96 // pred_region
            // Predicated region
            $region102: #{dual_computation_block_forward.2} parent=100 // pred_check
              _
            $region103: #{dual_computation_block_forward.2} parent=100 // pred_check_branch
              %6144 = sbr.rel (0) target = $region105
            $region104: #{dual_computation_block_forward.2} parent=100 // pred_region
              // Predicated region
              $region117: #{dual_computation_block_forward.2} parent=104 // pred_check
                _
              $region118: #{dual_computation_block_forward.2} parent=104 // pred_check_branch
                %6221 = sbr.rel (0) target = $region120
              $region119: #{dual_computation_block_forward.2} parent=104 // pred_region
                loop: start=0, step=1, limit=1
                $region121: #{dual_computation_block_forward.2} parent=119 // loop_pre_header
                  _
                $region122: #{dual_computation_block_forward.2} parent=119 // loop_header
                  %s6223 = sphi 0, %s6227
                  %p6224 = scmp.ge.s32.totalorder %s6223, 1
                  %s6228 = sphi %s5965, %s5965
                  %s6229 = sphi %s6140, %s6140
                $region123: #{dual_computation_block_forward.2} parent=119 // loop_header_branch
                  %6226 = sbr.rel (%p6224) target = $region127
                $region124: #{dual_computation_block_forward.2} parent=119 // loop_body
                  %v6230 = vld [vmem:[%s6228] sm:$0xff]
                  %6231 = vst [vmem:[%s6229] sm:$0xff] %v6230
                  %v6232 = vld [vmem:[%s6228 + $0x8] sm:$0xff]
                  %6233 = vst [vmem:[%s6229 + $0x8] sm:$0xff] %v6232
                  %v6234 = vld [vmem:[%s6228 + $0x10] sm:$0xff]
                  %6235 = vst [vmem:[%s6229 + $0x20] sm:$0xff] %v6234
                  %v6236 = vld [vmem:[%s6228 + $0x18] sm:$0xff]
                  %6237 = vst [vmem:[%s6229 + $0x28] sm:$0xff] %v6236
                  %v6238 = vld [vmem:[%s6228 + $0x20] sm:$0xff]
                  %6239 = vst [vmem:[%s6229 + $0x40] sm:$0xff] %v6238
                  %v6240 = vld [vmem:[%s6228 + $0x28] sm:$0xff]
                  %6241 = vst [vmem:[%s6229 + $0x48] sm:$0xff] %v6240
                  %v6242 = vld [vmem:[%s6228 + $0x30] sm:$0xff]
                  %6243 = vst [vmem:[%s6229 + $0x60] sm:$0xff] %v6242
                  %v6244 = vld [vmem:[%s6228 + $0x38] sm:$0xff]
                  %6245 = vst [vmem:[%s6229 + $0x68] sm:$0xff] %v6244
                  %v6246 = vld [vmem:[%s6228 + $0x40] sm:$0xff]
                  %6247 = vst [vmem:[%s6229 + $0x80] sm:$0xff] %v6246
                  %v6248 = vld [vmem:[%s6228 + $0x48] sm:$0xff]
                  %6249 = vst [vmem:[%s6229 + $0x88] sm:$0xff] %v6248
                  %v6250 = vld [vmem:[%s6228 + $0x50] sm:$0xff]
                  %6251 = vst [vmem:[%s6229 + $0xa0] sm:$0xff] %v6250
                  %v6252 = vld [vmem:[%s6228 + $0x58] sm:$0xff]
                  %6253 = vst [vmem:[%s6229 + $0xa8] sm:$0xff] %v6252
                  %v6254 = vld [vmem:[%s6228 + $0x60] sm:$0xff]
                  %6255 = vst [vmem:[%s6229 + $0xc0] sm:$0xff] %v6254
                  %v6256 = vld [vmem:[%s6228 + $0x68] sm:$0xff]
                  %6257 = vst [vmem:[%s6229 + $0xc8] sm:$0xff] %v6256
                  %v6258 = vld [vmem:[%s6228 + $0x70] sm:$0xff]
                  %6259 = vst [vmem:[%s6229 + $0xe0] sm:$0xff] %v6258
                  %v6260 = vld [vmem:[%s6228 + $0x78] sm:$0xff]
                  %6261 = vst [vmem:[%s6229 + $0xe8] sm:$0xff] %v6260
                  %v6262 = vld [vmem:[%s6228 + $0x80] sm:$0xff]
                  %6263 = vst [vmem:[%s6229 + $0x100] sm:$0xff] %v6262
                  %v6264 = vld [vmem:[%s6228 + $0x88] sm:$0xff]
                  %6265 = vst [vmem:[%s6229 + $0x108] sm:$0xff] %v6264
                  %v6266 = vld [vmem:[%s6228 + $0x90] sm:$0xff]
                  %6267 = vst [vmem:[%s6229 + $0x120] sm:$0xff] %v6266
                  %v6268 = vld [vmem:[%s6228 + $0x98] sm:$0xff]
                  %6269 = vst [vmem:[%s6229 + $0x128] sm:$0xff] %v6268
                  %v6270 = vld [vmem:[%s6228 + $0xa0] sm:$0xff]
                  %6271 = vst [vmem:[%s6229 + $0x140] sm:$0xff] %v6270
                  %v6272 = vld [vmem:[%s6228 + $0xa8] sm:$0xff]
                  %6273 = vst [vmem:[%s6229 + $0x148] sm:$0xff] %v6272
                  %v6274 = vld [vmem:[%s6228 + $0xb0] sm:$0xff]
                  %6275 = vst [vmem:[%s6229 + $0x160] sm:$0xff] %v6274
                  %v6276 = vld [vmem:[%s6228 + $0xb8] sm:$0xff]
                  %6277 = vst [vmem:[%s6229 + $0x168] sm:$0xff] %v6276
                  %v6278 = vld [vmem:[%s6228 + $0xc0] sm:$0xff]
                  %6279 = vst [vmem:[%s6229 + $0x180] sm:$0xff] %v6278
                  %v6280 = vld [vmem:[%s6228 + $0xc8] sm:$0xff]
                  %6281 = vst [vmem:[%s6229 + $0x188] sm:$0xff] %v6280
                  %v6282 = vld [vmem:[%s6228 + $0xd0] sm:$0xff]
                  %6283 = vst [vmem:[%s6229 + $0x1a0] sm:$0xff] %v6282
                  %v6284 = vld [vmem:[%s6228 + $0xd8] sm:$0xff]
                  %6285 = vst [vmem:[%s6229 + $0x1a8] sm:$0xff] %v6284
                  %v6286 = vld [vmem:[%s6228 + $0xe0] sm:$0xff]
                  %6287 = vst [vmem:[%s6229 + $0x1c0] sm:$0xff] %v6286
                  %v6288 = vld [vmem:[%s6228 + $0xe8] sm:$0xff]
                  %6289 = vst [vmem:[%s6229 + $0x1c8] sm:$0xff] %v6288
                  %v6290 = vld [vmem:[%s6228 + $0xf0] sm:$0xff]
                  %6291 = vst [vmem:[%s6229 + $0x1e0] sm:$0xff] %v6290
                  %v6292 = vld [vmem:[%s6228 + $0xf8] sm:$0xff]
                  %6293 = vst [vmem:[%s6229 + $0x1e8] sm:$0xff] %v6292
                $region125: #{dual_computation_block_forward.2} parent=119 // loop_footer
                  %s6227 = sadd.s32 1, %s6223
                $region126: #{dual_computation_block_forward.2} parent=119 // loop_footer_branch
                  %6222 = sbr.rel target = $region122
                $region127: #{dual_computation_block_forward.2} parent=119 // loop_exit
                  _
              $region120: #{dual_computation_block_forward.2} parent=104 // pred_fallthru
                _
              // Predicated region
              $region128: #{dual_computation_block_forward.2} parent=104 // pred_check
                _
              $region129: #{dual_computation_block_forward.2} parent=104 // pred_check_branch
                %6295 = sbr.rel target = $region131
              $region130: #{dual_computation_block_forward.2} parent=104 // pred_region
                _
              $region131: #{dual_computation_block_forward.2} parent=104 // pred_fallthru
                _
            $region105: #{dual_computation_block_forward.2} parent=100 // pred_fallthru
              _
            // Predicated region
            $region106: #{dual_computation_block_forward.2} parent=100 // pred_check
              _
            $region107: #{dual_computation_block_forward.2} parent=100 // pred_check_branch
              %6146 = sbr.rel target = $region109
            $region108: #{dual_computation_block_forward.2} parent=100 // pred_region
              loop: start=0, step=1, limit=1
              $region110: #{dual_computation_block_forward.2} parent=108 // loop_pre_header
                _
              $region111: #{dual_computation_block_forward.2} parent=108 // loop_header
                %s6149 = sphi 0, %s6153
                %p6150 = scmp.ge.s32.totalorder %s6149, 1
                %s6154 = sphi %s5965, %s5965
                %s6155 = sphi %s6140, %s6140
              $region112: #{dual_computation_block_forward.2} parent=108 // loop_header_branch
                %6152 = sbr.rel (%p6150) target = $region116
              $region113: #{dual_computation_block_forward.2} parent=108 // loop_body
                %v6156 = vld [vmem:[%s6154] sm:$0xff]
                %6157 = vst [vmem:[%s6155] sm:$0xff] %v6156
                %v6158 = vld [vmem:[%s6154 + $0x8] sm:$0xff]
                %6159 = vst [vmem:[%s6155 + $0x8] sm:$0xff] %v6158
                %v6160 = vld [vmem:[%s6154 + $0x10] sm:$0xff]
                %6161 = vst [vmem:[%s6155 + $0x20] sm:$0xff] %v6160
                %v6162 = vld [vmem:[%s6154 + $0x18] sm:$0xff]
                %6163 = vst [vmem:[%s6155 + $0x28] sm:$0xff] %v6162
                %v6164 = vld [vmem:[%s6154 + $0x20] sm:$0xff]
                %6165 = vst [vmem:[%s6155 + $0x40] sm:$0xff] %v6164
                %v6166 = vld [vmem:[%s6154 + $0x28] sm:$0xff]
                %6167 = vst [vmem:[%s6155 + $0x48] sm:$0xff] %v6166
                %v6168 = vld [vmem:[%s6154 + $0x30] sm:$0xff]
                %6169 = vst [vmem:[%s6155 + $0x60] sm:$0xff] %v6168
                %v6170 = vld [vmem:[%s6154 + $0x38] sm:$0xff]
                %6171 = vst [vmem:[%s6155 + $0x68] sm:$0xff] %v6170
                %v6172 = vld [vmem:[%s6154 + $0x40] sm:$0xff]
                %6173 = vst [vmem:[%s6155 + $0x80] sm:$0xff] %v6172
                %v6174 = vld [vmem:[%s6154 + $0x48] sm:$0xff]
                %6175 = vst [vmem:[%s6155 + $0x88] sm:$0xff] %v6174
                %v6176 = vld [vmem:[%s6154 + $0x50] sm:$0xff]
                %6177 = vst [vmem:[%s6155 + $0xa0] sm:$0xff] %v6176
                %v6178 = vld [vmem:[%s6154 + $0x58] sm:$0xff]
                %6179 = vst [vmem:[%s6155 + $0xa8] sm:$0xff] %v6178
                %v6180 = vld [vmem:[%s6154 + $0x60] sm:$0xff]
                %6181 = vst [vmem:[%s6155 + $0xc0] sm:$0xff] %v6180
                %v6182 = vld [vmem:[%s6154 + $0x68] sm:$0xff]
                %6183 = vst [vmem:[%s6155 + $0xc8] sm:$0xff] %v6182
                %v6184 = vld [vmem:[%s6154 + $0x70] sm:$0xff]
                %6185 = vst [vmem:[%s6155 + $0xe0] sm:$0xff] %v6184
                %v6186 = vld [vmem:[%s6154 + $0x78] sm:$0xff]
                %6187 = vst [vmem:[%s6155 + $0xe8] sm:$0xff] %v6186
                %v6188 = vld [vmem:[%s6154 + $0x80] sm:$0xff]
                %6189 = vst [vmem:[%s6155 + $0x100] sm:$0xff] %v6188
                %v6190 = vld [vmem:[%s6154 + $0x88] sm:$0xff]
                %6191 = vst [vmem:[%s6155 + $0x108] sm:$0xff] %v6190
                %v6192 = vld [vmem:[%s6154 + $0x90] sm:$0xff]
                %6193 = vst [vmem:[%s6155 + $0x120] sm:$0xff] %v6192
                %v6194 = vld [vmem:[%s6154 + $0x98] sm:$0xff]
                %6195 = vst [vmem:[%s6155 + $0x128] sm:$0xff] %v6194
                %v6196 = vld [vmem:[%s6154 + $0xa0] sm:$0xff]
                %6197 = vst [vmem:[%s6155 + $0x140] sm:$0xff] %v6196
                %v6198 = vld [vmem:[%s6154 + $0xa8] sm:$0xff]
                %6199 = vst [vmem:[%s6155 + $0x148] sm:$0xff] %v6198
                %v6200 = vld [vmem:[%s6154 + $0xb0] sm:$0xff]
                %6201 = vst [vmem:[%s6155 + $0x160] sm:$0xff] %v6200
                %v6202 = vld [vmem:[%s6154 + $0xb8] sm:$0xff]
                %6203 = vst [vmem:[%s6155 + $0x168] sm:$0xff] %v6202
                %v6204 = vld [vmem:[%s6154 + $0xc0] sm:$0xff]
                %6205 = vst [vmem:[%s6155 + $0x180] sm:$0xff] %v6204
                %v6206 = vld [vmem:[%s6154 + $0xc8] sm:$0xff]
                %6207 = vst [vmem:[%s6155 + $0x188] sm:$0xff] %v6206
                %v6208 = vld [vmem:[%s6154 + $0xd0] sm:$0xff]
                %6209 = vst [vmem:[%s6155 + $0x1a0] sm:$0xff] %v6208
                %v6210 = vld [vmem:[%s6154 + $0xd8] sm:$0xff]
                %6211 = vst [vmem:[%s6155 + $0x1a8] sm:$0xff] %v6210
                %v6212 = vld [vmem:[%s6154 + $0xe0] sm:$0xff]
                %6213 = vst [vmem:[%s6155 + $0x1c0] sm:$0xff] %v6212
                %v6214 = vld [vmem:[%s6154 + $0xe8] sm:$0xff]
                %6215 = vst [vmem:[%s6155 + $0x1c8] sm:$0xff] %v6214
                %v6216 = vld [vmem:[%s6154 + $0xf0] sm:$0xff]
                %6217 = vst [vmem:[%s6155 + $0x1e0] sm:$0xff] %v6216
                %v6218 = vld [vmem:[%s6154 + $0xf8] sm:$0xff]
                %6219 = vst [vmem:[%s6155 + $0x1e8] sm:$0xff] %v6218
              $region114: #{dual_computation_block_forward.2} parent=108 // loop_footer
                %s6153 = sadd.s32 1, %s6149
              $region115: #{dual_computation_block_forward.2} parent=108 // loop_footer_branch
                %6148 = sbr.rel target = $region111
              $region116: #{dual_computation_block_forward.2} parent=108 // loop_exit
                _
            $region109: #{dual_computation_block_forward.2} parent=100 // pred_fallthru
              _
          $region101: #{dual_computation_block_forward.2} parent=96 // pred_fallthru
            _
          %6296 = vnop
        $region97: #{dual_computation_block_forward.2} parent=46 // pred_fallthru
          _
      $region47: #{dual_computation_block_forward.2} parent=5 // pred_fallthru
        _
      %p6297 = scmp.le.s32.totalorder 2, %s10
      // Predicated region
      $region132: #{dual_computation_block_forward.2} parent=5 // pred_check
        %p6298 = pneg %p6297
      $region133: #{dual_computation_block_forward.2} parent=5 // pred_check_branch
        %6300 = sbr.rel (%p6298) target = $region135
      $region134: #{dual_computation_block_forward.2} parent=5 // pred_region
        %s6301 = ssub.s32 %s10, 2
        // Predicated region
        $region136: #{dual_computation_block_forward.2} parent=134 // pred_check
          %p6302 = pneg %p102
        $region137: #{dual_computation_block_forward.2} parent=134 // pred_check_branch
          %6304 = sbr.rel (%p6302) target = $region139
        $region138: #{dual_computation_block_forward.2} parent=134 // pred_region
          %s6305 = sand.u32 %s87, 1
          %s6306 = sand.u32 %s87, 1
          %s6307 = smul.addr %s6306, 256
          %s6308 = scalar_lea.vmem [#allocation7], %s6307
        $region139: #{dual_computation_block_forward.2} parent=134 // pred_fallthru
          _
        // Predicated region
        $region140: #{dual_computation_block_forward.2} parent=134 // pred_check
          %p6309 = pneg %p132
        $region141: #{dual_computation_block_forward.2} parent=134 // pred_check_branch
          %6311 = sbr.rel (%p6309) target = $region143
        $region142: #{dual_computation_block_forward.2} parent=134 // pred_region
          %s6312 = sand.u32 %s117, 1
          %s6313 = sand.u32 %s117, 1
          %s6314 = smul.addr %s6313, 256
          %s6315 = scalar_lea.vmem [#allocation8], %s6314
        $region143: #{dual_computation_block_forward.2} parent=134 // pred_fallthru
          _
      $region135: #{dual_computation_block_forward.2} parent=5 // pred_fallthru
        _
    $region6: #{dual_computation_block_forward.2} parent=1 // loop_footer
      %s14 = sadd.s32 1, %s10
    $region7: #{dual_computation_block_forward.2} parent=1 // loop_footer_branch
      %9 = sbr.rel target = $region3
    $region8: #{dual_computation_block_forward.2} parent=1 // loop_exit
      _

</llo_original>
